<compile_context>
chip_gen: v7x
topology: tpu7x:2x2x1
jax: 0.10.0
libtpu: 0.0.40
codegen_flags: <defaults>
</compile_context>

<pallas_src>
import functools
import math

import jax
import jax.numpy as jnp
from jax import lax
from jax.experimental import pallas as pl
from jax.experimental.pallas import tpu as pltpu


# ------------------------- model hyper-parameters -------------------------

B = 2             # batch
L = 16            # input sequence length
D = 4             # target_dim (channels of the series)
C_ENC = 32        # encoder channels
E_LAT = 32        # codebook embedding dim
NUM_CODEBOOK = 16
SOS_TOKEN = NUM_CODEBOOK
PKEEP = 0.5
N_EMBD = 128      # transformer n_embed (scaled down from 256)
N_HEAD = 4
N_LAYER = 2       # e_layers
MLP_HIDDEN = 4 * N_EMBD
MAX_POS = 64
HEAD_PAD = 128    # vocab (16) padded to 128 lanes for a dense logits store


# --------------------- fused encoder + VQ Pallas kernel --------------------

def _encode_vq_kernel(patches_ref, w_enc_ref, b_enc_ref, w_in_ref, b_in_ref,
                      w_q_ref, b_q_ref, cb_ref, idx_ref):
    # encoder conv (as matmul) -> input_encoder 1x1 conv + ReLU -> quant_conv
    h = jnp.dot(patches_ref[...], w_enc_ref[...],
                preferred_element_type=jnp.float32) + b_enc_ref[...]
    h = jnp.dot(h, w_in_ref[...],
                preferred_element_type=jnp.float32) + b_in_ref[...]
    h = jnp.maximum(h, 0.0)
    z = jnp.dot(h, w_q_ref[...],
                preferred_element_type=jnp.float32) + b_q_ref[...]   # (N, E)
    # vector-quantizer: squared distances + first-argmin (f32 for stable ties)
    cb = cb_ref[...]                                                  # (K, E)
    zz = jnp.sum(z * z, axis=1, keepdims=True)                        # (N, 1)
    cc = jnp.sum(cb * cb, axis=1)[None, :]                            # (1, K)
    zc = lax.dot_general(z, cb, (((1,), (1,)), ((), ())),
                         preferred_element_type=jnp.float32)          # (N, K)
    d = zz - 2.0 * zc + cc
    dmin = jnp.min(d, axis=1, keepdims=True)
    K = d.shape[1]
    iota = lax.broadcasted_iota(jnp.int32, d.shape, 1)
    idx = jnp.min(jnp.where(d <= dmin, iota, K), axis=1, keepdims=True)
    # lane-dense int32 store (index broadcast across 128 lanes)
    idx_ref[...] = jnp.broadcast_to(idx.astype(jnp.int32), idx_ref.shape)


def encode_to_z(params, x):
    """x: (B, L, D) channels-last -> codebook indices (B, L//2) int32."""
    b, l, d = x.shape
    lp = l // 2
    # im2col for Conv1d(k=3, stride=2, pad=1): a couple of cheap XLA ops.
    xp = jnp.pad(x, ((0, 0), (1, 1), (0, 0)))
    patches = jnp.concatenate(
        [xp[:, 0:l:2, :], xp[:, 1:l + 1:2, :], xp[:, 2:l + 2:2, :]], axis=-1)
    patches = patches.reshape(b * lp, 3 * d)
    idx = pl.pallas_call(
        _encode_vq_kernel,
        out_shape=jax.ShapeDtypeStruct((b * lp, 128), jnp.int32),
    )(patches, params['w_enc'], params['b_enc'], params['w_in'],
      params['b_in'], params['w_quant'], params['b_quant'],
      params['codebook'])
    return idx[:, 0].reshape(b, lp)


# -------------------------- fused GPT Pallas kernel -------------------------

def _gpt_kernel(tok_oh_ref, pos_ref, xp_ref, xpp_ref, mov_oh_ref,
                w_past_ref, b_past_ref, w_pp_ref, b_pp_ref,
                mov_emb_ref, tok_emb_ref,
                ln1_g_ref, ln1_b_ref, w_qkv_ref, b_qkv_ref, w_o_ref, b_o_ref,
                ln2_g_ref, ln2_b_ref, w_fc_ref, b_fc_ref, w_proj_ref,
                b_proj_ref, lnf_g_ref, lnf_b_ref, w_head_ref, b_head_ref,
                logits_ref, *, n_head):
    T, E = pos_ref.shape
    hd = E // n_head
    n_layer = w_qkv_ref.shape[0]
    bf16 = jnp.bfloat16

    def mm(a, w):  # bf16 MXU matmul, f32 accumulate
        return jnp.dot(a.astype(bf16), w.astype(bf16),
                       preferred_element_type=jnp.float32)

    def ln(x, g, b):  # f32 layernorm (eps = 1e-5, matches PyTorch)
        mu = jnp.mean(x, axis=-1, keepdims=True)
        xc = x - mu
        var = jnp.mean(xc * xc, axis=-1, keepdims=True)
        return xc * lax.rsqrt(var + 1e-5) * g + b

    # embeddings + conditioning (one-hot matmuls keep gathers on the MXU)
    tok = mm(tok_oh_ref[0], tok_emb_ref[...])                       # (T, E)
    cond = mm(xp_ref[0], w_past_ref[...]) + b_past_ref[...]         # (1, E)
    cond = cond + mm(xpp_ref[0], w_pp_ref[...]) + b_pp_ref[...]
    cond = cond + mm(mov_oh_ref[0], mov_emb_ref[...])
    h = tok + pos_ref[...] + cond                                   # (T, E) f32

    scale = 1.0 / math.sqrt(hd)
    row = lax.broadcasted_iota(jnp.int32, (T, T), 0)
    col = lax.broadcasted_iota(jnp.int32, (T, T), 1)
    causal = col <= row

    for l in range(n_layer):
        # ---- causal multi-head attention ----
        h2 = ln(h, ln1_g_ref[l], ln1_b_ref[l])
        qkv = mm(h2, w_qkv_ref[l]) + b_qkv_ref[l]                   # (T, 3E)
        q = qkv[:, 0:E]
        k = qkv[:, E:2 * E]
        v = qkv[:, 2 * E:3 * E]
        w_o_l = w_o_ref[l]                                          # (E, E)
        att_out = jnp.zeros((T, E), jnp.float32)
        for hh in range(n_head):
            lo = hh * hd
            qh = q[:, lo:lo + hd].astype(bf16)                      # (T, hd)
            kh = k[:, lo:lo + hd].astype(bf16)
            vh = v[:, lo:lo + hd].astype(bf16)
            s = lax.dot_general(qh, kh, (((1,), (1,)), ((), ())),
                                preferred_element_type=jnp.float32) * scale
            s = jnp.where(causal, s, -1e30)
            s = s - jnp.max(s, axis=-1, keepdims=True)
            p = jnp.exp(s)
            p = p * pl.reciprocal(jnp.sum(p, axis=-1, keepdims=True),
                                  approx=True)
            o_h = jnp.dot(p.astype(bf16), vh,
                          preferred_element_type=jnp.float32)       # (T, hd)
            # fuse the output projection per head (no lane concat needed)
            att_out = att_out + jnp.dot(o_h.astype(bf16),
                                        w_o_l[lo:lo + hd, :],
                                        preferred_element_type=jnp.float32)
        h = h + att_out + b_o_ref[l]
        # ---- MLP ----
        h2 = ln(h, ln2_g_ref[l], ln2_b_ref[l])
        m = jax.nn.gelu(mm(h2, w_fc_ref[l]) + b_fc_ref[l])
        h = h + mm(m, w_proj_ref[l]) + b_proj_ref[l]

    hf = ln(h, lnf_g_ref[...], lnf_b_ref[...])
    logits_ref[0] = (mm(hf, w_head_ref[...])
                     + b_head_ref[...]).astype(logits_ref.dtype)


def gpt_forward(params, idx, x_past, x_past_past, mov_indice):
    """Synthetic Final_GPT: idx (B, T) int -> logits (B, T, vocab)."""
    # TODO(synk): Final_GPT is not defined in the source file; this GPT stand-in
    # mirrors its interface (indices + x_past + x_past_past + mov_indice -> logits).
    b, t = idx.shape
    ld = x_past.shape[1] * x_past.shape[2]
    v1 = NUM_CODEBOOK + 1

    tok_oh = jax.nn.one_hot(idx, v1, dtype=jnp.bfloat16)            # (b, t, v1)
    mov_oh = jax.nn.one_hot(mov_indice, NUM_CODEBOOK,
                            dtype=jnp.bfloat16).reshape(b, 1, NUM_CODEBOOK)
    xp = x_past.reshape(b, 1, ld).astype(jnp.bfloat16)
    xpp = x_past_past.reshape(b, 1, ld).astype(jnp.bfloat16)
    pos = params['pos_emb'][:t]                                     # (t, E)

    def full(a):
        z = (0,) * a.ndim
        return pl.BlockSpec(a.shape, lambda i, _z=z: _z)

    def per_batch(a):
        r = (0,) * (a.ndim - 1)
        return pl.BlockSpec((1,) + a.shape[1:], lambda i, _r=r: (i,) + _r)

    args = (tok_oh, pos, xp, xpp, mov_oh,
            params['w_past'], params['b_past'],
            params['w_past_past'], params['b_past_past'],
            params['mov_emb'], params['tok_emb'],
            params['ln1_g'], params['ln1_b'],
            params['w_qkv'], params['b_qkv'],
            params['w_o'], params['b_o'],
            params['ln2_g'], params['ln2_b'],
            params['w_fc'], params['b_fc'],
            params['w_proj'], params['b_proj'],
            params['lnf_g'], params['lnf_b'],
            params['w_head'], params['b_head'])

    in_specs = [per_batch(tok_oh), full(pos), per_batch(xp), per_batch(xpp),
                per_batch(mov_oh)] + [full(a) for a in args[5:]]

    logits_pad = pl.pallas_call(
        functools.partial(_gpt_kernel, n_head=N_HEAD),
        out_shape=jax.ShapeDtypeStruct((b, t, HEAD_PAD), jnp.float32),
        grid=(b,),
        in_specs=in_specs,
        out_specs=pl.BlockSpec((1, t, HEAD_PAD), lambda i: (i, 0, 0)),
        compiler_params=pltpu.CompilerParams(
            dimension_semantics=("parallel",)),   # v7x: shard batch over TCs
    )(*args)
    return logits_pad[:, :, :NUM_CODEBOOK]


# -------------------------------- parameters -------------------------------

def init_params(key):
    bf16 = jnp.bfloat16

    def nrm(k, shape, scale=0.02, dtype=jnp.float32):
        return (scale * jax.random.normal(k, shape, jnp.float32)).astype(dtype)

    keys = iter(jax.random.split(key, 32))
    E = N_EMBD
    p = {
        # encoder / VQ path (tiny, kept f32 so codebook argmin ties are stable)
        'w_enc': nrm(next(keys), (3 * D, C_ENC)),
        'b_enc': jnp.zeros((1, C_ENC), jnp.float32),
        'w_in': nrm(next(keys), (C_ENC, C_ENC)),
        'b_in': jnp.zeros((1, C_ENC), jnp.float32),
        'w_quant': nrm(next(keys), (C_ENC, E_LAT)),
        'b_quant': jnp.zeros((1, E_LAT), jnp.float32),
        'codebook': nrm(next(keys), (NUM_CODEBOOK, E_LAT), scale=1.0),
        # GPT (matmul weights stored bf16; biases / LN / pos kept f32)
        'tok_emb': nrm(next(keys), (NUM_CODEBOOK + 1, E), dtype=bf16),
        'pos_emb': nrm(next(keys), (MAX_POS, E)),
        'mov_emb': nrm(next(keys), (NUM_CODEBOOK, E), dtype=bf16),
        'w_past': nrm(next(keys), (L * D, E), dtype=bf16),
        'b_past': jnp.zeros((1, E), jnp.float32),
        'w_past_past': nrm(next(keys), (L * D, E), dtype=bf16),
        'b_past_past': jnp.zeros((1, E), jnp.float32),
        # per-layer weights stacked along a leading (N_LAYER,) axis
        'ln1_g': jnp.ones((N_LAYER, 1, E), jnp.float32),
        'ln1_b': jnp.zeros((N_LAYER, 1, E), jnp.float32),
        'w_qkv': nrm(next(keys), (N_LAYER, E, 3 * E), dtype=bf16),
        'b_qkv': jnp.zeros((N_LAYER, 1, 3 * E), jnp.float32),
        'w_o': nrm(next(keys), (N_LAYER, E, E), dtype=bf16),
        'b_o': jnp.zeros((N_LAYER, 1, E), jnp.float32),
        'ln2_g': jnp.ones((N_LAYER, 1, E), jnp.float32),
        'ln2_b': jnp.zeros((N_LAYER, 1, E), jnp.float32),
        'w_fc': nrm(next(keys), (N_LAYER, E, MLP_HIDDEN), dtype=bf16),
        'b_fc': jnp.zeros((N_LAYER, 1, MLP_HIDDEN), jnp.float32),
        'w_proj': nrm(next(keys), (N_LAYER, MLP_HIDDEN, E), dtype=bf16),
        'b_proj': jnp.zeros((N_LAYER, 1, E), jnp.float32),
        'lnf_g': jnp.ones((1, E), jnp.float32),
        'lnf_b': jnp.zeros((1, E), jnp.float32),
        # head padded to 128 lanes for a dense store; padded columns are zero
        'w_head': jnp.pad(nrm(next(keys), (E, NUM_CODEBOOK)),
                          ((0, 0), (0, HEAD_PAD - NUM_CODEBOOK))).astype(bf16),
        'b_head': jnp.zeros((1, HEAD_PAD), jnp.float32),
    }
    return p


# --------------------------------- forward ---------------------------------

def target_vqgan_transformer_forward(params, x, x_past, x_past_past,
                                     mov_indice, key, pkeep=PKEEP):
    """Mirrors Target_VQGANTransformer.forward -> (logits, target_indices)."""
    b = x.shape[0]
    indices = encode_to_z(params, x)                                # (B, Lp)
    sos = jnp.full((b, 1), SOS_TOKEN, jnp.int32)
    k1, k2 = jax.random.split(key)
    mask = jax.random.bernoulli(k1, pkeep, indices.shape).astype(jnp.int32)
    rand_idx = jax.random.randint(k2, indices.shape, 0,
                                  NUM_CODEBOOK, jnp.int32)
    new_indices = mask * indices + (1 - mask) * rand_idx
    new_indices = jnp.concatenate([sos, new_indices], axis=1)
    target = indices
    logits = gpt_forward(params, new_indices[:, :-1],
                         x_past, x_past_past, mov_indice)
    return logits, target


# ----------------------------------- main -----------------------------------

if __name__ == "__main__":
    root = jax.random.PRNGKey(0)
    kp, kx, kp1, kp2, km, kf = jax.random.split(root, 6)

    params = init_params(kp)

    x = jax.random.normal(kx, (B, L, D), jnp.float32)
    x_past = jax.random.normal(kp1, (B, L, D), jnp.float32)
    x_past_past = jax.random.normal(kp2, (B, L, D), jnp.float32)
    mov_indice = jax.random.randint(km, (B,), 0, NUM_CODEBOOK, jnp.int32)

    fwd = jax.jit(target_vqgan_transformer_forward)
    logits, target = fwd(params, x, x_past, x_past_past, mov_indice, kf)
    logits = jax.block_until_ready(logits)
    target = jax.block_until_ready(target)

    assert logits.shape == (B, L // 2, NUM_CODEBOOK), logits.shape
    assert target.shape == (B, L // 2), target.shape
    assert bool(jnp.all(jnp.isfinite(logits)))
    print("KERNEL_OK")
</pallas_src>

<mosaic_0001>
module attributes {stable_mosaic.version = 11 : i64} {
  func.func @_encode_vq_kernel(%arg0: memref<16x12xf32, #tpu.memory_space<vmem>>, %arg1: memref<12x32xf32, #tpu.memory_space<vmem>>, %arg2: memref<1x32xf32, #tpu.memory_space<vmem>>, %arg3: memref<32x32xf32, #tpu.memory_space<vmem>>, %arg4: memref<1x32xf32, #tpu.memory_space<vmem>>, %arg5: memref<32x32xf32, #tpu.memory_space<vmem>>, %arg6: memref<1x32xf32, #tpu.memory_space<vmem>>, %arg7: memref<16x32xf32, #tpu.memory_space<vmem>>, %arg8: memref<16x128xi32, #tpu.memory_space<vmem>>) attributes {dimension_semantics = [], scalar_prefetch = 0 : i64, scratch_operands = 0 : i64, tpu.core_type = #tpu.core_type<tc>} {
    %c0 = arith.constant 0 : index
    %c0_0 = arith.constant 0 : index
    %0 = vector.load %arg0[%c0, %c0_0] : memref<16x12xf32, #tpu.memory_space<vmem>>, vector<16x12xf32>
    %c0_1 = arith.constant 0 : index
    %c0_2 = arith.constant 0 : index
    %1 = vector.load %arg1[%c0_1, %c0_2] : memref<12x32xf32, #tpu.memory_space<vmem>>, vector<12x32xf32>
    %cst = arith.constant dense<0.000000e+00> : vector<16x32xf32>
    %2 = tpu.matmul %0, %1, %cst {dimension_numbers = #tpu.dot_dimension_numbers<[1], [0], [0], [1], [0, 0, 1, 1], [], []>} : vector<16x12xf32>, vector<12x32xf32>, vector<16x32xf32> -> vector<16x32xf32>
    %c0_3 = arith.constant 0 : index
    %c0_4 = arith.constant 0 : index
    %3 = vector.load %arg2[%c0_3, %c0_4] : memref<1x32xf32, #tpu.memory_space<vmem>>, vector<1x32xf32>
    %4 = vector.broadcast %3 : vector<1x32xf32> to vector<16x32xf32>
    %5 = arith.addf %2, %4 : vector<16x32xf32>
    %c0_5 = arith.constant 0 : index
    %c0_6 = arith.constant 0 : index
    %6 = vector.load %arg3[%c0_5, %c0_6] : memref<32x32xf32, #tpu.memory_space<vmem>>, vector<32x32xf32>
    %cst_7 = arith.constant dense<0.000000e+00> : vector<16x32xf32>
    %7 = tpu.matmul %5, %6, %cst_7 {dimension_numbers = #tpu.dot_dimension_numbers<[1], [0], [0], [1], [0, 0, 1, 1], [], []>} : vector<16x32xf32>, vector<32x32xf32>, vector<16x32xf32> -> vector<16x32xf32>
    %c0_8 = arith.constant 0 : index
    %c0_9 = arith.constant 0 : index
    %8 = vector.load %arg4[%c0_8, %c0_9] : memref<1x32xf32, #tpu.memory_space<vmem>>, vector<1x32xf32>
    %9 = vector.broadcast %8 : vector<1x32xf32> to vector<16x32xf32>
    %10 = arith.addf %7, %9 : vector<16x32xf32>
    %cst_10 = arith.constant 0.000000e+00 : f32
    %11 = vector.broadcast %cst_10 : f32 to vector<16x32xf32>
    %12 = arith.maximumf %10, %11 : vector<16x32xf32>
    %c0_11 = arith.constant 0 : index
    %c0_12 = arith.constant 0 : index
    %13 = vector.load %arg5[%c0_11, %c0_12] : memref<32x32xf32, #tpu.memory_space<vmem>>, vector<32x32xf32>
    %cst_13 = arith.constant dense<0.000000e+00> : vector<16x32xf32>
    %14 = tpu.matmul %12, %13, %cst_13 {dimension_numbers = #tpu.dot_dimension_numbers<[1], [0], [0], [1], [0, 0, 1, 1], [], []>} : vector<16x32xf32>, vector<32x32xf32>, vector<16x32xf32> -> vector<16x32xf32>
    %c0_14 = arith.constant 0 : index
    %c0_15 = arith.constant 0 : index
    %15 = vector.load %arg6[%c0_14, %c0_15] : memref<1x32xf32, #tpu.memory_space<vmem>>, vector<1x32xf32>
    %16 = vector.broadcast %15 : vector<1x32xf32> to vector<16x32xf32>
    %17 = arith.addf %14, %16 : vector<16x32xf32>
    %c0_16 = arith.constant 0 : index
    %c0_17 = arith.constant 0 : index
    %18 = vector.load %arg7[%c0_16, %c0_17] : memref<16x32xf32, #tpu.memory_space<vmem>>, vector<16x32xf32>
    %19 = arith.mulf %17, %17 : vector<16x32xf32>
    %cst_18 = arith.constant dense<0.000000e+00> : vector<16xf32>
    %20 = vector.multi_reduction <add>, %19, %cst_18 [1] : vector<16x32xf32> to vector<16xf32>
    %21 = vector.shape_cast %20 : vector<16xf32> to vector<16x1xf32>
    %22 = arith.mulf %18, %18 : vector<16x32xf32>
    %cst_19 = arith.constant dense<0.000000e+00> : vector<16xf32>
    %23 = vector.multi_reduction <add>, %22, %cst_19 [1] : vector<16x32xf32> to vector<16xf32>
    %24 = vector.shape_cast %23 : vector<16xf32> to vector<1x16xf32>
    %cst_20 = arith.constant dense<0.000000e+00> : vector<16x16xf32>
    %25 = tpu.matmul %17, %18, %cst_20 {dimension_numbers = #tpu.dot_dimension_numbers<[1], [1], [0], [0], [0, 0, 1, 0], [], []>} : vector<16x32xf32>, vector<16x32xf32>, vector<16x16xf32> -> vector<16x16xf32>
    %cst_21 = arith.constant 2.000000e+00 : f32
    %26 = vector.broadcast %cst_21 : f32 to vector<16x16xf32>
    %27 = arith.mulf %26, %25 : vector<16x16xf32>
    %28 = vector.broadcast %21 : vector<16x1xf32> to vector<16x16xf32>
    %29 = arith.subf %28, %27 : vector<16x16xf32>
    %30 = vector.broadcast %24 : vector<1x16xf32> to vector<16x16xf32>
    %31 = arith.addf %29, %30 : vector<16x16xf32>
    %cst_22 = arith.constant dense<0x7F800000> : vector<16xf32>
    %32 = vector.multi_reduction <minimumf>, %31, %cst_22 [1] : vector<16x16xf32> to vector<16xf32>
    %33 = vector.shape_cast %32 : vector<16xf32> to vector<16x1xf32>
    %34 = tpu.iota {dimensions = array<i32: 1>} : vector<16x16xi32>
    %35 = vector.broadcast %33 : vector<16x1xf32> to vector<16x16xf32>
    %36 = arith.cmpf ole, %31, %35 : vector<16x16xf32>
    %c16_i32 = arith.constant 16 : i32
    %37 = vector.broadcast %c16_i32 : i32 to vector<16x16xi32>
    %38 = arith.select %36, %34, %37 : vector<16x16xi1>, vector<16x16xi32>
    %cst_23 = arith.constant dense<2147483647> : vector<16xi32>
    %39 = vector.multi_reduction <minsi>, %38, %cst_23 [1] : vector<16x16xi32> to vector<16xi32>
    %40 = vector.shape_cast %39 : vector<16xi32> to vector<16x1xi32>
    %41 = vector.shape_cast %40 : vector<16x1xi32> to vector<16x1xi32>
    %42 = vector.broadcast %41 : vector<16x1xi32> to vector<16x128xi32>
    %c0_24 = arith.constant 0 : index
    %c0_25 = arith.constant 0 : index
    %43 = vector.load %arg8[%c0_24, %c0_25] : memref<16x128xi32, #tpu.memory_space<vmem>>, vector<16x128xi32>
    tpu.vector_store %arg8[%c0_24, %c0_25], %42 {strides = array<i32>} : memref<16x128xi32, #tpu.memory_space<vmem>>, vector<16x128xi32>,
    return
  }
}

module attributes {stable_mosaic.version = 11 : i64} {
  func.func @_gpt_kernel(%arg0: i32, %arg1: memref<1x8x17xbf16, #tpu.memory_space<vmem>>, %arg2: memref<8x128xf32, #tpu.memory_space<vmem>>, %arg3: memref<1x1x64xbf16, #tpu.memory_space<vmem>>, %arg4: memref<1x1x64xbf16, #tpu.memory_space<vmem>>, %arg5: memref<1x1x16xbf16, #tpu.memory_space<vmem>>, %arg6: memref<64x128xbf16, #tpu.memory_space<vmem>>, %arg7: memref<1x128xf32, #tpu.memory_space<vmem>>, %arg8: memref<64x128xbf16, #tpu.memory_space<vmem>>, %arg9: memref<1x128xf32, #tpu.memory_space<vmem>>, %arg10: memref<16x128xbf16, #tpu.memory_space<vmem>>, %arg11: memref<17x128xbf16, #tpu.memory_space<vmem>>, %arg12: memref<2x1x128xf32, #tpu.memory_space<vmem>>, %arg13: memref<2x1x128xf32, #tpu.memory_space<vmem>>, %arg14: memref<2x128x384xbf16, #tpu.memory_space<vmem>>, %arg15: memref<2x1x384xf32, #tpu.memory_space<vmem>>, %arg16: memref<2x128x128xbf16, #tpu.memory_space<vmem>>, %arg17: memref<2x1x128xf32, #tpu.memory_space<vmem>>, %arg18: memref<2x1x128xf32, #tpu.memory_space<vmem>>, %arg19: memref<2x1x128xf32, #tpu.memory_space<vmem>>, %arg20: memref<2x128x512xbf16, #tpu.memory_space<vmem>>, %arg21: memref<2x1x512xf32, #tpu.memory_space<vmem>>, %arg22: memref<2x512x128xbf16, #tpu.memory_space<vmem>>, %arg23: memref<2x1x128xf32, #tpu.memory_space<vmem>>, %arg24: memref<1x128xf32, #tpu.memory_space<vmem>>, %arg25: memref<1x128xf32, #tpu.memory_space<vmem>>, %arg26: memref<128x128xbf16, #tpu.memory_space<vmem>>, %arg27: memref<1x128xf32, #tpu.memory_space<vmem>>, %arg28: memref<1x8x128xf32, #tpu.memory_space<vmem>>) attributes {dimension_semantics = [#tpu.dimension_semantics<parallel>], iteration_bounds = array<i64: 2>, scalar_prefetch = 0 : i64, scratch_operands = 0 : i64, tpu.core_type = #tpu.core_type<tc>, window_params = [{transform_indices = @transform_0, window_bounds = array<i64: 1, 8, 17>}, {pipeline_mode = #tpu.pipeline_mode<synchronous>, transform_indices = @transform_1, window_bounds = array<i64: 8, 128>}, {transform_indices = @transform_2, window_bounds = array<i64: 1, 1, 64>}, {transform_indices = @transform_3, window_bounds = array<i64: 1, 1, 64>}, {transform_indices = @transform_4, window_bounds = array<i64: 1, 1, 16>}, {pipeline_mode = #tpu.pipeline_mode<synchronous>, transform_indices = @transform_5, window_bounds = array<i64: 64, 128>}, {pipeline_mode = #tpu.pipeline_mode<synchronous>, transform_indices = @transform_6, window_bounds = array<i64: 1, 128>}, {pipeline_mode = #tpu.pipeline_mode<synchronous>, transform_indices = @transform_7, window_bounds = array<i64: 64, 128>}, {pipeline_mode = #tpu.pipeline_mode<synchronous>, transform_indices = @transform_8, window_bounds = array<i64: 1, 128>}, {pipeline_mode = #tpu.pipeline_mode<synchronous>, transform_indices = @transform_9, window_bounds = array<i64: 16, 128>}, {pipeline_mode = #tpu.pipeline_mode<synchronous>, transform_indices = @transform_10, window_bounds = array<i64: 17, 128>}, {pipeline_mode = #tpu.pipeline_mode<synchronous>, transform_indices = @transform_11, window_bounds = array<i64: 2, 1, 128>}, {pipeline_mode = #tpu.pipeline_mode<synchronous>, transform_indices = @transform_12, window_bounds = array<i64: 2, 1, 128>}, {pipeline_mode = #tpu.pipeline_mode<synchronous>, transform_indices = @transform_13, window_bounds = array<i64: 2, 128, 384>}, {pipeline_mode = #tpu.pipeline_mode<synchronous>, transform_indices = @transform_14, window_bounds = array<i64: 2, 1, 384>}, {pipeline_mode = #tpu.pipeline_mode<synchronous>, transform_indices = @transform_15, window_bounds = array<i64: 2, 128, 128>}, {pipeline_mode = #tpu.pipeline_mode<synchronous>, transform_indices = @transform_16, window_bounds = array<i64: 2, 1, 128>}, {pipeline_mode = #tpu.pipeline_mode<synchronous>, transform_indices = @transform_17, window_bounds = array<i64: 2, 1, 128>}, {pipeline_mode = #tpu.pipeline_mode<synchronous>, transform_indices = @transform_18, window_bounds = array<i64: 2, 1, 128>}, {pipeline_mode = #tpu.pipeline_mode<synchronous>, transform_indices = @transform_19, window_bounds = array<i64: 2, 128, 512>}, {pipeline_mode = #tpu.pipeline_mode<synchronous>, transform_indices = @transform_20, window_bounds = array<i64: 2, 1, 512>}, {pipeline_mode = #tpu.pipeline_mode<synchronous>, transform_indices = @transform_21, window_bounds = array<i64: 2, 512, 128>}, {pipeline_mode = #tpu.pipeline_mode<synchronous>, transform_indices = @transform_22, window_bounds = array<i64: 2, 1, 128>}, {pipeline_mode = #tpu.pipeline_mode<synchronous>, transform_indices = @transform_23, window_bounds = array<i64: 1, 128>}, {pipeline_mode = #tpu.pipeline_mode<synchronous>, transform_indices = @transform_24, window_bounds = array<i64: 1, 128>}, {pipeline_mode = #tpu.pipeline_mode<synchronous>, transform_indices = @transform_25, window_bounds = array<i64: 128, 128>}, {pipeline_mode = #tpu.pipeline_mode<synchronous>, transform_indices = @transform_26, window_bounds = array<i64: 1, 128>}, {transform_indices = @transform_27, window_bounds = array<i64: 1, 8, 128>}]} {
    %c0 = arith.constant 0 : index
    %c0_0 = arith.constant 0 : index
    %c0_1 = arith.constant 0 : index
    %0 = vector.load %arg1[%c0, %c0_0, %c0_1] : memref<1x8x17xbf16, #tpu.memory_space<vmem>>, vector<1x8x17xbf16>
    %1 = vector.shape_cast %0 : vector<1x8x17xbf16> to vector<8x17xbf16>
    %c0_2 = arith.constant 0 : index
    %c0_3 = arith.constant 0 : index
    %2 = vector.load %arg11[%c0_2, %c0_3] : memref<17x128xbf16, #tpu.memory_space<vmem>>, vector<17x128xbf16>
    %cst = arith.constant dense<0.000000e+00> : vector<8x128xf32>
    %3 = tpu.matmul %1, %2, %cst {dimension_numbers = #tpu.dot_dimension_numbers<[1], [0], [0], [1], [0, 0, 1, 1], [], []>} : vector<8x17xbf16>, vector<17x128xbf16>, vector<8x128xf32> -> vector<8x128xf32>
    %c0_4 = arith.constant 0 : index
    %c0_5 = arith.constant 0 : index
    %c0_6 = arith.constant 0 : index
    %4 = vector.load %arg3[%c0_4, %c0_5, %c0_6] : memref<1x1x64xbf16, #tpu.memory_space<vmem>>, vector<1x1x64xbf16>
    %5 = vector.shape_cast %4 : vector<1x1x64xbf16> to vector<1x64xbf16>
    %c0_7 = arith.constant 0 : index
    %c0_8 = arith.constant 0 : index
    %6 = vector.load %arg6[%c0_7, %c0_8] : memref<64x128xbf16, #tpu.memory_space<vmem>>, vector<64x128xbf16>
    %cst_9 = arith.constant dense<0.000000e+00> : vector<1x128xf32>
    %7 = tpu.matmul %5, %6, %cst_9 {dimension_numbers = #tpu.dot_dimension_numbers<[1], [0], [0], [1], [0, 0, 1, 1], [], []>} : vector<1x64xbf16>, vector<64x128xbf16>, vector<1x128xf32> -> vector<1x128xf32>
    %c0_10 = arith.constant 0 : index
    %c0_11 = arith.constant 0 : index
    %8 = vector.load %arg7[%c0_10, %c0_11] : memref<1x128xf32, #tpu.memory_space<vmem>>, vector<1x128xf32>
    %9 = arith.addf %7, %8 : vector<1x128xf32>
    %c0_12 = arith.constant 0 : index
    %c0_13 = arith.constant 0 : index
    %c0_14 = arith.constant 0 : index
    %10 = vector.load %arg4[%c0_12, %c0_13, %c0_14] : memref<1x1x64xbf16, #tpu.memory_space<vmem>>, vector<1x1x64xbf16>
    %11 = vector.shape_cast %10 : vector<1x1x64xbf16> to vector<1x64xbf16>
    %c0_15 = arith.constant 0 : index
    %c0_16 = arith.constant 0 : index
    %12 = vector.load %arg8[%c0_15, %c0_16] : memref<64x128xbf16, #tpu.memory_space<vmem>>, vector<64x128xbf16>
    %cst_17 = arith.constant dense<0.000000e+00> : vector<1x128xf32>
    %13 = tpu.matmul %11, %12, %cst_17 {dimension_numbers = #tpu.dot_dimension_numbers<[1], [0], [0], [1], [0, 0, 1, 1], [], []>} : vector<1x64xbf16>, vector<64x128xbf16>, vector<1x128xf32> -> vector<1x128xf32>
    %14 = arith.addf %9, %13 : vector<1x128xf32>
    %c0_18 = arith.constant 0 : index
    %c0_19 = arith.constant 0 : index
    %15 = vector.load %arg9[%c0_18, %c0_19] : memref<1x128xf32, #tpu.memory_space<vmem>>, vector<1x128xf32>
    %16 = arith.addf %14, %15 : vector<1x128xf32>
    %c0_20 = arith.constant 0 : index
    %c0_21 = arith.constant 0 : index
    %c0_22 = arith.constant 0 : index
    %17 = vector.load %arg5[%c0_20, %c0_21, %c0_22] : memref<1x1x16xbf16, #tpu.memory_space<vmem>>, vector<1x1x16xbf16>
    %18 = vector.shape_cast %17 : vector<1x1x16xbf16> to vector<1x16xbf16>
    %c0_23 = arith.constant 0 : index
    %c0_24 = arith.constant 0 : index
    %19 = vector.load %arg10[%c0_23, %c0_24] : memref<16x128xbf16, #tpu.memory_space<vmem>>, vector<16x128xbf16>
    %cst_25 = arith.constant dense<0.000000e+00> : vector<1x128xf32>
    %20 = tpu.matmul %18, %19, %cst_25 {dimension_numbers = #tpu.dot_dimension_numbers<[1], [0], [0], [1], [0, 0, 1, 1], [], []>} : vector<1x16xbf16>, vector<16x128xbf16>, vector<1x128xf32> -> vector<1x128xf32>
    %21 = arith.addf %16, %20 : vector<1x128xf32>
    %c0_26 = arith.constant 0 : index
    %c0_27 = arith.constant 0 : index
    %22 = vector.load %arg2[%c0_26, %c0_27] : memref<8x128xf32, #tpu.memory_space<vmem>>, vector<8x128xf32>
    %23 = arith.addf %3, %22 : vector<8x128xf32>
    %24 = vector.broadcast %21 : vector<1x128xf32> to vector<8x128xf32>
    %25 = arith.addf %23, %24 : vector<8x128xf32>
    %26 = tpu.iota {dimensions = array<i32: 0>} : vector<8x8xi32>
    %27 = tpu.iota {dimensions = array<i32: 1>} : vector<8x8xi32>
    %28 = arith.cmpi sle, %27, %26 : vector<8x8xi32>
    %c0_28 = arith.constant 0 : index
    %c0_29 = arith.constant 0 : index
    %c0_30 = arith.constant 0 : index
    %29 = vector.load %arg12[%c0_28, %c0_29, %c0_30] : memref<2x1x128xf32, #tpu.memory_space<vmem>>, vector<1x1x128xf32>
    %30 = vector.shape_cast %29 : vector<1x1x128xf32> to vector<1x128xf32>
    %c0_31 = arith.constant 0 : index
    %c0_32 = arith.constant 0 : index
    %c0_33 = arith.constant 0 : index
    %31 = vector.load %arg13[%c0_31, %c0_32, %c0_33] : memref<2x1x128xf32, #tpu.memory_space<vmem>>, vector<1x1x128xf32>
    %32 = vector.shape_cast %31 : vector<1x1x128xf32> to vector<1x128xf32>
    %cst_34 = arith.constant dense<0.000000e+00> : vector<8xf32>
    %33 = vector.multi_reduction <add>, %25, %cst_34 [1] : vector<8x128xf32> to vector<8xf32>
    %34 = vector.shape_cast %33 : vector<8xf32> to vector<8x1xf32>
    %cst_35 = arith.constant 1.280000e+02 : f32
    %35 = vector.broadcast %cst_35 : f32 to vector<8x1xf32>
    %36 = arith.divf %34, %35 : vector<8x1xf32>
    %37 = vector.broadcast %36 : vector<8x1xf32> to vector<8x128xf32>
    %38 = arith.subf %25, %37 : vector<8x128xf32>
    %39 = arith.mulf %38, %38 : vector<8x128xf32>
    %cst_36 = arith.constant dense<0.000000e+00> : vector<8xf32>
    %40 = vector.multi_reduction <add>, %39, %cst_36 [1] : vector<8x128xf32> to vector<8xf32>
    %41 = vector.shape_cast %40 : vector<8xf32> to vector<8x1xf32>
    %cst_37 = arith.constant 1.280000e+02 : f32
    %42 = vector.broadcast %cst_37 : f32 to vector<8x1xf32>
    %43 = arith.divf %41, %42 : vector<8x1xf32>
    %cst_38 = arith.constant 9.99999974E-6 : f32
    %44 = vector.broadcast %cst_38 : f32 to vector<8x1xf32>
    %45 = arith.addf %43, %44 : vector<8x1xf32>
    %46 = math.rsqrt %45 : vector<8x1xf32>
    %47 = vector.broadcast %46 : vector<8x1xf32> to vector<8x128xf32>
    %48 = arith.mulf %38, %47 : vector<8x128xf32>
    %49 = vector.broadcast %30 : vector<1x128xf32> to vector<8x128xf32>
    %50 = arith.mulf %48, %49 : vector<8x128xf32>
    %51 = vector.broadcast %32 : vector<1x128xf32> to vector<8x128xf32>
    %52 = arith.addf %50, %51 : vector<8x128xf32>
    %c0_39 = arith.constant 0 : index
    %c0_40 = arith.constant 0 : index
    %c0_41 = arith.constant 0 : index
    %53 = vector.load %arg14[%c0_39, %c0_40, %c0_41] : memref<2x128x384xbf16, #tpu.memory_space<vmem>>, vector<1x128x384xbf16>
    %54 = vector.shape_cast %53 : vector<1x128x384xbf16> to vector<128x384xbf16>
    %55 = arith.truncf %52 : vector<8x128xf32> to vector<8x128xbf16>
    %cst_42 = arith.constant dense<0.000000e+00> : vector<8x384xf32>
    %56 = tpu.matmul %55, %54, %cst_42 {dimension_numbers = #tpu.dot_dimension_numbers<[1], [0], [0], [1], [0, 0, 1, 1], [], []>} : vector<8x128xbf16>, vector<128x384xbf16>, vector<8x384xf32> -> vector<8x384xf32>
    %c0_43 = arith.constant 0 : index
    %c0_44 = arith.constant 0 : index
    %c0_45 = arith.constant 0 : index
    %57 = vector.load %arg15[%c0_43, %c0_44, %c0_45] : memref<2x1x384xf32, #tpu.memory_space<vmem>>, vector<1x1x384xf32>
    %58 = vector.shape_cast %57 : vector<1x1x384xf32> to vector<1x384xf32>
    %59 = vector.broadcast %58 : vector<1x384xf32> to vector<8x384xf32>
    %60 = arith.addf %56, %59 : vector<8x384xf32>
    %61 = vector.extract_strided_slice %60 {offsets = [0, 0], sizes = [8, 128], strides = [1, 1]} : vector<8x384xf32> to vector<8x128xf32>
    %62 = vector.extract_strided_slice %60 {offsets = [0, 128], sizes = [8, 128], strides = [1, 1]} : vector<8x384xf32> to vector<8x128xf32>
    %63 = vector.extract_strided_slice %60 {offsets = [0, 256], sizes = [8, 128], strides = [1, 1]} : vector<8x384xf32> to vector<8x128xf32>
    %c0_46 = arith.constant 0 : index
    %c0_47 = arith.constant 0 : index
    %c0_48 = arith.constant 0 : index
    %64 = vector.load %arg16[%c0_46, %c0_47, %c0_48] : memref<2x128x128xbf16, #tpu.memory_space<vmem>>, vector<1x128x128xbf16>
    %65 = vector.shape_cast %64 : vector<1x128x128xbf16> to vector<128x128xbf16>
    %cst_49 = arith.constant 0.000000e+00 : f32
    %66 = vector.broadcast %cst_49 : f32 to vector<8x128xf32>
    %67 = vector.extract_strided_slice %61 {offsets = [0, 0], sizes = [8, 32], strides = [1, 1]} : vector<8x128xf32> to vector<8x32xf32>
    %68 = arith.truncf %67 : vector<8x32xf32> to vector<8x32xbf16>
    %69 = vector.extract_strided_slice %62 {offsets = [0, 0], sizes = [8, 32], strides = [1, 1]} : vector<8x128xf32> to vector<8x32xf32>
    %70 = arith.truncf %69 : vector<8x32xf32> to vector<8x32xbf16>
    %71 = vector.extract_strided_slice %63 {offsets = [0, 0], sizes = [8, 32], strides = [1, 1]} : vector<8x128xf32> to vector<8x32xf32>
    %72 = arith.truncf %71 : vector<8x32xf32> to vector<8x32xbf16>
    %cst_50 = arith.constant dense<0.000000e+00> : vector<8x8xf32>
    %73 = tpu.matmul %68, %70, %cst_50 {dimension_numbers = #tpu.dot_dimension_numbers<[1], [1], [0], [0], [0, 0, 1, 0], [], []>} : vector<8x32xbf16>, vector<8x32xbf16>, vector<8x8xf32> -> vector<8x8xf32>
    %cst_51 = arith.constant 0.176776692 : f32
    %74 = vector.broadcast %cst_51 : f32 to vector<8x8xf32>
    %75 = arith.mulf %73, %74 : vector<8x8xf32>
    %cst_52 = arith.constant -1.000000e+30 : f32
    %76 = vector.broadcast %cst_52 : f32 to vector<8x8xf32>
    %77 = arith.select %28, %75, %76 : vector<8x8xi1>, vector<8x8xf32>
    %cst_53 = arith.constant dense<0xFF800000> : vector<8xf32>
    %78 = vector.multi_reduction <maximumf>, %77, %cst_53 [1] : vector<8x8xf32> to vector<8xf32>
    %79 = vector.shape_cast %78 : vector<8xf32> to vector<8x1xf32>
    %80 = vector.broadcast %79 : vector<8x1xf32> to vector<8x8xf32>
    %81 = arith.subf %77, %80 : vector<8x8xf32>
    %82 = math.exp %81 : vector<8x8xf32>
    %cst_54 = arith.constant dense<0.000000e+00> : vector<8xf32>
    %83 = vector.multi_reduction <add>, %82, %cst_54 [1] : vector<8x8xf32> to vector<8xf32>
    %84 = vector.shape_cast %83 : vector<8xf32> to vector<8x1xf32>
    %85 = tpu.reciprocal %84 {approx = true} : vector<8x1xf32> -> vector<8x1xf32>
    %86 = vector.broadcast %85 : vector<8x1xf32> to vector<8x8xf32>
    %87 = arith.mulf %82, %86 : vector<8x8xf32>
    %88 = arith.truncf %87 : vector<8x8xf32> to vector<8x8xbf16>
    %cst_55 = arith.constant dense<0.000000e+00> : vector<8x32xf32>
    %89 = tpu.matmul %88, %72, %cst_55 {dimension_numbers = #tpu.dot_dimension_numbers<[1], [0], [0], [1], [0, 0, 1, 1], [], []>} : vector<8x8xbf16>, vector<8x32xbf16>, vector<8x32xf32> -> vector<8x32xf32>
    %90 = arith.truncf %89 : vector<8x32xf32> to vector<8x32xbf16>
    %91 = vector.extract_strided_slice %65 {offsets = [0, 0], sizes = [32, 128], strides = [1, 1]} : vector<128x128xbf16> to vector<32x128xbf16>
    %cst_56 = arith.constant dense<0.000000e+00> : vector<8x128xf32>
    %92 = tpu.matmul %90, %91, %cst_56 {dimension_numbers = #tpu.dot_dimension_numbers<[1], [0], [0], [1], [0, 0, 1, 1], [], []>} : vector<8x32xbf16>, vector<32x128xbf16>, vector<8x128xf32> -> vector<8x128xf32>
    %93 = arith.addf %66, %92 : vector<8x128xf32>
    %94 = vector.extract_strided_slice %61 {offsets = [0, 32], sizes = [8, 32], strides = [1, 1]} : vector<8x128xf32> to vector<8x32xf32>
    %95 = arith.truncf %94 : vector<8x32xf32> to vector<8x32xbf16>
    %96 = vector.extract_strided_slice %62 {offsets = [0, 32], sizes = [8, 32], strides = [1, 1]} : vector<8x128xf32> to vector<8x32xf32>
    %97 = arith.truncf %96 : vector<8x32xf32> to vector<8x32xbf16>
    %98 = vector.extract_strided_slice %63 {offsets = [0, 32], sizes = [8, 32], strides = [1, 1]} : vector<8x128xf32> to vector<8x32xf32>
    %99 = arith.truncf %98 : vector<8x32xf32> to vector<8x32xbf16>
    %cst_57 = arith.constant dense<0.000000e+00> : vector<8x8xf32>
    %100 = tpu.matmul %95, %97, %cst_57 {dimension_numbers = #tpu.dot_dimension_numbers<[1], [1], [0], [0], [0, 0, 1, 0], [], []>} : vector<8x32xbf16>, vector<8x32xbf16>, vector<8x8xf32> -> vector<8x8xf32>
    %cst_58 = arith.constant 0.176776692 : f32
    %101 = vector.broadcast %cst_58 : f32 to vector<8x8xf32>
    %102 = arith.mulf %100, %101 : vector<8x8xf32>
    %cst_59 = arith.constant -1.000000e+30 : f32
    %103 = vector.broadcast %cst_59 : f32 to vector<8x8xf32>
    %104 = arith.select %28, %102, %103 : vector<8x8xi1>, vector<8x8xf32>
    %cst_60 = arith.constant dense<0xFF800000> : vector<8xf32>
    %105 = vector.multi_reduction <maximumf>, %104, %cst_60 [1] : vector<8x8xf32> to vector<8xf32>
    %106 = vector.shape_cast %105 : vector<8xf32> to vector<8x1xf32>
    %107 = vector.broadcast %106 : vector<8x1xf32> to vector<8x8xf32>
    %108 = arith.subf %104, %107 : vector<8x8xf32>
    %109 = math.exp %108 : vector<8x8xf32>
    %cst_61 = arith.constant dense<0.000000e+00> : vector<8xf32>
    %110 = vector.multi_reduction <add>, %109, %cst_61 [1] : vector<8x8xf32> to vector<8xf32>
    %111 = vector.shape_cast %110 : vector<8xf32> to vector<8x1xf32>
    %112 = tpu.reciprocal %111 {approx = true} : vector<8x1xf32> -> vector<8x1xf32>
    %113 = vector.broadcast %112 : vector<8x1xf32> to vector<8x8xf32>
    %114 = arith.mulf %109, %113 : vector<8x8xf32>
    %115 = arith.truncf %114 : vector<8x8xf32> to vector<8x8xbf16>
    %cst_62 = arith.constant dense<0.000000e+00> : vector<8x32xf32>
    %116 = tpu.matmul %115, %99, %cst_62 {dimension_numbers = #tpu.dot_dimension_numbers<[1], [0], [0], [1], [0, 0, 1, 1], [], []>} : vector<8x8xbf16>, vector<8x32xbf16>, vector<8x32xf32> -> vector<8x32xf32>
    %117 = arith.truncf %116 : vector<8x32xf32> to vector<8x32xbf16>
    %118 = vector.extract_strided_slice %65 {offsets = [32, 0], sizes = [32, 128], strides = [1, 1]} : vector<128x128xbf16> to vector<32x128xbf16>
    %cst_63 = arith.constant dense<0.000000e+00> : vector<8x128xf32>
    %119 = tpu.matmul %117, %118, %cst_63 {dimension_numbers = #tpu.dot_dimension_numbers<[1], [0], [0], [1], [0, 0, 1, 1], [], []>} : vector<8x32xbf16>, vector<32x128xbf16>, vector<8x128xf32> -> vector<8x128xf32>
    %120 = arith.addf %93, %119 : vector<8x128xf32>
    %121 = vector.extract_strided_slice %61 {offsets = [0, 64], sizes = [8, 32], strides = [1, 1]} : vector<8x128xf32> to vector<8x32xf32>
    %122 = arith.truncf %121 : vector<8x32xf32> to vector<8x32xbf16>
    %123 = vector.extract_strided_slice %62 {offsets = [0, 64], sizes = [8, 32], strides = [1, 1]} : vector<8x128xf32> to vector<8x32xf32>
    %124 = arith.truncf %123 : vector<8x32xf32> to vector<8x32xbf16>
    %125 = vector.extract_strided_slice %63 {offsets = [0, 64], sizes = [8, 32], strides = [1, 1]} : vector<8x128xf32> to vector<8x32xf32>
    %126 = arith.truncf %125 : vector<8x32xf32> to vector<8x32xbf16>
    %cst_64 = arith.constant dense<0.000000e+00> : vector<8x8xf32>
    %127 = tpu.matmul %122, %124, %cst_64 {dimension_numbers = #tpu.dot_dimension_numbers<[1], [1], [0], [0], [0, 0, 1, 0], [], []>} : vector<8x32xbf16>, vector<8x32xbf16>, vector<8x8xf32> -> vector<8x8xf32>
    %cst_65 = arith.constant 0.176776692 : f32
    %128 = vector.broadcast %cst_65 : f32 to vector<8x8xf32>
    %129 = arith.mulf %127, %128 : vector<8x8xf32>
    %cst_66 = arith.constant -1.000000e+30 : f32
    %130 = vector.broadcast %cst_66 : f32 to vector<8x8xf32>
    %131 = arith.select %28, %129, %130 : vector<8x8xi1>, vector<8x8xf32>
    %cst_67 = arith.constant dense<0xFF800000> : vector<8xf32>
    %132 = vector.multi_reduction <maximumf>, %131, %cst_67 [1] : vector<8x8xf32> to vector<8xf32>
    %133 = vector.shape_cast %132 : vector<8xf32> to vector<8x1xf32>
    %134 = vector.broadcast %133 : vector<8x1xf32> to vector<8x8xf32>
    %135 = arith.subf %131, %134 : vector<8x8xf32>
    %136 = math.exp %135 : vector<8x8xf32>
    %cst_68 = arith.constant dense<0.000000e+00> : vector<8xf32>
    %137 = vector.multi_reduction <add>, %136, %cst_68 [1] : vector<8x8xf32> to vector<8xf32>
    %138 = vector.shape_cast %137 : vector<8xf32> to vector<8x1xf32>
    %139 = tpu.reciprocal %138 {approx = true} : vector<8x1xf32> -> vector<8x1xf32>
    %140 = vector.broadcast %139 : vector<8x1xf32> to vector<8x8xf32>
    %141 = arith.mulf %136, %140 : vector<8x8xf32>
    %142 = arith.truncf %141 : vector<8x8xf32> to vector<8x8xbf16>
    %cst_69 = arith.constant dense<0.000000e+00> : vector<8x32xf32>
    %143 = tpu.matmul %142, %126, %cst_69 {dimension_numbers = #tpu.dot_dimension_numbers<[1], [0], [0], [1], [0, 0, 1, 1], [], []>} : vector<8x8xbf16>, vector<8x32xbf16>, vector<8x32xf32> -> vector<8x32xf32>
    %144 = arith.truncf %143 : vector<8x32xf32> to vector<8x32xbf16>
    %145 = vector.extract_strided_slice %65 {offsets = [64, 0], sizes = [32, 128], strides = [1, 1]} : vector<128x128xbf16> to vector<32x128xbf16>
    %cst_70 = arith.constant dense<0.000000e+00> : vector<8x128xf32>
    %146 = tpu.matmul %144, %145, %cst_70 {dimension_numbers = #tpu.dot_dimension_numbers<[1], [0], [0], [1], [0, 0, 1, 1], [], []>} : vector<8x32xbf16>, vector<32x128xbf16>, vector<8x128xf32> -> vector<8x128xf32>
    %147 = arith.addf %120, %146 : vector<8x128xf32>
    %148 = vector.extract_strided_slice %61 {offsets = [0, 96], sizes = [8, 32], strides = [1, 1]} : vector<8x128xf32> to vector<8x32xf32>
    %149 = arith.truncf %148 : vector<8x32xf32> to vector<8x32xbf16>
    %150 = vector.extract_strided_slice %62 {offsets = [0, 96], sizes = [8, 32], strides = [1, 1]} : vector<8x128xf32> to vector<8x32xf32>
    %151 = arith.truncf %150 : vector<8x32xf32> to vector<8x32xbf16>
    %152 = vector.extract_strided_slice %63 {offsets = [0, 96], sizes = [8, 32], strides = [1, 1]} : vector<8x128xf32> to vector<8x32xf32>
    %153 = arith.truncf %152 : vector<8x32xf32> to vector<8x32xbf16>
    %cst_71 = arith.constant dense<0.000000e+00> : vector<8x8xf32>
    %154 = tpu.matmul %149, %151, %cst_71 {dimension_numbers = #tpu.dot_dimension_numbers<[1], [1], [0], [0], [0, 0, 1, 0], [], []>} : vector<8x32xbf16>, vector<8x32xbf16>, vector<8x8xf32> -> vector<8x8xf32>
    %cst_72 = arith.constant 0.176776692 : f32
    %155 = vector.broadcast %cst_72 : f32 to vector<8x8xf32>
    %156 = arith.mulf %154, %155 : vector<8x8xf32>
    %cst_73 = arith.constant -1.000000e+30 : f32
    %157 = vector.broadcast %cst_73 : f32 to vector<8x8xf32>
    %158 = arith.select %28, %156, %157 : vector<8x8xi1>, vector<8x8xf32>
    %cst_74 = arith.constant dense<0xFF800000> : vector<8xf32>
    %159 = vector.multi_reduction <maximumf>, %158, %cst_74 [1] : vector<8x8xf32> to vector<8xf32>
    %160 = vector.shape_cast %159 : vector<8xf32> to vector<8x1xf32>
    %161 = vector.broadcast %160 : vector<8x1xf32> to vector<8x8xf32>
    %162 = arith.subf %158, %161 : vector<8x8xf32>
    %163 = math.exp %162 : vector<8x8xf32>
    %cst_75 = arith.constant dense<0.000000e+00> : vector<8xf32>
    %164 = vector.multi_reduction <add>, %163, %cst_75 [1] : vector<8x8xf32> to vector<8xf32>
    %165 = vector.shape_cast %164 : vector<8xf32> to vector<8x1xf32>
    %166 = tpu.reciprocal %165 {approx = true} : vector<8x1xf32> -> vector<8x1xf32>
    %167 = vector.broadcast %166 : vector<8x1xf32> to vector<8x8xf32>
    %168 = arith.mulf %163, %167 : vector<8x8xf32>
    %169 = arith.truncf %168 : vector<8x8xf32> to vector<8x8xbf16>
    %cst_76 = arith.constant dense<0.000000e+00> : vector<8x32xf32>
    %170 = tpu.matmul %169, %153, %cst_76 {dimension_numbers = #tpu.dot_dimension_numbers<[1], [0], [0], [1], [0, 0, 1, 1], [], []>} : vector<8x8xbf16>, vector<8x32xbf16>, vector<8x32xf32> -> vector<8x32xf32>
    %171 = arith.truncf %170 : vector<8x32xf32> to vector<8x32xbf16>
    %172 = vector.extract_strided_slice %65 {offsets = [96, 0], sizes = [32, 128], strides = [1, 1]} : vector<128x128xbf16> to vector<32x128xbf16>
    %cst_77 = arith.constant dense<0.000000e+00> : vector<8x128xf32>
    %173 = tpu.matmul %171, %172, %cst_77 {dimension_numbers = #tpu.dot_dimension_numbers<[1], [0], [0], [1], [0, 0, 1, 1], [], []>} : vector<8x32xbf16>, vector<32x128xbf16>, vector<8x128xf32> -> vector<8x128xf32>
    %174 = arith.addf %147, %173 : vector<8x128xf32>
    %175 = arith.addf %25, %174 : vector<8x128xf32>
    %c0_78 = arith.constant 0 : index
    %c0_79 = arith.constant 0 : index
    %c0_80 = arith.constant 0 : index
    %176 = vector.load %arg17[%c0_78, %c0_79, %c0_80] : memref<2x1x128xf32, #tpu.memory_space<vmem>>, vector<1x1x128xf32>
    %177 = vector.shape_cast %176 : vector<1x1x128xf32> to vector<1x128xf32>
    %178 = vector.broadcast %177 : vector<1x128xf32> to vector<8x128xf32>
    %179 = arith.addf %175, %178 : vector<8x128xf32>
    %c0_81 = arith.constant 0 : index
    %c0_82 = arith.constant 0 : index
    %c0_83 = arith.constant 0 : index
    %180 = vector.load %arg18[%c0_81, %c0_82, %c0_83] : memref<2x1x128xf32, #tpu.memory_space<vmem>>, vector<1x1x128xf32>
    %181 = vector.shape_cast %180 : vector<1x1x128xf32> to vector<1x128xf32>
    %c0_84 = arith.constant 0 : index
    %c0_85 = arith.constant 0 : index
    %c0_86 = arith.constant 0 : index
    %182 = vector.load %arg19[%c0_84, %c0_85, %c0_86] : memref<2x1x128xf32, #tpu.memory_space<vmem>>, vector<1x1x128xf32>
    %183 = vector.shape_cast %182 : vector<1x1x128xf32> to vector<1x128xf32>
    %cst_87 = arith.constant dense<0.000000e+00> : vector<8xf32>
    %184 = vector.multi_reduction <add>, %179, %cst_87 [1] : vector<8x128xf32> to vector<8xf32>
    %185 = vector.shape_cast %184 : vector<8xf32> to vector<8x1xf32>
    %cst_88 = arith.constant 1.280000e+02 : f32
    %186 = vector.broadcast %cst_88 : f32 to vector<8x1xf32>
    %187 = arith.divf %185, %186 : vector<8x1xf32>
    %188 = vector.broadcast %187 : vector<8x1xf32> to vector<8x128xf32>
    %189 = arith.subf %179, %188 : vector<8x128xf32>
    %190 = arith.mulf %189, %189 : vector<8x128xf32>
    %cst_89 = arith.constant dense<0.000000e+00> : vector<8xf32>
    %191 = vector.multi_reduction <add>, %190, %cst_89 [1] : vector<8x128xf32> to vector<8xf32>
    %192 = vector.shape_cast %191 : vector<8xf32> to vector<8x1xf32>
    %cst_90 = arith.constant 1.280000e+02 : f32
    %193 = vector.broadcast %cst_90 : f32 to vector<8x1xf32>
    %194 = arith.divf %192, %193 : vector<8x1xf32>
    %cst_91 = arith.constant 9.99999974E-6 : f32
    %195 = vector.broadcast %cst_91 : f32 to vector<8x1xf32>
    %196 = arith.addf %194, %195 : vector<8x1xf32>
    %197 = math.rsqrt %196 : vector<8x1xf32>
    %198 = vector.broadcast %197 : vector<8x1xf32> to vector<8x128xf32>
    %199 = arith.mulf %189, %198 : vector<8x128xf32>
    %200 = vector.broadcast %181 : vector<1x128xf32> to vector<8x128xf32>
    %201 = arith.mulf %199, %200 : vector<8x128xf32>
    %202 = vector.broadcast %183 : vector<1x128xf32> to vector<8x128xf32>
    %203 = arith.addf %201, %202 : vector<8x128xf32>
    %c0_92 = arith.constant 0 : index
    %c0_93 = arith.constant 0 : index
    %c0_94 = arith.constant 0 : index
    %204 = vector.load %arg20[%c0_92, %c0_93, %c0_94] : memref<2x128x512xbf16, #tpu.memory_space<vmem>>, vector<1x128x512xbf16>
    %205 = vector.shape_cast %204 : vector<1x128x512xbf16> to vector<128x512xbf16>
    %206 = arith.truncf %203 : vector<8x128xf32> to vector<8x128xbf16>
    %cst_95 = arith.constant dense<0.000000e+00> : vector<8x512xf32>
    %207 = tpu.matmul %206, %205, %cst_95 {dimension_numbers = #tpu.dot_dimension_numbers<[1], [0], [0], [1], [0, 0, 1, 1], [], []>} : vector<8x128xbf16>, vector<128x512xbf16>, vector<8x512xf32> -> vector<8x512xf32>
    %c0_96 = arith.constant 0 : index
    %c0_97 = arith.constant 0 : index
    %c0_98 = arith.constant 0 : index
    %208 = vector.load %arg21[%c0_96, %c0_97, %c0_98] : memref<2x1x512xf32, #tpu.memory_space<vmem>>, vector<1x1x512xf32>
    %209 = vector.shape_cast %208 : vector<1x1x512xf32> to vector<1x512xf32>
    %210 = vector.broadcast %209 : vector<1x512xf32> to vector<8x512xf32>
    %211 = arith.addf %207, %210 : vector<8x512xf32>
    %212 = arith.mulf %211, %211 : vector<8x512xf32>
    %213 = arith.mulf %211, %212 : vector<8x512xf32>
    %cst_99 = arith.constant 4.471500e-02 : f32
    %214 = vector.broadcast %cst_99 : f32 to vector<8x512xf32>
    %215 = arith.mulf %214, %213 : vector<8x512xf32>
    %216 = arith.addf %211, %215 : vector<8x512xf32>
    %cst_100 = arith.constant 0.797884583 : f32
    %217 = vector.broadcast %cst_100 : f32 to vector<8x512xf32>
    %218 = arith.mulf %217, %216 : vector<8x512xf32>
    %219 = math.tanh %218 : vector<8x512xf32>
    %cst_101 = arith.constant 1.000000e+00 : f32
    %220 = vector.broadcast %cst_101 : f32 to vector<8x512xf32>
    %221 = arith.addf %220, %219 : vector<8x512xf32>
    %cst_102 = arith.constant 5.000000e-01 : f32
    %222 = vector.broadcast %cst_102 : f32 to vector<8x512xf32>
    %223 = arith.mulf %222, %221 : vector<8x512xf32>
    %224 = arith.mulf %211, %223 : vector<8x512xf32>
    %c0_103 = arith.constant 0 : index
    %c0_104 = arith.constant 0 : index
    %c0_105 = arith.constant 0 : index
    %225 = vector.load %arg22[%c0_103, %c0_104, %c0_105] : memref<2x512x128xbf16, #tpu.memory_space<vmem>>, vector<1x512x128xbf16>
    %226 = vector.shape_cast %225 : vector<1x512x128xbf16> to vector<512x128xbf16>
    %227 = arith.truncf %224 : vector<8x512xf32> to vector<8x512xbf16>
    %cst_106 = arith.constant dense<0.000000e+00> : vector<8x128xf32>
    %228 = tpu.matmul %227, %226, %cst_106 {dimension_numbers = #tpu.dot_dimension_numbers<[1], [0], [0], [1], [0, 0, 1, 1], [], []>} : vector<8x512xbf16>, vector<512x128xbf16>, vector<8x128xf32> -> vector<8x128xf32>
    %229 = arith.addf %179, %228 : vector<8x128xf32>
    %c0_107 = arith.constant 0 : index
    %c0_108 = arith.constant 0 : index
    %c0_109 = arith.constant 0 : index
    %230 = vector.load %arg23[%c0_107, %c0_108, %c0_109] : memref<2x1x128xf32, #tpu.memory_space<vmem>>, vector<1x1x128xf32>
    %231 = vector.shape_cast %230 : vector<1x1x128xf32> to vector<1x128xf32>
    %232 = vector.broadcast %231 : vector<1x128xf32> to vector<8x128xf32>
    %233 = arith.addf %229, %232 : vector<8x128xf32>
    %c1 = arith.constant 1 : index
    %c0_110 = arith.constant 0 : index
    %c0_111 = arith.constant 0 : index
    %234 = vector.load %arg12[%c1, %c0_110, %c0_111] : memref<2x1x128xf32, #tpu.memory_space<vmem>>, vector<1x1x128xf32>
    %235 = vector.shape_cast %234 : vector<1x1x128xf32> to vector<1x128xf32>
    %c1_112 = arith.constant 1 : index
    %c0_113 = arith.constant 0 : index
    %c0_114 = arith.constant 0 : index
    %236 = vector.load %arg13[%c1_112, %c0_113, %c0_114] : memref<2x1x128xf32, #tpu.memory_space<vmem>>, vector<1x1x128xf32>
    %237 = vector.shape_cast %236 : vector<1x1x128xf32> to vector<1x128xf32>
    %cst_115 = arith.constant dense<0.000000e+00> : vector<8xf32>
    %238 = vector.multi_reduction <add>, %233, %cst_115 [1] : vector<8x128xf32> to vector<8xf32>
    %239 = vector.shape_cast %238 : vector<8xf32> to vector<8x1xf32>
    %cst_116 = arith.constant 1.280000e+02 : f32
    %240 = vector.broadcast %cst_116 : f32 to vector<8x1xf32>
    %241 = arith.divf %239, %240 : vector<8x1xf32>
    %242 = vector.broadcast %241 : vector<8x1xf32> to vector<8x128xf32>
    %243 = arith.subf %233, %242 : vector<8x128xf32>
    %244 = arith.mulf %243, %243 : vector<8x128xf32>
    %cst_117 = arith.constant dense<0.000000e+00> : vector<8xf32>
    %245 = vector.multi_reduction <add>, %244, %cst_117 [1] : vector<8x128xf32> to vector<8xf32>
    %246 = vector.shape_cast %245 : vector<8xf32> to vector<8x1xf32>
    %cst_118 = arith.constant 1.280000e+02 : f32
    %247 = vector.broadcast %cst_118 : f32 to vector<8x1xf32>
    %248 = arith.divf %246, %247 : vector<8x1xf32>
    %cst_119 = arith.constant 9.99999974E-6 : f32
    %249 = vector.broadcast %cst_119 : f32 to vector<8x1xf32>
    %250 = arith.addf %248, %249 : vector<8x1xf32>
    %251 = math.rsqrt %250 : vector<8x1xf32>
    %252 = vector.broadcast %251 : vector<8x1xf32> to vector<8x128xf32>
    %253 = arith.mulf %243, %252 : vector<8x128xf32>
    %254 = vector.broadcast %235 : vector<1x128xf32> to vector<8x128xf32>
    %255 = arith.mulf %253, %254 : vector<8x128xf32>
    %256 = vector.broadcast %237 : vector<1x128xf32> to vector<8x128xf32>
    %257 = arith.addf %255, %256 : vector<8x128xf32>
    %c1_120 = arith.constant 1 : index
    %c0_121 = arith.constant 0 : index
    %c0_122 = arith.constant 0 : index
    %258 = vector.load %arg14[%c1_120, %c0_121, %c0_122] : memref<2x128x384xbf16, #tpu.memory_space<vmem>>, vector<1x128x384xbf16>
    %259 = vector.shape_cast %258 : vector<1x128x384xbf16> to vector<128x384xbf16>
    %260 = arith.truncf %257 : vector<8x128xf32> to vector<8x128xbf16>
    %cst_123 = arith.constant dense<0.000000e+00> : vector<8x384xf32>
    %261 = tpu.matmul %260, %259, %cst_123 {dimension_numbers = #tpu.dot_dimension_numbers<[1], [0], [0], [1], [0, 0, 1, 1], [], []>} : vector<8x128xbf16>, vector<128x384xbf16>, vector<8x384xf32> -> vector<8x384xf32>
    %c1_124 = arith.constant 1 : index
    %c0_125 = arith.constant 0 : index
    %c0_126 = arith.constant 0 : index
    %262 = vector.load %arg15[%c1_124, %c0_125, %c0_126] : memref<2x1x384xf32, #tpu.memory_space<vmem>>, vector<1x1x384xf32>
    %263 = vector.shape_cast %262 : vector<1x1x384xf32> to vector<1x384xf32>
    %264 = vector.broadcast %263 : vector<1x384xf32> to vector<8x384xf32>
    %265 = arith.addf %261, %264 : vector<8x384xf32>
    %266 = vector.extract_strided_slice %265 {offsets = [0, 0], sizes = [8, 128], strides = [1, 1]} : vector<8x384xf32> to vector<8x128xf32>
    %267 = vector.extract_strided_slice %265 {offsets = [0, 128], sizes = [8, 128], strides = [1, 1]} : vector<8x384xf32> to vector<8x128xf32>
    %268 = vector.extract_strided_slice %265 {offsets = [0, 256], sizes = [8, 128], strides = [1, 1]} : vector<8x384xf32> to vector<8x128xf32>
    %c1_127 = arith.constant 1 : index
    %c0_128 = arith.constant 0 : index
    %c0_129 = arith.constant 0 : index
    %269 = vector.load %arg16[%c1_127, %c0_128, %c0_129] : memref<2x128x128xbf16, #tpu.memory_space<vmem>>, vector<1x128x128xbf16>
    %270 = vector.shape_cast %269 : vector<1x128x128xbf16> to vector<128x128xbf16>
    %cst_130 = arith.constant 0.000000e+00 : f32
    %271 = vector.broadcast %cst_130 : f32 to vector<8x128xf32>
    %272 = vector.extract_strided_slice %266 {offsets = [0, 0], sizes = [8, 32], strides = [1, 1]} : vector<8x128xf32> to vector<8x32xf32>
    %273 = arith.truncf %272 : vector<8x32xf32> to vector<8x32xbf16>
    %274 = vector.extract_strided_slice %267 {offsets = [0, 0], sizes = [8, 32], strides = [1, 1]} : vector<8x128xf32> to vector<8x32xf32>
    %275 = arith.truncf %274 : vector<8x32xf32> to vector<8x32xbf16>
    %276 = vector.extract_strided_slice %268 {offsets = [0, 0], sizes = [8, 32], strides = [1, 1]} : vector<8x128xf32> to vector<8x32xf32>
    %277 = arith.truncf %276 : vector<8x32xf32> to vector<8x32xbf16>
    %cst_131 = arith.constant dense<0.000000e+00> : vector<8x8xf32>
    %278 = tpu.matmul %273, %275, %cst_131 {dimension_numbers = #tpu.dot_dimension_numbers<[1], [1], [0], [0], [0, 0, 1, 0], [], []>} : vector<8x32xbf16>, vector<8x32xbf16>, vector<8x8xf32> -> vector<8x8xf32>
    %cst_132 = arith.constant 0.176776692 : f32
    %279 = vector.broadcast %cst_132 : f32 to vector<8x8xf32>
    %280 = arith.mulf %278, %279 : vector<8x8xf32>
    %cst_133 = arith.constant -1.000000e+30 : f32
    %281 = vector.broadcast %cst_133 : f32 to vector<8x8xf32>
    %282 = arith.select %28, %280, %281 : vector<8x8xi1>, vector<8x8xf32>
    %cst_134 = arith.constant dense<0xFF800000> : vector<8xf32>
    %283 = vector.multi_reduction <maximumf>, %282, %cst_134 [1] : vector<8x8xf32> to vector<8xf32>
    %284 = vector.shape_cast %283 : vector<8xf32> to vector<8x1xf32>
    %285 = vector.broadcast %284 : vector<8x1xf32> to vector<8x8xf32>
    %286 = arith.subf %282, %285 : vector<8x8xf32>
    %287 = math.exp %286 : vector<8x8xf32>
    %cst_135 = arith.constant dense<0.000000e+00> : vector<8xf32>
    %288 = vector.multi_reduction <add>, %287, %cst_135 [1] : vector<8x8xf32> to vector<8xf32>
    %289 = vector.shape_cast %288 : vector<8xf32> to vector<8x1xf32>
    %290 = tpu.reciprocal %289 {approx = true} : vector<8x1xf32> -> vector<8x1xf32>
    %291 = vector.broadcast %290 : vector<8x1xf32> to vector<8x8xf32>
    %292 = arith.mulf %287, %291 : vector<8x8xf32>
    %293 = arith.truncf %292 : vector<8x8xf32> to vector<8x8xbf16>
    %cst_136 = arith.constant dense<0.000000e+00> : vector<8x32xf32>
    %294 = tpu.matmul %293, %277, %cst_136 {dimension_numbers = #tpu.dot_dimension_numbers<[1], [0], [0], [1], [0, 0, 1, 1], [], []>} : vector<8x8xbf16>, vector<8x32xbf16>, vector<8x32xf32> -> vector<8x32xf32>
    %295 = arith.truncf %294 : vector<8x32xf32> to vector<8x32xbf16>
    %296 = vector.extract_strided_slice %270 {offsets = [0, 0], sizes = [32, 128], strides = [1, 1]} : vector<128x128xbf16> to vector<32x128xbf16>
    %cst_137 = arith.constant dense<0.000000e+00> : vector<8x128xf32>
    %297 = tpu.matmul %295, %296, %cst_137 {dimension_numbers = #tpu.dot_dimension_numbers<[1], [0], [0], [1], [0, 0, 1, 1], [], []>} : vector<8x32xbf16>, vector<32x128xbf16>, vector<8x128xf32> -> vector<8x128xf32>
    %298 = arith.addf %271, %297 : vector<8x128xf32>
    %299 = vector.extract_strided_slice %266 {offsets = [0, 32], sizes = [8, 32], strides = [1, 1]} : vector<8x128xf32> to vector<8x32xf32>
    %300 = arith.truncf %299 : vector<8x32xf32> to vector<8x32xbf16>
    %301 = vector.extract_strided_slice %267 {offsets = [0, 32], sizes = [8, 32], strides = [1, 1]} : vector<8x128xf32> to vector<8x32xf32>
    %302 = arith.truncf %301 : vector<8x32xf32> to vector<8x32xbf16>
    %303 = vector.extract_strided_slice %268 {offsets = [0, 32], sizes = [8, 32], strides = [1, 1]} : vector<8x128xf32> to vector<8x32xf32>
    %304 = arith.truncf %303 : vector<8x32xf32> to vector<8x32xbf16>
    %cst_138 = arith.constant dense<0.000000e+00> : vector<8x8xf32>
    %305 = tpu.matmul %300, %302, %cst_138 {dimension_numbers = #tpu.dot_dimension_numbers<[1], [1], [0], [0], [0, 0, 1, 0], [], []>} : vector<8x32xbf16>, vector<8x32xbf16>, vector<8x8xf32> -> vector<8x8xf32>
    %cst_139 = arith.constant 0.176776692 : f32
    %306 = vector.broadcast %cst_139 : f32 to vector<8x8xf32>
    %307 = arith.mulf %305, %306 : vector<8x8xf32>
    %cst_140 = arith.constant -1.000000e+30 : f32
    %308 = vector.broadcast %cst_140 : f32 to vector<8x8xf32>
    %309 = arith.select %28, %307, %308 : vector<8x8xi1>, vector<8x8xf32>
    %cst_141 = arith.constant dense<0xFF800000> : vector<8xf32>
    %310 = vector.multi_reduction <maximumf>, %309, %cst_141 [1] : vector<8x8xf32> to vector<8xf32>
    %311 = vector.shape_cast %310 : vector<8xf32> to vector<8x1xf32>
    %312 = vector.broadcast %311 : vector<8x1xf32> to vector<8x8xf32>
    %313 = arith.subf %309, %312 : vector<8x8xf32>
    %314 = math.exp %313 : vector<8x8xf32>
    %cst_142 = arith.constant dense<0.000000e+00> : vector<8xf32>
    %315 = vector.multi_reduction <add>, %314, %cst_142 [1] : vector<8x8xf32> to vector<8xf32>
    %316 = vector.shape_cast %315 : vector<8xf32> to vector<8x1xf32>
    %317 = tpu.reciprocal %316 {approx = true} : vector<8x1xf32> -> vector<8x1xf32>
    %318 = vector.broadcast %317 : vector<8x1xf32> to vector<8x8xf32>
    %319 = arith.mulf %314, %318 : vector<8x8xf32>
    %320 = arith.truncf %319 : vector<8x8xf32> to vector<8x8xbf16>
    %cst_143 = arith.constant dense<0.000000e+00> : vector<8x32xf32>
    %321 = tpu.matmul %320, %304, %cst_143 {dimension_numbers = #tpu.dot_dimension_numbers<[1], [0], [0], [1], [0, 0, 1, 1], [], []>} : vector<8x8xbf16>, vector<8x32xbf16>, vector<8x32xf32> -> vector<8x32xf32>
    %322 = arith.truncf %321 : vector<8x32xf32> to vector<8x32xbf16>
    %323 = vector.extract_strided_slice %270 {offsets = [32, 0], sizes = [32, 128], strides = [1, 1]} : vector<128x128xbf16> to vector<32x128xbf16>
    %cst_144 = arith.constant dense<0.000000e+00> : vector<8x128xf32>
    %324 = tpu.matmul %322, %323, %cst_144 {dimension_numbers = #tpu.dot_dimension_numbers<[1], [0], [0], [1], [0, 0, 1, 1], [], []>} : vector<8x32xbf16>, vector<32x128xbf16>, vector<8x128xf32> -> vector<8x128xf32>
    %325 = arith.addf %298, %324 : vector<8x128xf32>
    %326 = vector.extract_strided_slice %266 {offsets = [0, 64], sizes = [8, 32], strides = [1, 1]} : vector<8x128xf32> to vector<8x32xf32>
    %327 = arith.truncf %326 : vector<8x32xf32> to vector<8x32xbf16>
    %328 = vector.extract_strided_slice %267 {offsets = [0, 64], sizes = [8, 32], strides = [1, 1]} : vector<8x128xf32> to vector<8x32xf32>
    %329 = arith.truncf %328 : vector<8x32xf32> to vector<8x32xbf16>
    %330 = vector.extract_strided_slice %268 {offsets = [0, 64], sizes = [8, 32], strides = [1, 1]} : vector<8x128xf32> to vector<8x32xf32>
    %331 = arith.truncf %330 : vector<8x32xf32> to vector<8x32xbf16>
    %cst_145 = arith.constant dense<0.000000e+00> : vector<8x8xf32>
    %332 = tpu.matmul %327, %329, %cst_145 {dimension_numbers = #tpu.dot_dimension_numbers<[1], [1], [0], [0], [0, 0, 1, 0], [], []>} : vector<8x32xbf16>, vector<8x32xbf16>, vector<8x8xf32> -> vector<8x8xf32>
    %cst_146 = arith.constant 0.176776692 : f32
    %333 = vector.broadcast %cst_146 : f32 to vector<8x8xf32>
    %334 = arith.mulf %332, %333 : vector<8x8xf32>
    %cst_147 = arith.constant -1.000000e+30 : f32
    %335 = vector.broadcast %cst_147 : f32 to vector<8x8xf32>
    %336 = arith.select %28, %334, %335 : vector<8x8xi1>, vector<8x8xf32>
    %cst_148 = arith.constant dense<0xFF800000> : vector<8xf32>
    %337 = vector.multi_reduction <maximumf>, %336, %cst_148 [1] : vector<8x8xf32> to vector<8xf32>
    %338 = vector.shape_cast %337 : vector<8xf32> to vector<8x1xf32>
    %339 = vector.broadcast %338 : vector<8x1xf32> to vector<8x8xf32>
    %340 = arith.subf %336, %339 : vector<8x8xf32>
    %341 = math.exp %340 : vector<8x8xf32>
    %cst_149 = arith.constant dense<0.000000e+00> : vector<8xf32>
    %342 = vector.multi_reduction <add>, %341, %cst_149 [1] : vector<8x8xf32> to vector<8xf32>
    %343 = vector.shape_cast %342 : vector<8xf32> to vector<8x1xf32>
    %344 = tpu.reciprocal %343 {approx = true} : vector<8x1xf32> -> vector<8x1xf32>
    %345 = vector.broadcast %344 : vector<8x1xf32> to vector<8x8xf32>
    %346 = arith.mulf %341, %345 : vector<8x8xf32>
    %347 = arith.truncf %346 : vector<8x8xf32> to vector<8x8xbf16>
    %cst_150 = arith.constant dense<0.000000e+00> : vector<8x32xf32>
    %348 = tpu.matmul %347, %331, %cst_150 {dimension_numbers = #tpu.dot_dimension_numbers<[1], [0], [0], [1], [0, 0, 1, 1], [], []>} : vector<8x8xbf16>, vector<8x32xbf16>, vector<8x32xf32> -> vector<8x32xf32>
    %349 = arith.truncf %348 : vector<8x32xf32> to vector<8x32xbf16>
    %350 = vector.extract_strided_slice %270 {offsets = [64, 0], sizes = [32, 128], strides = [1, 1]} : vector<128x128xbf16> to vector<32x128xbf16>
    %cst_151 = arith.constant dense<0.000000e+00> : vector<8x128xf32>
    %351 = tpu.matmul %349, %350, %cst_151 {dimension_numbers = #tpu.dot_dimension_numbers<[1], [0], [0], [1], [0, 0, 1, 1], [], []>} : vector<8x32xbf16>, vector<32x128xbf16>, vector<8x128xf32> -> vector<8x128xf32>
    %352 = arith.addf %325, %351 : vector<8x128xf32>
    %353 = vector.extract_strided_slice %266 {offsets = [0, 96], sizes = [8, 32], strides = [1, 1]} : vector<8x128xf32> to vector<8x32xf32>
    %354 = arith.truncf %353 : vector<8x32xf32> to vector<8x32xbf16>
    %355 = vector.extract_strided_slice %267 {offsets = [0, 96], sizes = [8, 32], strides = [1, 1]} : vector<8x128xf32> to vector<8x32xf32>
    %356 = arith.truncf %355 : vector<8x32xf32> to vector<8x32xbf16>
    %357 = vector.extract_strided_slice %268 {offsets = [0, 96], sizes = [8, 32], strides = [1, 1]} : vector<8x128xf32> to vector<8x32xf32>
    %358 = arith.truncf %357 : vector<8x32xf32> to vector<8x32xbf16>
    %cst_152 = arith.constant dense<0.000000e+00> : vector<8x8xf32>
    %359 = tpu.matmul %354, %356, %cst_152 {dimension_numbers = #tpu.dot_dimension_numbers<[1], [1], [0], [0], [0, 0, 1, 0], [], []>} : vector<8x32xbf16>, vector<8x32xbf16>, vector<8x8xf32> -> vector<8x8xf32>
    %cst_153 = arith.constant 0.176776692 : f32
    %360 = vector.broadcast %cst_153 : f32 to vector<8x8xf32>
    %361 = arith.mulf %359, %360 : vector<8x8xf32>
    %cst_154 = arith.constant -1.000000e+30 : f32
    %362 = vector.broadcast %cst_154 : f32 to vector<8x8xf32>
    %363 = arith.select %28, %361, %362 : vector<8x8xi1>, vector<8x8xf32>
    %cst_155 = arith.constant dense<0xFF800000> : vector<8xf32>
    %364 = vector.multi_reduction <maximumf>, %363, %cst_155 [1] : vector<8x8xf32> to vector<8xf32>
    %365 = vector.shape_cast %364 : vector<8xf32> to vector<8x1xf32>
    %366 = vector.broadcast %365 : vector<8x1xf32> to vector<8x8xf32>
    %367 = arith.subf %363, %366 : vector<8x8xf32>
    %368 = math.exp %367 : vector<8x8xf32>
    %cst_156 = arith.constant dense<0.000000e+00> : vector<8xf32>
    %369 = vector.multi_reduction <add>, %368, %cst_156 [1] : vector<8x8xf32> to vector<8xf32>
    %370 = vector.shape_cast %369 : vector<8xf32> to vector<8x1xf32>
    %371 = tpu.reciprocal %370 {approx = true} : vector<8x1xf32> -> vector<8x1xf32>
    %372 = vector.broadcast %371 : vector<8x1xf32> to vector<8x8xf32>
    %373 = arith.mulf %368, %372 : vector<8x8xf32>
    %374 = arith.truncf %373 : vector<8x8xf32> to vector<8x8xbf16>
    %cst_157 = arith.constant dense<0.000000e+00> : vector<8x32xf32>
    %375 = tpu.matmul %374, %358, %cst_157 {dimension_numbers = #tpu.dot_dimension_numbers<[1], [0], [0], [1], [0, 0, 1, 1], [], []>} : vector<8x8xbf16>, vector<8x32xbf16>, vector<8x32xf32> -> vector<8x32xf32>
    %376 = arith.truncf %375 : vector<8x32xf32> to vector<8x32xbf16>
    %377 = vector.extract_strided_slice %270 {offsets = [96, 0], sizes = [32, 128], strides = [1, 1]} : vector<128x128xbf16> to vector<32x128xbf16>
    %cst_158 = arith.constant dense<0.000000e+00> : vector<8x128xf32>
    %378 = tpu.matmul %376, %377, %cst_158 {dimension_numbers = #tpu.dot_dimension_numbers<[1], [0], [0], [1], [0, 0, 1, 1], [], []>} : vector<8x32xbf16>, vector<32x128xbf16>, vector<8x128xf32> -> vector<8x128xf32>
    %379 = arith.addf %352, %378 : vector<8x128xf32>
    %380 = arith.addf %233, %379 : vector<8x128xf32>
    %c1_159 = arith.constant 1 : index
    %c0_160 = arith.constant 0 : index
    %c0_161 = arith.constant 0 : index
    %381 = vector.load %arg17[%c1_159, %c0_160, %c0_161] : memref<2x1x128xf32, #tpu.memory_space<vmem>>, vector<1x1x128xf32>
    %382 = vector.shape_cast %381 : vector<1x1x128xf32> to vector<1x128xf32>
    %383 = vector.broadcast %382 : vector<1x128xf32> to vector<8x128xf32>
    %384 = arith.addf %380, %383 : vector<8x128xf32>
    %c1_162 = arith.constant 1 : index
    %c0_163 = arith.constant 0 : index
    %c0_164 = arith.constant 0 : index
    %385 = vector.load %arg18[%c1_162, %c0_163, %c0_164] : memref<2x1x128xf32, #tpu.memory_space<vmem>>, vector<1x1x128xf32>
    %386 = vector.shape_cast %385 : vector<1x1x128xf32> to vector<1x128xf32>
    %c1_165 = arith.constant 1 : index
    %c0_166 = arith.constant 0 : index
    %c0_167 = arith.constant 0 : index
    %387 = vector.load %arg19[%c1_165, %c0_166, %c0_167] : memref<2x1x128xf32, #tpu.memory_space<vmem>>, vector<1x1x128xf32>
    %388 = vector.shape_cast %387 : vector<1x1x128xf32> to vector<1x128xf32>
    %cst_168 = arith.constant dense<0.000000e+00> : vector<8xf32>
    %389 = vector.multi_reduction <add>, %384, %cst_168 [1] : vector<8x128xf32> to vector<8xf32>
    %390 = vector.shape_cast %389 : vector<8xf32> to vector<8x1xf32>
    %cst_169 = arith.constant 1.280000e+02 : f32
    %391 = vector.broadcast %cst_169 : f32 to vector<8x1xf32>
    %392 = arith.divf %390, %391 : vector<8x1xf32>
    %393 = vector.broadcast %392 : vector<8x1xf32> to vector<8x128xf32>
    %394 = arith.subf %384, %393 : vector<8x128xf32>
    %395 = arith.mulf %394, %394 : vector<8x128xf32>
    %cst_170 = arith.constant dense<0.000000e+00> : vector<8xf32>
    %396 = vector.multi_reduction <add>, %395, %cst_170 [1] : vector<8x128xf32> to vector<8xf32>
    %397 = vector.shape_cast %396 : vector<8xf32> to vector<8x1xf32>
    %cst_171 = arith.constant 1.280000e+02 : f32
    %398 = vector.broadcast %cst_171 : f32 to vector<8x1xf32>
    %399 = arith.divf %397, %398 : vector<8x1xf32>
    %cst_172 = arith.constant 9.99999974E-6 : f32
    %400 = vector.broadcast %cst_172 : f32 to vector<8x1xf32>
    %401 = arith.addf %399, %400 : vector<8x1xf32>
    %402 = math.rsqrt %401 : vector<8x1xf32>
    %403 = vector.broadcast %402 : vector<8x1xf32> to vector<8x128xf32>
    %404 = arith.mulf %394, %403 : vector<8x128xf32>
    %405 = vector.broadcast %386 : vector<1x128xf32> to vector<8x128xf32>
    %406 = arith.mulf %404, %405 : vector<8x128xf32>
    %407 = vector.broadcast %388 : vector<1x128xf32> to vector<8x128xf32>
    %408 = arith.addf %406, %407 : vector<8x128xf32>
    %c1_173 = arith.constant 1 : index
    %c0_174 = arith.constant 0 : index
    %c0_175 = arith.constant 0 : index
    %409 = vector.load %arg20[%c1_173, %c0_174, %c0_175] : memref<2x128x512xbf16, #tpu.memory_space<vmem>>, vector<1x128x512xbf16>
    %410 = vector.shape_cast %409 : vector<1x128x512xbf16> to vector<128x512xbf16>
    %411 = arith.truncf %408 : vector<8x128xf32> to vector<8x128xbf16>
    %cst_176 = arith.constant dense<0.000000e+00> : vector<8x512xf32>
    %412 = tpu.matmul %411, %410, %cst_176 {dimension_numbers = #tpu.dot_dimension_numbers<[1], [0], [0], [1], [0, 0, 1, 1], [], []>} : vector<8x128xbf16>, vector<128x512xbf16>, vector<8x512xf32> -> vector<8x512xf32>
    %c1_177 = arith.constant 1 : index
    %c0_178 = arith.constant 0 : index
    %c0_179 = arith.constant 0 : index
    %413 = vector.load %arg21[%c1_177, %c0_178, %c0_179] : memref<2x1x512xf32, #tpu.memory_space<vmem>>, vector<1x1x512xf32>
    %414 = vector.shape_cast %413 : vector<1x1x512xf32> to vector<1x512xf32>
    %415 = vector.broadcast %414 : vector<1x512xf32> to vector<8x512xf32>
    %416 = arith.addf %412, %415 : vector<8x512xf32>
    %417 = arith.mulf %416, %416 : vector<8x512xf32>
    %418 = arith.mulf %416, %417 : vector<8x512xf32>
    %cst_180 = arith.constant 4.471500e-02 : f32
    %419 = vector.broadcast %cst_180 : f32 to vector<8x512xf32>
    %420 = arith.mulf %419, %418 : vector<8x512xf32>
    %421 = arith.addf %416, %420 : vector<8x512xf32>
    %cst_181 = arith.constant 0.797884583 : f32
    %422 = vector.broadcast %cst_181 : f32 to vector<8x512xf32>
    %423 = arith.mulf %422, %421 : vector<8x512xf32>
    %424 = math.tanh %423 : vector<8x512xf32>
    %cst_182 = arith.constant 1.000000e+00 : f32
    %425 = vector.broadcast %cst_182 : f32 to vector<8x512xf32>
    %426 = arith.addf %425, %424 : vector<8x512xf32>
    %cst_183 = arith.constant 5.000000e-01 : f32
    %427 = vector.broadcast %cst_183 : f32 to vector<8x512xf32>
    %428 = arith.mulf %427, %426 : vector<8x512xf32>
    %429 = arith.mulf %416, %428 : vector<8x512xf32>
    %c1_184 = arith.constant 1 : index
    %c0_185 = arith.constant 0 : index
    %c0_186 = arith.constant 0 : index
    %430 = vector.load %arg22[%c1_184, %c0_185, %c0_186] : memref<2x512x128xbf16, #tpu.memory_space<vmem>>, vector<1x512x128xbf16>
    %431 = vector.shape_cast %430 : vector<1x512x128xbf16> to vector<512x128xbf16>
    %432 = arith.truncf %429 : vector<8x512xf32> to vector<8x512xbf16>
    %cst_187 = arith.constant dense<0.000000e+00> : vector<8x128xf32>
    %433 = tpu.matmul %432, %431, %cst_187 {dimension_numbers = #tpu.dot_dimension_numbers<[1], [0], [0], [1], [0, 0, 1, 1], [], []>} : vector<8x512xbf16>, vector<512x128xbf16>, vector<8x128xf32> -> vector<8x128xf32>
    %434 = arith.addf %384, %433 : vector<8x128xf32>
    %c1_188 = arith.constant 1 : index
    %c0_189 = arith.constant 0 : index
    %c0_190 = arith.constant 0 : index
    %435 = vector.load %arg23[%c1_188, %c0_189, %c0_190] : memref<2x1x128xf32, #tpu.memory_space<vmem>>, vector<1x1x128xf32>
    %436 = vector.shape_cast %435 : vector<1x1x128xf32> to vector<1x128xf32>
    %437 = vector.broadcast %436 : vector<1x128xf32> to vector<8x128xf32>
    %438 = arith.addf %434, %437 : vector<8x128xf32>
    %c0_191 = arith.constant 0 : index
    %c0_192 = arith.constant 0 : index
    %439 = vector.load %arg24[%c0_191, %c0_192] : memref<1x128xf32, #tpu.memory_space<vmem>>, vector<1x128xf32>
    %c0_193 = arith.constant 0 : index
    %c0_194 = arith.constant 0 : index
    %440 = vector.load %arg25[%c0_193, %c0_194] : memref<1x128xf32, #tpu.memory_space<vmem>>, vector<1x128xf32>
    %cst_195 = arith.constant dense<0.000000e+00> : vector<8xf32>
    %441 = vector.multi_reduction <add>, %438, %cst_195 [1] : vector<8x128xf32> to vector<8xf32>
    %442 = vector.shape_cast %441 : vector<8xf32> to vector<8x1xf32>
    %cst_196 = arith.constant 1.280000e+02 : f32
    %443 = vector.broadcast %cst_196 : f32 to vector<8x1xf32>
    %444 = arith.divf %442, %443 : vector<8x1xf32>
    %445 = vector.broadcast %444 : vector<8x1xf32> to vector<8x128xf32>
    %446 = arith.subf %438, %445 : vector<8x128xf32>
    %447 = arith.mulf %446, %446 : vector<8x128xf32>
    %cst_197 = arith.constant dense<0.000000e+00> : vector<8xf32>
    %448 = vector.multi_reduction <add>, %447, %cst_197 [1] : vector<8x128xf32> to vector<8xf32>
    %449 = vector.shape_cast %448 : vector<8xf32> to vector<8x1xf32>
    %cst_198 = arith.constant 1.280000e+02 : f32
    %450 = vector.broadcast %cst_198 : f32 to vector<8x1xf32>
    %451 = arith.divf %449, %450 : vector<8x1xf32>
    %cst_199 = arith.constant 9.99999974E-6 : f32
    %452 = vector.broadcast %cst_199 : f32 to vector<8x1xf32>
    %453 = arith.addf %451, %452 : vector<8x1xf32>
    %454 = math.rsqrt %453 : vector<8x1xf32>
    %455 = vector.broadcast %454 : vector<8x1xf32> to vector<8x128xf32>
    %456 = arith.mulf %446, %455 : vector<8x128xf32>
    %457 = vector.broadcast %439 : vector<1x128xf32> to vector<8x128xf32>
    %458 = arith.mulf %456, %457 : vector<8x128xf32>
    %459 = vector.broadcast %440 : vector<1x128xf32> to vector<8x128xf32>
    %460 = arith.addf %458, %459 : vector<8x128xf32>
    %c0_200 = arith.constant 0 : index
    %c0_201 = arith.constant 0 : index
    %461 = vector.load %arg26[%c0_200, %c0_201] : memref<128x128xbf16, #tpu.memory_space<vmem>>, vector<128x128xbf16>
    %462 = arith.truncf %460 : vector<8x128xf32> to vector<8x128xbf16>
    %cst_202 = arith.constant dense<0.000000e+00> : vector<8x128xf32>
    %463 = tpu.matmul %462, %461, %cst_202 {dimension_numbers = #tpu.dot_dimension_numbers<[1], [0], [0], [1], [0, 0, 1, 1], [], []>} : vector<8x128xbf16>, vector<128x128xbf16>, vector<8x128xf32> -> vector<8x128xf32>
    %c0_203 = arith.constant 0 : index
    %c0_204 = arith.constant 0 : index
    %464 = vector.load %arg27[%c0_203, %c0_204] : memref<1x128xf32, #tpu.memory_space<vmem>>, vector<1x128xf32>
    %465 = vector.broadcast %464 : vector<1x128xf32> to vector<8x128xf32>
    %466 = arith.addf %463, %465 : vector<8x128xf32>
    %c0_205 = arith.constant 0 : index
    %c0_206 = arith.constant 0 : index
    %c0_207 = arith.constant 0 : index
    %467 = vector.load %arg28[%c0_205, %c0_206, %c0_207] : memref<1x8x128xf32, #tpu.memory_space<vmem>>, vector<1x8x128xf32>
    %468 = vector.shape_cast %467 : vector<1x8x128xf32> to vector<8x128xf32>
    %469 = vector.shape_cast %466 : vector<8x128xf32> to vector<1x8x128xf32>
    tpu.vector_store %arg28[%c0_205, %c0_206, %c0_207], %469 {strides = array<i32>} : memref<1x8x128xf32, #tpu.memory_space<vmem>>, vector<1x8x128xf32>,
    return
  }
  func.func @transform_0(%arg0: i32) -> (i32, i32, i32) {
    %c0_i32 = arith.constant 0 : i32
    %c0_i32_0 = arith.constant 0 : i32
    %c0_i32_1 = arith.constant 0 : i32
    return %arg0, %c0_i32, %c0_i32_0 : i32, i32, i32
  }
  func.func @transform_1(%arg0: i32) -> (i32, i32) {
    %c0_i32 = arith.constant 0 : i32
    %c0_i32_0 = arith.constant 0 : i32
    %c0_i32_1 = arith.constant 0 : i32
    return %c0_i32, %c0_i32_0 : i32, i32
  }
  func.func @transform_2(%arg0: i32) -> (i32, i32, i32) {
    %c0_i32 = arith.constant 0 : i32
    %c0_i32_0 = arith.constant 0 : i32
    %c0_i32_1 = arith.constant 0 : i32
    return %arg0, %c0_i32, %c0_i32_0 : i32, i32, i32
  }
  func.func @transform_3(%arg0: i32) -> (i32, i32, i32) {
    %c0_i32 = arith.constant 0 : i32
    %c0_i32_0 = arith.constant 0 : i32
    %c0_i32_1 = arith.constant 0 : i32
    return %arg0, %c0_i32, %c0_i32_0 : i32, i32, i32
  }
  func.func @transform_4(%arg0: i32) -> (i32, i32, i32) {
    %c0_i32 = arith.constant 0 : i32
    %c0_i32_0 = arith.constant 0 : i32
    %c0_i32_1 = arith.constant 0 : i32
    return %arg0, %c0_i32, %c0_i32_0 : i32, i32, i32
  }
  func.func @transform_5(%arg0: i32) -> (i32, i32) {
    %c0_i32 = arith.constant 0 : i32
    %c0_i32_0 = arith.constant 0 : i32
    %c0_i32_1 = arith.constant 0 : i32
    return %c0_i32, %c0_i32_0 : i32, i32
  }
  func.func @transform_6(%arg0: i32) -> (i32, i32) {
    %c0_i32 = arith.constant 0 : i32
    %c0_i32_0 = arith.constant 0 : i32
    %c0_i32_1 = arith.constant 0 : i32
    return %c0_i32, %c0_i32_0 : i32, i32
  }
  func.func @transform_7(%arg0: i32) -> (i32, i32) {
    %c0_i32 = arith.constant 0 : i32
    %c0_i32_0 = arith.constant 0 : i32
    %c0_i32_1 = arith.constant 0 : i32
    return %c0_i32, %c0_i32_0 : i32, i32
  }
  func.func @transform_8(%arg0: i32) -> (i32, i32) {
    %c0_i32 = arith.constant 0 : i32
    %c0_i32_0 = arith.constant 0 : i32
    %c0_i32_1 = arith.constant 0 : i32
    return %c0_i32, %c0_i32_0 : i32, i32
  }
  func.func @transform_9(%arg0: i32) -> (i32, i32) {
    %c0_i32 = arith.constant 0 : i32
    %c0_i32_0 = arith.constant 0 : i32
    %c0_i32_1 = arith.constant 0 : i32
    return %c0_i32, %c0_i32_0 : i32, i32
  }
  func.func @transform_10(%arg0: i32) -> (i32, i32) {
    %c0_i32 = arith.constant 0 : i32
    %c0_i32_0 = arith.constant 0 : i32
    %c0_i32_1 = arith.constant 0 : i32
    return %c0_i32, %c0_i32_0 : i32, i32
  }
  func.func @transform_11(%arg0: i32) -> (i32, i32, i32) {
    %c0_i32 = arith.constant 0 : i32
    %c0_i32_0 = arith.constant 0 : i32
    %c0_i32_1 = arith.constant 0 : i32
    %c0_i32_2 = arith.constant 0 : i32
    return %c0_i32, %c0_i32_0, %c0_i32_1 : i32, i32, i32
  }
  func.func @transform_12(%arg0: i32) -> (i32, i32, i32) {
    %c0_i32 = arith.constant 0 : i32
    %c0_i32_0 = arith.constant 0 : i32
    %c0_i32_1 = arith.constant 0 : i32
    %c0_i32_2 = arith.constant 0 : i32
    return %c0_i32, %c0_i32_0, %c0_i32_1 : i32, i32, i32
  }
  func.func @transform_13(%arg0: i32) -> (i32, i32, i32) {
    %c0_i32 = arith.constant 0 : i32
    %c0_i32_0 = arith.constant 0 : i32
    %c0_i32_1 = arith.constant 0 : i32
    %c0_i32_2 = arith.constant 0 : i32
    return %c0_i32, %c0_i32_0, %c0_i32_1 : i32, i32, i32
  }
  func.func @transform_14(%arg0: i32) -> (i32, i32, i32) {
    %c0_i32 = arith.constant 0 : i32
    %c0_i32_0 = arith.constant 0 : i32
    %c0_i32_1 = arith.constant 0 : i32
    %c0_i32_2 = arith.constant 0 : i32
    return %c0_i32, %c0_i32_0, %c0_i32_1 : i32, i32, i32
  }
  func.func @transform_15(%arg0: i32) -> (i32, i32, i32) {
    %c0_i32 = arith.constant 0 : i32
    %c0_i32_0 = arith.constant 0 : i32
    %c0_i32_1 = arith.constant 0 : i32
    %c0_i32_2 = arith.constant 0 : i32
    return %c0_i32, %c0_i32_0, %c0_i32_1 : i32, i32, i32
  }
  func.func @transform_16(%arg0: i32) -> (i32, i32, i32) {
    %c0_i32 = arith.constant 0 : i32
    %c0_i32_0 = arith.constant 0 : i32
    %c0_i32_1 = arith.constant 0 : i32
    %c0_i32_2 = arith.constant 0 : i32
    return %c0_i32, %c0_i32_0, %c0_i32_1 : i32, i32, i32
  }
  func.func @transform_17(%arg0: i32) -> (i32, i32, i32) {
    %c0_i32 = arith.constant 0 : i32
    %c0_i32_0 = arith.constant 0 : i32
    %c0_i32_1 = arith.constant 0 : i32
    %c0_i32_2 = arith.constant 0 : i32
    return %c0_i32, %c0_i32_0, %c0_i32_1 : i32, i32, i32
  }
  func.func @transform_18(%arg0: i32) -> (i32, i32, i32) {
    %c0_i32 = arith.constant 0 : i32
    %c0_i32_0 = arith.constant 0 : i32
    %c0_i32_1 = arith.constant 0 : i32
    %c0_i32_2 = arith.constant 0 : i32
    return %c0_i32, %c0_i32_0, %c0_i32_1 : i32, i32, i32
  }
  func.func @transform_19(%arg0: i32) -> (i32, i32, i32) {
    %c0_i32 = arith.constant 0 : i32
    %c0_i32_0 = arith.constant 0 : i32
    %c0_i32_1 = arith.constant 0 : i32
    %c0_i32_2 = arith.constant 0 : i32
    return %c0_i32, %c0_i32_0, %c0_i32_1 : i32, i32, i32
  }
  func.func @transform_20(%arg0: i32) -> (i32, i32, i32) {
    %c0_i32 = arith.constant 0 : i32
    %c0_i32_0 = arith.constant 0 : i32
    %c0_i32_1 = arith.constant 0 : i32
    %c0_i32_2 = arith.constant 0 : i32
    return %c0_i32, %c0_i32_0, %c0_i32_1 : i32, i32, i32
  }
  func.func @transform_21(%arg0: i32) -> (i32, i32, i32) {
    %c0_i32 = arith.constant 0 : i32
    %c0_i32_0 = arith.constant 0 : i32
    %c0_i32_1 = arith.constant 0 : i32
    %c0_i32_2 = arith.constant 0 : i32
    return %c0_i32, %c0_i32_0, %c0_i32_1 : i32, i32, i32
  }
  func.func @transform_22(%arg0: i32) -> (i32, i32, i32) {
    %c0_i32 = arith.constant 0 : i32
    %c0_i32_0 = arith.constant 0 : i32
    %c0_i32_1 = arith.constant 0 : i32
    %c0_i32_2 = arith.constant 0 : i32
    return %c0_i32, %c0_i32_0, %c0_i32_1 : i32, i32, i32
  }
  func.func @transform_23(%arg0: i32) -> (i32, i32) {
    %c0_i32 = arith.constant 0 : i32
    %c0_i32_0 = arith.constant 0 : i32
    %c0_i32_1 = arith.constant 0 : i32
    return %c0_i32, %c0_i32_0 : i32, i32
  }
  func.func @transform_24(%arg0: i32) -> (i32, i32) {
    %c0_i32 = arith.constant 0 : i32
    %c0_i32_0 = arith.constant 0 : i32
    %c0_i32_1 = arith.constant 0 : i32
    return %c0_i32, %c0_i32_0 : i32, i32
  }
  func.func @transform_25(%arg0: i32) -> (i32, i32) {
    %c0_i32 = arith.constant 0 : i32
    %c0_i32_0 = arith.constant 0 : i32
    %c0_i32_1 = arith.constant 0 : i32
    return %c0_i32, %c0_i32_0 : i32, i32
  }
  func.func @transform_26(%arg0: i32) -> (i32, i32) {
    %c0_i32 = arith.constant 0 : i32
    %c0_i32_0 = arith.constant 0 : i32
    %c0_i32_1 = arith.constant 0 : i32
    return %c0_i32, %c0_i32_0 : i32, i32
  }
  func.func @transform_27(%arg0: i32) -> (i32, i32, i32) {
    %c0_i32 = arith.constant 0 : i32
    %c0_i32_0 = arith.constant 0 : i32
    %c0_i32_1 = arith.constant 0 : i32
    return %arg0, %c0_i32, %c0_i32_0 : i32, i32, i32
  }
}

</mosaic_0001>

<llo_original>
// kernel: squeeze.23
$region0: #{squeeze.23}
  %s0 = inlined_call_operand.vmem [shape: s32[16], index: 0, kind: input, shape index: {}]
  %s1 = inlined_call_operand.vmem [shape: s32[2,8], index: 1, kind: output, shape index: {}]
  $region1: #{squeeze.23} parent=0
    #allocation0 [shape = 'u8[4096]{0}', space=vmem, size = 0x1000, scoped, tag = 'scoped mem for output reshape']
    #allocation1 [shape = 'u8[4096]{0}', space=vmem, size = 0x1000, scoped, tag = 'scoped mem for input reshape']
    %s3 = sshllo.u32 0, 1
    %v4 = vld [vmem:[%s0] sm:%s3]
    %5 = vst [vmem:[#allocation1] sm:%s3] %v4
    %v6 = vld [vmem:[#allocation1] sm:$0x1]
    %vm7 = vcmask 64512
    %8 = vst.msk [vmem:[#allocation0] sm:$0x1] %vm7, %v6
    %v9 = vld [vmem:[#allocation1] sm:$0x1]
    %10 = vrot.lane.b32.xlu0 %v9, 120
    %v11 = vpop.permute.xlu0 %10
    %vm12 = vcmask 64512
    %s13 = scalar_lea.vmem [#allocation0], 1
    %14 = vst.msk [vmem:[%s13] sm:$0x1] %vm12, %v11
    %s16 = sshllo.u32 0, 2
    %v18 = vld [vmem:[#allocation0] sm:%s16]
    %s19 = sshllo.u32 0, 2
    %20 = vst [vmem:[%s1] sm:%s19] %v18

// kernel: target_vqgan_transformer_forward.2
$region0: #{target_vqgan_transformer_forward.2}
  #allocation0 [shape = 'u32[]', space=smem, size = 0x4, offset = 0x4, fixed_abs, tag = 'smem constant byte address 0x4 - core index']
  #allocation1 [shape = 'u32[144,128]{1,0:T(1,128)}', space=vmem, size = 0x12000, scoped, tag = 'internal scratch']
  %s0 = inlined_call_operand.vmem [shape: f32[16,12], index: 0, kind: input, shape index: {}]
  %s1 = inlined_call_operand.vmem [shape: f32[12,32], index: 1, kind: input, shape index: {}]
  %s2 = inlined_call_operand.vmem [shape: f32[1,32], index: 2, kind: input, shape index: {}]
  %s3 = inlined_call_operand.vmem [shape: f32[32,32], index: 3, kind: input, shape index: {}]
  %s4 = inlined_call_operand.hbm [shape: f32[1,32], index: 4, kind: input, shape index: {}]
  %s5 = inlined_call_operand.hbm [shape: f32[32,32], index: 5, kind: input, shape index: {}]
  %s6 = inlined_call_operand.hbm [shape: f32[1,32], index: 6, kind: input, shape index: {}]
  %s7 = inlined_call_operand.hbm [shape: f32[16,32], index: 7, kind: input, shape index: {}]
  %s8 = inlined_call_operand.vmem [shape: s32[16,128], index: 8, kind: output, shape index: {}]
  %s9 = sld [smem:[#allocation0]]
  $region58: #{target_vqgan_transformer_forward.2} parent=0
    _
  %s11 = ssub.s32 1, %s9
  %s12 = scalar_select 0, %s11, %s9
  $region1: #{target_vqgan_transformer_forward.2} parent=0
    #allocation2 [shape = 'u8[512]{0}', space=vmem, size = 0x400, scoped, tag = 'input window, operand 4, single buffered']
    #allocation3 [shape = 's32[1]{0}', space=sflag, size = 0x4, scoped, tag = 'scoped memory for target_vqgan_transformer_forward.2']
    #allocation4 [shape = 'u8[16384]{0}', space=vmem, size = 0x4000, scoped, tag = 'input window, operand 5, single buffered']
    #allocation5 [shape = 's32[1]{0}', space=sflag, size = 0x4, scoped, tag = 'scoped memory for target_vqgan_transformer_forward.2']
    #allocation6 [shape = 'u8[512]{0}', space=vmem, size = 0x400, scoped, tag = 'input window, operand 6, single buffered']
    #allocation7 [shape = 'u8[8192]{0}', space=vmem, size = 0x2000, scoped, tag = 'input window, operand 7, single buffered']
    #allocation8 [shape = 's32[1]{0}', space=sflag, size = 0x4, scoped, tag = 'scoped memory for target_vqgan_transformer_forward.2']
    %13 = vsyncpa [#allocation3], 0
    %14 = vsyncpa [#allocation5], 0
    %15 = vsyncpa [#allocation8], 0
    // Predicated region
    $region2: #{target_vqgan_transformer_forward.2} parent=1 // pred_check
      _
    $region3: #{target_vqgan_transformer_forward.2} parent=1 // pred_check_branch
      %17 = sbr.rel (0) target = $region5
    $region4: #{target_vqgan_transformer_forward.2} parent=1 // pred_region
      _
    $region5: #{target_vqgan_transformer_forward.2} parent=1 // pred_fallthru
      _
    // Predicated region
    $region6: #{target_vqgan_transformer_forward.2} parent=1 // pred_check
      _
    $region7: #{target_vqgan_transformer_forward.2} parent=1 // pred_check_branch
      %19 = sbr.rel (0) target = $region9
    $region8: #{target_vqgan_transformer_forward.2} parent=1 // pred_region
      _
    $region9: #{target_vqgan_transformer_forward.2} parent=1 // pred_fallthru
      _
    // Predicated region
    $region10: #{target_vqgan_transformer_forward.2} parent=1 // pred_check
      _
    $region11: #{target_vqgan_transformer_forward.2} parent=1 // pred_check_branch
      %21 = sbr.rel (0) target = $region13
    $region12: #{target_vqgan_transformer_forward.2} parent=1 // pred_region
      _
    $region13: #{target_vqgan_transformer_forward.2} parent=1 // pred_fallthru
      _
    // Predicated region
    $region14: #{target_vqgan_transformer_forward.2} parent=1 // pred_check
      _
    $region15: #{target_vqgan_transformer_forward.2} parent=1 // pred_check_branch
      %23 = sbr.rel (0) target = $region17
    $region16: #{target_vqgan_transformer_forward.2} parent=1 // pred_region
      _
    $region17: #{target_vqgan_transformer_forward.2} parent=1 // pred_fallthru
      _
    // Predicated region
    $region18: #{target_vqgan_transformer_forward.2} parent=1 // pred_check
      _
    $region19: #{target_vqgan_transformer_forward.2} parent=1 // pred_check_branch
      %25 = sbr.rel (0) target = $region21
    $region20: #{target_vqgan_transformer_forward.2} parent=1 // pred_region
      %s27 = ssub.s32 16, 16
      %28 = vsyncadd [#allocation3], %s27
      %s30 = sshll.u32 [#allocation2], 4
      %s31 = int_to_ptr.vmem [resolvable:$true] %s30
      %33 = dma.hbm_to_vmem [thread:$0]  %s4, 16, %s31, [#allocation3]
    $region21: #{target_vqgan_transformer_forward.2} parent=1 // pred_fallthru
      _
    // Predicated region
    $region22: #{target_vqgan_transformer_forward.2} parent=1 // pred_check
      _
    $region23: #{target_vqgan_transformer_forward.2} parent=1 // pred_check_branch
      %35 = sbr.rel (0) target = $region25
    $region24: #{target_vqgan_transformer_forward.2} parent=1 // pred_region
      %s37 = ssub.s32 512, 512
      %38 = vsyncadd [#allocation5], %s37
      %s39 = sshll.u32 [#allocation4], 4
      %s40 = int_to_ptr.vmem [resolvable:$true] %s39
      %45 = dma.hbm_to_vmem [thread:$0]  %s5, 512, %s40, [#allocation5], 128, 128, 8
    $region25: #{target_vqgan_transformer_forward.2} parent=1 // pred_fallthru
      _
    // Predicated region
    $region26: #{target_vqgan_transformer_forward.2} parent=1 // pred_check
      _
    $region27: #{target_vqgan_transformer_forward.2} parent=1 // pred_check_branch
      %47 = sbr.rel (0) target = $region29
    $region28: #{target_vqgan_transformer_forward.2} parent=1 // pred_region
      %s49 = ssub.s32 16, 16
      %50 = vsyncadd [#allocation5], %s49
      %s52 = sshll.u32 [#allocation6], 4
      %s53 = int_to_ptr.vmem [resolvable:$true] %s52
      %55 = dma.hbm_to_vmem [thread:$0]  %s6, 16, %s53, [#allocation5]
    $region29: #{target_vqgan_transformer_forward.2} parent=1 // pred_fallthru
      _
    // Predicated region
    $region30: #{target_vqgan_transformer_forward.2} parent=1 // pred_check
      _
    $region31: #{target_vqgan_transformer_forward.2} parent=1 // pred_check_branch
      %57 = sbr.rel (0) target = $region33
    $region32: #{target_vqgan_transformer_forward.2} parent=1 // pred_region
      %s59 = ssub.s32 256, 256
      %60 = vsyncadd [#allocation8], %s59
      %s61 = sshll.u32 [#allocation7], 4
      %s62 = int_to_ptr.vmem [resolvable:$true] %s61
      %67 = dma.hbm_to_vmem [thread:$0]  %s7, 256, %s62, [#allocation8], 128, 128, 8
    $region33: #{target_vqgan_transformer_forward.2} parent=1 // pred_fallthru
      _
    // Predicated region
    $region34: #{target_vqgan_transformer_forward.2} parent=1 // pred_check
      _
    $region35: #{target_vqgan_transformer_forward.2} parent=1 // pred_check_branch
      %69 = sbr.rel (0) target = $region37
    $region36: #{target_vqgan_transformer_forward.2} parent=1 // pred_region
      %70 = dma.done [#allocation3], 16
    $region37: #{target_vqgan_transformer_forward.2} parent=1 // pred_fallthru
      _
    // Predicated region
    $region38: #{target_vqgan_transformer_forward.2} parent=1 // pred_check
      _
    $region39: #{target_vqgan_transformer_forward.2} parent=1 // pred_check_branch
      %72 = sbr.rel (0) target = $region41
    $region40: #{target_vqgan_transformer_forward.2} parent=1 // pred_region
      %73 = dma.done [#allocation5], 512
    $region41: #{target_vqgan_transformer_forward.2} parent=1 // pred_fallthru
      _
    // Predicated region
    $region42: #{target_vqgan_transformer_forward.2} parent=1 // pred_check
      _
    $region43: #{target_vqgan_transformer_forward.2} parent=1 // pred_check_branch
      %75 = sbr.rel (0) target = $region45
    $region44: #{target_vqgan_transformer_forward.2} parent=1 // pred_region
      %76 = dma.done [#allocation5], 16
    $region45: #{target_vqgan_transformer_forward.2} parent=1 // pred_fallthru
      _
    // Predicated region
    $region46: #{target_vqgan_transformer_forward.2} parent=1 // pred_check
      _
    $region47: #{target_vqgan_transformer_forward.2} parent=1 // pred_check_branch
      %78 = sbr.rel (0) target = $region49
    $region48: #{target_vqgan_transformer_forward.2} parent=1 // pred_region
      %79 = dma.done [#allocation8], 256
    $region49: #{target_vqgan_transformer_forward.2} parent=1 // pred_fallthru
      _
    %v80 = vld [vmem:[%s0] sm:$0xff]
    %v81 = vld [vmem:[%s0 + $0x8] sm:$0xff]
    %v82 = vld [vmem:[%s1] sm:$0xff]
    %v83 = vld [vmem:[%s1 + $0x8] sm:$0xf]
    %v84 = vld [vmem:[%s2] sm:$0x1]
    %v86 = vlaneseq
    %v87 = vshrl.u32 %v86, 7
    %v88 = vsub.s32 0, %v87
    %v89 = vrot.slane %v84, %v88
    %vm91 = vcmask 97280
    %v93 = vsel %vm91, %v80, 0
    %v96 = vsel %vm91, %v81, 0
    %vm98 = vcmask 1043456
    %v100 = vsel %vm98, %v83, 0
    %102 = vmatprep.subr.mxu0 0.0
    %103 = vmatpush1.msra.mxu0 %v82
    %104 = vmatprep.subr.mxu0 0.0
    %105 = vmatpush1.msra.mxu0 %v100
    %106 = vmatprep.subr.mxu0 0.0
    %107 = vmatpush1.msra.mxu0 0.0
    %108 = vmatprep.subr.mxu0 0.0
    %109 = vmatpush1.msra.mxu0 0.0
    %110 = vmatprep.subr.mxu0 0.0
    %111 = vmatpush1.msra.mxu0 0.0
    %112 = vmatprep.subr.mxu0 0.0
    %113 = vmatpush1.msra.mxu0 0.0
    %114 = vmatprep.subr.mxu0 0.0
    %115 = vmatpush1.msra.mxu0 0.0
    %116 = vmatprep.subr.mxu0 0.0
    %117 = vmatpush1.msra.mxu0 0.0
    %118 = vmatprep.subr.mxu0 0.0
    %119 = vmatpush1.msra.mxu0 0.0
    %120 = vmatprep.subr.mxu0 0.0
    %121 = vmatpush1.msra.mxu0 0.0
    %122 = vmatprep.subr.mxu0 0.0
    %123 = vmatpush1.msra.mxu0 0.0
    %124 = vmatprep.subr.mxu0 0.0
    %125 = vmatpush1.msra.mxu0 0.0
    %126 = vmatprep.subr.mxu0 0.0
    %127 = vmatpush1.msra.mxu0 0.0
    %128 = vmatprep.subr.mxu0 0.0
    %129 = vmatpush1.msra.mxu0 0.0
    %130 = vmatprep.subr.mxu0 0.0
    %131 = vmatpush1.msra.mxu0 0.0
    %132 = vmatprep.subr.mxu0 0.0
    %133 = vmatpush1.msra.mxu0 0.0
    %134 = vmatprep.subr.mxu0 0.0
    %135 = vmatpush1.msra.mxu0 0.0
    %136 = vmatprep.subr.mxu0 0.0
    %137 = vmatpush1.msra.mxu0 0.0
    %138 = vmatprep.subr.mxu0 0.0
    %139 = vmatpush1.msra.mxu0 0.0
    %140 = vmatprep.subr.mxu0 0.0
    %141 = vmatpush1.msra.mxu0 0.0
    %142 = vmatprep.subr.mxu0 0.0
    %143 = vmatpush1.msra.mxu0 0.0
    %144 = vmatprep.subr.mxu0 0.0
    %145 = vmatpush1.msra.mxu0 0.0
    %146 = vmatprep.subr.mxu0 0.0
    %147 = vmatpush1.msra.mxu0 0.0
    %148 = vmatprep.subr.mxu0 0.0
    %149 = vmatpush1.msra.mxu0 0.0
    %150 = vmatprep.subr.mxu0 0.0
    %151 = vmatpush1.msra.mxu0 0.0
    %152 = vmatprep.subr.mxu0 0.0
    %153 = vmatpush1.msra.mxu0 0.0
    %154 = vmatprep.subr.mxu0 0.0
    %155 = vmatpush1.msra.mxu0 0.0
    %156 = vmatprep.subr.mxu0 0.0
    %157 = vmatpush1.msra.mxu0 0.0
    %158 = vmatprep.subr.mxu0 0.0
    %159 = vmatpush1.msra.mxu0 0.0
    %160 = vmatprep.subr.mxu0 0.0
    %161 = vmatpush1.msra.mxu0 0.0
    %162 = vmatprep.subr.mxu0 0.0
    %163 = vmatpush1.msra.mxu0 0.0
    %164 = vmatprep.subr.mxu0 0.0
    %165 = vmatpush1.msra.mxu0 0.0
    %166 = vmatprep.mubr.f32.mxu0 0.0
    %167 = vmatmul.mubr.f32.gmra.mrb[0].mxu0 %v93
    %v168 = vpop.f32.mrb[0].mxu0
    %v169 = vadd.f32 %v89, %v168
    %v170 = vpop.f32.mrb[0].mxu0
    %171 = vmatprep.mubr.f32.mxu0 0.0
    %172 = vmatmul.mubr.f32.gmra.mrb[0].mxu0 %v96
    %v173 = vpop.f32.mrb[0].mxu0
    %v174 = vadd.f32 %v89, %v173
    %v175 = vpop.f32.mrb[0].mxu0
    %176 = vdwg.mxu0
    %v177 = vld [vmem:[%s3] sm:$0xff]
    %v178 = vld [vmem:[%s3 + $0x8] sm:$0xff]
    %v179 = vld [vmem:[%s3 + $0x10] sm:$0xff]
    %v180 = vld [vmem:[%s3 + $0x18] sm:$0xff]
    %v181 = vld [vmem:[#allocation2] sm:$0x1]
    %v183 = vlaneseq
    %v184 = vshrl.u32 %v183, 7
    %v185 = vsub.s32 0, %v184
    %v186 = vrot.slane %v181, %v185
    %vm188 = vcmask 261120
    %v190 = vsel %vm188, %v169, 0
    %v193 = vsel %vm188, %v174, 0
    %195 = vmatprep.subr.mxu0 0.0
    %196 = vmatpush1.msra.mxu0 %v177
    %197 = vmatprep.subr.mxu0 0.0
    %198 = vmatpush1.msra.mxu0 %v178
    %199 = vmatprep.subr.mxu0 0.0
    %200 = vmatpush1.msra.mxu0 %v179
    %201 = vmatprep.subr.mxu0 0.0
    %202 = vmatpush1.msra.mxu0 %v180
    %203 = vmatprep.subr.mxu0 0.0
    %204 = vmatpush1.msra.mxu0 0.0
    %205 = vmatprep.subr.mxu0 0.0
    %206 = vmatpush1.msra.mxu0 0.0
    %207 = vmatprep.subr.mxu0 0.0
    %208 = vmatpush1.msra.mxu0 0.0
    %209 = vmatprep.subr.mxu0 0.0
    %210 = vmatpush1.msra.mxu0 0.0
    %211 = vmatprep.subr.mxu0 0.0
    %212 = vmatpush1.msra.mxu0 0.0
    %213 = vmatprep.subr.mxu0 0.0
    %214 = vmatpush1.msra.mxu0 0.0
    %215 = vmatprep.subr.mxu0 0.0
    %216 = vmatpush1.msra.mxu0 0.0
    %217 = vmatprep.subr.mxu0 0.0
    %218 = vmatpush1.msra.mxu0 0.0
    %219 = vmatprep.subr.mxu0 0.0
    %220 = vmatpush1.msra.mxu0 0.0
    %221 = vmatprep.subr.mxu0 0.0
    %222 = vmatpush1.msra.mxu0 0.0
    %223 = vmatprep.subr.mxu0 0.0
    %224 = vmatpush1.msra.mxu0 0.0
    %225 = vmatprep.subr.mxu0 0.0
    %226 = vmatpush1.msra.mxu0 0.0
    %227 = vmatprep.subr.mxu0 0.0
    %228 = vmatpush1.msra.mxu0 0.0
    %229 = vmatprep.subr.mxu0 0.0
    %230 = vmatpush1.msra.mxu0 0.0
    %231 = vmatprep.subr.mxu0 0.0
    %232 = vmatpush1.msra.mxu0 0.0
    %233 = vmatprep.subr.mxu0 0.0
    %234 = vmatpush1.msra.mxu0 0.0
    %235 = vmatprep.subr.mxu0 0.0
    %236 = vmatpush1.msra.mxu0 0.0
    %237 = vmatprep.subr.mxu0 0.0
    %238 = vmatpush1.msra.mxu0 0.0
    %239 = vmatprep.subr.mxu0 0.0
    %240 = vmatpush1.msra.mxu0 0.0
    %241 = vmatprep.subr.mxu0 0.0
    %242 = vmatpush1.msra.mxu0 0.0
    %243 = vmatprep.subr.mxu0 0.0
    %244 = vmatpush1.msra.mxu0 0.0
    %245 = vmatprep.subr.mxu0 0.0
    %246 = vmatpush1.msra.mxu0 0.0
    %247 = vmatprep.subr.mxu0 0.0
    %248 = vmatpush1.msra.mxu0 0.0
    %249 = vmatprep.subr.mxu0 0.0
    %250 = vmatpush1.msra.mxu0 0.0
    %251 = vmatprep.subr.mxu0 0.0
    %252 = vmatpush1.msra.mxu0 0.0
    %253 = vmatprep.subr.mxu0 0.0
    %254 = vmatpush1.msra.mxu0 0.0
    %255 = vmatprep.subr.mxu0 0.0
    %256 = vmatpush1.msra.mxu0 0.0
    %257 = vmatprep.subr.mxu0 0.0
    %258 = vmatpush1.msra.mxu0 0.0
    %259 = vmatprep.mubr.f32.mxu0 0.0
    %260 = vmatmul.mubr.f32.gmra.mrb[0].mxu0 %v190
    %v261 = vpop.f32.mrb[0].mxu0
    %v262 = vadd.f32 %v186, %v261
    %v263 = vpop.f32.mrb[0].mxu0
    %264 = vmatprep.mubr.f32.mxu0 0.0
    %265 = vmatmul.mubr.f32.gmra.mrb[0].mxu0 %v193
    %v266 = vpop.f32.mrb[0].mxu0
    %v267 = vadd.f32 %v186, %v266
    %v268 = vpop.f32.mrb[0].mxu0
    %269 = vdwg.mxu0
    %v270 = vmax.f32 %v262, 0.0
    %v271 = vmax.f32 %v267, 0.0
    %v272 = vld [vmem:[#allocation4] sm:$0xff]
    %v273 = vld [vmem:[#allocation4 + $0x8] sm:$0xff]
    %v274 = vld [vmem:[#allocation4 + $0x10] sm:$0xff]
    %v275 = vld [vmem:[#allocation4 + $0x18] sm:$0xff]
    %v276 = vld [vmem:[#allocation6] sm:$0x1]
    %v278 = vlaneseq
    %v279 = vshrl.u32 %v278, 7
    %v280 = vsub.s32 0, %v279
    %v281 = vrot.slane %v276, %v280
    %v284 = vsel %vm188, %v270, 0
    %v287 = vsel %vm188, %v271, 0
    %289 = vmatprep.subr.mxu0 0.0
    %290 = vmatpush1.msra.mxu0 %v272
    %291 = vmatprep.subr.mxu0 0.0
    %292 = vmatpush1.msra.mxu0 %v273
    %293 = vmatprep.subr.mxu0 0.0
    %294 = vmatpush1.msra.mxu0 %v274
    %295 = vmatprep.subr.mxu0 0.0
    %296 = vmatpush1.msra.mxu0 %v275
    %297 = vmatprep.subr.mxu0 0.0
    %298 = vmatpush1.msra.mxu0 0.0
    %299 = vmatprep.subr.mxu0 0.0
    %300 = vmatpush1.msra.mxu0 0.0
    %301 = vmatprep.subr.mxu0 0.0
    %302 = vmatpush1.msra.mxu0 0.0
    %303 = vmatprep.subr.mxu0 0.0
    %304 = vmatpush1.msra.mxu0 0.0
    %305 = vmatprep.subr.mxu0 0.0
    %306 = vmatpush1.msra.mxu0 0.0
    %307 = vmatprep.subr.mxu0 0.0
    %308 = vmatpush1.msra.mxu0 0.0
    %309 = vmatprep.subr.mxu0 0.0
    %310 = vmatpush1.msra.mxu0 0.0
    %311 = vmatprep.subr.mxu0 0.0
    %312 = vmatpush1.msra.mxu0 0.0
    %313 = vmatprep.subr.mxu0 0.0
    %314 = vmatpush1.msra.mxu0 0.0
    %315 = vmatprep.subr.mxu0 0.0
    %316 = vmatpush1.msra.mxu0 0.0
    %317 = vmatprep.subr.mxu0 0.0
    %318 = vmatpush1.msra.mxu0 0.0
    %319 = vmatprep.subr.mxu0 0.0
    %320 = vmatpush1.msra.mxu0 0.0
    %321 = vmatprep.subr.mxu0 0.0
    %322 = vmatpush1.msra.mxu0 0.0
    %323 = vmatprep.subr.mxu0 0.0
    %324 = vmatpush1.msra.mxu0 0.0
    %325 = vmatprep.subr.mxu0 0.0
    %326 = vmatpush1.msra.mxu0 0.0
    %327 = vmatprep.subr.mxu0 0.0
    %328 = vmatpush1.msra.mxu0 0.0
    %329 = vmatprep.subr.mxu0 0.0
    %330 = vmatpush1.msra.mxu0 0.0
    %331 = vmatprep.subr.mxu0 0.0
    %332 = vmatpush1.msra.mxu0 0.0
    %333 = vmatprep.subr.mxu0 0.0
    %334 = vmatpush1.msra.mxu0 0.0
    %335 = vmatprep.subr.mxu0 0.0
    %336 = vmatpush1.msra.mxu0 0.0
    %337 = vmatprep.subr.mxu0 0.0
    %338 = vmatpush1.msra.mxu0 0.0
    %339 = vmatprep.subr.mxu0 0.0
    %340 = vmatpush1.msra.mxu0 0.0
    %341 = vmatprep.subr.mxu0 0.0
    %342 = vmatpush1.msra.mxu0 0.0
    %343 = vmatprep.subr.mxu0 0.0
    %344 = vmatpush1.msra.mxu0 0.0
    %345 = vmatprep.subr.mxu0 0.0
    %346 = vmatpush1.msra.mxu0 0.0
    %347 = vmatprep.subr.mxu0 0.0
    %348 = vmatpush1.msra.mxu0 0.0
    %349 = vmatprep.subr.mxu0 0.0
    %350 = vmatpush1.msra.mxu0 0.0
    %351 = vmatprep.subr.mxu0 0.0
    %352 = vmatpush1.msra.mxu0 0.0
    %353 = vmatprep.mubr.f32.mxu0 0.0
    %354 = vmatmul.mubr.f32.gmra.mrb[0].mxu0 %v284
    %v355 = vpop.f32.mrb[0].mxu0
    %v356 = vadd.f32 %v281, %v355
    %v357 = vpop.f32.mrb[0].mxu0
    %358 = vmatprep.mubr.f32.mxu0 0.0
    %359 = vmatmul.mubr.f32.gmra.mrb[0].mxu0 %v287
    %v360 = vpop.f32.mrb[0].mxu0
    %v361 = vadd.f32 %v281, %v360
    %v362 = vpop.f32.mrb[0].mxu0
    %363 = vdwg.mxu0
    %v364 = vld [vmem:[#allocation7] sm:$0xff]
    %v365 = vld [vmem:[#allocation7 + $0x8] sm:$0xff]
    %v366 = vmul.f32 %v356, %v356
    %v367 = vmul.f32 %v361, %v361
    %v368 = vsel %vm188, %v366, 0.0
    %369 = vadd.xlane.f32.xlu0 %v368
    %v370 = vpop.xlane.xlu0 %369
    %v371 = vsel %vm188, %v367, 0.0
    %372 = vadd.xlane.f32.xlu0 %v371
    %v373 = vpop.xlane.xlu0 %372
    %v374 = vmul.f32 %v364, %v364
    %v375 = vmul.f32 %v365, %v365
    %v376 = vsel %vm188, %v374, 0.0
    %377 = vadd.xlane.f32.xlu0 %v376
    %v378 = vpop.xlane.xlu0 %377
    %v379 = vsel %vm188, %v375, 0.0
    %380 = vadd.xlane.f32.xlu0 %v379
    %v381 = vpop.xlane.xlu0 %380
    %v383 = vsel %vm188, %v356, 0
    %v386 = vsel %vm188, %v361, 0
    %v389 = vsel %vm188, %v364, 0
    %v392 = vsel %vm188, %v365, 0
    %394 = vmatprep.subr.mxu0 0.0
    %395 = vmatpush1.xpose.msra.mxu0 %v389
    %396 = vmatprep.subr.mxu0 0.0
    %397 = vmatpush1.xpose.msra.mxu0 %v392
    %398 = vmatprep.subr.mxu0 0.0
    %399 = vmatpush1.xpose.msra.mxu0 0.0
    %400 = vmatprep.subr.mxu0 0.0
    %401 = vmatpush1.xpose.msra.mxu0 0.0
    %402 = vmatprep.subr.mxu0 0.0
    %403 = vmatpush1.xpose.msra.mxu0 0.0
    %404 = vmatprep.subr.mxu0 0.0
    %405 = vmatpush1.xpose.msra.mxu0 0.0
    %406 = vmatprep.subr.mxu0 0.0
    %407 = vmatpush1.xpose.msra.mxu0 0.0
    %408 = vmatprep.subr.mxu0 0.0
    %409 = vmatpush1.xpose.msra.mxu0 0.0
    %410 = vmatprep.subr.mxu0 0.0
    %411 = vmatpush1.xpose.msra.mxu0 0.0
    %412 = vmatprep.subr.mxu0 0.0
    %413 = vmatpush1.xpose.msra.mxu0 0.0
    %414 = vmatprep.subr.mxu0 0.0
    %415 = vmatpush1.xpose.msra.mxu0 0.0
    %416 = vmatprep.subr.mxu0 0.0
    %417 = vmatpush1.xpose.msra.mxu0 0.0
    %418 = vmatprep.subr.mxu0 0.0
    %419 = vmatpush1.xpose.msra.mxu0 0.0
    %420 = vmatprep.subr.mxu0 0.0
    %421 = vmatpush1.xpose.msra.mxu0 0.0
    %422 = vmatprep.subr.mxu0 0.0
    %423 = vmatpush1.xpose.msra.mxu0 0.0
    %424 = vmatprep.subr.mxu0 0.0
    %425 = vmatpush1.xpose.msra.mxu0 0.0
    %426 = vmatprep.subr.mxu0 0.0
    %427 = vmatpush1.xpose.msra.mxu0 0.0
    %428 = vmatprep.subr.mxu0 0.0
    %429 = vmatpush1.xpose.msra.mxu0 0.0
    %430 = vmatprep.subr.mxu0 0.0
    %431 = vmatpush1.xpose.msra.mxu0 0.0
    %432 = vmatprep.subr.mxu0 0.0
    %433 = vmatpush1.xpose.msra.mxu0 0.0
    %434 = vmatprep.subr.mxu0 0.0
    %435 = vmatpush1.xpose.msra.mxu0 0.0
    %436 = vmatprep.subr.mxu0 0.0
    %437 = vmatpush1.xpose.msra.mxu0 0.0
    %438 = vmatprep.subr.mxu0 0.0
    %439 = vmatpush1.xpose.msra.mxu0 0.0
    %440 = vmatprep.subr.mxu0 0.0
    %441 = vmatpush1.xpose.msra.mxu0 0.0
    %442 = vmatprep.subr.mxu0 0.0
    %443 = vmatpush1.xpose.msra.mxu0 0.0
    %444 = vmatprep.subr.mxu0 0.0
    %445 = vmatpush1.xpose.msra.mxu0 0.0
    %446 = vmatprep.subr.mxu0 0.0
    %447 = vmatpush1.xpose.msra.mxu0 0.0
    %448 = vmatprep.subr.mxu0 0.0
    %449 = vmatpush1.xpose.msra.mxu0 0.0
    %450 = vmatprep.subr.mxu0 0.0
    %451 = vmatpush1.xpose.msra.mxu0 0.0
    %452 = vmatprep.subr.mxu0 0.0
    %453 = vmatpush1.xpose.msra.mxu0 0.0
    %454 = vmatprep.subr.mxu0 0.0
    %455 = vmatpush1.xpose.msra.mxu0 0.0
    %456 = vmatprep.subr.mxu0 0.0
    %457 = vmatpush1.xpose.msra.mxu0 0.0
    %458 = vmatprep.mubr.f32.mxu0 0.0
    %459 = vmatmul.mubr.f32.gmra.mrb[0].mxu0 %v383
    %v460 = vpop.f32.mrb[0].mxu0
    %v461 = vadd.f32 0.0, %v460
    %v462 = vpop.f32.mrb[0].mxu0
    %463 = vmatprep.mubr.f32.mxu0 0.0
    %464 = vmatmul.mubr.f32.gmra.mrb[0].mxu0 %v386
    %v465 = vpop.f32.mrb[0].mxu0
    %v466 = vadd.f32 0.0, %v465
    %v467 = vpop.f32.mrb[0].mxu0
    %468 = vdwg.mxu0
    %v469 = vmul.f32 %v461, 2.0
    %v470 = vmul.f32 %v466, 2.0
    %v471 = vsub.f32 %v370, %v469
    %v472 = vsub.f32 %v373, %v470
    %v475 = vlaneseq
    %v476 = vand.u32 %v475, 127
    %v477 = vlaneseq
    %v478 = vshrl.u32 %v477, 7
    %v479 = vsub.s32 %v476, %v478
    %v480 = vrot.slane %v378, %v479
    %v481 = vadd.s32 %v476, 4294967288
    %v482 = vlaneseq
    %v483 = vshrl.u32 %v482, 7
    %v484 = vsub.s32 %v481, %v483
    %v485 = vrot.slane %v381, %v484
    %vm486 = vcmask 130112
    %v487 = vsel %vm486, %v485, %v480
    %vm488 = vcmask 1042434
    %v489 = vsel %vm488, %v487, %v487
    %vm490 = vcmask 1043459
    %v491 = vsel %vm490, %v487, %v489
    %vm492 = vcmask 1044484
    %v493 = vsel %vm492, %v487, %v491
    %vm494 = vcmask 1045509
    %v495 = vsel %vm494, %v487, %v493
    %vm496 = vcmask 1046534
    %v497 = vsel %vm496, %v487, %v495
    %vm498 = vcmask 1047559
    %v499 = vsel %vm498, %v487, %v497
    %v501 = vadd.f32 %v471, %v499
    %v502 = vadd.f32 %v472, %v499
    %vm503 = vcmask 130048
    %v504 = vsel %vm503, %v501, inf
    %505 = vmin.xlane.f32.xlu0 %v504
    %v506 = vpop.xlane.xlu0 %505
    %v507 = vsel %vm503, %v502, inf
    %508 = vmin.xlane.f32.xlu0 %v507
    %v509 = vpop.xlane.xlu0 %508
    %vm510 = vcmp.le.f32.partialorder %v501, %v506
    %vm511 = vcmp.le.f32.partialorder %v502, %v509
    %v512 = vsel %vm510, %v476, 16
    %v513 = vsel %vm511, %v476, 16
    %v514 = vsel %vm503, %v512, 2147483647
    %v515 = vand.u32 %v514, 65535
    %v516 = vshra.s32 %v514, 16
    %v517 = vcvt.s32.f32 %v515
    %v518 = vcvt.s32.f32 %v516
    %519 = vmin.xlane.f32.xlu0 %v518
    %v520 = vpop.xlane.xlu0 %519
    %vm521 = vcmp.eq.f32.partialorder %v518, %v520
    %v522 = vsel %vm521, %v517, inf
    %523 = vmin.xlane.f32.xlu0 %v522
    %v524 = vpop.xlane.xlu0 %523
    %v525 = vcvt.f32.s32 %v524
    %v526 = vcvt.f32.s32 %v520
    %v527 = vshll.u32 %v526, 16
    %v528 = vadd.s32 %v527, %v525
    %v529 = vsel %vm503, %v513, 2147483647
    %v530 = vand.u32 %v529, 65535
    %v531 = vshra.s32 %v529, 16
    %v532 = vcvt.s32.f32 %v530
    %v533 = vcvt.s32.f32 %v531
    %534 = vmin.xlane.f32.xlu0 %v533
    %v535 = vpop.xlane.xlu0 %534
    %vm536 = vcmp.eq.f32.partialorder %v533, %v535
    %v537 = vsel %vm536, %v532, inf
    %538 = vmin.xlane.f32.xlu0 %v537
    %v539 = vpop.xlane.xlu0 %538
    %v540 = vcvt.f32.s32 %v539
    %v541 = vcvt.f32.s32 %v535
    %v542 = vshll.u32 %v541, 16
    %v543 = vadd.s32 %v542, %v540
    %544 = vst [vmem:[%s8] sm:$0xff] %v528
    %545 = vst [vmem:[%s8 + $0x8] sm:$0xff] %v543
    // Predicated region
    $region50: #{target_vqgan_transformer_forward.2} parent=1 // pred_check
      _
    $region51: #{target_vqgan_transformer_forward.2} parent=1 // pred_check_branch
      %547 = sbr.rel (0) target = $region53
    $region52: #{target_vqgan_transformer_forward.2} parent=1 // pred_region
      _
    $region53: #{target_vqgan_transformer_forward.2} parent=1 // pred_fallthru
      _
    // Predicated region
    $region54: #{target_vqgan_transformer_forward.2} parent=1 // pred_check
      _
    $region55: #{target_vqgan_transformer_forward.2} parent=1 // pred_check_branch
      %549 = sbr.rel (0) target = $region57
    $region56: #{target_vqgan_transformer_forward.2} parent=1 // pred_region
      _
    $region57: #{target_vqgan_transformer_forward.2} parent=1 // pred_fallthru
      _
    %550 = vsyncpa [#allocation3], 1
    %551 = vsyncpa [#allocation5], 1
    %552 = vsyncpa [#allocation8], 1

// kernel: target_vqgan_transformer_forward.3
$region0: #{target_vqgan_transformer_forward.3}
  #allocation0 [shape = 'u32[]', space=smem, size = 0x4, offset = 0x4, fixed_abs, tag = 'smem constant byte address 0x4 - core index']
  #allocation1 [shape = 'u32[144,128]{1,0:T(1,128)}', space=vmem, size = 0x12000, scoped, tag = 'internal scratch']
  %s0 = inlined_call_operand.vmem [shape: bf16[2,8,17], index: 0, kind: input, shape index: {}]
  %s1 = inlined_call_operand.vmem [shape: f32[8,128], index: 1, kind: input, shape index: {}]
  %s2 = inlined_call_operand.vmem [shape: bf16[2,1,64], index: 2, kind: input, shape index: {}]
  %s3 = inlined_call_operand.vmem [shape: bf16[2,1,64], index: 3, kind: input, shape index: {}]
  %s4 = inlined_call_operand.vmem [shape: bf16[2,1,16], index: 4, kind: input, shape index: {}]
  %s5 = inlined_call_operand.vmem [shape: bf16[64,128], index: 5, kind: input, shape index: {}]
  %s6 = inlined_call_operand.hbm [shape: f32[1,128], index: 6, kind: input, shape index: {}]
  %s7 = inlined_call_operand.vmem [shape: bf16[64,128], index: 7, kind: input, shape index: {}]
  %s8 = inlined_call_operand.hbm [shape: f32[1,128], index: 8, kind: input, shape index: {}]
  %s9 = inlined_call_operand.hbm [shape: bf16[16,128], index: 9, kind: input, shape index: {}]
  %s10 = inlined_call_operand.hbm [shape: bf16[17,128], index: 10, kind: input, shape index: {}]
  %s11 = inlined_call_operand.hbm [shape: f32[2,1,128], index: 11, kind: input, shape index: {}]
  %s12 = inlined_call_operand.hbm [shape: f32[2,1,128], index: 12, kind: input, shape index: {}]
  %s13 = inlined_call_operand.hbm [shape: bf16[2,128,384], index: 13, kind: input, shape index: {}]
  %s14 = inlined_call_operand.hbm [shape: f32[2,1,384], index: 14, kind: input, shape index: {}]
  %s15 = inlined_call_operand.vmem [shape: bf16[2,128,128], index: 15, kind: input, shape index: {}]
  %s16 = inlined_call_operand.hbm [shape: f32[2,1,128], index: 16, kind: input, shape index: {}]
  %s17 = inlined_call_operand.hbm [shape: f32[2,1,128], index: 17, kind: input, shape index: {}]
  %s18 = inlined_call_operand.hbm [shape: f32[2,1,128], index: 18, kind: input, shape index: {}]
  %s19 = inlined_call_operand.vmem [shape: bf16[2,128,512], index: 19, kind: input, shape index: {}]
  %s20 = inlined_call_operand.hbm [shape: f32[2,1,512], index: 20, kind: input, shape index: {}]
  %s21 = inlined_call_operand.hbm [shape: bf16[2,512,128], index: 21, kind: input, shape index: {}]
  %s22 = inlined_call_operand.hbm [shape: f32[2,1,128], index: 22, kind: input, shape index: {}]
  %s23 = inlined_call_operand.hbm [shape: f32[1,128], index: 23, kind: input, shape index: {}]
  %s24 = inlined_call_operand.hbm [shape: f32[1,128], index: 24, kind: input, shape index: {}]
  %s25 = inlined_call_operand.hbm [shape: bf16[128,128], index: 25, kind: input, shape index: {}]
  %s26 = inlined_call_operand.hbm [shape: f32[1,128], index: 26, kind: input, shape index: {}]
  %s27 = inlined_call_operand.hbm [shape: f32[2,8,128], index: 27, kind: output, shape index: {}]
  %s28 = sld [smem:[#allocation0]]
  $region213: #{target_vqgan_transformer_forward.3} parent=0
    _
  %s30 = ssub.s32 1, %s28
  %s31 = scalar_select 0, %s30, %s28
  $region1: #{target_vqgan_transformer_forward.3} parent=0
    #allocation2 [shape = 'u8[512]{0}', space=vmem, size = 0x400, scoped, tag = 'input window, operand 6, single buffered']
    #allocation3 [shape = 's32[2]{0}', space=sflag, size = 0x8, scoped, tag = 'scoped memory for target_vqgan_transformer_forward.3']
    #allocation4 [shape = 's32[2]{0}', space=sflag, size = 0x8, scoped, tag = 'scoped memory for target_vqgan_transformer_forward.3']
    #allocation5 [shape = 'u8[512]{0}', space=vmem, size = 0x400, scoped, tag = 'input window, operand 8, single buffered']
    #allocation6 [shape = 's32[1]{0}', space=sflag, size = 0x4, scoped, tag = 'scoped memory for target_vqgan_transformer_forward.3']
    #allocation7 [shape = 'u8[4096]{0}', space=vmem, size = 0x1000, scoped, tag = 'input window, operand 9, single buffered']
    #allocation8 [shape = 'u8[6144]{0}', space=vmem, size = 0x1800, scoped, tag = 'input window, operand 10, single buffered']
    #allocation9 [shape = 's32[1]{0}', space=sflag, size = 0x4, scoped, tag = 'scoped memory for target_vqgan_transformer_forward.3']
    #allocation10 [shape = 'u8[1024]{0}', space=vmem, size = 0x400, scoped, tag = 'input window, operand 11, single buffered']
    #allocation11 [shape = 'u8[1024]{0}', space=vmem, size = 0x400, scoped, tag = 'input window, operand 12, single buffered']
    #allocation12 [shape = 's32[1]{0}', space=sflag, size = 0x4, scoped, tag = 'scoped memory for target_vqgan_transformer_forward.3']
    #allocation13 [shape = 'u8[196608]{0}', space=vmem, size = 0x30000, scoped, tag = 'input window, operand 13, single buffered']
    #allocation14 [shape = 'u8[3072]{0}', space=vmem, size = 0xc00, scoped, tag = 'input window, operand 14, single buffered']
    #allocation15 [shape = 's32[1]{0}', space=sflag, size = 0x4, scoped, tag = 'scoped memory for target_vqgan_transformer_forward.3']
    #allocation16 [shape = 'u8[1024]{0}', space=vmem, size = 0x400, scoped, tag = 'input window, operand 16, single buffered']
    #allocation17 [shape = 'u8[1024]{0}', space=vmem, size = 0x400, scoped, tag = 'input window, operand 17, single buffered']
    #allocation18 [shape = 's32[1]{0}', space=sflag, size = 0x4, scoped, tag = 'scoped memory for target_vqgan_transformer_forward.3']
    #allocation19 [shape = 'u8[1024]{0}', space=vmem, size = 0x400, scoped, tag = 'input window, operand 18, single buffered']
    #allocation20 [shape = 'u8[4096]{0}', space=vmem, size = 0x1000, scoped, tag = 'input window, operand 20, single buffered']
    #allocation21 [shape = 's32[1]{0}', space=sflag, size = 0x4, scoped, tag = 'scoped memory for target_vqgan_transformer_forward.3']
    #allocation22 [shape = 'u8[262144]{0}', space=vmem, size = 0x40000, scoped, tag = 'input window, operand 21, single buffered']
    #allocation23 [shape = 'u8[1024]{0}', space=vmem, size = 0x400, scoped, tag = 'input window, operand 22, single buffered']
    #allocation24 [shape = 's32[1]{0}', space=sflag, size = 0x4, scoped, tag = 'scoped memory for target_vqgan_transformer_forward.3']
    #allocation25 [shape = 'u8[512]{0}', space=vmem, size = 0x400, scoped, tag = 'input window, operand 23, single buffered']
    #allocation26 [shape = 'u8[512]{0}', space=vmem, size = 0x400, scoped, tag = 'input window, operand 24, single buffered']
    #allocation27 [shape = 's32[1]{0}', space=sflag, size = 0x4, scoped, tag = 'scoped memory for target_vqgan_transformer_forward.3']
    #allocation28 [shape = 'u8[32768]{0}', space=vmem, size = 0x8000, scoped, tag = 'input window, operand 25, single buffered']
    #allocation29 [shape = 'u8[512]{0}', space=vmem, size = 0x400, scoped, tag = 'input window, operand 26, single buffered']
    #allocation30 [shape = 's32[1]{0}', space=sflag, size = 0x4, scoped, tag = 'scoped memory for target_vqgan_transformer_forward.3']
    #allocation31 [shape = 'u8[8192]{0}', space=vmem, size = 0x2000, scoped, tag = 'output window, operand 0']
    %32 = vsyncpa [#allocation3], 0
    %33 = vsyncpa [#allocation6], 0
    %34 = vsyncpa [#allocation9], 0
    %35 = vsyncpa [#allocation12], 0
    %36 = vsyncpa [#allocation15], 0
    %37 = vsyncpa [#allocation18], 0
    %38 = vsyncpa [#allocation21], 0
    %39 = vsyncpa [#allocation24], 0
    %40 = vsyncpa [#allocation27], 0
    %41 = vsyncpa [#allocation30], 0
    %42 = vsyncpa [#allocation4], 0
    %s43 = scalar_lea.sflag [#allocation4], 1
    %44 = vsyncpa %s43, 0
    loop: start=0, step=1, limit=4
    $region2: #{target_vqgan_transformer_forward.3} parent=1 // loop_pre_header
      _
    $region3: #{target_vqgan_transformer_forward.3} parent=1 // loop_header
      %s46 = sphi 0, %s50
      %p47 = scmp.ge.s32.totalorder %s46, 4
      %s56 = sphi 0, %s58
      %s59 = sphi 0, %s56
      %s60 = sphi 0, %s59
      %s76 = sphi 0, %s60
      %s80 = sphi 0, %s80
      %s82 = sphi 0, %s80
      %s83 = sphi 0, %s82
      %s97 = sphi 0, %s83
      %s103 = sphi 0, %s105
      %s106 = sphi 0, %s103
      %s107 = sphi 0, %s106
      %s123 = sphi 0, %s107
      %s129 = sphi 0, %s131
      %s132 = sphi 0, %s129
      %s133 = sphi 0, %s132
      %s149 = sphi 0, %s133
      %s155 = sphi 0, %s157
      %s158 = sphi 0, %s155
      %s159 = sphi 0, %s158
      %s175 = sphi 0, %s159
      %s179 = sphi 0, %s179
      %s181 = sphi 0, %s179
      %s182 = sphi 0, %s181
      %s196 = sphi 0, %s182
      %s200 = sphi 0, %s200
      %s202 = sphi 0, %s200
      %s203 = sphi 0, %s202
      %s217 = sphi 0, %s203
      %s221 = sphi 0, %s221
      %s223 = sphi 0, %s221
      %s224 = sphi 0, %s223
      %s238 = sphi 0, %s224
      %s242 = sphi 0, %s242
      %s244 = sphi 0, %s242
      %s245 = sphi 0, %s244
      %s259 = sphi 0, %s245
      %s263 = sphi 0, %s263
      %s265 = sphi 0, %s263
      %s266 = sphi 0, %s265
      %s280 = sphi 0, %s266
      %s284 = sphi 0, %s284
      %s286 = sphi 0, %s284
      %s287 = sphi 0, %s286
      %s301 = sphi 0, %s287
      %s305 = sphi 0, %s305
      %s307 = sphi 0, %s305
      %s308 = sphi 0, %s307
      %s322 = sphi 0, %s308
      %s326 = sphi 0, %s326
      %s328 = sphi 0, %s326
      %s329 = sphi 0, %s328
      %s343 = sphi 0, %s329
      %s347 = sphi 0, %s347
      %s349 = sphi 0, %s347
      %s350 = sphi 0, %s349
      %s364 = sphi 0, %s350
      %s368 = sphi 0, %s368
      %s370 = sphi 0, %s368
      %s371 = sphi 0, %s370
      %s385 = sphi 0, %s371
      %s389 = sphi 0, %s389
      %s391 = sphi 0, %s389
      %s392 = sphi 0, %s391
      %s406 = sphi 0, %s392
      %s410 = sphi 0, %s410
      %s412 = sphi 0, %s410
      %s413 = sphi 0, %s412
      %s427 = sphi 0, %s413
      %s431 = sphi 0, %s431
      %s433 = sphi 0, %s431
      %s434 = sphi 0, %s433
      %s448 = sphi 0, %s434
      %s452 = sphi 0, %s452
      %s454 = sphi 0, %s452
      %s455 = sphi 0, %s454
      %s469 = sphi 0, %s455
      %s473 = sphi 0, %s473
      %s475 = sphi 0, %s473
      %s476 = sphi 0, %s475
      %s490 = sphi 0, %s476
      %s494 = sphi 0, %s494
      %s496 = sphi 0, %s494
      %s497 = sphi 0, %s496
      %s511 = sphi 0, %s497
      %s515 = sphi 0, %s515
      %s517 = sphi 0, %s515
      %s518 = sphi 0, %s517
      %s532 = sphi 0, %s518
      %s536 = sphi 0, %s536
      %s538 = sphi 0, %s536
      %s539 = sphi 0, %s538
      %s553 = sphi 0, %s539
      %s557 = sphi 0, %s557
      %s559 = sphi 0, %s557
      %s560 = sphi 0, %s559
      %s574 = sphi 0, %s560
      %s578 = sphi 0, %s578
      %s580 = sphi 0, %s578
      %s581 = sphi 0, %s580
      %s595 = sphi 0, %s581
      %s599 = sphi 0, %s599
      %s601 = sphi 0, %s599
      %s602 = sphi 0, %s601
      %s616 = sphi 0, %s602
      %s620 = sphi 0, %s620
      %s622 = sphi 0, %s620
      %s623 = sphi 0, %s622
      %s637 = sphi 0, %s623
      %s643 = sphi 0, %s645
      %s646 = sphi 0, %s643
      %s647 = sphi 0, %s646
      %s663 = sphi 0, %s647
    $region4: #{target_vqgan_transformer_forward.3} parent=1 // loop_header_branch
      %49 = sbr.rel (%p47) target = $region8
    $region5: #{target_vqgan_transformer_forward.3} parent=1 // loop_body
      %s51 = ssub.s32 %s46, 1
      %s52 = ssub.s32 %s46, 2
      %s53 = sadd.s32 %s46, 1
      %s54 = ssub.s32 %s46, %s53
      %p55 = scmp.eq.s32.totalorder %s54, 0
      %s57 = sadd.s32 %s56, 1
      %s58 = scalar_select %p55, %s56, %s57
      %p61 = pneg %p55
      %p62 = scmp.eq.s32.totalorder %s46, 1
      %p63 = por %p61, %p62
      %p64 = scmp.ne.s32.totalorder %s56, %s59
      %p65 = scmp.eq.s32.totalorder %s46, 0
      %p66 = por %p64, %p65
      %p67 = scmp.ne.s32.totalorder %s56, %s59
      %p68 = scmp.eq.s32.totalorder %s51, 1
      %p69 = por %p67, %p68
      %p70 = scmp.ne.s32.totalorder %s59, %s60
      %p71 = scmp.eq.s32.totalorder %s51, 0
      %p72 = por %p70, %p71
      %p73 = scmp.ne.s32.totalorder %s59, %s60
      %p74 = scmp.eq.s32.totalorder %s52, 1
      %p75 = por %p73, %p74
      %p77 = scmp.ne.s32.totalorder %s60, %s76
      %p78 = scmp.eq.s32.totalorder %s52, 0
      %p79 = por %p77, %p78
      %s81 = sadd.s32 %s80, 1
      %p84 = scmp.eq.s32.totalorder %s46, 1
      %p85 = scmp.ne.s32.totalorder %s80, %s82
      %p86 = scmp.eq.s32.totalorder %s46, 0
      %p87 = por %p85, %p86
      %p88 = scmp.ne.s32.totalorder %s80, %s82
      %p89 = scmp.eq.s32.totalorder %s51, 1
      %p90 = por %p88, %p89
      %p91 = scmp.ne.s32.totalorder %s82, %s83
      %p92 = scmp.eq.s32.totalorder %s51, 0
      %p93 = por %p91, %p92
      %p94 = scmp.ne.s32.totalorder %s82, %s83
      %p95 = scmp.eq.s32.totalorder %s52, 1
      %p96 = por %p94, %p95
      %p98 = scmp.ne.s32.totalorder %s83, %s97
      %p99 = scmp.eq.s32.totalorder %s52, 0
      %p100 = por %p98, %p99
      %s101 = ssub.s32 %s46, %s53
      %p102 = scmp.eq.s32.totalorder %s101, 0
      %s104 = sadd.s32 %s103, 1
      %s105 = scalar_select %p102, %s103, %s104
      %p108 = pneg %p102
      %p109 = scmp.eq.s32.totalorder %s46, 1
      %p110 = por %p108, %p109
      %p111 = scmp.ne.s32.totalorder %s103, %s106
      %p112 = scmp.eq.s32.totalorder %s46, 0
      %p113 = por %p111, %p112
      %p114 = scmp.ne.s32.totalorder %s103, %s106
      %p115 = scmp.eq.s32.totalorder %s51, 1
      %p116 = por %p114, %p115
      %p117 = scmp.ne.s32.totalorder %s106, %s107
      %p118 = scmp.eq.s32.totalorder %s51, 0
      %p119 = por %p117, %p118
      %p120 = scmp.ne.s32.totalorder %s106, %s107
      %p121 = scmp.eq.s32.totalorder %s52, 1
      %p122 = por %p120, %p121
      %p124 = scmp.ne.s32.totalorder %s107, %s123
      %p125 = scmp.eq.s32.totalorder %s52, 0
      %p126 = por %p124, %p125
      %s127 = ssub.s32 %s46, %s53
      %p128 = scmp.eq.s32.totalorder %s127, 0
      %s130 = sadd.s32 %s129, 1
      %s131 = scalar_select %p128, %s129, %s130
      %p134 = pneg %p128
      %p135 = scmp.eq.s32.totalorder %s46, 1
      %p136 = por %p134, %p135
      %p137 = scmp.ne.s32.totalorder %s129, %s132
      %p138 = scmp.eq.s32.totalorder %s46, 0
      %p139 = por %p137, %p138
      %p140 = scmp.ne.s32.totalorder %s129, %s132
      %p141 = scmp.eq.s32.totalorder %s51, 1
      %p142 = por %p140, %p141
      %p143 = scmp.ne.s32.totalorder %s132, %s133
      %p144 = scmp.eq.s32.totalorder %s51, 0
      %p145 = por %p143, %p144
      %p146 = scmp.ne.s32.totalorder %s132, %s133
      %p147 = scmp.eq.s32.totalorder %s52, 1
      %p148 = por %p146, %p147
      %p150 = scmp.ne.s32.totalorder %s133, %s149
      %p151 = scmp.eq.s32.totalorder %s52, 0
      %p152 = por %p150, %p151
      %s153 = ssub.s32 %s46, %s53
      %p154 = scmp.eq.s32.totalorder %s153, 0
      %s156 = sadd.s32 %s155, 1
      %s157 = scalar_select %p154, %s155, %s156
      %p160 = pneg %p154
      %p161 = scmp.eq.s32.totalorder %s46, 1
      %p162 = por %p160, %p161
      %p163 = scmp.ne.s32.totalorder %s155, %s158
      %p164 = scmp.eq.s32.totalorder %s46, 0
      %p165 = por %p163, %p164
      %p166 = scmp.ne.s32.totalorder %s155, %s158
      %p167 = scmp.eq.s32.totalorder %s51, 1
      %p168 = por %p166, %p167
      %p169 = scmp.ne.s32.totalorder %s158, %s159
      %p170 = scmp.eq.s32.totalorder %s51, 0
      %p171 = por %p169, %p170
      %p172 = scmp.ne.s32.totalorder %s158, %s159
      %p173 = scmp.eq.s32.totalorder %s52, 1
      %p174 = por %p172, %p173
      %p176 = scmp.ne.s32.totalorder %s159, %s175
      %p177 = scmp.eq.s32.totalorder %s52, 0
      %p178 = por %p176, %p177
      %s180 = sadd.s32 %s179, 1
      %p183 = scmp.eq.s32.totalorder %s46, 1
      %p184 = scmp.ne.s32.totalorder %s179, %s181
      %p185 = scmp.eq.s32.totalorder %s46, 0
      %p186 = por %p184, %p185
      %p187 = scmp.ne.s32.totalorder %s179, %s181
      %p188 = scmp.eq.s32.totalorder %s51, 1
      %p189 = por %p187, %p188
      %p190 = scmp.ne.s32.totalorder %s181, %s182
      %p191 = scmp.eq.s32.totalorder %s51, 0
      %p192 = por %p190, %p191
      %p193 = scmp.ne.s32.totalorder %s181, %s182
      %p194 = scmp.eq.s32.totalorder %s52, 1
      %p195 = por %p193, %p194
      %p197 = scmp.ne.s32.totalorder %s182, %s196
      %p198 = scmp.eq.s32.totalorder %s52, 0
      %p199 = por %p197, %p198
      %s201 = sadd.s32 %s200, 1
      %p204 = scmp.eq.s32.totalorder %s46, 1
      %p205 = scmp.ne.s32.totalorder %s200, %s202
      %p206 = scmp.eq.s32.totalorder %s46, 0
      %p207 = por %p205, %p206
      %p208 = scmp.ne.s32.totalorder %s200, %s202
      %p209 = scmp.eq.s32.totalorder %s51, 1
      %p210 = por %p208, %p209
      %p211 = scmp.ne.s32.totalorder %s202, %s203
      %p212 = scmp.eq.s32.totalorder %s51, 0
      %p213 = por %p211, %p212
      %p214 = scmp.ne.s32.totalorder %s202, %s203
      %p215 = scmp.eq.s32.totalorder %s52, 1
      %p216 = por %p214, %p215
      %p218 = scmp.ne.s32.totalorder %s203, %s217
      %p219 = scmp.eq.s32.totalorder %s52, 0
      %p220 = por %p218, %p219
      %s222 = sadd.s32 %s221, 1
      %p225 = scmp.eq.s32.totalorder %s46, 1
      %p226 = scmp.ne.s32.totalorder %s221, %s223
      %p227 = scmp.eq.s32.totalorder %s46, 0
      %p228 = por %p226, %p227
      %p229 = scmp.ne.s32.totalorder %s221, %s223
      %p230 = scmp.eq.s32.totalorder %s51, 1
      %p231 = por %p229, %p230
      %p232 = scmp.ne.s32.totalorder %s223, %s224
      %p233 = scmp.eq.s32.totalorder %s51, 0
      %p234 = por %p232, %p233
      %p235 = scmp.ne.s32.totalorder %s223, %s224
      %p236 = scmp.eq.s32.totalorder %s52, 1
      %p237 = por %p235, %p236
      %p239 = scmp.ne.s32.totalorder %s224, %s238
      %p240 = scmp.eq.s32.totalorder %s52, 0
      %p241 = por %p239, %p240
      %s243 = sadd.s32 %s242, 1
      %p246 = scmp.eq.s32.totalorder %s46, 1
      %p247 = scmp.ne.s32.totalorder %s242, %s244
      %p248 = scmp.eq.s32.totalorder %s46, 0
      %p249 = por %p247, %p248
      %p250 = scmp.ne.s32.totalorder %s242, %s244
      %p251 = scmp.eq.s32.totalorder %s51, 1
      %p252 = por %p250, %p251
      %p253 = scmp.ne.s32.totalorder %s244, %s245
      %p254 = scmp.eq.s32.totalorder %s51, 0
      %p255 = por %p253, %p254
      %p256 = scmp.ne.s32.totalorder %s244, %s245
      %p257 = scmp.eq.s32.totalorder %s52, 1
      %p258 = por %p256, %p257
      %p260 = scmp.ne.s32.totalorder %s245, %s259
      %p261 = scmp.eq.s32.totalorder %s52, 0
      %p262 = por %p260, %p261
      %s264 = sadd.s32 %s263, 1
      %p267 = scmp.eq.s32.totalorder %s46, 1
      %p268 = scmp.ne.s32.totalorder %s263, %s265
      %p269 = scmp.eq.s32.totalorder %s46, 0
      %p270 = por %p268, %p269
      %p271 = scmp.ne.s32.totalorder %s263, %s265
      %p272 = scmp.eq.s32.totalorder %s51, 1
      %p273 = por %p271, %p272
      %p274 = scmp.ne.s32.totalorder %s265, %s266
      %p275 = scmp.eq.s32.totalorder %s51, 0
      %p276 = por %p274, %p275
      %p277 = scmp.ne.s32.totalorder %s265, %s266
      %p278 = scmp.eq.s32.totalorder %s52, 1
      %p279 = por %p277, %p278
      %p281 = scmp.ne.s32.totalorder %s266, %s280
      %p282 = scmp.eq.s32.totalorder %s52, 0
      %p283 = por %p281, %p282
      %s285 = sadd.s32 %s284, 1
      %p288 = scmp.eq.s32.totalorder %s46, 1
      %p289 = scmp.ne.s32.totalorder %s284, %s286
      %p290 = scmp.eq.s32.totalorder %s46, 0
      %p291 = por %p289, %p290
      %p292 = scmp.ne.s32.totalorder %s284, %s286
      %p293 = scmp.eq.s32.totalorder %s51, 1
      %p294 = por %p292, %p293
      %p295 = scmp.ne.s32.totalorder %s286, %s287
      %p296 = scmp.eq.s32.totalorder %s51, 0
      %p297 = por %p295, %p296
      %p298 = scmp.ne.s32.totalorder %s286, %s287
      %p299 = scmp.eq.s32.totalorder %s52, 1
      %p300 = por %p298, %p299
      %p302 = scmp.ne.s32.totalorder %s287, %s301
      %p303 = scmp.eq.s32.totalorder %s52, 0
      %p304 = por %p302, %p303
      %s306 = sadd.s32 %s305, 1
      %p309 = scmp.eq.s32.totalorder %s46, 1
      %p310 = scmp.ne.s32.totalorder %s305, %s307
      %p311 = scmp.eq.s32.totalorder %s46, 0
      %p312 = por %p310, %p311
      %p313 = scmp.ne.s32.totalorder %s305, %s307
      %p314 = scmp.eq.s32.totalorder %s51, 1
      %p315 = por %p313, %p314
      %p316 = scmp.ne.s32.totalorder %s307, %s308
      %p317 = scmp.eq.s32.totalorder %s51, 0
      %p318 = por %p316, %p317
      %p319 = scmp.ne.s32.totalorder %s307, %s308
      %p320 = scmp.eq.s32.totalorder %s52, 1
      %p321 = por %p319, %p320
      %p323 = scmp.ne.s32.totalorder %s308, %s322
      %p324 = scmp.eq.s32.totalorder %s52, 0
      %p325 = por %p323, %p324
      %s327 = sadd.s32 %s326, 1
      %p330 = scmp.eq.s32.totalorder %s46, 1
      %p331 = scmp.ne.s32.totalorder %s326, %s328
      %p332 = scmp.eq.s32.totalorder %s46, 0
      %p333 = por %p331, %p332
      %p334 = scmp.ne.s32.totalorder %s326, %s328
      %p335 = scmp.eq.s32.totalorder %s51, 1
      %p336 = por %p334, %p335
      %p337 = scmp.ne.s32.totalorder %s328, %s329
      %p338 = scmp.eq.s32.totalorder %s51, 0
      %p339 = por %p337, %p338
      %p340 = scmp.ne.s32.totalorder %s328, %s329
      %p341 = scmp.eq.s32.totalorder %s52, 1
      %p342 = por %p340, %p341
      %p344 = scmp.ne.s32.totalorder %s329, %s343
      %p345 = scmp.eq.s32.totalorder %s52, 0
      %p346 = por %p344, %p345
      %s348 = sadd.s32 %s347, 1
      %p351 = scmp.eq.s32.totalorder %s46, 1
      %p352 = scmp.ne.s32.totalorder %s347, %s349
      %p353 = scmp.eq.s32.totalorder %s46, 0
      %p354 = por %p352, %p353
      %p355 = scmp.ne.s32.totalorder %s347, %s349
      %p356 = scmp.eq.s32.totalorder %s51, 1
      %p357 = por %p355, %p356
      %p358 = scmp.ne.s32.totalorder %s349, %s350
      %p359 = scmp.eq.s32.totalorder %s51, 0
      %p360 = por %p358, %p359
      %p361 = scmp.ne.s32.totalorder %s349, %s350
      %p362 = scmp.eq.s32.totalorder %s52, 1
      %p363 = por %p361, %p362
      %p365 = scmp.ne.s32.totalorder %s350, %s364
      %p366 = scmp.eq.s32.totalorder %s52, 0
      %p367 = por %p365, %p366
      %s369 = sadd.s32 %s368, 1
      %p372 = scmp.eq.s32.totalorder %s46, 1
      %p373 = scmp.ne.s32.totalorder %s368, %s370
      %p374 = scmp.eq.s32.totalorder %s46, 0
      %p375 = por %p373, %p374
      %p376 = scmp.ne.s32.totalorder %s368, %s370
      %p377 = scmp.eq.s32.totalorder %s51, 1
      %p378 = por %p376, %p377
      %p379 = scmp.ne.s32.totalorder %s370, %s371
      %p380 = scmp.eq.s32.totalorder %s51, 0
      %p381 = por %p379, %p380
      %p382 = scmp.ne.s32.totalorder %s370, %s371
      %p383 = scmp.eq.s32.totalorder %s52, 1
      %p384 = por %p382, %p383
      %p386 = scmp.ne.s32.totalorder %s371, %s385
      %p387 = scmp.eq.s32.totalorder %s52, 0
      %p388 = por %p386, %p387
      %s390 = sadd.s32 %s389, 1
      %p393 = scmp.eq.s32.totalorder %s46, 1
      %p394 = scmp.ne.s32.totalorder %s389, %s391
      %p395 = scmp.eq.s32.totalorder %s46, 0
      %p396 = por %p394, %p395
      %p397 = scmp.ne.s32.totalorder %s389, %s391
      %p398 = scmp.eq.s32.totalorder %s51, 1
      %p399 = por %p397, %p398
      %p400 = scmp.ne.s32.totalorder %s391, %s392
      %p401 = scmp.eq.s32.totalorder %s51, 0
      %p402 = por %p400, %p401
      %p403 = scmp.ne.s32.totalorder %s391, %s392
      %p404 = scmp.eq.s32.totalorder %s52, 1
      %p405 = por %p403, %p404
      %p407 = scmp.ne.s32.totalorder %s392, %s406
      %p408 = scmp.eq.s32.totalorder %s52, 0
      %p409 = por %p407, %p408
      %s411 = sadd.s32 %s410, 1
      %p414 = scmp.eq.s32.totalorder %s46, 1
      %p415 = scmp.ne.s32.totalorder %s410, %s412
      %p416 = scmp.eq.s32.totalorder %s46, 0
      %p417 = por %p415, %p416
      %p418 = scmp.ne.s32.totalorder %s410, %s412
      %p419 = scmp.eq.s32.totalorder %s51, 1
      %p420 = por %p418, %p419
      %p421 = scmp.ne.s32.totalorder %s412, %s413
      %p422 = scmp.eq.s32.totalorder %s51, 0
      %p423 = por %p421, %p422
      %p424 = scmp.ne.s32.totalorder %s412, %s413
      %p425 = scmp.eq.s32.totalorder %s52, 1
      %p426 = por %p424, %p425
      %p428 = scmp.ne.s32.totalorder %s413, %s427
      %p429 = scmp.eq.s32.totalorder %s52, 0
      %p430 = por %p428, %p429
      %s432 = sadd.s32 %s431, 1
      %p435 = scmp.eq.s32.totalorder %s46, 1
      %p436 = scmp.ne.s32.totalorder %s431, %s433
      %p437 = scmp.eq.s32.totalorder %s46, 0
      %p438 = por %p436, %p437
      %p439 = scmp.ne.s32.totalorder %s431, %s433
      %p440 = scmp.eq.s32.totalorder %s51, 1
      %p441 = por %p439, %p440
      %p442 = scmp.ne.s32.totalorder %s433, %s434
      %p443 = scmp.eq.s32.totalorder %s51, 0
      %p444 = por %p442, %p443
      %p445 = scmp.ne.s32.totalorder %s433, %s434
      %p446 = scmp.eq.s32.totalorder %s52, 1
      %p447 = por %p445, %p446
      %p449 = scmp.ne.s32.totalorder %s434, %s448
      %p450 = scmp.eq.s32.totalorder %s52, 0
      %p451 = por %p449, %p450
      %s453 = sadd.s32 %s452, 1
      %p456 = scmp.eq.s32.totalorder %s46, 1
      %p457 = scmp.ne.s32.totalorder %s452, %s454
      %p458 = scmp.eq.s32.totalorder %s46, 0
      %p459 = por %p457, %p458
      %p460 = scmp.ne.s32.totalorder %s452, %s454
      %p461 = scmp.eq.s32.totalorder %s51, 1
      %p462 = por %p460, %p461
      %p463 = scmp.ne.s32.totalorder %s454, %s455
      %p464 = scmp.eq.s32.totalorder %s51, 0
      %p465 = por %p463, %p464
      %p466 = scmp.ne.s32.totalorder %s454, %s455
      %p467 = scmp.eq.s32.totalorder %s52, 1
      %p468 = por %p466, %p467
      %p470 = scmp.ne.s32.totalorder %s455, %s469
      %p471 = scmp.eq.s32.totalorder %s52, 0
      %p472 = por %p470, %p471
      %s474 = sadd.s32 %s473, 1
      %p477 = scmp.eq.s32.totalorder %s46, 1
      %p478 = scmp.ne.s32.totalorder %s473, %s475
      %p479 = scmp.eq.s32.totalorder %s46, 0
      %p480 = por %p478, %p479
      %p481 = scmp.ne.s32.totalorder %s473, %s475
      %p482 = scmp.eq.s32.totalorder %s51, 1
      %p483 = por %p481, %p482
      %p484 = scmp.ne.s32.totalorder %s475, %s476
      %p485 = scmp.eq.s32.totalorder %s51, 0
      %p486 = por %p484, %p485
      %p487 = scmp.ne.s32.totalorder %s475, %s476
      %p488 = scmp.eq.s32.totalorder %s52, 1
      %p489 = por %p487, %p488
      %p491 = scmp.ne.s32.totalorder %s476, %s490
      %p492 = scmp.eq.s32.totalorder %s52, 0
      %p493 = por %p491, %p492
      %s495 = sadd.s32 %s494, 1
      %p498 = scmp.eq.s32.totalorder %s46, 1
      %p499 = scmp.ne.s32.totalorder %s494, %s496
      %p500 = scmp.eq.s32.totalorder %s46, 0
      %p501 = por %p499, %p500
      %p502 = scmp.ne.s32.totalorder %s494, %s496
      %p503 = scmp.eq.s32.totalorder %s51, 1
      %p504 = por %p502, %p503
      %p505 = scmp.ne.s32.totalorder %s496, %s497
      %p506 = scmp.eq.s32.totalorder %s51, 0
      %p507 = por %p505, %p506
      %p508 = scmp.ne.s32.totalorder %s496, %s497
      %p509 = scmp.eq.s32.totalorder %s52, 1
      %p510 = por %p508, %p509
      %p512 = scmp.ne.s32.totalorder %s497, %s511
      %p513 = scmp.eq.s32.totalorder %s52, 0
      %p514 = por %p512, %p513
      %s516 = sadd.s32 %s515, 1
      %p519 = scmp.eq.s32.totalorder %s46, 1
      %p520 = scmp.ne.s32.totalorder %s515, %s517
      %p521 = scmp.eq.s32.totalorder %s46, 0
      %p522 = por %p520, %p521
      %p523 = scmp.ne.s32.totalorder %s515, %s517
      %p524 = scmp.eq.s32.totalorder %s51, 1
      %p525 = por %p523, %p524
      %p526 = scmp.ne.s32.totalorder %s517, %s518
      %p527 = scmp.eq.s32.totalorder %s51, 0
      %p528 = por %p526, %p527
      %p529 = scmp.ne.s32.totalorder %s517, %s518
      %p530 = scmp.eq.s32.totalorder %s52, 1
      %p531 = por %p529, %p530
      %p533 = scmp.ne.s32.totalorder %s518, %s532
      %p534 = scmp.eq.s32.totalorder %s52, 0
      %p535 = por %p533, %p534
      %s537 = sadd.s32 %s536, 1
      %p540 = scmp.eq.s32.totalorder %s46, 1
      %p541 = scmp.ne.s32.totalorder %s536, %s538
      %p542 = scmp.eq.s32.totalorder %s46, 0
      %p543 = por %p541, %p542
      %p544 = scmp.ne.s32.totalorder %s536, %s538
      %p545 = scmp.eq.s32.totalorder %s51, 1
      %p546 = por %p544, %p545
      %p547 = scmp.ne.s32.totalorder %s538, %s539
      %p548 = scmp.eq.s32.totalorder %s51, 0
      %p549 = por %p547, %p548
      %p550 = scmp.ne.s32.totalorder %s538, %s539
      %p551 = scmp.eq.s32.totalorder %s52, 1
      %p552 = por %p550, %p551
      %p554 = scmp.ne.s32.totalorder %s539, %s553
      %p555 = scmp.eq.s32.totalorder %s52, 0
      %p556 = por %p554, %p555
      %s558 = sadd.s32 %s557, 1
      %p561 = scmp.eq.s32.totalorder %s46, 1
      %p562 = scmp.ne.s32.totalorder %s557, %s559
      %p563 = scmp.eq.s32.totalorder %s46, 0
      %p564 = por %p562, %p563
      %p565 = scmp.ne.s32.totalorder %s557, %s559
      %p566 = scmp.eq.s32.totalorder %s51, 1
      %p567 = por %p565, %p566
      %p568 = scmp.ne.s32.totalorder %s559, %s560
      %p569 = scmp.eq.s32.totalorder %s51, 0
      %p570 = por %p568, %p569
      %p571 = scmp.ne.s32.totalorder %s559, %s560
      %p572 = scmp.eq.s32.totalorder %s52, 1
      %p573 = por %p571, %p572
      %p575 = scmp.ne.s32.totalorder %s560, %s574
      %p576 = scmp.eq.s32.totalorder %s52, 0
      %p577 = por %p575, %p576
      %s579 = sadd.s32 %s578, 1
      %p582 = scmp.eq.s32.totalorder %s46, 1
      %p583 = scmp.ne.s32.totalorder %s578, %s580
      %p584 = scmp.eq.s32.totalorder %s46, 0
      %p585 = por %p583, %p584
      %p586 = scmp.ne.s32.totalorder %s578, %s580
      %p587 = scmp.eq.s32.totalorder %s51, 1
      %p588 = por %p586, %p587
      %p589 = scmp.ne.s32.totalorder %s580, %s581
      %p590 = scmp.eq.s32.totalorder %s51, 0
      %p591 = por %p589, %p590
      %p592 = scmp.ne.s32.totalorder %s580, %s581
      %p593 = scmp.eq.s32.totalorder %s52, 1
      %p594 = por %p592, %p593
      %p596 = scmp.ne.s32.totalorder %s581, %s595
      %p597 = scmp.eq.s32.totalorder %s52, 0
      %p598 = por %p596, %p597
      %s600 = sadd.s32 %s599, 1
      %p603 = scmp.eq.s32.totalorder %s46, 1
      %p604 = scmp.ne.s32.totalorder %s599, %s601
      %p605 = scmp.eq.s32.totalorder %s46, 0
      %p606 = por %p604, %p605
      %p607 = scmp.ne.s32.totalorder %s599, %s601
      %p608 = scmp.eq.s32.totalorder %s51, 1
      %p609 = por %p607, %p608
      %p610 = scmp.ne.s32.totalorder %s601, %s602
      %p611 = scmp.eq.s32.totalorder %s51, 0
      %p612 = por %p610, %p611
      %p613 = scmp.ne.s32.totalorder %s601, %s602
      %p614 = scmp.eq.s32.totalorder %s52, 1
      %p615 = por %p613, %p614
      %p617 = scmp.ne.s32.totalorder %s602, %s616
      %p618 = scmp.eq.s32.totalorder %s52, 0
      %p619 = por %p617, %p618
      %s621 = sadd.s32 %s620, 1
      %p624 = scmp.eq.s32.totalorder %s46, 1
      %p625 = scmp.ne.s32.totalorder %s620, %s622
      %p626 = scmp.eq.s32.totalorder %s46, 0
      %p627 = por %p625, %p626
      %p628 = scmp.ne.s32.totalorder %s620, %s622
      %p629 = scmp.eq.s32.totalorder %s51, 1
      %p630 = por %p628, %p629
      %p631 = scmp.ne.s32.totalorder %s622, %s623
      %p632 = scmp.eq.s32.totalorder %s51, 0
      %p633 = por %p631, %p632
      %p634 = scmp.ne.s32.totalorder %s622, %s623
      %p635 = scmp.eq.s32.totalorder %s52, 1
      %p636 = por %p634, %p635
      %p638 = scmp.ne.s32.totalorder %s623, %s637
      %p639 = scmp.eq.s32.totalorder %s52, 0
      %p640 = por %p638, %p639
      %s641 = ssub.s32 %s46, %s53
      %p642 = scmp.eq.s32.totalorder %s641, 0
      %s644 = sadd.s32 %s643, 1
      %s645 = scalar_select %p642, %s643, %s644
      %p648 = pneg %p642
      %p649 = scmp.eq.s32.totalorder %s46, 1
      %p650 = por %p648, %p649
      %p651 = scmp.ne.s32.totalorder %s643, %s646
      %p652 = scmp.eq.s32.totalorder %s46, 0
      %p653 = por %p651, %p652
      %p654 = scmp.ne.s32.totalorder %s643, %s646
      %p655 = scmp.eq.s32.totalorder %s51, 1
      %p656 = por %p654, %p655
      %p657 = scmp.ne.s32.totalorder %s646, %s647
      %p658 = scmp.eq.s32.totalorder %s51, 0
      %p659 = por %p657, %p658
      %p660 = scmp.ne.s32.totalorder %s646, %s647
      %p661 = scmp.eq.s32.totalorder %s52, 1
      %p662 = por %p660, %p661
      %p664 = scmp.ne.s32.totalorder %s647, %s663
      %p665 = scmp.eq.s32.totalorder %s52, 0
      %p666 = por %p664, %p665
      %p667 = scmp.le.s32.totalorder 1, %s46
      %p668 = scmp.lt.s32.totalorder %s46, 3
      %p669 = pnand %p667, %p668
      %p670 = pneg %p669
      // Predicated region
      $region9: #{target_vqgan_transformer_forward.3} parent=5 // pred_check
        _
      $region10: #{target_vqgan_transformer_forward.3} parent=5 // pred_check_branch
        %672 = sbr.rel (%p669) target = $region12
      $region11: #{target_vqgan_transformer_forward.3} parent=5 // pred_region
        %s673 = ssub.s32 %s46, 1
        // Predicated region
        $region13: #{target_vqgan_transformer_forward.3} parent=11 // pred_check
          %p674 = pneg %p93
        $region14: #{target_vqgan_transformer_forward.3} parent=11 // pred_check_branch
          %676 = sbr.rel (%p674) target = $region16
        $region15: #{target_vqgan_transformer_forward.3} parent=11 // pred_region
          _
        $region16: #{target_vqgan_transformer_forward.3} parent=11 // pred_fallthru
          _
        // Predicated region
        $region17: #{target_vqgan_transformer_forward.3} parent=11 // pred_check
          %p677 = pneg %p192
        $region18: #{target_vqgan_transformer_forward.3} parent=11 // pred_check_branch
          %679 = sbr.rel (%p677) target = $region20
        $region19: #{target_vqgan_transformer_forward.3} parent=11 // pred_region
          _
        $region20: #{target_vqgan_transformer_forward.3} parent=11 // pred_fallthru
          _
        // Predicated region
        $region21: #{target_vqgan_transformer_forward.3} parent=11 // pred_check
          %p680 = pneg %p213
        $region22: #{target_vqgan_transformer_forward.3} parent=11 // pred_check_branch
          %682 = sbr.rel (%p680) target = $region24
        $region23: #{target_vqgan_transformer_forward.3} parent=11 // pred_region
          %s684 = ssub.s32 16, 16
          %685 = vsyncadd [#allocation3], %s684
          %s687 = sshll.u32 [#allocation2], 4
          %s688 = int_to_ptr.vmem [resolvable:$true] %s687
          %690 = dma.hbm_to_vmem [thread:$0]  %s6, 16, %s688, [#allocation3]
        $region24: #{target_vqgan_transformer_forward.3} parent=11 // pred_fallthru
          _
        // Predicated region
        $region25: #{target_vqgan_transformer_forward.3} parent=11 // pred_check
          %p691 = pneg %p234
        $region26: #{target_vqgan_transformer_forward.3} parent=11 // pred_check_branch
          %693 = sbr.rel (%p691) target = $region28
        $region27: #{target_vqgan_transformer_forward.3} parent=11 // pred_region
          _
        $region28: #{target_vqgan_transformer_forward.3} parent=11 // pred_fallthru
          _
        // Predicated region
        $region29: #{target_vqgan_transformer_forward.3} parent=11 // pred_check
          %p694 = pneg %p255
        $region30: #{target_vqgan_transformer_forward.3} parent=11 // pred_check_branch
          %696 = sbr.rel (%p694) target = $region32
        $region31: #{target_vqgan_transformer_forward.3} parent=11 // pred_region
          %s698 = ssub.s32 16, 16
          %699 = vsyncadd [#allocation6], %s698
          %s701 = sshll.u32 [#allocation5], 4
          %s702 = int_to_ptr.vmem [resolvable:$true] %s701
          %704 = dma.hbm_to_vmem [thread:$0]  %s8, 16, %s702, [#allocation6]
        $region32: #{target_vqgan_transformer_forward.3} parent=11 // pred_fallthru
          _
        // Predicated region
        $region33: #{target_vqgan_transformer_forward.3} parent=11 // pred_check
          %p705 = pneg %p276
        $region34: #{target_vqgan_transformer_forward.3} parent=11 // pred_check_branch
          %707 = sbr.rel (%p705) target = $region36
        $region35: #{target_vqgan_transformer_forward.3} parent=11 // pred_region
          %s709 = ssub.s32 128, 128
          %710 = vsyncadd [#allocation6], %s709
          %s711 = sshll.u32 [#allocation7], 4
          %s712 = int_to_ptr.vmem [resolvable:$true] %s711
          %717 = dma.hbm_to_vmem [thread:$0]  %s9, 128, %s712, [#allocation6], 64, 64, 4
        $region36: #{target_vqgan_transformer_forward.3} parent=11 // pred_fallthru
          _
        // Predicated region
        $region37: #{target_vqgan_transformer_forward.3} parent=11 // pred_check
          %p718 = pneg %p297
        $region38: #{target_vqgan_transformer_forward.3} parent=11 // pred_check_branch
          %720 = sbr.rel (%p718) target = $region40
        $region39: #{target_vqgan_transformer_forward.3} parent=11 // pred_region
          %s722 = ssub.s32 192, 192
          %723 = vsyncadd [#allocation9], %s722
          %s724 = sshll.u32 [#allocation8], 4
          %s725 = int_to_ptr.vmem [resolvable:$true] %s724
          %730 = dma.hbm_to_vmem [thread:$0]  %s10, 192, %s725, [#allocation9], 64, 64, 4
        $region40: #{target_vqgan_transformer_forward.3} parent=11 // pred_fallthru
          _
        // Predicated region
        $region41: #{target_vqgan_transformer_forward.3} parent=11 // pred_check
          %p731 = pneg %p318
        $region42: #{target_vqgan_transformer_forward.3} parent=11 // pred_check_branch
          %733 = sbr.rel (%p731) target = $region44
        $region43: #{target_vqgan_transformer_forward.3} parent=11 // pred_region
          %s735 = ssub.s32 32, 32
          %736 = vsyncadd [#allocation9], %s735
          %s737 = sshll.u32 [#allocation10], 4
          %s738 = int_to_ptr.vmem [resolvable:$true] %s737
          %743 = dma.hbm_to_vmem [thread:$0]  %s11, 32, %s738, [#allocation9], 16, 16, 1
        $region44: #{target_vqgan_transformer_forward.3} parent=11 // pred_fallthru
          _
        // Predicated region
        $region45: #{target_vqgan_transformer_forward.3} parent=11 // pred_check
          %p744 = pneg %p339
        $region46: #{target_vqgan_transformer_forward.3} parent=11 // pred_check_branch
          %746 = sbr.rel (%p744) target = $region48
        $region47: #{target_vqgan_transformer_forward.3} parent=11 // pred_region
          %s748 = ssub.s32 32, 32
          %749 = vsyncadd [#allocation12], %s748
          %s750 = sshll.u32 [#allocation11], 4
          %s751 = int_to_ptr.vmem [resolvable:$true] %s750
          %756 = dma.hbm_to_vmem [thread:$0]  %s12, 32, %s751, [#allocation12], 16, 16, 1
        $region48: #{target_vqgan_transformer_forward.3} parent=11 // pred_fallthru
          _
        // Predicated region
        $region49: #{target_vqgan_transformer_forward.3} parent=11 // pred_check
          %p757 = pneg %p360
        $region50: #{target_vqgan_transformer_forward.3} parent=11 // pred_check_branch
          %759 = sbr.rel (%p757) target = $region52
        $region51: #{target_vqgan_transformer_forward.3} parent=11 // pred_region
          %s761 = ssub.s32 6144, 6144
          %762 = vsyncadd [#allocation12], %s761
          %s763 = sshll.u32 [#allocation13], 4
          %s764 = int_to_ptr.vmem [resolvable:$true] %s763
          %769 = dma.hbm_to_vmem [thread:$0]  %s13, 6144, %s764, [#allocation12], 192, 192, 12
        $region52: #{target_vqgan_transformer_forward.3} parent=11 // pred_fallthru
          _
        // Predicated region
        $region53: #{target_vqgan_transformer_forward.3} parent=11 // pred_check
          %p770 = pneg %p381
        $region54: #{target_vqgan_transformer_forward.3} parent=11 // pred_check_branch
          %772 = sbr.rel (%p770) target = $region56
        $region55: #{target_vqgan_transformer_forward.3} parent=11 // pred_region
          %s774 = ssub.s32 96, 96
          %775 = vsyncadd [#allocation15], %s774
          %s776 = sshll.u32 [#allocation14], 4
          %s777 = int_to_ptr.vmem [resolvable:$true] %s776
          %782 = dma.hbm_to_vmem [thread:$0]  %s14, 96, %s777, [#allocation15], 48, 48, 3
        $region56: #{target_vqgan_transformer_forward.3} parent=11 // pred_fallthru
          _
        // Predicated region
        $region57: #{target_vqgan_transformer_forward.3} parent=11 // pred_check
          %p783 = pneg %p402
        $region58: #{target_vqgan_transformer_forward.3} parent=11 // pred_check_branch
          %785 = sbr.rel (%p783) target = $region60
        $region59: #{target_vqgan_transformer_forward.3} parent=11 // pred_region
          _
        $region60: #{target_vqgan_transformer_forward.3} parent=11 // pred_fallthru
          _
        // Predicated region
        $region61: #{target_vqgan_transformer_forward.3} parent=11 // pred_check
          %p786 = pneg %p423
        $region62: #{target_vqgan_transformer_forward.3} parent=11 // pred_check_branch
          %788 = sbr.rel (%p786) target = $region64
        $region63: #{target_vqgan_transformer_forward.3} parent=11 // pred_region
          %s790 = ssub.s32 32, 32
          %791 = vsyncadd [#allocation15], %s790
          %s792 = sshll.u32 [#allocation16], 4
          %s793 = int_to_ptr.vmem [resolvable:$true] %s792
          %798 = dma.hbm_to_vmem [thread:$0]  %s16, 32, %s793, [#allocation15], 16, 16, 1
        $region64: #{target_vqgan_transformer_forward.3} parent=11 // pred_fallthru
          _
        // Predicated region
        $region65: #{target_vqgan_transformer_forward.3} parent=11 // pred_check
          %p799 = pneg %p444
        $region66: #{target_vqgan_transformer_forward.3} parent=11 // pred_check_branch
          %801 = sbr.rel (%p799) target = $region68
        $region67: #{target_vqgan_transformer_forward.3} parent=11 // pred_region
          %s803 = ssub.s32 32, 32
          %804 = vsyncadd [#allocation18], %s803
          %s805 = sshll.u32 [#allocation17], 4
          %s806 = int_to_ptr.vmem [resolvable:$true] %s805
          %811 = dma.hbm_to_vmem [thread:$0]  %s17, 32, %s806, [#allocation18], 16, 16, 1
        $region68: #{target_vqgan_transformer_forward.3} parent=11 // pred_fallthru
          _
        // Predicated region
        $region69: #{target_vqgan_transformer_forward.3} parent=11 // pred_check
          %p812 = pneg %p465
        $region70: #{target_vqgan_transformer_forward.3} parent=11 // pred_check_branch
          %814 = sbr.rel (%p812) target = $region72
        $region71: #{target_vqgan_transformer_forward.3} parent=11 // pred_region
          %s816 = ssub.s32 32, 32
          %817 = vsyncadd [#allocation18], %s816
          %s818 = sshll.u32 [#allocation19], 4
          %s819 = int_to_ptr.vmem [resolvable:$true] %s818
          %824 = dma.hbm_to_vmem [thread:$0]  %s18, 32, %s819, [#allocation18], 16, 16, 1
        $region72: #{target_vqgan_transformer_forward.3} parent=11 // pred_fallthru
          _
        // Predicated region
        $region73: #{target_vqgan_transformer_forward.3} parent=11 // pred_check
          %p825 = pneg %p486
        $region74: #{target_vqgan_transformer_forward.3} parent=11 // pred_check_branch
          %827 = sbr.rel (%p825) target = $region76
        $region75: #{target_vqgan_transformer_forward.3} parent=11 // pred_region
          _
        $region76: #{target_vqgan_transformer_forward.3} parent=11 // pred_fallthru
          _
        // Predicated region
        $region77: #{target_vqgan_transformer_forward.3} parent=11 // pred_check
          %p828 = pneg %p507
        $region78: #{target_vqgan_transformer_forward.3} parent=11 // pred_check_branch
          %830 = sbr.rel (%p828) target = $region80
        $region79: #{target_vqgan_transformer_forward.3} parent=11 // pred_region
          %s832 = ssub.s32 128, 128
          %833 = vsyncadd [#allocation21], %s832
          %s834 = sshll.u32 [#allocation20], 4
          %s835 = int_to_ptr.vmem [resolvable:$true] %s834
          %840 = dma.hbm_to_vmem [thread:$0]  %s20, 128, %s835, [#allocation21], 64, 64, 4
        $region80: #{target_vqgan_transformer_forward.3} parent=11 // pred_fallthru
          _
        // Predicated region
        $region81: #{target_vqgan_transformer_forward.3} parent=11 // pred_check
          %p841 = pneg %p528
        $region82: #{target_vqgan_transformer_forward.3} parent=11 // pred_check_branch
          %843 = sbr.rel (%p841) target = $region84
        $region83: #{target_vqgan_transformer_forward.3} parent=11 // pred_region
          %s845 = ssub.s32 8192, 8192
          %846 = vsyncadd [#allocation21], %s845
          %s847 = sshll.u32 [#allocation22], 4
          %s848 = int_to_ptr.vmem [resolvable:$true] %s847
          %853 = dma.hbm_to_vmem [thread:$0]  %s21, 8192, %s848, [#allocation21], 64, 64, 4
        $region84: #{target_vqgan_transformer_forward.3} parent=11 // pred_fallthru
          _
        // Predicated region
        $region85: #{target_vqgan_transformer_forward.3} parent=11 // pred_check
          %p854 = pneg %p549
        $region86: #{target_vqgan_transformer_forward.3} parent=11 // pred_check_branch
          %856 = sbr.rel (%p854) target = $region88
        $region87: #{target_vqgan_transformer_forward.3} parent=11 // pred_region
          %s858 = ssub.s32 32, 32
          %859 = vsyncadd [#allocation24], %s858
          %s860 = sshll.u32 [#allocation23], 4
          %s861 = int_to_ptr.vmem [resolvable:$true] %s860
          %866 = dma.hbm_to_vmem [thread:$0]  %s22, 32, %s861, [#allocation24], 16, 16, 1
        $region88: #{target_vqgan_transformer_forward.3} parent=11 // pred_fallthru
          _
        // Predicated region
        $region89: #{target_vqgan_transformer_forward.3} parent=11 // pred_check
          %p867 = pneg %p570
        $region90: #{target_vqgan_transformer_forward.3} parent=11 // pred_check_branch
          %869 = sbr.rel (%p867) target = $region92
        $region91: #{target_vqgan_transformer_forward.3} parent=11 // pred_region
          %s871 = ssub.s32 16, 16
          %872 = vsyncadd [#allocation24], %s871
          %s874 = sshll.u32 [#allocation25], 4
          %s875 = int_to_ptr.vmem [resolvable:$true] %s874
          %877 = dma.hbm_to_vmem [thread:$0]  %s23, 16, %s875, [#allocation24]
        $region92: #{target_vqgan_transformer_forward.3} parent=11 // pred_fallthru
          _
        // Predicated region
        $region93: #{target_vqgan_transformer_forward.3} parent=11 // pred_check
          %p878 = pneg %p591
        $region94: #{target_vqgan_transformer_forward.3} parent=11 // pred_check_branch
          %880 = sbr.rel (%p878) target = $region96
        $region95: #{target_vqgan_transformer_forward.3} parent=11 // pred_region
          %s882 = ssub.s32 16, 16
          %883 = vsyncadd [#allocation27], %s882
          %s885 = sshll.u32 [#allocation26], 4
          %s886 = int_to_ptr.vmem [resolvable:$true] %s885
          %888 = dma.hbm_to_vmem [thread:$0]  %s24, 16, %s886, [#allocation27]
        $region96: #{target_vqgan_transformer_forward.3} parent=11 // pred_fallthru
          _
        // Predicated region
        $region97: #{target_vqgan_transformer_forward.3} parent=11 // pred_check
          %p889 = pneg %p612
        $region98: #{target_vqgan_transformer_forward.3} parent=11 // pred_check_branch
          %891 = sbr.rel (%p889) target = $region100
        $region99: #{target_vqgan_transformer_forward.3} parent=11 // pred_region
          %s893 = ssub.s32 1024, 1024
          %894 = vsyncadd [#allocation27], %s893
          %s895 = sshll.u32 [#allocation28], 4
          %s896 = int_to_ptr.vmem [resolvable:$true] %s895
          %901 = dma.hbm_to_vmem [thread:$0]  %s25, 1024, %s896, [#allocation27], 64, 64, 4
        $region100: #{target_vqgan_transformer_forward.3} parent=11 // pred_fallthru
          _
        // Predicated region
        $region101: #{target_vqgan_transformer_forward.3} parent=11 // pred_check
          %p902 = pneg %p633
        $region102: #{target_vqgan_transformer_forward.3} parent=11 // pred_check_branch
          %904 = sbr.rel (%p902) target = $region104
        $region103: #{target_vqgan_transformer_forward.3} parent=11 // pred_region
          %s906 = ssub.s32 16, 16
          %907 = vsyncadd [#allocation30], %s906
          %s909 = sshll.u32 [#allocation29], 4
          %s910 = int_to_ptr.vmem [resolvable:$true] %s909
          %912 = dma.hbm_to_vmem [thread:$0]  %s26, 16, %s910, [#allocation30]
        $region104: #{target_vqgan_transformer_forward.3} parent=11 // pred_fallthru
          _
      $region12: #{target_vqgan_transformer_forward.3} parent=5 // pred_fallthru
        _
      %p913 = scmp.lt.s32.totalorder %s46, 2
      // Predicated region
      $region105: #{target_vqgan_transformer_forward.3} parent=5 // pred_check
        %p914 = pneg %p913
      $region106: #{target_vqgan_transformer_forward.3} parent=5 // pred_check_branch
        %916 = sbr.rel (%p914) target = $region108
      $region107: #{target_vqgan_transformer_forward.3} parent=5 // pred_region
        // Predicated region
        $region109: #{target_vqgan_transformer_forward.3} parent=107 // pred_check
          %p917 = pneg %p66
        $region110: #{target_vqgan_transformer_forward.3} parent=107 // pred_check_branch
          %919 = sbr.rel (%p917) target = $region112
        $region111: #{target_vqgan_transformer_forward.3} parent=107 // pred_region
          %p920 = scmp.lt.s32.totalorder %s46, 1
          %s921 = scalar_select %p920, %s46, 1
          %s922 = smul.addr %s921, 4
          %s923 = scalar_lea.vmem %s0, %s922
        $region112: #{target_vqgan_transformer_forward.3} parent=107 // pred_fallthru
          _
        // Predicated region
        $region113: #{target_vqgan_transformer_forward.3} parent=107 // pred_check
          %p924 = pneg %p113
        $region114: #{target_vqgan_transformer_forward.3} parent=107 // pred_check_branch
          %926 = sbr.rel (%p924) target = $region116
        $region115: #{target_vqgan_transformer_forward.3} parent=107 // pred_region
          %p927 = scmp.lt.s32.totalorder %s46, 1
          %s928 = scalar_select %p927, %s46, 1
          %s929 = scalar_lea.vmem %s2, %s928
        $region116: #{target_vqgan_transformer_forward.3} parent=107 // pred_fallthru
          _
        // Predicated region
        $region117: #{target_vqgan_transformer_forward.3} parent=107 // pred_check
          %p930 = pneg %p139
        $region118: #{target_vqgan_transformer_forward.3} parent=107 // pred_check_branch
          %932 = sbr.rel (%p930) target = $region120
        $region119: #{target_vqgan_transformer_forward.3} parent=107 // pred_region
          %p933 = scmp.lt.s32.totalorder %s46, 1
          %s934 = scalar_select %p933, %s46, 1
          %s935 = scalar_lea.vmem %s3, %s934
        $region120: #{target_vqgan_transformer_forward.3} parent=107 // pred_fallthru
          _
        // Predicated region
        $region121: #{target_vqgan_transformer_forward.3} parent=107 // pred_check
          %p936 = pneg %p165
        $region122: #{target_vqgan_transformer_forward.3} parent=107 // pred_check_branch
          %938 = sbr.rel (%p936) target = $region124
        $region123: #{target_vqgan_transformer_forward.3} parent=107 // pred_region
          %p939 = scmp.lt.s32.totalorder %s46, 1
          %s940 = scalar_select %p939, %s46, 1
          %s941 = scalar_lea.vmem %s4, %s940
        $region124: #{target_vqgan_transformer_forward.3} parent=107 // pred_fallthru
          _
      $region108: #{target_vqgan_transformer_forward.3} parent=5 // pred_fallthru
        _
      %p942 = scmp.le.s32.totalorder 1, %s46
      %p943 = scmp.lt.s32.totalorder %s46, 3
      %p944 = pnand %p942, %p943
      %p945 = pneg %p944
      // Predicated region
      $region125: #{target_vqgan_transformer_forward.3} parent=5 // pred_check
        _
      $region126: #{target_vqgan_transformer_forward.3} parent=5 // pred_check_branch
        %947 = sbr.rel (%p944) target = $region128
      $region127: #{target_vqgan_transformer_forward.3} parent=5 // pred_region
        %s948 = ssub.s32 %s46, 1
        // Predicated region
        $region129: #{target_vqgan_transformer_forward.3} parent=127 // pred_check
          %p949 = pneg %p213
        $region130: #{target_vqgan_transformer_forward.3} parent=127 // pred_check_branch
          %951 = sbr.rel (%p949) target = $region132
        $region131: #{target_vqgan_transformer_forward.3} parent=127 // pred_region
          %952 = dma.done [#allocation3], 16
        $region132: #{target_vqgan_transformer_forward.3} parent=127 // pred_fallthru
          _
        // Predicated region
        $region133: #{target_vqgan_transformer_forward.3} parent=127 // pred_check
          %p953 = pneg %p255
        $region134: #{target_vqgan_transformer_forward.3} parent=127 // pred_check_branch
          %955 = sbr.rel (%p953) target = $region136
        $region135: #{target_vqgan_transformer_forward.3} parent=127 // pred_region
          %956 = dma.done [#allocation6], 16
        $region136: #{target_vqgan_transformer_forward.3} parent=127 // pred_fallthru
          _
        // Predicated region
        $region137: #{target_vqgan_transformer_forward.3} parent=127 // pred_check
          %p957 = pneg %p276
        $region138: #{target_vqgan_transformer_forward.3} parent=127 // pred_check_branch
          %959 = sbr.rel (%p957) target = $region140
        $region139: #{target_vqgan_transformer_forward.3} parent=127 // pred_region
          %960 = dma.done [#allocation6], 128
        $region140: #{target_vqgan_transformer_forward.3} parent=127 // pred_fallthru
          _
        // Predicated region
        $region141: #{target_vqgan_transformer_forward.3} parent=127 // pred_check
          %p961 = pneg %p297
        $region142: #{target_vqgan_transformer_forward.3} parent=127 // pred_check_branch
          %963 = sbr.rel (%p961) target = $region144
        $region143: #{target_vqgan_transformer_forward.3} parent=127 // pred_region
          %964 = dma.done [#allocation9], 192
        $region144: #{target_vqgan_transformer_forward.3} parent=127 // pred_fallthru
          _
        // Predicated region
        $region145: #{target_vqgan_transformer_forward.3} parent=127 // pred_check
          %p965 = pneg %p318
        $region146: #{target_vqgan_transformer_forward.3} parent=127 // pred_check_branch
          %967 = sbr.rel (%p965) target = $region148
        $region147: #{target_vqgan_transformer_forward.3} parent=127 // pred_region
          %968 = dma.done [#allocation9], 32
        $region148: #{target_vqgan_transformer_forward.3} parent=127 // pred_fallthru
          _
        // Predicated region
        $region149: #{target_vqgan_transformer_forward.3} parent=127 // pred_check
          %p969 = pneg %p339
        $region150: #{target_vqgan_transformer_forward.3} parent=127 // pred_check_branch
          %971 = sbr.rel (%p969) target = $region152
        $region151: #{target_vqgan_transformer_forward.3} parent=127 // pred_region
          %972 = dma.done [#allocation12], 32
        $region152: #{target_vqgan_transformer_forward.3} parent=127 // pred_fallthru
          _
        // Predicated region
        $region153: #{target_vqgan_transformer_forward.3} parent=127 // pred_check
          %p973 = pneg %p360
        $region154: #{target_vqgan_transformer_forward.3} parent=127 // pred_check_branch
          %975 = sbr.rel (%p973) target = $region156
        $region155: #{target_vqgan_transformer_forward.3} parent=127 // pred_region
          %976 = dma.done [#allocation12], 6144
        $region156: #{target_vqgan_transformer_forward.3} parent=127 // pred_fallthru
          _
        // Predicated region
        $region157: #{target_vqgan_transformer_forward.3} parent=127 // pred_check
          %p977 = pneg %p381
        $region158: #{target_vqgan_transformer_forward.3} parent=127 // pred_check_branch
          %979 = sbr.rel (%p977) target = $region160
        $region159: #{target_vqgan_transformer_forward.3} parent=127 // pred_region
          %980 = dma.done [#allocation15], 96
        $region160: #{target_vqgan_transformer_forward.3} parent=127 // pred_fallthru
          _
        // Predicated region
        $region161: #{target_vqgan_transformer_forward.3} parent=127 // pred_check
          %p981 = pneg %p423
        $region162: #{target_vqgan_transformer_forward.3} parent=127 // pred_check_branch
          %983 = sbr.rel (%p981) target = $region164
        $region163: #{target_vqgan_transformer_forward.3} parent=127 // pred_region
          %984 = dma.done [#allocation15], 32
        $region164: #{target_vqgan_transformer_forward.3} parent=127 // pred_fallthru
          _
        // Predicated region
        $region165: #{target_vqgan_transformer_forward.3} parent=127 // pred_check
          %p985 = pneg %p444
        $region166: #{target_vqgan_transformer_forward.3} parent=127 // pred_check_branch
          %987 = sbr.rel (%p985) target = $region168
        $region167: #{target_vqgan_transformer_forward.3} parent=127 // pred_region
          %988 = dma.done [#allocation18], 32
        $region168: #{target_vqgan_transformer_forward.3} parent=127 // pred_fallthru
          _
        // Predicated region
        $region169: #{target_vqgan_transformer_forward.3} parent=127 // pred_check
          %p989 = pneg %p465
        $region170: #{target_vqgan_transformer_forward.3} parent=127 // pred_check_branch
          %991 = sbr.rel (%p989) target = $region172
        $region171: #{target_vqgan_transformer_forward.3} parent=127 // pred_region
          %992 = dma.done [#allocation18], 32
        $region172: #{target_vqgan_transformer_forward.3} parent=127 // pred_fallthru
          _
        // Predicated region
        $region173: #{target_vqgan_transformer_forward.3} parent=127 // pred_check
          %p993 = pneg %p507
        $region174: #{target_vqgan_transformer_forward.3} parent=127 // pred_check_branch
          %995 = sbr.rel (%p993) target = $region176
        $region175: #{target_vqgan_transformer_forward.3} parent=127 // pred_region
          %996 = dma.done [#allocation21], 128
        $region176: #{target_vqgan_transformer_forward.3} parent=127 // pred_fallthru
          _
        // Predicated region
        $region177: #{target_vqgan_transformer_forward.3} parent=127 // pred_check
          %p997 = pneg %p528
        $region178: #{target_vqgan_transformer_forward.3} parent=127 // pred_check_branch
          %999 = sbr.rel (%p997) target = $region180
        $region179: #{target_vqgan_transformer_forward.3} parent=127 // pred_region
          %1000 = dma.done [#allocation21], 8192
        $region180: #{target_vqgan_transformer_forward.3} parent=127 // pred_fallthru
          _
        // Predicated region
        $region181: #{target_vqgan_transformer_forward.3} parent=127 // pred_check
          %p1001 = pneg %p549
        $region182: #{target_vqgan_transformer_forward.3} parent=127 // pred_check_branch
          %1003 = sbr.rel (%p1001) target = $region184
        $region183: #{target_vqgan_transformer_forward.3} parent=127 // pred_region
          %1004 = dma.done [#allocation24], 32
        $region184: #{target_vqgan_transformer_forward.3} parent=127 // pred_fallthru
          _
        // Predicated region
        $region185: #{target_vqgan_transformer_forward.3} parent=127 // pred_check
          %p1005 = pneg %p570
        $region186: #{target_vqgan_transformer_forward.3} parent=127 // pred_check_branch
          %1007 = sbr.rel (%p1005) target = $region188
        $region187: #{target_vqgan_transformer_forward.3} parent=127 // pred_region
          %1008 = dma.done [#allocation24], 16
        $region188: #{target_vqgan_transformer_forward.3} parent=127 // pred_fallthru
          _
        // Predicated region
        $region189: #{target_vqgan_transformer_forward.3} parent=127 // pred_check
          %p1009 = pneg %p591
        $region190: #{target_vqgan_transformer_forward.3} parent=127 // pred_check_branch
          %1011 = sbr.rel (%p1009) target = $region192
        $region191: #{target_vqgan_transformer_forward.3} parent=127 // pred_region
          %1012 = dma.done [#allocation27], 16
        $region192: #{target_vqgan_transformer_forward.3} parent=127 // pred_fallthru
          _
        // Predicated region
        $region193: #{target_vqgan_transformer_forward.3} parent=127 // pred_check
          %p1013 = pneg %p612
        $region194: #{target_vqgan_transformer_forward.3} parent=127 // pred_check_branch
          %1015 = sbr.rel (%p1013) target = $region196
        $region195: #{target_vqgan_transformer_forward.3} parent=127 // pred_region
          %1016 = dma.done [#allocation27], 1024
        $region196: #{target_vqgan_transformer_forward.3} parent=127 // pred_fallthru
          _
        // Predicated region
        $region197: #{target_vqgan_transformer_forward.3} parent=127 // pred_check
          %p1017 = pneg %p633
        $region198: #{target_vqgan_transformer_forward.3} parent=127 // pred_check_branch
          %1019 = sbr.rel (%p1017) target = $region200
        $region199: #{target_vqgan_transformer_forward.3} parent=127 // pred_region
          %1020 = dma.done [#allocation30], 16
        $region200: #{target_vqgan_transformer_forward.3} parent=127 // pred_fallthru
          _
        %p1021 = scmp.lt.s32.totalorder %s51, 1
        %s1022 = scalar_select %p1021, %s51, 1
        %s1023 = smul.addr %s1022, 4
        %s1024 = scalar_lea.vmem %s0, %s1023
        %p1025 = pneg %p72
        %p1026 = pneg %p69
        %p1027 = pneg %p93
        %p1028 = pneg %p90
        %p1029 = scmp.lt.s32.totalorder %s51, 1
        %s1030 = scalar_select %p1029, %s51, 1
        %s1031 = scalar_lea.vmem %s2, %s1030
        %p1032 = pneg %p119
        %p1033 = pneg %p116
        %p1034 = scmp.lt.s32.totalorder %s51, 1
        %s1035 = scalar_select %p1034, %s51, 1
        %s1036 = scalar_lea.vmem %s3, %s1035
        %p1037 = pneg %p145
        %p1038 = pneg %p142
        %p1039 = scmp.lt.s32.totalorder %s51, 1
        %s1040 = scalar_select %p1039, %s51, 1
        %s1041 = scalar_lea.vmem %s4, %s1040
        %p1042 = pneg %p171
        %p1043 = pneg %p168
        %p1044 = pneg %p192
        %p1045 = pneg %p189
        %p1046 = pneg %p213
        %p1047 = pneg %p210
        %p1048 = pneg %p234
        %p1049 = pneg %p231
        %p1050 = pneg %p255
        %p1051 = pneg %p252
        %p1052 = pneg %p276
        %p1053 = pneg %p273
        %p1054 = pneg %p297
        %p1055 = pneg %p294
        %p1056 = pneg %p318
        %p1057 = pneg %p315
        %p1058 = pneg %p339
        %p1059 = pneg %p336
        %p1060 = pneg %p360
        %p1061 = pneg %p357
        %p1062 = pneg %p381
        %p1063 = pneg %p378
        %p1064 = pneg %p402
        %p1065 = pneg %p399
        %p1066 = pneg %p423
        %p1067 = pneg %p420
        %p1068 = pneg %p444
        %p1069 = pneg %p441
        %p1070 = pneg %p465
        %p1071 = pneg %p462
        %p1072 = pneg %p486
        %p1073 = pneg %p483
        %p1074 = pneg %p507
        %p1075 = pneg %p504
        %p1076 = pneg %p528
        %p1077 = pneg %p525
        %p1078 = pneg %p549
        %p1079 = pneg %p546
        %p1080 = pneg %p570
        %p1081 = pneg %p567
        %p1082 = pneg %p591
        %p1083 = pneg %p588
        %p1084 = pneg %p612
        %p1085 = pneg %p609
        %p1086 = pneg %p633
        %p1087 = pneg %p630
        %p1088 = pneg %p659
        %p1089 = pneg %p656
        %s1090 = sand.u32 %s646, 1
        %s1091 = scalar_lea.sflag [#allocation4], %s1090
        %s1092 = sand.u32 %s646, 1
        %s1093 = smul.addr %s1092, 8
        %s1094 = scalar_lea.vmem [#allocation31], %s1093
        %p1095 = scmp.lt.s32.totalorder %s51, 1
        %s1096 = scalar_select %p1095, %s51, 1
        %s1097 = smul.addr %s1096, 4
        %s1098 = scalar_lea.vmem %s0, %s1097
        %p1099 = scmp.lt.s32.totalorder %s51, 1
        %s1100 = scalar_select %p1099, %s51, 1
        %s1101 = scalar_lea.vmem %s2, %s1100
        %p1102 = scmp.lt.s32.totalorder %s51, 1
        %s1103 = scalar_select %p1102, %s51, 1
        %s1104 = scalar_lea.vmem %s3, %s1103
        %p1105 = scmp.lt.s32.totalorder %s51, 1
        %s1106 = scalar_select %p1105, %s51, 1
        %s1107 = scalar_lea.vmem %s4, %s1106
        %v1109 = vld [vmem:[%s1098] sm:$0xf]
        %v1110 = vld [vmem:[#allocation8] sm:$0xf]
        %v1111 = vld [vmem:[#allocation8 + $0x4] sm:$0xf]
        %v1112 = vld [vmem:[#allocation8 + $0x8] sm:$0x1]
        %v1113 = vld [vmem:[%s1101] sm:$0x1]
        %v1114 = vld [vmem:[%s5] sm:$0xf]
        %v1115 = vld [vmem:[%s5 + $0x4] sm:$0xf]
        %v1116 = vld [vmem:[%s5 + $0x8] sm:$0xf]
        %v1117 = vld [vmem:[%s5 + $0xc] sm:$0xf]
        %v1118 = vld [vmem:[%s5 + $0x10] sm:$0xf]
        %v1119 = vld [vmem:[%s5 + $0x14] sm:$0xf]
        %v1120 = vld [vmem:[%s5 + $0x18] sm:$0xf]
        %v1121 = vld [vmem:[%s5 + $0x1c] sm:$0xf]
        %v1122 = vld [vmem:[#allocation2] sm:$0x1]
        %v1131 = vunpack.c.l.b16 %v1114
        %v1132 = vunpack.c.l.b16 %v1115
        %v1133 = vunpack.c.l.b16 %v1116
        %v1134 = vunpack.c.l.b16 %v1117
        %v1135 = vunpack.c.l.b16 %v1118
        %v1136 = vunpack.c.l.b16 %v1119
        %v1137 = vunpack.c.l.b16 %v1120
        %v1138 = vunpack.c.l.b16 %v1121
        %v1139 = vpack.c.b16 %v1132, %v1131
        %v1140 = vpack.c.b16 %v1134, %v1133
        %v1141 = vpack.c.b16 %v1136, %v1135
        %v1142 = vpack.c.b16 %v1138, %v1137
        %vm1147 = vcmask 523264
        %v1149 = vsel %vm1147, %v1113, 0
        %1151 = vmatprep.subr.bf16.mxu0 0
        %1152 = vmatpush1.bf16.msra.mxu0 %v1139
        %1153 = vmatprep.subr.bf16.mxu0 0
        %1154 = vmatpush1.bf16.msra.mxu0 %v1140
        %1155 = vmatprep.subr.bf16.mxu0 0
        %1156 = vmatpush1.bf16.msra.mxu0 %v1141
        %1157 = vmatprep.subr.bf16.mxu0 0
        %1158 = vmatpush1.bf16.msra.mxu0 %v1142
        %1159 = vmatprep.subr.bf16.mxu0 0
        %1160 = vmatpush1.bf16.msra.mxu0 0
        %1161 = vmatprep.subr.bf16.mxu0 0
        %1162 = vmatpush1.bf16.msra.mxu0 0
        %1163 = vmatprep.subr.bf16.mxu0 0
        %1164 = vmatpush1.bf16.msra.mxu0 0
        %1165 = vmatprep.subr.bf16.mxu0 0
        %1166 = vmatpush1.bf16.msra.mxu0 0
        %1167 = vmatprep.subr.bf16.mxu0 0
        %1168 = vmatpush1.bf16.msra.mxu0 0
        %1169 = vmatprep.subr.bf16.mxu0 0
        %1170 = vmatpush1.bf16.msra.mxu0 0
        %1171 = vmatprep.subr.bf16.mxu0 0
        %1172 = vmatpush1.bf16.msra.mxu0 0
        %1173 = vmatprep.subr.bf16.mxu0 0
        %1174 = vmatpush1.bf16.msra.mxu0 0
        %1175 = vmatprep.subr.bf16.mxu0 0
        %1176 = vmatpush1.bf16.msra.mxu0 0
        %1177 = vmatprep.subr.bf16.mxu0 0
        %1178 = vmatpush1.bf16.msra.mxu0 0
        %1179 = vmatprep.subr.bf16.mxu0 0
        %1180 = vmatpush1.bf16.msra.mxu0 0
        %1181 = vmatprep.subr.bf16.mxu0 0
        %1182 = vmatpush1.bf16.msra.mxu0 0
        %1183 = vmatprep.mubr.bf16.mxu0 0
        %1184 = vmatmul.mubr.bf16.gmra.mrb[0].mxu0 %v1149
        %v1185 = vpop.f32.mrb[0].mxu0
        %v1186 = vadd.f32 %v1122, %v1185
        %v1187 = vpop.f32.mrb[0].mxu0
        %v1188 = vpop.f32.mrb[0].mxu0
        %v1189 = vpop.f32.mrb[0].mxu0
        %1190 = vdwg.mxu0
        %v1191 = vld [vmem:[%s1104] sm:$0x1]
        %v1192 = vld [vmem:[%s7] sm:$0xf]
        %v1193 = vld [vmem:[%s7 + $0x4] sm:$0xf]
        %v1194 = vld [vmem:[%s7 + $0x8] sm:$0xf]
        %v1195 = vld [vmem:[%s7 + $0xc] sm:$0xf]
        %v1196 = vld [vmem:[%s7 + $0x10] sm:$0xf]
        %v1197 = vld [vmem:[%s7 + $0x14] sm:$0xf]
        %v1198 = vld [vmem:[%s7 + $0x18] sm:$0xf]
        %v1199 = vld [vmem:[%s7 + $0x1c] sm:$0xf]
        %v1208 = vunpack.c.l.b16 %v1192
        %v1209 = vunpack.c.l.b16 %v1193
        %v1210 = vunpack.c.l.b16 %v1194
        %v1211 = vunpack.c.l.b16 %v1195
        %v1212 = vunpack.c.l.b16 %v1196
        %v1213 = vunpack.c.l.b16 %v1197
        %v1214 = vunpack.c.l.b16 %v1198
        %v1215 = vunpack.c.l.b16 %v1199
        %v1216 = vpack.c.b16 %v1209, %v1208
        %v1217 = vpack.c.b16 %v1211, %v1210
        %v1218 = vpack.c.b16 %v1213, %v1212
        %v1219 = vpack.c.b16 %v1215, %v1214
        %v1225 = vsel %vm1147, %v1191, 0
        %1227 = vmatprep.subr.bf16.mxu0 0
        %1228 = vmatpush1.bf16.msra.mxu0 %v1216
        %1229 = vmatprep.subr.bf16.mxu0 0
        %1230 = vmatpush1.bf16.msra.mxu0 %v1217
        %1231 = vmatprep.subr.bf16.mxu0 0
        %1232 = vmatpush1.bf16.msra.mxu0 %v1218
        %1233 = vmatprep.subr.bf16.mxu0 0
        %1234 = vmatpush1.bf16.msra.mxu0 %v1219
        %1235 = vmatprep.subr.bf16.mxu0 0
        %1236 = vmatpush1.bf16.msra.mxu0 0
        %1237 = vmatprep.subr.bf16.mxu0 0
        %1238 = vmatpush1.bf16.msra.mxu0 0
        %1239 = vmatprep.subr.bf16.mxu0 0
        %1240 = vmatpush1.bf16.msra.mxu0 0
        %1241 = vmatprep.subr.bf16.mxu0 0
        %1242 = vmatpush1.bf16.msra.mxu0 0
        %1243 = vmatprep.subr.bf16.mxu0 0
        %1244 = vmatpush1.bf16.msra.mxu0 0
        %1245 = vmatprep.subr.bf16.mxu0 0
        %1246 = vmatpush1.bf16.msra.mxu0 0
        %1247 = vmatprep.subr.bf16.mxu0 0
        %1248 = vmatpush1.bf16.msra.mxu0 0
        %1249 = vmatprep.subr.bf16.mxu0 0
        %1250 = vmatpush1.bf16.msra.mxu0 0
        %1251 = vmatprep.subr.bf16.mxu0 0
        %1252 = vmatpush1.bf16.msra.mxu0 0
        %1253 = vmatprep.subr.bf16.mxu0 0
        %1254 = vmatpush1.bf16.msra.mxu0 0
        %1255 = vmatprep.subr.bf16.mxu0 0
        %1256 = vmatpush1.bf16.msra.mxu0 0
        %1257 = vmatprep.subr.bf16.mxu0 0
        %1258 = vmatpush1.bf16.msra.mxu0 0
        %1259 = vmatprep.mubr.bf16.mxu0 0
        %1260 = vmatmul.mubr.bf16.gmra.mrb[0].mxu0 %v1225
        %v1261 = vpop.f32.mrb[0].mxu0
        %v1262 = vadd.f32 0.0, %v1261
        %v1263 = vpop.f32.mrb[0].mxu0
        %v1264 = vpop.f32.mrb[0].mxu0
        %v1265 = vpop.f32.mrb[0].mxu0
        %1266 = vdwg.mxu0
        %v1267 = vadd.f32 %v1186, %v1262
        %v1268 = vld [vmem:[#allocation5] sm:$0x1]
        %v1269 = vadd.f32 %v1267, %v1268
        %v1270 = vld [vmem:[%s1107] sm:$0x1]
        %v1271 = vld [vmem:[#allocation7] sm:$0xf]
        %v1272 = vld [vmem:[#allocation7 + $0x4] sm:$0xf]
        %v1275 = vunpack.c.l.b16 %v1271
        %v1276 = vunpack.c.l.b16 %v1272
        %v1277 = vpack.c.b16 %v1276, %v1275
        %vm1279 = vcmask 130048
        %v1281 = vsel %vm1279, %v1270, 0
        %1283 = vmatprep.subr.bf16.mxu0 0
        %1284 = vmatpush1.bf16.msra.mxu0 %v1277
        %1285 = vmatprep.subr.bf16.mxu0 0
        %1286 = vmatpush1.bf16.msra.mxu0 0
        %1287 = vmatprep.subr.bf16.mxu0 0
        %1288 = vmatpush1.bf16.msra.mxu0 0
        %1289 = vmatprep.subr.bf16.mxu0 0
        %1290 = vmatpush1.bf16.msra.mxu0 0
        %1291 = vmatprep.subr.bf16.mxu0 0
        %1292 = vmatpush1.bf16.msra.mxu0 0
        %1293 = vmatprep.subr.bf16.mxu0 0
        %1294 = vmatpush1.bf16.msra.mxu0 0
        %1295 = vmatprep.subr.bf16.mxu0 0
        %1296 = vmatpush1.bf16.msra.mxu0 0
        %1297 = vmatprep.subr.bf16.mxu0 0
        %1298 = vmatpush1.bf16.msra.mxu0 0
        %1299 = vmatprep.subr.bf16.mxu0 0
        %1300 = vmatpush1.bf16.msra.mxu0 0
        %1301 = vmatprep.subr.bf16.mxu0 0
        %1302 = vmatpush1.bf16.msra.mxu0 0
        %1303 = vmatprep.subr.bf16.mxu0 0
        %1304 = vmatpush1.bf16.msra.mxu0 0
        %1305 = vmatprep.subr.bf16.mxu0 0
        %1306 = vmatpush1.bf16.msra.mxu0 0
        %1307 = vmatprep.subr.bf16.mxu0 0
        %1308 = vmatpush1.bf16.msra.mxu0 0
        %1309 = vmatprep.subr.bf16.mxu0 0
        %1310 = vmatpush1.bf16.msra.mxu0 0
        %1311 = vmatprep.subr.bf16.mxu0 0
        %1312 = vmatpush1.bf16.msra.mxu0 0
        %1313 = vmatprep.subr.bf16.mxu0 0
        %1314 = vmatpush1.bf16.msra.mxu0 0
        %1315 = vmatprep.mubr.bf16.mxu0 0
        %1316 = vmatmul.mubr.bf16.gmra.mrb[0].mxu0 %v1281
        %v1317 = vpop.f32.mrb[0].mxu0
        %v1318 = vadd.f32 0.0, %v1317
        %v1319 = vpop.f32.mrb[0].mxu0
        %v1320 = vpop.f32.mrb[0].mxu0
        %v1321 = vpop.f32.mrb[0].mxu0
        %1322 = vdwg.mxu0
        %v1323 = vadd.f32 %v1269, %v1318
        %v1324 = vld [vmem:[%s1] sm:$0xff]
        %v1328 = vunpack.c.l.b16 %v1110
        %v1329 = vunpack.c.l.b16 %v1111
        %v1330 = vunpack.c.l.b16 %v1112
        %v1331 = vpack.c.b16 %v1329, %v1328
        %v1332 = vpack.c.b16 %v1330, %v1330
        %vm1334 = vcmask 138240
        %v1336 = vsel %vm1334, %v1109, 0
        %vm1338 = vcmask 1040384
        %v1339 = vsel 0, 4294967295, 65535
        %v1340 = vsel %vm1338, %v1339, 0
        %v1342 = vand.u32 %v1332, %v1340
        %1344 = vmatprep.subr.bf16.mxu0 0
        %1345 = vmatpush1.bf16.msra.mxu0 %v1331
        %1346 = vmatprep.subr.bf16.mxu0 0
        %1347 = vmatpush1.bf16.msra.mxu0 %v1342
        %1348 = vmatprep.subr.bf16.mxu0 0
        %1349 = vmatpush1.bf16.msra.mxu0 0
        %1350 = vmatprep.subr.bf16.mxu0 0
        %1351 = vmatpush1.bf16.msra.mxu0 0
        %1352 = vmatprep.subr.bf16.mxu0 0
        %1353 = vmatpush1.bf16.msra.mxu0 0
        %1354 = vmatprep.subr.bf16.mxu0 0
        %1355 = vmatpush1.bf16.msra.mxu0 0
        %1356 = vmatprep.subr.bf16.mxu0 0
        %1357 = vmatpush1.bf16.msra.mxu0 0
        %1358 = vmatprep.subr.bf16.mxu0 0
        %1359 = vmatpush1.bf16.msra.mxu0 0
        %1360 = vmatprep.subr.bf16.mxu0 0
        %1361 = vmatpush1.bf16.msra.mxu0 0
        %1362 = vmatprep.subr.bf16.mxu0 0
        %1363 = vmatpush1.bf16.msra.mxu0 0
        %1364 = vmatprep.subr.bf16.mxu0 0
        %1365 = vmatpush1.bf16.msra.mxu0 0
        %1366 = vmatprep.subr.bf16.mxu0 0
        %1367 = vmatpush1.bf16.msra.mxu0 0
        %1368 = vmatprep.subr.bf16.mxu0 0
        %1369 = vmatpush1.bf16.msra.mxu0 0
        %1370 = vmatprep.subr.bf16.mxu0 0
        %1371 = vmatpush1.bf16.msra.mxu0 0
        %1372 = vmatprep.subr.bf16.mxu0 0
        %1373 = vmatpush1.bf16.msra.mxu0 0
        %1374 = vmatprep.subr.bf16.mxu0 0
        %1375 = vmatpush1.bf16.msra.mxu0 0
        %1376 = vmatprep.mubr.bf16.mxu0 0
        %1377 = vmatmul.mubr.bf16.gmra.mrb[0].mxu0 %v1336
        %v1378 = vpop.f32.mrb[0].mxu0
        %v1379 = vadd.f32 %v1324, %v1378
        %v1380 = vpop.f32.mrb[0].mxu0
        %v1381 = vpop.f32.mrb[0].mxu0
        %v1382 = vpop.f32.mrb[0].mxu0
        %1383 = vdwg.mxu0
        %v1384 = vlaneseq
        %v1385 = vshrl.u32 %v1384, 7
        %v1386 = vsub.s32 0, %v1385
        %v1387 = vrot.slane %v1323, %v1386
        %v1388 = vadd.f32 %v1379, %v1387
        %v1389 = vlaneseq
        %v1390 = vshrl.u32 %v1389, 7
        %v1391 = vlaneseq
        %v1392 = vand.u32 %v1391, 127
        %vm1393 = vcmp.le.s32.totalorder %v1392, %v1390
        %v1394 = vld [vmem:[#allocation10] sm:$0x1]
        %v1395 = vld [vmem:[#allocation11] sm:$0x1]
        %1396 = vadd.xlane.f32.xlu0 %v1388
        %v1397 = vpop.xlane.xlu0 %1396
        %v1398 = vrcp.pop 128.0
        %v1399 = vmul.f32 %v1397, %v1398
        %v1400 = vsub.f32 %v1388, %v1399
        %v1401 = vmul.f32 %v1400, %v1400
        %1402 = vadd.xlane.f32.xlu0 %v1401
        %v1403 = vpop.xlane.xlu0 %1402
        %v1404 = vmul.f32 %v1403, %v1398
        %v1405 = vadd.f32 %v1404, 1e-05
        %v1406 = vrsqrt.pop %v1405
        %v1407 = vmul.f32 %v1400, %v1406
        %v1409 = vlaneseq
        %v1410 = vshrl.u32 %v1409, 7
        %v1411 = vsub.s32 0, %v1410
        %v1412 = vrot.slane %v1394, %v1411
        %v1414 = vmul.f32 %v1407, %v1412
        %v1416 = vlaneseq
        %v1417 = vshrl.u32 %v1416, 7
        %v1418 = vsub.s32 0, %v1417
        %v1419 = vrot.slane %v1395, %v1418
        %v1421 = vadd.f32 %v1414, %v1419
        %v1422 = vld [vmem:[#allocation13] sm:$0xff]
        %v1423 = vld [vmem:[#allocation13 + $0x8] sm:$0xf]
        %v1424 = vld [vmem:[#allocation13 + $0xc] sm:$0xff]
        %v1425 = vld [vmem:[#allocation13 + $0x14] sm:$0xf]
        %v1426 = vld [vmem:[#allocation13 + $0x18] sm:$0xff]
        %v1427 = vld [vmem:[#allocation13 + $0x20] sm:$0xf]
        %v1428 = vld [vmem:[#allocation13 + $0x24] sm:$0xff]
        %v1429 = vld [vmem:[#allocation13 + $0x2c] sm:$0xf]
        %v1430 = vld [vmem:[#allocation13 + $0x30] sm:$0xff]
        %v1431 = vld [vmem:[#allocation13 + $0x38] sm:$0xf]
        %v1432 = vld [vmem:[#allocation13 + $0x3c] sm:$0xff]
        %v1433 = vld [vmem:[#allocation13 + $0x44] sm:$0xf]
        %v1434 = vld [vmem:[#allocation13 + $0x48] sm:$0xff]
        %v1435 = vld [vmem:[#allocation13 + $0x50] sm:$0xf]
        %v1436 = vld [vmem:[#allocation13 + $0x54] sm:$0xff]
        %v1437 = vld [vmem:[#allocation13 + $0x5c] sm:$0xf]
        %v1438 = vld [vmem:[#allocation13 + $0x60] sm:$0xff]
        %v1439 = vld [vmem:[#allocation13 + $0x68] sm:$0xf]
        %v1440 = vld [vmem:[#allocation13 + $0x6c] sm:$0xff]
        %v1441 = vld [vmem:[#allocation13 + $0x74] sm:$0xf]
        %v1442 = vld [vmem:[#allocation13 + $0x78] sm:$0xff]
        %v1443 = vld [vmem:[#allocation13 + $0x80] sm:$0xf]
        %v1444 = vld [vmem:[#allocation13 + $0x84] sm:$0xff]
        %v1445 = vld [vmem:[#allocation13 + $0x8c] sm:$0xf]
        %v1446 = vld [vmem:[#allocation13 + $0x90] sm:$0xff]
        %v1447 = vld [vmem:[#allocation13 + $0x98] sm:$0xf]
        %v1448 = vld [vmem:[#allocation13 + $0x9c] sm:$0xff]
        %v1449 = vld [vmem:[#allocation13 + $0xa4] sm:$0xf]
        %v1450 = vld [vmem:[#allocation13 + $0xa8] sm:$0xff]
        %v1451 = vld [vmem:[#allocation13 + $0xb0] sm:$0xf]
        %v1452 = vld [vmem:[#allocation13 + $0xb4] sm:$0xff]
        %v1453 = vld [vmem:[#allocation13 + $0xbc] sm:$0xf]
        %v1454 = vpack.c.bf16 %v1421, %v1421
        %v1455 = vld [vmem:[#allocation14] sm:$0x7]
        %v1457 = vlaneseq
        %v1458 = vshrl.u32 %v1457, 7
        %v1459 = vsub.s32 0, %v1458
        %v1460 = vrot.slane %v1455, %v1459
        %v1461 = vlaneseq
        %v1462 = vshrl.u32 %v1461, 7
        %v1463 = vsub.s32 1, %v1462
        %v1464 = vrot.slane %v1455, %v1463
        %v1465 = vlaneseq
        %v1466 = vshrl.u32 %v1465, 7
        %v1467 = vsub.s32 2, %v1466
        %v1468 = vrot.slane %v1455, %v1467
        %v1504 = vunpack.c.l.b16 %v1422
        %v1505 = vunpack.c.h.b16 %v1422
        %v1506 = vunpack.c.l.b16 %v1423
        %v1507 = vunpack.c.l.b16 %v1424
        %v1508 = vunpack.c.h.b16 %v1424
        %v1509 = vunpack.c.l.b16 %v1425
        %v1510 = vunpack.c.l.b16 %v1426
        %v1511 = vunpack.c.h.b16 %v1426
        %v1512 = vunpack.c.l.b16 %v1427
        %v1513 = vunpack.c.l.b16 %v1428
        %v1514 = vunpack.c.h.b16 %v1428
        %v1515 = vunpack.c.l.b16 %v1429
        %v1516 = vunpack.c.l.b16 %v1430
        %v1517 = vunpack.c.h.b16 %v1430
        %v1518 = vunpack.c.l.b16 %v1431
        %v1519 = vunpack.c.l.b16 %v1432
        %v1520 = vunpack.c.h.b16 %v1432
        %v1521 = vunpack.c.l.b16 %v1433
        %v1522 = vunpack.c.l.b16 %v1434
        %v1523 = vunpack.c.h.b16 %v1434
        %v1524 = vunpack.c.l.b16 %v1435
        %v1525 = vunpack.c.l.b16 %v1436
        %v1526 = vunpack.c.h.b16 %v1436
        %v1527 = vunpack.c.l.b16 %v1437
        %v1528 = vunpack.c.l.b16 %v1438
        %v1529 = vunpack.c.h.b16 %v1438
        %v1530 = vunpack.c.l.b16 %v1439
        %v1531 = vunpack.c.l.b16 %v1440
        %v1532 = vunpack.c.h.b16 %v1440
        %v1533 = vunpack.c.l.b16 %v1441
        %v1534 = vunpack.c.l.b16 %v1442
        %v1535 = vunpack.c.h.b16 %v1442
        %v1536 = vunpack.c.l.b16 %v1443
        %v1537 = vunpack.c.l.b16 %v1444
        %v1538 = vunpack.c.h.b16 %v1444
        %v1539 = vunpack.c.l.b16 %v1445
        %v1540 = vunpack.c.l.b16 %v1446
        %v1541 = vunpack.c.h.b16 %v1446
        %v1542 = vunpack.c.l.b16 %v1447
        %v1543 = vunpack.c.l.b16 %v1448
        %v1544 = vunpack.c.h.b16 %v1448
        %v1545 = vunpack.c.l.b16 %v1449
        %v1546 = vunpack.c.l.b16 %v1450
        %v1547 = vunpack.c.h.b16 %v1450
        %v1548 = vunpack.c.l.b16 %v1451
        %v1549 = vunpack.c.l.b16 %v1452
        %v1550 = vunpack.c.h.b16 %v1452
        %v1551 = vunpack.c.l.b16 %v1453
        %v1552 = vpack.c.b16 %v1507, %v1504
        %v1553 = vpack.c.b16 %v1508, %v1505
        %v1554 = vpack.c.b16 %v1509, %v1506
        %v1555 = vpack.c.b16 %v1513, %v1510
        %v1556 = vpack.c.b16 %v1514, %v1511
        %v1557 = vpack.c.b16 %v1515, %v1512
        %v1558 = vpack.c.b16 %v1519, %v1516
        %v1559 = vpack.c.b16 %v1520, %v1517
        %v1560 = vpack.c.b16 %v1521, %v1518
        %v1561 = vpack.c.b16 %v1525, %v1522
        %v1562 = vpack.c.b16 %v1526, %v1523
        %v1563 = vpack.c.b16 %v1527, %v1524
        %v1564 = vpack.c.b16 %v1531, %v1528
        %v1565 = vpack.c.b16 %v1532, %v1529
        %v1566 = vpack.c.b16 %v1533, %v1530
        %v1567 = vpack.c.b16 %v1537, %v1534
        %v1568 = vpack.c.b16 %v1538, %v1535
        %v1569 = vpack.c.b16 %v1539, %v1536
        %v1570 = vpack.c.b16 %v1543, %v1540
        %v1571 = vpack.c.b16 %v1544, %v1541
        %v1572 = vpack.c.b16 %v1545, %v1542
        %v1573 = vpack.c.b16 %v1549, %v1546
        %v1574 = vpack.c.b16 %v1550, %v1547
        %v1575 = vpack.c.b16 %v1551, %v1548
        %1600 = vmatprep.subr.bf16.mxu0 %v1553
        %1601 = vmatpush1.bf16.msra.mxu0 %v1552
        %1602 = vmatprep.subr.bf16.mxu0 %v1556
        %1603 = vmatpush1.bf16.msra.mxu0 %v1555
        %1604 = vmatprep.subr.bf16.mxu0 %v1559
        %1605 = vmatpush1.bf16.msra.mxu0 %v1558
        %1606 = vmatprep.subr.bf16.mxu0 %v1562
        %1607 = vmatpush1.bf16.msra.mxu0 %v1561
        %1608 = vmatprep.subr.bf16.mxu0 %v1565
        %1609 = vmatpush1.bf16.msra.mxu0 %v1564
        %1610 = vmatprep.subr.bf16.mxu0 %v1568
        %1611 = vmatpush1.bf16.msra.mxu0 %v1567
        %1612 = vmatprep.subr.bf16.mxu0 %v1571
        %1613 = vmatpush1.bf16.msra.mxu0 %v1570
        %1614 = vmatprep.subr.bf16.mxu0 %v1574
        %1615 = vmatpush1.bf16.msra.mxu0 %v1573
        %1616 = vmatprep.subr.bf16.mxu0 0
        %1617 = vmatpush1.bf16.msra.mxu0 0
        %1618 = vmatprep.subr.bf16.mxu0 0
        %1619 = vmatpush1.bf16.msra.mxu0 0
        %1620 = vmatprep.subr.bf16.mxu0 0
        %1621 = vmatpush1.bf16.msra.mxu0 0
        %1622 = vmatprep.subr.bf16.mxu0 0
        %1623 = vmatpush1.bf16.msra.mxu0 0
        %1624 = vmatprep.subr.bf16.mxu0 0
        %1625 = vmatpush1.bf16.msra.mxu0 0
        %1626 = vmatprep.subr.bf16.mxu0 0
        %1627 = vmatpush1.bf16.msra.mxu0 0
        %1628 = vmatprep.subr.bf16.mxu0 0
        %1629 = vmatpush1.bf16.msra.mxu0 0
        %1630 = vmatprep.subr.bf16.mxu0 0
        %1631 = vmatpush1.bf16.msra.mxu0 0
        %1632 = vmatprep.mubr.bf16.mxu0 0
        %1633 = vmatmul.mubr.bf16.gmra.mrb[0].mxu0 %v1454
        %v1634 = vpop.f32.mrb[0].mxu0
        %v1635 = vadd.f32 %v1460, %v1634
        %v1636 = vpop.f32.mrb[0].mxu0
        %v1637 = vadd.f32 %v1464, %v1636
        %v1638 = vpop.f32.mrb[0].mxu0
        %v1639 = vpop.f32.mrb[0].mxu0
        %1640 = vdwg.mxu0
        %1641 = vmatprep.subr.bf16.mxu0 0
        %1642 = vmatpush1.bf16.msra.mxu0 %v1554
        %1643 = vmatprep.subr.bf16.mxu0 0
        %1644 = vmatpush1.bf16.msra.mxu0 %v1557
        %1645 = vmatprep.subr.bf16.mxu0 0
        %1646 = vmatpush1.bf16.msra.mxu0 %v1560
        %1647 = vmatprep.subr.bf16.mxu0 0
        %1648 = vmatpush1.bf16.msra.mxu0 %v1563
        %1649 = vmatprep.subr.bf16.mxu0 0
        %1650 = vmatpush1.bf16.msra.mxu0 %v1566
        %1651 = vmatprep.subr.bf16.mxu0 0
        %1652 = vmatpush1.bf16.msra.mxu0 %v1569
        %1653 = vmatprep.subr.bf16.mxu0 0
        %1654 = vmatpush1.bf16.msra.mxu0 %v1572
        %1655 = vmatprep.subr.bf16.mxu0 0
        %1656 = vmatpush1.bf16.msra.mxu0 %v1575
        %1657 = vmatprep.subr.bf16.mxu0 0
        %1658 = vmatpush1.bf16.msra.mxu0 0
        %1659 = vmatprep.subr.bf16.mxu0 0
        %1660 = vmatpush1.bf16.msra.mxu0 0
        %1661 = vmatprep.subr.bf16.mxu0 0
        %1662 = vmatpush1.bf16.msra.mxu0 0
        %1663 = vmatprep.subr.bf16.mxu0 0
        %1664 = vmatpush1.bf16.msra.mxu0 0
        %1665 = vmatprep.subr.bf16.mxu0 0
        %1666 = vmatpush1.bf16.msra.mxu0 0
        %1667 = vmatprep.subr.bf16.mxu0 0
        %1668 = vmatpush1.bf16.msra.mxu0 0
        %1669 = vmatprep.subr.bf16.mxu0 0
        %1670 = vmatpush1.bf16.msra.mxu0 0
        %1671 = vmatprep.subr.bf16.mxu0 0
        %1672 = vmatpush1.bf16.msra.mxu0 0
        %1673 = vmatprep.mubr.bf16.mxu0 0
        %1674 = vmatmul.mubr.bf16.gmra.mrb[0].mxu0 %v1454
        %v1675 = vpop.f32.mrb[0].mxu0
        %v1676 = vadd.f32 %v1468, %v1675
        %v1677 = vpop.f32.mrb[0].mxu0
        %v1678 = vpop.f32.mrb[0].mxu0
        %v1679 = vpop.f32.mrb[0].mxu0
        %1680 = vdwg.mxu0
        %v1681 = vld [vmem:[%s15] sm:$0xf]
        %v1682 = vld [vmem:[%s15 + $0x4] sm:$0xf]
        %v1683 = vld [vmem:[%s15 + $0x8] sm:$0xf]
        %v1684 = vld [vmem:[%s15 + $0xc] sm:$0xf]
        %v1685 = vld [vmem:[%s15 + $0x10] sm:$0xf]
        %v1686 = vld [vmem:[%s15 + $0x14] sm:$0xf]
        %v1687 = vld [vmem:[%s15 + $0x18] sm:$0xf]
        %v1688 = vld [vmem:[%s15 + $0x1c] sm:$0xf]
        %v1689 = vld [vmem:[%s15 + $0x20] sm:$0xf]
        %v1690 = vld [vmem:[%s15 + $0x24] sm:$0xf]
        %v1691 = vld [vmem:[%s15 + $0x28] sm:$0xf]
        %v1692 = vld [vmem:[%s15 + $0x2c] sm:$0xf]
        %v1693 = vld [vmem:[%s15 + $0x30] sm:$0xf]
        %v1694 = vld [vmem:[%s15 + $0x34] sm:$0xf]
        %v1695 = vld [vmem:[%s15 + $0x38] sm:$0xf]
        %v1696 = vld [vmem:[%s15 + $0x3c] sm:$0xf]
        %v1697 = vpack.c.bf16 %v1635, %v1635
        %v1698 = vpack.c.bf16 %v1637, %v1637
        %v1699 = vpack.c.bf16 %v1676, %v1676
        %vm1700 = vcmask 261120
        %v1702 = vsel %vm1700, %v1697, 0
        %v1705 = vsel %vm1700, %v1698, 0
        %1707 = vmatprep.subr.bf16.mxu0 0
        %1708 = vmatpush1.bf16.xpose.msra.mxu0 %v1705
        %1709 = vmatprep.subr.bf16.mxu0 0
        %1710 = vmatpush1.bf16.xpose.msra.mxu0 0
        %1711 = vmatprep.subr.bf16.mxu0 0
        %1712 = vmatpush1.bf16.xpose.msra.mxu0 0
        %1713 = vmatprep.subr.bf16.mxu0 0
        %1714 = vmatpush1.bf16.xpose.msra.mxu0 0
        %1715 = vmatprep.subr.bf16.mxu0 0
        %1716 = vmatpush1.bf16.xpose.msra.mxu0 0
        %1717 = vmatprep.subr.bf16.mxu0 0
        %1718 = vmatpush1.bf16.xpose.msra.mxu0 0
        %1719 = vmatprep.subr.bf16.mxu0 0
        %1720 = vmatpush1.bf16.xpose.msra.mxu0 0
        %1721 = vmatprep.subr.bf16.mxu0 0
        %1722 = vmatpush1.bf16.xpose.msra.mxu0 0
        %1723 = vmatprep.subr.bf16.mxu0 0
        %1724 = vmatpush1.bf16.xpose.msra.mxu0 0
        %1725 = vmatprep.subr.bf16.mxu0 0
        %1726 = vmatpush1.bf16.xpose.msra.mxu0 0
        %1727 = vmatprep.subr.bf16.mxu0 0
        %1728 = vmatpush1.bf16.xpose.msra.mxu0 0
        %1729 = vmatprep.subr.bf16.mxu0 0
        %1730 = vmatpush1.bf16.xpose.msra.mxu0 0
        %1731 = vmatprep.subr.bf16.mxu0 0
        %1732 = vmatpush1.bf16.xpose.msra.mxu0 0
        %1733 = vmatprep.subr.bf16.mxu0 0
        %1734 = vmatpush1.bf16.xpose.msra.mxu0 0
        %1735 = vmatprep.subr.bf16.mxu0 0
        %1736 = vmatpush1.bf16.xpose.msra.mxu0 0
        %1737 = vmatprep.subr.bf16.mxu0 0
        %1738 = vmatpush1.bf16.xpose.msra.mxu0 0
        %1739 = vmatprep.mubr.bf16.mxu0 0
        %1740 = vmatmul.mubr.bf16.gmra.mrb[0].mxu0 %v1702
        %v1741 = vpop.f32.mrb[0].mxu0
        %v1742 = vadd.f32 0.0, %v1741
        %v1743 = vpop.f32.mrb[0].mxu0
        %v1744 = vpop.f32.mrb[0].mxu0
        %v1745 = vpop.f32.mrb[0].mxu0
        %1746 = vdwg.mxu0
        %v1747 = vmul.f32 %v1742, 0.17677669
        %v1748 = vsel %vm1393, %v1747, -1e+30
        %vm1749 = vcmask 64512
        %v1750 = vsel %vm1749, %v1748, -inf
        %1751 = vmax.xlane.f32.xlu0 %v1750
        %v1752 = vpop.xlane.xlu0 %1751
        %v1753 = vsub.f32 %v1748, %v1752
        %v1754 = vmul.f32 %v1753, 1.442695
        %v1755 = vpow.pop %v1754
        %v1756 = vsel %vm1749, %v1755, 0.0
        %1757 = vadd.xlane.f32.xlu0 %v1756
        %v1758 = vpop.xlane.xlu0 %1757
        %v1759 = vrcp.pop %v1758
        %v1760 = vmul.f32 %v1755, %v1759
        %v1761 = vpack.c.bf16 %v1760, %v1760
        %v1763 = vsel %vm1749, %v1761, 0
        %vm1765 = vcmask 1043456
        %v1767 = vsel %vm1765, %v1699, 0
        %1769 = vmatprep.subr.bf16.mxu0 0
        %1770 = vmatpush1.bf16.msra.mxu0 %v1767
        %1771 = vmatprep.subr.bf16.mxu0 0
        %1772 = vmatpush1.bf16.msra.mxu0 0
        %1773 = vmatprep.subr.bf16.mxu0 0
        %1774 = vmatpush1.bf16.msra.mxu0 0
        %1775 = vmatprep.subr.bf16.mxu0 0
        %1776 = vmatpush1.bf16.msra.mxu0 0
        %1777 = vmatprep.subr.bf16.mxu0 0
        %1778 = vmatpush1.bf16.msra.mxu0 0
        %1779 = vmatprep.subr.bf16.mxu0 0
        %1780 = vmatpush1.bf16.msra.mxu0 0
        %1781 = vmatprep.subr.bf16.mxu0 0
        %1782 = vmatpush1.bf16.msra.mxu0 0
        %1783 = vmatprep.subr.bf16.mxu0 0
        %1784 = vmatpush1.bf16.msra.mxu0 0
        %1785 = vmatprep.subr.bf16.mxu0 0
        %1786 = vmatpush1.bf16.msra.mxu0 0
        %1787 = vmatprep.subr.bf16.mxu0 0
        %1788 = vmatpush1.bf16.msra.mxu0 0
        %1789 = vmatprep.subr.bf16.mxu0 0
        %1790 = vmatpush1.bf16.msra.mxu0 0
        %1791 = vmatprep.subr.bf16.mxu0 0
        %1792 = vmatpush1.bf16.msra.mxu0 0
        %1793 = vmatprep.subr.bf16.mxu0 0
        %1794 = vmatpush1.bf16.msra.mxu0 0
        %1795 = vmatprep.subr.bf16.mxu0 0
        %1796 = vmatpush1.bf16.msra.mxu0 0
        %1797 = vmatprep.subr.bf16.mxu0 0
        %1798 = vmatpush1.bf16.msra.mxu0 0
        %1799 = vmatprep.subr.bf16.mxu0 0
        %1800 = vmatpush1.bf16.msra.mxu0 0
        %1801 = vmatprep.mubr.bf16.mxu0 0
        %1802 = vmatmul.mubr.bf16.gmra.mrb[0].mxu0 %v1763
        %v1803 = vpop.f32.mrb[0].mxu0
        %v1804 = vadd.f32 0.0, %v1803
        %v1805 = vpop.f32.mrb[0].mxu0
        %v1806 = vpop.f32.mrb[0].mxu0
        %v1807 = vpop.f32.mrb[0].mxu0
        %1808 = vdwg.mxu0
        %v1809 = vpack.c.bf16 %v1804, %v1804
        %1811 = vrot.lane.b32.xlu0 %v1697, 96
        %v1812 = vpop.permute.xlu0 %1811
        %1814 = vrot.lane.b32.xlu0 %v1698, 96
        %v1815 = vpop.permute.xlu0 %1814
        %v1817 = vsel %vm1700, %v1812, 0
        %v1820 = vsel %vm1700, %v1815, 0
        %1822 = vmatprep.subr.bf16.mxu0 0
        %1823 = vmatpush1.bf16.xpose.msra.mxu0 %v1820
        %1824 = vmatprep.subr.bf16.mxu0 0
        %1825 = vmatpush1.bf16.xpose.msra.mxu0 0
        %1826 = vmatprep.subr.bf16.mxu0 0
        %1827 = vmatpush1.bf16.xpose.msra.mxu0 0
        %1828 = vmatprep.subr.bf16.mxu0 0
        %1829 = vmatpush1.bf16.xpose.msra.mxu0 0
        %1830 = vmatprep.subr.bf16.mxu0 0
        %1831 = vmatpush1.bf16.xpose.msra.mxu0 0
        %1832 = vmatprep.subr.bf16.mxu0 0
        %1833 = vmatpush1.bf16.xpose.msra.mxu0 0
        %1834 = vmatprep.subr.bf16.mxu0 0
        %1835 = vmatpush1.bf16.xpose.msra.mxu0 0
        %1836 = vmatprep.subr.bf16.mxu0 0
        %1837 = vmatpush1.bf16.xpose.msra.mxu0 0
        %1838 = vmatprep.subr.bf16.mxu0 0
        %1839 = vmatpush1.bf16.xpose.msra.mxu0 0
        %1840 = vmatprep.subr.bf16.mxu0 0
        %1841 = vmatpush1.bf16.xpose.msra.mxu0 0
        %1842 = vmatprep.subr.bf16.mxu0 0
        %1843 = vmatpush1.bf16.xpose.msra.mxu0 0
        %1844 = vmatprep.subr.bf16.mxu0 0
        %1845 = vmatpush1.bf16.xpose.msra.mxu0 0
        %1846 = vmatprep.subr.bf16.mxu0 0
        %1847 = vmatpush1.bf16.xpose.msra.mxu0 0
        %1848 = vmatprep.subr.bf16.mxu0 0
        %1849 = vmatpush1.bf16.xpose.msra.mxu0 0
        %1850 = vmatprep.subr.bf16.mxu0 0
        %1851 = vmatpush1.bf16.xpose.msra.mxu0 0
        %1852 = vmatprep.subr.bf16.mxu0 0
        %1853 = vmatpush1.bf16.xpose.msra.mxu0 0
        %1854 = vmatprep.mubr.bf16.mxu0 0
        %1855 = vmatmul.mubr.bf16.gmra.mrb[0].mxu0 %v1817
        %v1856 = vpop.f32.mrb[0].mxu0
        %v1857 = vadd.f32 0.0, %v1856
        %v1858 = vpop.f32.mrb[0].mxu0
        %v1859 = vpop.f32.mrb[0].mxu0
        %v1860 = vpop.f32.mrb[0].mxu0
        %1861 = vdwg.mxu0
        %v1862 = vmul.f32 %v1857, 0.17677669
        %v1863 = vsel %vm1393, %v1862, -1e+30
        %v1864 = vsel %vm1749, %v1863, -inf
        %1865 = vmax.xlane.f32.xlu0 %v1864
        %v1866 = vpop.xlane.xlu0 %1865
        %v1867 = vsub.f32 %v1863, %v1866
        %v1868 = vmul.f32 %v1867, 1.442695
        %v1869 = vpow.pop %v1868
        %v1870 = vsel %vm1749, %v1869, 0.0
        %1871 = vadd.xlane.f32.xlu0 %v1870
        %v1872 = vpop.xlane.xlu0 %1871
        %v1873 = vrcp.pop %v1872
        %v1874 = vmul.f32 %v1869, %v1873
        %v1875 = vpack.c.bf16 %v1874, %v1874
        %1877 = vrot.lane.b32.xlu0 %v1699, 96
        %v1878 = vpop.permute.xlu0 %1877
        %v1880 = vsel %vm1749, %v1875, 0
        %v1883 = vsel %vm1765, %v1878, 0
        %1885 = vmatprep.subr.bf16.mxu0 0
        %1886 = vmatpush1.bf16.msra.mxu0 %v1883
        %1887 = vmatprep.subr.bf16.mxu0 0
        %1888 = vmatpush1.bf16.msra.mxu0 0
        %1889 = vmatprep.subr.bf16.mxu0 0
        %1890 = vmatpush1.bf16.msra.mxu0 0
        %1891 = vmatprep.subr.bf16.mxu0 0
        %1892 = vmatpush1.bf16.msra.mxu0 0
        %1893 = vmatprep.subr.bf16.mxu0 0
        %1894 = vmatpush1.bf16.msra.mxu0 0
        %1895 = vmatprep.subr.bf16.mxu0 0
        %1896 = vmatpush1.bf16.msra.mxu0 0
        %1897 = vmatprep.subr.bf16.mxu0 0
        %1898 = vmatpush1.bf16.msra.mxu0 0
        %1899 = vmatprep.subr.bf16.mxu0 0
        %1900 = vmatpush1.bf16.msra.mxu0 0
        %1901 = vmatprep.subr.bf16.mxu0 0
        %1902 = vmatpush1.bf16.msra.mxu0 0
        %1903 = vmatprep.subr.bf16.mxu0 0
        %1904 = vmatpush1.bf16.msra.mxu0 0
        %1905 = vmatprep.subr.bf16.mxu0 0
        %1906 = vmatpush1.bf16.msra.mxu0 0
        %1907 = vmatprep.subr.bf16.mxu0 0
        %1908 = vmatpush1.bf16.msra.mxu0 0
        %1909 = vmatprep.subr.bf16.mxu0 0
        %1910 = vmatpush1.bf16.msra.mxu0 0
        %1911 = vmatprep.subr.bf16.mxu0 0
        %1912 = vmatpush1.bf16.msra.mxu0 0
        %1913 = vmatprep.subr.bf16.mxu0 0
        %1914 = vmatpush1.bf16.msra.mxu0 0
        %1915 = vmatprep.subr.bf16.mxu0 0
        %1916 = vmatpush1.bf16.msra.mxu0 0
        %1917 = vmatprep.mubr.bf16.mxu0 0
        %1918 = vmatmul.mubr.bf16.gmra.mrb[0].mxu0 %v1880
        %v1919 = vpop.f32.mrb[0].mxu0
        %v1920 = vadd.f32 0.0, %v1919
        %v1921 = vpop.f32.mrb[0].mxu0
        %v1922 = vpop.f32.mrb[0].mxu0
        %v1923 = vpop.f32.mrb[0].mxu0
        %1924 = vdwg.mxu0
        %v1925 = vpack.c.bf16 %v1920, %v1920
        %v1930 = vunpack.c.l.b16 %v1685
        %v1931 = vunpack.c.l.b16 %v1686
        %v1932 = vunpack.c.l.b16 %v1687
        %v1933 = vunpack.c.l.b16 %v1688
        %v1934 = vpack.c.b16 %v1931, %v1930
        %v1935 = vpack.c.b16 %v1933, %v1932
        %v1939 = vsel %vm1700, %v1925, 0
        %1941 = vmatprep.subr.bf16.mxu0 0
        %1942 = vmatpush1.bf16.msra.mxu0 %v1934
        %1943 = vmatprep.subr.bf16.mxu0 0
        %1944 = vmatpush1.bf16.msra.mxu0 %v1935
        %1945 = vmatprep.subr.bf16.mxu0 0
        %1946 = vmatpush1.bf16.msra.mxu0 0
        %1947 = vmatprep.subr.bf16.mxu0 0
        %1948 = vmatpush1.bf16.msra.mxu0 0
        %1949 = vmatprep.subr.bf16.mxu0 0
        %1950 = vmatpush1.bf16.msra.mxu0 0
        %1951 = vmatprep.subr.bf16.mxu0 0
        %1952 = vmatpush1.bf16.msra.mxu0 0
        %1953 = vmatprep.subr.bf16.mxu0 0
        %1954 = vmatpush1.bf16.msra.mxu0 0
        %1955 = vmatprep.subr.bf16.mxu0 0
        %1956 = vmatpush1.bf16.msra.mxu0 0
        %1957 = vmatprep.subr.bf16.mxu0 0
        %1958 = vmatpush1.bf16.msra.mxu0 0
        %1959 = vmatprep.subr.bf16.mxu0 0
        %1960 = vmatpush1.bf16.msra.mxu0 0
        %1961 = vmatprep.subr.bf16.mxu0 0
        %1962 = vmatpush1.bf16.msra.mxu0 0
        %1963 = vmatprep.subr.bf16.mxu0 0
        %1964 = vmatpush1.bf16.msra.mxu0 0
        %1965 = vmatprep.subr.bf16.mxu0 0
        %1966 = vmatpush1.bf16.msra.mxu0 0
        %1967 = vmatprep.subr.bf16.mxu0 0
        %1968 = vmatpush1.bf16.msra.mxu0 0
        %1969 = vmatprep.subr.bf16.mxu0 0
        %1970 = vmatpush1.bf16.msra.mxu0 0
        %1971 = vmatprep.subr.bf16.mxu0 0
        %1972 = vmatpush1.bf16.msra.mxu0 0
        %1973 = vmatprep.mubr.bf16.mxu0 0
        %1974 = vmatmul.mubr.bf16.gmra.mrb[0].mxu0 %v1939
        %v1975 = vpop.f32.mrb[0].mxu0
        %v1976 = vadd.f32 0.0, %v1975
        %v1977 = vpop.f32.mrb[0].mxu0
        %v1978 = vpop.f32.mrb[0].mxu0
        %v1979 = vpop.f32.mrb[0].mxu0
        %1980 = vdwg.mxu0
        %v1985 = vunpack.c.l.b16 %v1681
        %v1986 = vunpack.c.l.b16 %v1682
        %v1987 = vunpack.c.l.b16 %v1683
        %v1988 = vunpack.c.l.b16 %v1684
        %v1989 = vpack.c.b16 %v1986, %v1985
        %v1990 = vpack.c.b16 %v1988, %v1987
        %v1994 = vsel %vm1700, %v1809, 0
        %1996 = vmatprep.subr.bf16.mxu0 0
        %1997 = vmatpush1.bf16.msra.mxu0 %v1989
        %1998 = vmatprep.subr.bf16.mxu0 0
        %1999 = vmatpush1.bf16.msra.mxu0 %v1990
        %2000 = vmatprep.subr.bf16.mxu0 0
        %2001 = vmatpush1.bf16.msra.mxu0 0
        %2002 = vmatprep.subr.bf16.mxu0 0
        %2003 = vmatpush1.bf16.msra.mxu0 0
        %2004 = vmatprep.subr.bf16.mxu0 0
        %2005 = vmatpush1.bf16.msra.mxu0 0
        %2006 = vmatprep.subr.bf16.mxu0 0
        %2007 = vmatpush1.bf16.msra.mxu0 0
        %2008 = vmatprep.subr.bf16.mxu0 0
        %2009 = vmatpush1.bf16.msra.mxu0 0
        %2010 = vmatprep.subr.bf16.mxu0 0
        %2011 = vmatpush1.bf16.msra.mxu0 0
        %2012 = vmatprep.subr.bf16.mxu0 0
        %2013 = vmatpush1.bf16.msra.mxu0 0
        %2014 = vmatprep.subr.bf16.mxu0 0
        %2015 = vmatpush1.bf16.msra.mxu0 0
        %2016 = vmatprep.subr.bf16.mxu0 0
        %2017 = vmatpush1.bf16.msra.mxu0 0
        %2018 = vmatprep.subr.bf16.mxu0 0
        %2019 = vmatpush1.bf16.msra.mxu0 0
        %2020 = vmatprep.subr.bf16.mxu0 0
        %2021 = vmatpush1.bf16.msra.mxu0 0
        %2022 = vmatprep.subr.bf16.mxu0 0
        %2023 = vmatpush1.bf16.msra.mxu0 0
        %2024 = vmatprep.subr.bf16.mxu0 0
        %2025 = vmatpush1.bf16.msra.mxu0 0
        %2026 = vmatprep.subr.bf16.mxu0 0
        %2027 = vmatpush1.bf16.msra.mxu0 0
        %2028 = vmatprep.mubr.bf16.mxu0 0
        %2029 = vmatmul.mubr.bf16.gmra.mrb[0].mxu0 %v1994
        %v2030 = vpop.f32.mrb[0].mxu0
        %v2031 = vadd.f32 %v1976, %v2030
        %v2032 = vpop.f32.mrb[0].mxu0
        %v2033 = vpop.f32.mrb[0].mxu0
        %v2034 = vpop.f32.mrb[0].mxu0
        %2035 = vdwg.mxu0
        %2036 = vrot.lane.b32.xlu0 %v1697, 64
        %v2037 = vpop.permute.xlu0 %2036
        %2038 = vrot.lane.b32.xlu0 %v1698, 64
        %v2039 = vpop.permute.xlu0 %2038
        %v2041 = vsel %vm1700, %v2037, 0
        %v2044 = vsel %vm1700, %v2039, 0
        %2046 = vmatprep.subr.bf16.mxu0 0
        %2047 = vmatpush1.bf16.xpose.msra.mxu0 %v2044
        %2048 = vmatprep.subr.bf16.mxu0 0
        %2049 = vmatpush1.bf16.xpose.msra.mxu0 0
        %2050 = vmatprep.subr.bf16.mxu0 0
        %2051 = vmatpush1.bf16.xpose.msra.mxu0 0
        %2052 = vmatprep.subr.bf16.mxu0 0
        %2053 = vmatpush1.bf16.xpose.msra.mxu0 0
        %2054 = vmatprep.subr.bf16.mxu0 0
        %2055 = vmatpush1.bf16.xpose.msra.mxu0 0
        %2056 = vmatprep.subr.bf16.mxu0 0
        %2057 = vmatpush1.bf16.xpose.msra.mxu0 0
        %2058 = vmatprep.subr.bf16.mxu0 0
        %2059 = vmatpush1.bf16.xpose.msra.mxu0 0
        %2060 = vmatprep.subr.bf16.mxu0 0
        %2061 = vmatpush1.bf16.xpose.msra.mxu0 0
        %2062 = vmatprep.subr.bf16.mxu0 0
        %2063 = vmatpush1.bf16.xpose.msra.mxu0 0
        %2064 = vmatprep.subr.bf16.mxu0 0
        %2065 = vmatpush1.bf16.xpose.msra.mxu0 0
        %2066 = vmatprep.subr.bf16.mxu0 0
        %2067 = vmatpush1.bf16.xpose.msra.mxu0 0
        %2068 = vmatprep.subr.bf16.mxu0 0
        %2069 = vmatpush1.bf16.xpose.msra.mxu0 0
        %2070 = vmatprep.subr.bf16.mxu0 0
        %2071 = vmatpush1.bf16.xpose.msra.mxu0 0
        %2072 = vmatprep.subr.bf16.mxu0 0
        %2073 = vmatpush1.bf16.xpose.msra.mxu0 0
        %2074 = vmatprep.subr.bf16.mxu0 0
        %2075 = vmatpush1.bf16.xpose.msra.mxu0 0
        %2076 = vmatprep.subr.bf16.mxu0 0
        %2077 = vmatpush1.bf16.xpose.msra.mxu0 0
        %2078 = vmatprep.mubr.bf16.mxu0 0
        %2079 = vmatmul.mubr.bf16.gmra.mrb[0].mxu0 %v2041
        %v2080 = vpop.f32.mrb[0].mxu0
        %v2081 = vadd.f32 0.0, %v2080
        %v2082 = vpop.f32.mrb[0].mxu0
        %v2083 = vpop.f32.mrb[0].mxu0
        %v2084 = vpop.f32.mrb[0].mxu0
        %2085 = vdwg.mxu0
        %v2086 = vmul.f32 %v2081, 0.17677669
        %v2087 = vsel %vm1393, %v2086, -1e+30
        %v2088 = vsel %vm1749, %v2087, -inf
        %2089 = vmax.xlane.f32.xlu0 %v2088
        %v2090 = vpop.xlane.xlu0 %2089
        %v2091 = vsub.f32 %v2087, %v2090
        %v2092 = vmul.f32 %v2091, 1.442695
        %v2093 = vpow.pop %v2092
        %v2094 = vsel %vm1749, %v2093, 0.0
        %2095 = vadd.xlane.f32.xlu0 %v2094
        %v2096 = vpop.xlane.xlu0 %2095
        %v2097 = vrcp.pop %v2096
        %v2098 = vmul.f32 %v2093, %v2097
        %v2099 = vpack.c.bf16 %v2098, %v2098
        %2100 = vrot.lane.b32.xlu0 %v1699, 64
        %v2101 = vpop.permute.xlu0 %2100
        %v2103 = vsel %vm1749, %v2099, 0
        %v2106 = vsel %vm1765, %v2101, 0
        %2108 = vmatprep.subr.bf16.mxu0 0
        %2109 = vmatpush1.bf16.msra.mxu0 %v2106
        %2110 = vmatprep.subr.bf16.mxu0 0
        %2111 = vmatpush1.bf16.msra.mxu0 0
        %2112 = vmatprep.subr.bf16.mxu0 0
        %2113 = vmatpush1.bf16.msra.mxu0 0
        %2114 = vmatprep.subr.bf16.mxu0 0
        %2115 = vmatpush1.bf16.msra.mxu0 0
        %2116 = vmatprep.subr.bf16.mxu0 0
        %2117 = vmatpush1.bf16.msra.mxu0 0
        %2118 = vmatprep.subr.bf16.mxu0 0
        %2119 = vmatpush1.bf16.msra.mxu0 0
        %2120 = vmatprep.subr.bf16.mxu0 0
        %2121 = vmatpush1.bf16.msra.mxu0 0
        %2122 = vmatprep.subr.bf16.mxu0 0
        %2123 = vmatpush1.bf16.msra.mxu0 0
        %2124 = vmatprep.subr.bf16.mxu0 0
        %2125 = vmatpush1.bf16.msra.mxu0 0
        %2126 = vmatprep.subr.bf16.mxu0 0
        %2127 = vmatpush1.bf16.msra.mxu0 0
        %2128 = vmatprep.subr.bf16.mxu0 0
        %2129 = vmatpush1.bf16.msra.mxu0 0
        %2130 = vmatprep.subr.bf16.mxu0 0
        %2131 = vmatpush1.bf16.msra.mxu0 0
        %2132 = vmatprep.subr.bf16.mxu0 0
        %2133 = vmatpush1.bf16.msra.mxu0 0
        %2134 = vmatprep.subr.bf16.mxu0 0
        %2135 = vmatpush1.bf16.msra.mxu0 0
        %2136 = vmatprep.subr.bf16.mxu0 0
        %2137 = vmatpush1.bf16.msra.mxu0 0
        %2138 = vmatprep.subr.bf16.mxu0 0
        %2139 = vmatpush1.bf16.msra.mxu0 0
        %2140 = vmatprep.mubr.bf16.mxu0 0
        %2141 = vmatmul.mubr.bf16.gmra.mrb[0].mxu0 %v2103
        %v2142 = vpop.f32.mrb[0].mxu0
        %v2143 = vadd.f32 0.0, %v2142
        %v2144 = vpop.f32.mrb[0].mxu0
        %v2145 = vpop.f32.mrb[0].mxu0
        %v2146 = vpop.f32.mrb[0].mxu0
        %2147 = vdwg.mxu0
        %v2148 = vpack.c.bf16 %v2143, %v2143
        %v2153 = vunpack.c.l.b16 %v1689
        %v2154 = vunpack.c.l.b16 %v1690
        %v2155 = vunpack.c.l.b16 %v1691
        %v2156 = vunpack.c.l.b16 %v1692
        %v2157 = vpack.c.b16 %v2154, %v2153
        %v2158 = vpack.c.b16 %v2156, %v2155
        %v2162 = vsel %vm1700, %v2148, 0
        %2164 = vmatprep.subr.bf16.mxu0 0
        %2165 = vmatpush1.bf16.msra.mxu0 %v2157
        %2166 = vmatprep.subr.bf16.mxu0 0
        %2167 = vmatpush1.bf16.msra.mxu0 %v2158
        %2168 = vmatprep.subr.bf16.mxu0 0
        %2169 = vmatpush1.bf16.msra.mxu0 0
        %2170 = vmatprep.subr.bf16.mxu0 0
        %2171 = vmatpush1.bf16.msra.mxu0 0
        %2172 = vmatprep.subr.bf16.mxu0 0
        %2173 = vmatpush1.bf16.msra.mxu0 0
        %2174 = vmatprep.subr.bf16.mxu0 0
        %2175 = vmatpush1.bf16.msra.mxu0 0
        %2176 = vmatprep.subr.bf16.mxu0 0
        %2177 = vmatpush1.bf16.msra.mxu0 0
        %2178 = vmatprep.subr.bf16.mxu0 0
        %2179 = vmatpush1.bf16.msra.mxu0 0
        %2180 = vmatprep.subr.bf16.mxu0 0
        %2181 = vmatpush1.bf16.msra.mxu0 0
        %2182 = vmatprep.subr.bf16.mxu0 0
        %2183 = vmatpush1.bf16.msra.mxu0 0
        %2184 = vmatprep.subr.bf16.mxu0 0
        %2185 = vmatpush1.bf16.msra.mxu0 0
        %2186 = vmatprep.subr.bf16.mxu0 0
        %2187 = vmatpush1.bf16.msra.mxu0 0
        %2188 = vmatprep.subr.bf16.mxu0 0
        %2189 = vmatpush1.bf16.msra.mxu0 0
        %2190 = vmatprep.subr.bf16.mxu0 0
        %2191 = vmatpush1.bf16.msra.mxu0 0
        %2192 = vmatprep.subr.bf16.mxu0 0
        %2193 = vmatpush1.bf16.msra.mxu0 0
        %2194 = vmatprep.subr.bf16.mxu0 0
        %2195 = vmatpush1.bf16.msra.mxu0 0
        %2196 = vmatprep.mubr.bf16.mxu0 0
        %2197 = vmatmul.mubr.bf16.gmra.mrb[0].mxu0 %v2162
        %v2198 = vpop.f32.mrb[0].mxu0
        %v2199 = vadd.f32 0.0, %v2198
        %v2200 = vpop.f32.mrb[0].mxu0
        %v2201 = vpop.f32.mrb[0].mxu0
        %v2202 = vpop.f32.mrb[0].mxu0
        %2203 = vdwg.mxu0
        %v2204 = vadd.f32 %v2031, %v2199
        %2205 = vrot.lane.b32.xlu0 %v1697, 32
        %v2206 = vpop.permute.xlu0 %2205
        %2207 = vrot.lane.b32.xlu0 %v1698, 32
        %v2208 = vpop.permute.xlu0 %2207
        %v2210 = vsel %vm1700, %v2206, 0
        %v2213 = vsel %vm1700, %v2208, 0
        %2215 = vmatprep.subr.bf16.mxu0 0
        %2216 = vmatpush1.bf16.xpose.msra.mxu0 %v2213
        %2217 = vmatprep.subr.bf16.mxu0 0
        %2218 = vmatpush1.bf16.xpose.msra.mxu0 0
        %2219 = vmatprep.subr.bf16.mxu0 0
        %2220 = vmatpush1.bf16.xpose.msra.mxu0 0
        %2221 = vmatprep.subr.bf16.mxu0 0
        %2222 = vmatpush1.bf16.xpose.msra.mxu0 0
        %2223 = vmatprep.subr.bf16.mxu0 0
        %2224 = vmatpush1.bf16.xpose.msra.mxu0 0
        %2225 = vmatprep.subr.bf16.mxu0 0
        %2226 = vmatpush1.bf16.xpose.msra.mxu0 0
        %2227 = vmatprep.subr.bf16.mxu0 0
        %2228 = vmatpush1.bf16.xpose.msra.mxu0 0
        %2229 = vmatprep.subr.bf16.mxu0 0
        %2230 = vmatpush1.bf16.xpose.msra.mxu0 0
        %2231 = vmatprep.subr.bf16.mxu0 0
        %2232 = vmatpush1.bf16.xpose.msra.mxu0 0
        %2233 = vmatprep.subr.bf16.mxu0 0
        %2234 = vmatpush1.bf16.xpose.msra.mxu0 0
        %2235 = vmatprep.subr.bf16.mxu0 0
        %2236 = vmatpush1.bf16.xpose.msra.mxu0 0
        %2237 = vmatprep.subr.bf16.mxu0 0
        %2238 = vmatpush1.bf16.xpose.msra.mxu0 0
        %2239 = vmatprep.subr.bf16.mxu0 0
        %2240 = vmatpush1.bf16.xpose.msra.mxu0 0
        %2241 = vmatprep.subr.bf16.mxu0 0
        %2242 = vmatpush1.bf16.xpose.msra.mxu0 0
        %2243 = vmatprep.subr.bf16.mxu0 0
        %2244 = vmatpush1.bf16.xpose.msra.mxu0 0
        %2245 = vmatprep.subr.bf16.mxu0 0
        %2246 = vmatpush1.bf16.xpose.msra.mxu0 0
        %2247 = vmatprep.mubr.bf16.mxu0 0
        %2248 = vmatmul.mubr.bf16.gmra.mrb[0].mxu0 %v2210
        %v2249 = vpop.f32.mrb[0].mxu0
        %v2250 = vadd.f32 0.0, %v2249
        %v2251 = vpop.f32.mrb[0].mxu0
        %v2252 = vpop.f32.mrb[0].mxu0
        %v2253 = vpop.f32.mrb[0].mxu0
        %2254 = vdwg.mxu0
        %v2255 = vmul.f32 %v2250, 0.17677669
        %v2256 = vsel %vm1393, %v2255, -1e+30
        %v2257 = vsel %vm1749, %v2256, -inf
        %2258 = vmax.xlane.f32.xlu0 %v2257
        %v2259 = vpop.xlane.xlu0 %2258
        %v2260 = vsub.f32 %v2256, %v2259
        %v2261 = vmul.f32 %v2260, 1.442695
        %v2262 = vpow.pop %v2261
        %v2263 = vsel %vm1749, %v2262, 0.0
        %2264 = vadd.xlane.f32.xlu0 %v2263
        %v2265 = vpop.xlane.xlu0 %2264
        %v2266 = vrcp.pop %v2265
        %v2267 = vmul.f32 %v2262, %v2266
        %v2268 = vpack.c.bf16 %v2267, %v2267
        %2269 = vrot.lane.b32.xlu0 %v1699, 32
        %v2270 = vpop.permute.xlu0 %2269
        %v2272 = vsel %vm1749, %v2268, 0
        %v2275 = vsel %vm1765, %v2270, 0
        %2277 = vmatprep.subr.bf16.mxu0 0
        %2278 = vmatpush1.bf16.msra.mxu0 %v2275
        %2279 = vmatprep.subr.bf16.mxu0 0
        %2280 = vmatpush1.bf16.msra.mxu0 0
        %2281 = vmatprep.subr.bf16.mxu0 0
        %2282 = vmatpush1.bf16.msra.mxu0 0
        %2283 = vmatprep.subr.bf16.mxu0 0
        %2284 = vmatpush1.bf16.msra.mxu0 0
        %2285 = vmatprep.subr.bf16.mxu0 0
        %2286 = vmatpush1.bf16.msra.mxu0 0
        %2287 = vmatprep.subr.bf16.mxu0 0
        %2288 = vmatpush1.bf16.msra.mxu0 0
        %2289 = vmatprep.subr.bf16.mxu0 0
        %2290 = vmatpush1.bf16.msra.mxu0 0
        %2291 = vmatprep.subr.bf16.mxu0 0
        %2292 = vmatpush1.bf16.msra.mxu0 0
        %2293 = vmatprep.subr.bf16.mxu0 0
        %2294 = vmatpush1.bf16.msra.mxu0 0
        %2295 = vmatprep.subr.bf16.mxu0 0
        %2296 = vmatpush1.bf16.msra.mxu0 0
        %2297 = vmatprep.subr.bf16.mxu0 0
        %2298 = vmatpush1.bf16.msra.mxu0 0
        %2299 = vmatprep.subr.bf16.mxu0 0
        %2300 = vmatpush1.bf16.msra.mxu0 0
        %2301 = vmatprep.subr.bf16.mxu0 0
        %2302 = vmatpush1.bf16.msra.mxu0 0
        %2303 = vmatprep.subr.bf16.mxu0 0
        %2304 = vmatpush1.bf16.msra.mxu0 0
        %2305 = vmatprep.subr.bf16.mxu0 0
        %2306 = vmatpush1.bf16.msra.mxu0 0
        %2307 = vmatprep.subr.bf16.mxu0 0
        %2308 = vmatpush1.bf16.msra.mxu0 0
        %2309 = vmatprep.mubr.bf16.mxu0 0
        %2310 = vmatmul.mubr.bf16.gmra.mrb[0].mxu0 %v2272
        %v2311 = vpop.f32.mrb[0].mxu0
        %v2312 = vadd.f32 0.0, %v2311
        %v2313 = vpop.f32.mrb[0].mxu0
        %v2314 = vpop.f32.mrb[0].mxu0
        %v2315 = vpop.f32.mrb[0].mxu0
        %2316 = vdwg.mxu0
        %v2317 = vpack.c.bf16 %v2312, %v2312
        %v2322 = vunpack.c.l.b16 %v1693
        %v2323 = vunpack.c.l.b16 %v1694
        %v2324 = vunpack.c.l.b16 %v1695
        %v2325 = vunpack.c.l.b16 %v1696
        %v2326 = vpack.c.b16 %v2323, %v2322
        %v2327 = vpack.c.b16 %v2325, %v2324
        %v2331 = vsel %vm1700, %v2317, 0
        %2333 = vmatprep.subr.bf16.mxu0 0
        %2334 = vmatpush1.bf16.msra.mxu0 %v2326
        %2335 = vmatprep.subr.bf16.mxu0 0
        %2336 = vmatpush1.bf16.msra.mxu0 %v2327
        %2337 = vmatprep.subr.bf16.mxu0 0
        %2338 = vmatpush1.bf16.msra.mxu0 0
        %2339 = vmatprep.subr.bf16.mxu0 0
        %2340 = vmatpush1.bf16.msra.mxu0 0
        %2341 = vmatprep.subr.bf16.mxu0 0
        %2342 = vmatpush1.bf16.msra.mxu0 0
        %2343 = vmatprep.subr.bf16.mxu0 0
        %2344 = vmatpush1.bf16.msra.mxu0 0
        %2345 = vmatprep.subr.bf16.mxu0 0
        %2346 = vmatpush1.bf16.msra.mxu0 0
        %2347 = vmatprep.subr.bf16.mxu0 0
        %2348 = vmatpush1.bf16.msra.mxu0 0
        %2349 = vmatprep.subr.bf16.mxu0 0
        %2350 = vmatpush1.bf16.msra.mxu0 0
        %2351 = vmatprep.subr.bf16.mxu0 0
        %2352 = vmatpush1.bf16.msra.mxu0 0
        %2353 = vmatprep.subr.bf16.mxu0 0
        %2354 = vmatpush1.bf16.msra.mxu0 0
        %2355 = vmatprep.subr.bf16.mxu0 0
        %2356 = vmatpush1.bf16.msra.mxu0 0
        %2357 = vmatprep.subr.bf16.mxu0 0
        %2358 = vmatpush1.bf16.msra.mxu0 0
        %2359 = vmatprep.subr.bf16.mxu0 0
        %2360 = vmatpush1.bf16.msra.mxu0 0
        %2361 = vmatprep.subr.bf16.mxu0 0
        %2362 = vmatpush1.bf16.msra.mxu0 0
        %2363 = vmatprep.subr.bf16.mxu0 0
        %2364 = vmatpush1.bf16.msra.mxu0 0
        %2365 = vmatprep.mubr.bf16.mxu0 0
        %2366 = vmatmul.mubr.bf16.gmra.mrb[0].mxu0 %v2331
        %v2367 = vpop.f32.mrb[0].mxu0
        %v2368 = vadd.f32 0.0, %v2367
        %v2369 = vpop.f32.mrb[0].mxu0
        %v2370 = vpop.f32.mrb[0].mxu0
        %v2371 = vpop.f32.mrb[0].mxu0
        %2372 = vdwg.mxu0
        %v2373 = vadd.f32 %v2204, %v2368
        %v2374 = vadd.f32 %v1388, %v2373
        %v2375 = vld [vmem:[#allocation16] sm:$0x1]
        %v2377 = vlaneseq
        %v2378 = vshrl.u32 %v2377, 7
        %v2379 = vsub.s32 0, %v2378
        %v2380 = vrot.slane %v2375, %v2379
        %v2382 = vadd.f32 %v2374, %v2380
        %v2383 = vld [vmem:[#allocation17] sm:$0x1]
        %v2384 = vld [vmem:[#allocation19] sm:$0x1]
        %2385 = vadd.xlane.f32.xlu0 %v2382
        %v2386 = vpop.xlane.xlu0 %2385
        %v2387 = vmul.f32 %v2386, %v1398
        %v2388 = vsub.f32 %v2382, %v2387
        %v2389 = vmul.f32 %v2388, %v2388
        %2390 = vadd.xlane.f32.xlu0 %v2389
        %v2391 = vpop.xlane.xlu0 %2390
        %v2392 = vmul.f32 %v2391, %v1398
        %v2393 = vadd.f32 %v2392, 1e-05
        %v2394 = vrsqrt.pop %v2393
        %v2395 = vmul.f32 %v2388, %v2394
        %v2397 = vlaneseq
        %v2398 = vshrl.u32 %v2397, 7
        %v2399 = vsub.s32 0, %v2398
        %v2400 = vrot.slane %v2383, %v2399
        %v2402 = vmul.f32 %v2395, %v2400
        %v2404 = vlaneseq
        %v2405 = vshrl.u32 %v2404, 7
        %v2406 = vsub.s32 0, %v2405
        %v2407 = vrot.slane %v2384, %v2406
        %v2409 = vadd.f32 %v2402, %v2407
        %v2410 = vld [vmem:[%s19] sm:$0xff]
        %v2411 = vld [vmem:[%s19 + $0x8] sm:$0xff]
        %v2412 = vld [vmem:[%s19 + $0x10] sm:$0xff]
        %v2413 = vld [vmem:[%s19 + $0x18] sm:$0xff]
        %v2414 = vld [vmem:[%s19 + $0x20] sm:$0xff]
        %v2415 = vld [vmem:[%s19 + $0x28] sm:$0xff]
        %v2416 = vld [vmem:[%s19 + $0x30] sm:$0xff]
        %v2417 = vld [vmem:[%s19 + $0x38] sm:$0xff]
        %v2418 = vld [vmem:[%s19 + $0x40] sm:$0xff]
        %v2419 = vld [vmem:[%s19 + $0x48] sm:$0xff]
        %v2420 = vld [vmem:[%s19 + $0x50] sm:$0xff]
        %v2421 = vld [vmem:[%s19 + $0x58] sm:$0xff]
        %v2422 = vld [vmem:[%s19 + $0x60] sm:$0xff]
        %v2423 = vld [vmem:[%s19 + $0x68] sm:$0xff]
        %v2424 = vld [vmem:[%s19 + $0x70] sm:$0xff]
        %v2425 = vld [vmem:[%s19 + $0x78] sm:$0xff]
        %v2426 = vld [vmem:[%s19 + $0x80] sm:$0xff]
        %v2427 = vld [vmem:[%s19 + $0x88] sm:$0xff]
        %v2428 = vld [vmem:[%s19 + $0x90] sm:$0xff]
        %v2429 = vld [vmem:[%s19 + $0x98] sm:$0xff]
        %v2430 = vld [vmem:[%s19 + $0xa0] sm:$0xff]
        %v2431 = vld [vmem:[%s19 + $0xa8] sm:$0xff]
        %v2432 = vld [vmem:[%s19 + $0xb0] sm:$0xff]
        %v2433 = vld [vmem:[%s19 + $0xb8] sm:$0xff]
        %v2434 = vld [vmem:[%s19 + $0xc0] sm:$0xff]
        %v2435 = vld [vmem:[%s19 + $0xc8] sm:$0xff]
        %v2436 = vld [vmem:[%s19 + $0xd0] sm:$0xff]
        %v2437 = vld [vmem:[%s19 + $0xd8] sm:$0xff]
        %v2438 = vld [vmem:[%s19 + $0xe0] sm:$0xff]
        %v2439 = vld [vmem:[%s19 + $0xe8] sm:$0xff]
        %v2440 = vld [vmem:[%s19 + $0xf0] sm:$0xff]
        %v2441 = vld [vmem:[%s19 + $0xf8] sm:$0xff]
        %v2442 = vpack.c.bf16 %v2409, %v2409
        %v2443 = vld [vmem:[#allocation20] sm:$0xf]
        %v2445 = vlaneseq
        %v2446 = vshrl.u32 %v2445, 7
        %v2447 = vsub.s32 0, %v2446
        %v2448 = vrot.slane %v2443, %v2447
        %v2449 = vlaneseq
        %v2450 = vshrl.u32 %v2449, 7
        %v2451 = vsub.s32 1, %v2450
        %v2452 = vrot.slane %v2443, %v2451
        %v2453 = vlaneseq
        %v2454 = vshrl.u32 %v2453, 7
        %v2455 = vsub.s32 2, %v2454
        %v2456 = vrot.slane %v2443, %v2455
        %v2457 = vlaneseq
        %v2458 = vshrl.u32 %v2457, 7
        %v2459 = vsub.s32 3, %v2458
        %v2460 = vrot.slane %v2443, %v2459
        %v2497 = vunpack.c.l.b16 %v2410
        %v2498 = vunpack.c.h.b16 %v2410
        %v2499 = vunpack.c.l.b16 %v2411
        %v2500 = vunpack.c.h.b16 %v2411
        %v2501 = vunpack.c.l.b16 %v2412
        %v2502 = vunpack.c.h.b16 %v2412
        %v2503 = vunpack.c.l.b16 %v2413
        %v2504 = vunpack.c.h.b16 %v2413
        %v2505 = vunpack.c.l.b16 %v2414
        %v2506 = vunpack.c.h.b16 %v2414
        %v2507 = vunpack.c.l.b16 %v2415
        %v2508 = vunpack.c.h.b16 %v2415
        %v2509 = vunpack.c.l.b16 %v2416
        %v2510 = vunpack.c.h.b16 %v2416
        %v2511 = vunpack.c.l.b16 %v2417
        %v2512 = vunpack.c.h.b16 %v2417
        %v2513 = vunpack.c.l.b16 %v2418
        %v2514 = vunpack.c.h.b16 %v2418
        %v2515 = vunpack.c.l.b16 %v2419
        %v2516 = vunpack.c.h.b16 %v2419
        %v2517 = vunpack.c.l.b16 %v2420
        %v2518 = vunpack.c.h.b16 %v2420
        %v2519 = vunpack.c.l.b16 %v2421
        %v2520 = vunpack.c.h.b16 %v2421
        %v2521 = vunpack.c.l.b16 %v2422
        %v2522 = vunpack.c.h.b16 %v2422
        %v2523 = vunpack.c.l.b16 %v2423
        %v2524 = vunpack.c.h.b16 %v2423
        %v2525 = vunpack.c.l.b16 %v2424
        %v2526 = vunpack.c.h.b16 %v2424
        %v2527 = vunpack.c.l.b16 %v2425
        %v2528 = vunpack.c.h.b16 %v2425
        %v2529 = vunpack.c.l.b16 %v2426
        %v2530 = vunpack.c.h.b16 %v2426
        %v2531 = vunpack.c.l.b16 %v2427
        %v2532 = vunpack.c.h.b16 %v2427
        %v2533 = vunpack.c.l.b16 %v2428
        %v2534 = vunpack.c.h.b16 %v2428
        %v2535 = vunpack.c.l.b16 %v2429
        %v2536 = vunpack.c.h.b16 %v2429
        %v2537 = vunpack.c.l.b16 %v2430
        %v2538 = vunpack.c.h.b16 %v2430
        %v2539 = vunpack.c.l.b16 %v2431
        %v2540 = vunpack.c.h.b16 %v2431
        %v2541 = vunpack.c.l.b16 %v2432
        %v2542 = vunpack.c.h.b16 %v2432
        %v2543 = vunpack.c.l.b16 %v2433
        %v2544 = vunpack.c.h.b16 %v2433
        %v2545 = vunpack.c.l.b16 %v2434
        %v2546 = vunpack.c.h.b16 %v2434
        %v2547 = vunpack.c.l.b16 %v2435
        %v2548 = vunpack.c.h.b16 %v2435
        %v2549 = vunpack.c.l.b16 %v2436
        %v2550 = vunpack.c.h.b16 %v2436
        %v2551 = vunpack.c.l.b16 %v2437
        %v2552 = vunpack.c.h.b16 %v2437
        %v2553 = vunpack.c.l.b16 %v2438
        %v2554 = vunpack.c.h.b16 %v2438
        %v2555 = vunpack.c.l.b16 %v2439
        %v2556 = vunpack.c.h.b16 %v2439
        %v2557 = vunpack.c.l.b16 %v2440
        %v2558 = vunpack.c.h.b16 %v2440
        %v2559 = vunpack.c.l.b16 %v2441
        %v2560 = vunpack.c.h.b16 %v2441
        %v2561 = vpack.c.b16 %v2501, %v2497
        %v2562 = vpack.c.b16 %v2502, %v2498
        %v2563 = vpack.c.b16 %v2503, %v2499
        %v2564 = vpack.c.b16 %v2504, %v2500
        %v2565 = vpack.c.b16 %v2509, %v2505
        %v2566 = vpack.c.b16 %v2510, %v2506
        %v2567 = vpack.c.b16 %v2511, %v2507
        %v2568 = vpack.c.b16 %v2512, %v2508
        %v2569 = vpack.c.b16 %v2517, %v2513
        %v2570 = vpack.c.b16 %v2518, %v2514
        %v2571 = vpack.c.b16 %v2519, %v2515
        %v2572 = vpack.c.b16 %v2520, %v2516
        %v2573 = vpack.c.b16 %v2525, %v2521
        %v2574 = vpack.c.b16 %v2526, %v2522
        %v2575 = vpack.c.b16 %v2527, %v2523
        %v2576 = vpack.c.b16 %v2528, %v2524
        %v2577 = vpack.c.b16 %v2533, %v2529
        %v2578 = vpack.c.b16 %v2534, %v2530
        %v2579 = vpack.c.b16 %v2535, %v2531
        %v2580 = vpack.c.b16 %v2536, %v2532
        %v2581 = vpack.c.b16 %v2541, %v2537
        %v2582 = vpack.c.b16 %v2542, %v2538
        %v2583 = vpack.c.b16 %v2543, %v2539
        %v2584 = vpack.c.b16 %v2544, %v2540
        %v2585 = vpack.c.b16 %v2549, %v2545
        %v2586 = vpack.c.b16 %v2550, %v2546
        %v2587 = vpack.c.b16 %v2551, %v2547
        %v2588 = vpack.c.b16 %v2552, %v2548
        %v2589 = vpack.c.b16 %v2557, %v2553
        %v2590 = vpack.c.b16 %v2558, %v2554
        %v2591 = vpack.c.b16 %v2559, %v2555
        %v2592 = vpack.c.b16 %v2560, %v2556
        %2625 = vmatprep.subr.bf16.mxu0 %v2562
        %2626 = vmatpush1.bf16.msra.mxu0 %v2561
        %2627 = vmatprep.subr.bf16.mxu0 %v2566
        %2628 = vmatpush1.bf16.msra.mxu0 %v2565
        %2629 = vmatprep.subr.bf16.mxu0 %v2570
        %2630 = vmatpush1.bf16.msra.mxu0 %v2569
        %2631 = vmatprep.subr.bf16.mxu0 %v2574
        %2632 = vmatpush1.bf16.msra.mxu0 %v2573
        %2633 = vmatprep.subr.bf16.mxu0 %v2578
        %2634 = vmatpush1.bf16.msra.mxu0 %v2577
        %2635 = vmatprep.subr.bf16.mxu0 %v2582
        %2636 = vmatpush1.bf16.msra.mxu0 %v2581
        %2637 = vmatprep.subr.bf16.mxu0 %v2586
        %2638 = vmatpush1.bf16.msra.mxu0 %v2585
        %2639 = vmatprep.subr.bf16.mxu0 %v2590
        %2640 = vmatpush1.bf16.msra.mxu0 %v2589
        %2641 = vmatprep.subr.bf16.mxu0 0
        %2642 = vmatpush1.bf16.msra.mxu0 0
        %2643 = vmatprep.subr.bf16.mxu0 0
        %2644 = vmatpush1.bf16.msra.mxu0 0
        %2645 = vmatprep.subr.bf16.mxu0 0
        %2646 = vmatpush1.bf16.msra.mxu0 0
        %2647 = vmatprep.subr.bf16.mxu0 0
        %2648 = vmatpush1.bf16.msra.mxu0 0
        %2649 = vmatprep.subr.bf16.mxu0 0
        %2650 = vmatpush1.bf16.msra.mxu0 0
        %2651 = vmatprep.subr.bf16.mxu0 0
        %2652 = vmatpush1.bf16.msra.mxu0 0
        %2653 = vmatprep.subr.bf16.mxu0 0
        %2654 = vmatpush1.bf16.msra.mxu0 0
        %2655 = vmatprep.subr.bf16.mxu0 0
        %2656 = vmatpush1.bf16.msra.mxu0 0
        %2657 = vmatprep.mubr.bf16.mxu0 0
        %2658 = vmatmul.mubr.bf16.gmra.mrb[0].mxu0 %v2442
        %v2659 = vpop.f32.mrb[0].mxu0
        %v2660 = vadd.f32 %v2448, %v2659
        %v2661 = vpop.f32.mrb[0].mxu0
        %v2662 = vadd.f32 %v2452, %v2661
        %v2663 = vpop.f32.mrb[0].mxu0
        %v2664 = vpop.f32.mrb[0].mxu0
        %2665 = vdwg.mxu0
        %2666 = vmatprep.subr.bf16.mxu0 %v2564
        %2667 = vmatpush1.bf16.msra.mxu0 %v2563
        %2668 = vmatprep.subr.bf16.mxu0 %v2568
        %2669 = vmatpush1.bf16.msra.mxu0 %v2567
        %2670 = vmatprep.subr.bf16.mxu0 %v2572
        %2671 = vmatpush1.bf16.msra.mxu0 %v2571
        %2672 = vmatprep.subr.bf16.mxu0 %v2576
        %2673 = vmatpush1.bf16.msra.mxu0 %v2575
        %2674 = vmatprep.subr.bf16.mxu0 %v2580
        %2675 = vmatpush1.bf16.msra.mxu0 %v2579
        %2676 = vmatprep.subr.bf16.mxu0 %v2584
        %2677 = vmatpush1.bf16.msra.mxu0 %v2583
        %2678 = vmatprep.subr.bf16.mxu0 %v2588
        %2679 = vmatpush1.bf16.msra.mxu0 %v2587
        %2680 = vmatprep.subr.bf16.mxu0 %v2592
        %2681 = vmatpush1.bf16.msra.mxu0 %v2591
        %2682 = vmatprep.subr.bf16.mxu0 0
        %2683 = vmatpush1.bf16.msra.mxu0 0
        %2684 = vmatprep.subr.bf16.mxu0 0
        %2685 = vmatpush1.bf16.msra.mxu0 0
        %2686 = vmatprep.subr.bf16.mxu0 0
        %2687 = vmatpush1.bf16.msra.mxu0 0
        %2688 = vmatprep.subr.bf16.mxu0 0
        %2689 = vmatpush1.bf16.msra.mxu0 0
        %2690 = vmatprep.subr.bf16.mxu0 0
        %2691 = vmatpush1.bf16.msra.mxu0 0
        %2692 = vmatprep.subr.bf16.mxu0 0
        %2693 = vmatpush1.bf16.msra.mxu0 0
        %2694 = vmatprep.subr.bf16.mxu0 0
        %2695 = vmatpush1.bf16.msra.mxu0 0
        %2696 = vmatprep.subr.bf16.mxu0 0
        %2697 = vmatpush1.bf16.msra.mxu0 0
        %2698 = vmatprep.mubr.bf16.mxu0 0
        %2699 = vmatmul.mubr.bf16.gmra.mrb[0].mxu0 %v2442
        %v2700 = vpop.f32.mrb[0].mxu0
        %v2701 = vadd.f32 %v2456, %v2700
        %v2702 = vpop.f32.mrb[0].mxu0
        %v2703 = vadd.f32 %v2460, %v2702
        %v2704 = vpop.f32.mrb[0].mxu0
        %v2705 = vpop.f32.mrb[0].mxu0
        %2706 = vdwg.mxu0
        %v2707 = vmul.f32 %v2660, %v2660
        %v2708 = vmul.f32 %v2662, %v2662
        %v2709 = vmul.f32 %v2701, %v2701
        %v2710 = vmul.f32 %v2703, %v2703
        %v2711 = vmul.f32 %v2660, %v2707
        %v2712 = vmul.f32 %v2662, %v2708
        %v2713 = vmul.f32 %v2701, %v2709
        %v2714 = vmul.f32 %v2703, %v2710
        %v2715 = vmul.f32 %v2711, 0.044715
        %v2716 = vmul.f32 %v2712, 0.044715
        %v2717 = vmul.f32 %v2713, 0.044715
        %v2718 = vmul.f32 %v2714, 0.044715
        %v2719 = vadd.f32 %v2660, %v2715
        %v2720 = vadd.f32 %v2662, %v2716
        %v2721 = vadd.f32 %v2701, %v2717
        %v2722 = vadd.f32 %v2703, %v2718
        %v2723 = vmul.f32 %v2719, 0.7978846
        %v2724 = vmul.f32 %v2720, 0.7978846
        %v2725 = vmul.f32 %v2721, 0.7978846
        %v2726 = vmul.f32 %v2722, 0.7978846
        %v2727 = vtanh.pop %v2723
        %v2728 = vtanh.pop %v2724
        %v2729 = vtanh.pop %v2725
        %v2730 = vtanh.pop %v2726
        %v2731 = vadd.f32 %v2727, 1.0
        %v2732 = vadd.f32 %v2728, 1.0
        %v2733 = vadd.f32 %v2729, 1.0
        %v2734 = vadd.f32 %v2730, 1.0
        %v2735 = vmul.f32 %v2731, 0.5
        %v2736 = vmul.f32 %v2732, 0.5
        %v2737 = vmul.f32 %v2733, 0.5
        %v2738 = vmul.f32 %v2734, 0.5
        %v2739 = vmul.f32 %v2660, %v2735
        %v2740 = vmul.f32 %v2662, %v2736
        %v2741 = vmul.f32 %v2701, %v2737
        %v2742 = vmul.f32 %v2703, %v2738
        %v2743 = vld [vmem:[#allocation22] sm:$0xf]
        %v2744 = vld [vmem:[#allocation22 + $0x4] sm:$0xf]
        %v2745 = vld [vmem:[#allocation22 + $0x8] sm:$0xf]
        %v2746 = vld [vmem:[#allocation22 + $0xc] sm:$0xf]
        %v2747 = vld [vmem:[#allocation22 + $0x10] sm:$0xf]
        %v2748 = vld [vmem:[#allocation22 + $0x14] sm:$0xf]
        %v2749 = vld [vmem:[#allocation22 + $0x18] sm:$0xf]
        %v2750 = vld [vmem:[#allocation22 + $0x1c] sm:$0xf]
        %v2751 = vld [vmem:[#allocation22 + $0x20] sm:$0xf]
        %v2752 = vld [vmem:[#allocation22 + $0x24] sm:$0xf]
        %v2753 = vld [vmem:[#allocation22 + $0x28] sm:$0xf]
        %v2754 = vld [vmem:[#allocation22 + $0x2c] sm:$0xf]
        %v2755 = vld [vmem:[#allocation22 + $0x30] sm:$0xf]
        %v2756 = vld [vmem:[#allocation22 + $0x34] sm:$0xf]
        %v2757 = vld [vmem:[#allocation22 + $0x38] sm:$0xf]
        %v2758 = vld [vmem:[#allocation22 + $0x3c] sm:$0xf]
        %v2759 = vld [vmem:[#allocation22 + $0x40] sm:$0xf]
        %v2760 = vld [vmem:[#allocation22 + $0x44] sm:$0xf]
        %v2761 = vld [vmem:[#allocation22 + $0x48] sm:$0xf]
        %v2762 = vld [vmem:[#allocation22 + $0x4c] sm:$0xf]
        %v2763 = vld [vmem:[#allocation22 + $0x50] sm:$0xf]
        %v2764 = vld [vmem:[#allocation22 + $0x54] sm:$0xf]
        %v2765 = vld [vmem:[#allocation22 + $0x58] sm:$0xf]
        %v2766 = vld [vmem:[#allocation22 + $0x5c] sm:$0xf]
        %v2767 = vld [vmem:[#allocation22 + $0x60] sm:$0xf]
        %v2768 = vld [vmem:[#allocation22 + $0x64] sm:$0xf]
        %v2769 = vld [vmem:[#allocation22 + $0x68] sm:$0xf]
        %v2770 = vld [vmem:[#allocation22 + $0x6c] sm:$0xf]
        %v2771 = vld [vmem:[#allocation22 + $0x70] sm:$0xf]
        %v2772 = vld [vmem:[#allocation22 + $0x74] sm:$0xf]
        %v2773 = vld [vmem:[#allocation22 + $0x78] sm:$0xf]
        %v2774 = vld [vmem:[#allocation22 + $0x7c] sm:$0xf]
        %v2775 = vld [vmem:[#allocation22 + $0x80] sm:$0xf]
        %v2776 = vld [vmem:[#allocation22 + $0x84] sm:$0xf]
        %v2777 = vld [vmem:[#allocation22 + $0x88] sm:$0xf]
        %v2778 = vld [vmem:[#allocation22 + $0x8c] sm:$0xf]
        %v2779 = vld [vmem:[#allocation22 + $0x90] sm:$0xf]
        %v2780 = vld [vmem:[#allocation22 + $0x94] sm:$0xf]
        %v2781 = vld [vmem:[#allocation22 + $0x98] sm:$0xf]
        %v2782 = vld [vmem:[#allocation22 + $0x9c] sm:$0xf]
        %v2783 = vld [vmem:[#allocation22 + $0xa0] sm:$0xf]
        %v2784 = vld [vmem:[#allocation22 + $0xa4] sm:$0xf]
        %v2785 = vld [vmem:[#allocation22 + $0xa8] sm:$0xf]
        %v2786 = vld [vmem:[#allocation22 + $0xac] sm:$0xf]
        %v2787 = vld [vmem:[#allocation22 + $0xb0] sm:$0xf]
        %v2788 = vld [vmem:[#allocation22 + $0xb4] sm:$0xf]
        %v2789 = vld [vmem:[#allocation22 + $0xb8] sm:$0xf]
        %v2790 = vld [vmem:[#allocation22 + $0xbc] sm:$0xf]
        %v2791 = vld [vmem:[#allocation22 + $0xc0] sm:$0xf]
        %v2792 = vld [vmem:[#allocation22 + $0xc4] sm:$0xf]
        %v2793 = vld [vmem:[#allocation22 + $0xc8] sm:$0xf]
        %v2794 = vld [vmem:[#allocation22 + $0xcc] sm:$0xf]
        %v2795 = vld [vmem:[#allocation22 + $0xd0] sm:$0xf]
        %v2796 = vld [vmem:[#allocation22 + $0xd4] sm:$0xf]
        %v2797 = vld [vmem:[#allocation22 + $0xd8] sm:$0xf]
        %v2798 = vld [vmem:[#allocation22 + $0xdc] sm:$0xf]
        %v2799 = vld [vmem:[#allocation22 + $0xe0] sm:$0xf]
        %v2800 = vld [vmem:[#allocation22 + $0xe4] sm:$0xf]
        %v2801 = vld [vmem:[#allocation22 + $0xe8] sm:$0xf]
        %v2802 = vld [vmem:[#allocation22 + $0xec] sm:$0xf]
        %v2803 = vld [vmem:[#allocation22 + $0xf0] sm:$0xf]
        %v2804 = vld [vmem:[#allocation22 + $0xf4] sm:$0xf]
        %v2805 = vld [vmem:[#allocation22 + $0xf8] sm:$0xf]
        %v2806 = vld [vmem:[#allocation22 + $0xfc] sm:$0xf]
        %v2807 = vpack.c.bf16 %v2739, %v2739
        %v2808 = vpack.c.bf16 %v2740, %v2740
        %v2809 = vpack.c.bf16 %v2741, %v2741
        %v2810 = vpack.c.bf16 %v2742, %v2742
        %v2875 = vunpack.c.l.b16 %v2743
        %v2876 = vunpack.c.l.b16 %v2744
        %v2877 = vunpack.c.l.b16 %v2745
        %v2878 = vunpack.c.l.b16 %v2746
        %v2879 = vunpack.c.l.b16 %v2747
        %v2880 = vunpack.c.l.b16 %v2748
        %v2881 = vunpack.c.l.b16 %v2749
        %v2882 = vunpack.c.l.b16 %v2750
        %v2883 = vunpack.c.l.b16 %v2751
        %v2884 = vunpack.c.l.b16 %v2752
        %v2885 = vunpack.c.l.b16 %v2753
        %v2886 = vunpack.c.l.b16 %v2754
        %v2887 = vunpack.c.l.b16 %v2755
        %v2888 = vunpack.c.l.b16 %v2756
        %v2889 = vunpack.c.l.b16 %v2757
        %v2890 = vunpack.c.l.b16 %v2758
        %v2891 = vunpack.c.l.b16 %v2759
        %v2892 = vunpack.c.l.b16 %v2760
        %v2893 = vunpack.c.l.b16 %v2761
        %v2894 = vunpack.c.l.b16 %v2762
        %v2895 = vunpack.c.l.b16 %v2763
        %v2896 = vunpack.c.l.b16 %v2764
        %v2897 = vunpack.c.l.b16 %v2765
        %v2898 = vunpack.c.l.b16 %v2766
        %v2899 = vunpack.c.l.b16 %v2767
        %v2900 = vunpack.c.l.b16 %v2768
        %v2901 = vunpack.c.l.b16 %v2769
        %v2902 = vunpack.c.l.b16 %v2770
        %v2903 = vunpack.c.l.b16 %v2771
        %v2904 = vunpack.c.l.b16 %v2772
        %v2905 = vunpack.c.l.b16 %v2773
        %v2906 = vunpack.c.l.b16 %v2774
        %v2907 = vunpack.c.l.b16 %v2775
        %v2908 = vunpack.c.l.b16 %v2776
        %v2909 = vunpack.c.l.b16 %v2777
        %v2910 = vunpack.c.l.b16 %v2778
        %v2911 = vunpack.c.l.b16 %v2779
        %v2912 = vunpack.c.l.b16 %v2780
        %v2913 = vunpack.c.l.b16 %v2781
        %v2914 = vunpack.c.l.b16 %v2782
        %v2915 = vunpack.c.l.b16 %v2783
        %v2916 = vunpack.c.l.b16 %v2784
        %v2917 = vunpack.c.l.b16 %v2785
        %v2918 = vunpack.c.l.b16 %v2786
        %v2919 = vunpack.c.l.b16 %v2787
        %v2920 = vunpack.c.l.b16 %v2788
        %v2921 = vunpack.c.l.b16 %v2789
        %v2922 = vunpack.c.l.b16 %v2790
        %v2923 = vunpack.c.l.b16 %v2791
        %v2924 = vunpack.c.l.b16 %v2792
        %v2925 = vunpack.c.l.b16 %v2793
        %v2926 = vunpack.c.l.b16 %v2794
        %v2927 = vunpack.c.l.b16 %v2795
        %v2928 = vunpack.c.l.b16 %v2796
        %v2929 = vunpack.c.l.b16 %v2797
        %v2930 = vunpack.c.l.b16 %v2798
        %v2931 = vunpack.c.l.b16 %v2799
        %v2932 = vunpack.c.l.b16 %v2800
        %v2933 = vunpack.c.l.b16 %v2801
        %v2934 = vunpack.c.l.b16 %v2802
        %v2935 = vunpack.c.l.b16 %v2803
        %v2936 = vunpack.c.l.b16 %v2804
        %v2937 = vunpack.c.l.b16 %v2805
        %v2938 = vunpack.c.l.b16 %v2806
        %v2939 = vpack.c.b16 %v2876, %v2875
        %v2940 = vpack.c.b16 %v2878, %v2877
        %v2941 = vpack.c.b16 %v2880, %v2879
        %v2942 = vpack.c.b16 %v2882, %v2881
        %v2943 = vpack.c.b16 %v2884, %v2883
        %v2944 = vpack.c.b16 %v2886, %v2885
        %v2945 = vpack.c.b16 %v2888, %v2887
        %v2946 = vpack.c.b16 %v2890, %v2889
        %v2947 = vpack.c.b16 %v2892, %v2891
        %v2948 = vpack.c.b16 %v2894, %v2893
        %v2949 = vpack.c.b16 %v2896, %v2895
        %v2950 = vpack.c.b16 %v2898, %v2897
        %v2951 = vpack.c.b16 %v2900, %v2899
        %v2952 = vpack.c.b16 %v2902, %v2901
        %v2953 = vpack.c.b16 %v2904, %v2903
        %v2954 = vpack.c.b16 %v2906, %v2905
        %v2955 = vpack.c.b16 %v2908, %v2907
        %v2956 = vpack.c.b16 %v2910, %v2909
        %v2957 = vpack.c.b16 %v2912, %v2911
        %v2958 = vpack.c.b16 %v2914, %v2913
        %v2959 = vpack.c.b16 %v2916, %v2915
        %v2960 = vpack.c.b16 %v2918, %v2917
        %v2961 = vpack.c.b16 %v2920, %v2919
        %v2962 = vpack.c.b16 %v2922, %v2921
        %v2963 = vpack.c.b16 %v2924, %v2923
        %v2964 = vpack.c.b16 %v2926, %v2925
        %v2965 = vpack.c.b16 %v2928, %v2927
        %v2966 = vpack.c.b16 %v2930, %v2929
        %v2967 = vpack.c.b16 %v2932, %v2931
        %v2968 = vpack.c.b16 %v2934, %v2933
        %v2969 = vpack.c.b16 %v2936, %v2935
        %v2970 = vpack.c.b16 %v2938, %v2937
        %3003 = vmatprep.subr.bf16.mxu0 0
        %3004 = vmatpush1.bf16.msra.mxu0 %v2939
        %3005 = vmatprep.subr.bf16.mxu0 0
        %3006 = vmatpush1.bf16.msra.mxu0 %v2940
        %3007 = vmatprep.subr.bf16.mxu0 0
        %3008 = vmatpush1.bf16.msra.mxu0 %v2941
        %3009 = vmatprep.subr.bf16.mxu0 0
        %3010 = vmatpush1.bf16.msra.mxu0 %v2942
        %3011 = vmatprep.subr.bf16.mxu0 0
        %3012 = vmatpush1.bf16.msra.mxu0 %v2943
        %3013 = vmatprep.subr.bf16.mxu0 0
        %3014 = vmatpush1.bf16.msra.mxu0 %v2944
        %3015 = vmatprep.subr.bf16.mxu0 0
        %3016 = vmatpush1.bf16.msra.mxu0 %v2945
        %3017 = vmatprep.subr.bf16.mxu0 0
        %3018 = vmatpush1.bf16.msra.mxu0 %v2946
        %3019 = vmatprep.subr.bf16.mxu0 0
        %3020 = vmatpush1.bf16.msra.mxu0 %v2947
        %3021 = vmatprep.subr.bf16.mxu0 0
        %3022 = vmatpush1.bf16.msra.mxu0 %v2948
        %3023 = vmatprep.subr.bf16.mxu0 0
        %3024 = vmatpush1.bf16.msra.mxu0 %v2949
        %3025 = vmatprep.subr.bf16.mxu0 0
        %3026 = vmatpush1.bf16.msra.mxu0 %v2950
        %3027 = vmatprep.subr.bf16.mxu0 0
        %3028 = vmatpush1.bf16.msra.mxu0 %v2951
        %3029 = vmatprep.subr.bf16.mxu0 0
        %3030 = vmatpush1.bf16.msra.mxu0 %v2952
        %3031 = vmatprep.subr.bf16.mxu0 0
        %3032 = vmatpush1.bf16.msra.mxu0 %v2953
        %3033 = vmatprep.subr.bf16.mxu0 0
        %3034 = vmatpush1.bf16.msra.mxu0 %v2954
        %3035 = vmatprep.mubr.bf16.mxu0 %v2808
        %3036 = vmatmul.mubr.bf16.gmra.mrb[0].mxu0 %v2807
        %v3037 = vpop.f32.mrb[0].mxu0
        %v3038 = vadd.f32 0.0, %v3037
        %v3039 = vpop.f32.mrb[0].mxu0
        %v3040 = vpop.f32.mrb[0].mxu0
        %v3041 = vpop.f32.mrb[0].mxu0
        %3042 = vdwg.mxu0
        %3043 = vmatprep.subr.bf16.mxu0 0
        %3044 = vmatpush1.bf16.msra.mxu0 %v2955
        %3045 = vmatprep.subr.bf16.mxu0 0
        %3046 = vmatpush1.bf16.msra.mxu0 %v2956
        %3047 = vmatprep.subr.bf16.mxu0 0
        %3048 = vmatpush1.bf16.msra.mxu0 %v2957
        %3049 = vmatprep.subr.bf16.mxu0 0
        %3050 = vmatpush1.bf16.msra.mxu0 %v2958
        %3051 = vmatprep.subr.bf16.mxu0 0
        %3052 = vmatpush1.bf16.msra.mxu0 %v2959
        %3053 = vmatprep.subr.bf16.mxu0 0
        %3054 = vmatpush1.bf16.msra.mxu0 %v2960
        %3055 = vmatprep.subr.bf16.mxu0 0
        %3056 = vmatpush1.bf16.msra.mxu0 %v2961
        %3057 = vmatprep.subr.bf16.mxu0 0
        %3058 = vmatpush1.bf16.msra.mxu0 %v2962
        %3059 = vmatprep.subr.bf16.mxu0 0
        %3060 = vmatpush1.bf16.msra.mxu0 %v2963
        %3061 = vmatprep.subr.bf16.mxu0 0
        %3062 = vmatpush1.bf16.msra.mxu0 %v2964
        %3063 = vmatprep.subr.bf16.mxu0 0
        %3064 = vmatpush1.bf16.msra.mxu0 %v2965
        %3065 = vmatprep.subr.bf16.mxu0 0
        %3066 = vmatpush1.bf16.msra.mxu0 %v2966
        %3067 = vmatprep.subr.bf16.mxu0 0
        %3068 = vmatpush1.bf16.msra.mxu0 %v2967
        %3069 = vmatprep.subr.bf16.mxu0 0
        %3070 = vmatpush1.bf16.msra.mxu0 %v2968
        %3071 = vmatprep.subr.bf16.mxu0 0
        %3072 = vmatpush1.bf16.msra.mxu0 %v2969
        %3073 = vmatprep.subr.bf16.mxu0 0
        %3074 = vmatpush1.bf16.msra.mxu0 %v2970
        %3075 = vmatprep.mubr.bf16.mxu0 %v2810
        %3076 = vmatmul.mubr.bf16.gmra.mrb[0].mxu0 %v2809
        %v3077 = vpop.f32.mrb[0].mxu0
        %v3078 = vadd.f32 %v3038, %v3077
        %v3079 = vpop.f32.mrb[0].mxu0
        %v3080 = vpop.f32.mrb[0].mxu0
        %v3081 = vpop.f32.mrb[0].mxu0
        %3082 = vdwg.mxu0
        %v3083 = vadd.f32 %v2382, %v3078
        %v3084 = vld [vmem:[#allocation23] sm:$0x1]
        %v3086 = vlaneseq
        %v3087 = vshrl.u32 %v3086, 7
        %v3088 = vsub.s32 0, %v3087
        %v3089 = vrot.slane %v3084, %v3088
        %v3091 = vadd.f32 %v3083, %v3089
        %s3092 = scalar_lea.vmem [#allocation10], 1
        %v3093 = vld [vmem:[%s3092] sm:$0x1]
        %s3094 = scalar_lea.vmem [#allocation11], 1
        %v3095 = vld [vmem:[%s3094] sm:$0x1]
        %3096 = vadd.xlane.f32.xlu0 %v3091
        %v3097 = vpop.xlane.xlu0 %3096
        %v3098 = vmul.f32 %v3097, %v1398
        %v3099 = vsub.f32 %v3091, %v3098
        %v3100 = vmul.f32 %v3099, %v3099
        %3101 = vadd.xlane.f32.xlu0 %v3100
        %v3102 = vpop.xlane.xlu0 %3101
        %v3103 = vmul.f32 %v3102, %v1398
        %v3104 = vadd.f32 %v3103, 1e-05
        %v3105 = vrsqrt.pop %v3104
        %v3106 = vmul.f32 %v3099, %v3105
        %v3108 = vlaneseq
        %v3109 = vshrl.u32 %v3108, 7
        %v3110 = vsub.s32 0, %v3109
        %v3111 = vrot.slane %v3093, %v3110
        %v3113 = vmul.f32 %v3106, %v3111
        %v3115 = vlaneseq
        %v3116 = vshrl.u32 %v3115, 7
        %v3117 = vsub.s32 0, %v3116
        %v3118 = vrot.slane %v3095, %v3117
        %v3120 = vadd.f32 %v3113, %v3118
        %s3121 = scalar_lea.vmem [#allocation13], 192
        %v3122 = vld [vmem:[%s3121] sm:$0xff]
        %v3123 = vld [vmem:[%s3121 + $0x8] sm:$0xf]
        %v3124 = vld [vmem:[%s3121 + $0xc] sm:$0xff]
        %v3125 = vld [vmem:[%s3121 + $0x14] sm:$0xf]
        %v3126 = vld [vmem:[%s3121 + $0x18] sm:$0xff]
        %v3127 = vld [vmem:[%s3121 + $0x20] sm:$0xf]
        %v3128 = vld [vmem:[%s3121 + $0x24] sm:$0xff]
        %v3129 = vld [vmem:[%s3121 + $0x2c] sm:$0xf]
        %v3130 = vld [vmem:[%s3121 + $0x30] sm:$0xff]
        %v3131 = vld [vmem:[%s3121 + $0x38] sm:$0xf]
        %v3132 = vld [vmem:[%s3121 + $0x3c] sm:$0xff]
        %v3133 = vld [vmem:[%s3121 + $0x44] sm:$0xf]
        %v3134 = vld [vmem:[%s3121 + $0x48] sm:$0xff]
        %v3135 = vld [vmem:[%s3121 + $0x50] sm:$0xf]
        %v3136 = vld [vmem:[%s3121 + $0x54] sm:$0xff]
        %v3137 = vld [vmem:[%s3121 + $0x5c] sm:$0xf]
        %v3138 = vld [vmem:[%s3121 + $0x60] sm:$0xff]
        %v3139 = vld [vmem:[%s3121 + $0x68] sm:$0xf]
        %v3140 = vld [vmem:[%s3121 + $0x6c] sm:$0xff]
        %v3141 = vld [vmem:[%s3121 + $0x74] sm:$0xf]
        %v3142 = vld [vmem:[%s3121 + $0x78] sm:$0xff]
        %v3143 = vld [vmem:[%s3121 + $0x80] sm:$0xf]
        %v3144 = vld [vmem:[%s3121 + $0x84] sm:$0xff]
        %v3145 = vld [vmem:[%s3121 + $0x8c] sm:$0xf]
        %v3146 = vld [vmem:[%s3121 + $0x90] sm:$0xff]
        %v3147 = vld [vmem:[%s3121 + $0x98] sm:$0xf]
        %v3148 = vld [vmem:[%s3121 + $0x9c] sm:$0xff]
        %v3149 = vld [vmem:[%s3121 + $0xa4] sm:$0xf]
        %v3150 = vld [vmem:[%s3121 + $0xa8] sm:$0xff]
        %v3151 = vld [vmem:[%s3121 + $0xb0] sm:$0xf]
        %v3152 = vld [vmem:[%s3121 + $0xb4] sm:$0xff]
        %v3153 = vld [vmem:[%s3121 + $0xbc] sm:$0xf]
        %v3154 = vpack.c.bf16 %v3120, %v3120
        %s3155 = scalar_lea.vmem [#allocation14], 3
        %v3156 = vld [vmem:[%s3155] sm:$0x7]
        %v3158 = vlaneseq
        %v3159 = vshrl.u32 %v3158, 7
        %v3160 = vsub.s32 0, %v3159
        %v3161 = vrot.slane %v3156, %v3160
        %v3162 = vlaneseq
        %v3163 = vshrl.u32 %v3162, 7
        %v3164 = vsub.s32 1, %v3163
        %v3165 = vrot.slane %v3156, %v3164
        %v3166 = vlaneseq
        %v3167 = vshrl.u32 %v3166, 7
        %v3168 = vsub.s32 2, %v3167
        %v3169 = vrot.slane %v3156, %v3168
        %v3205 = vunpack.c.l.b16 %v3122
        %v3206 = vunpack.c.h.b16 %v3122
        %v3207 = vunpack.c.l.b16 %v3123
        %v3208 = vunpack.c.l.b16 %v3124
        %v3209 = vunpack.c.h.b16 %v3124
        %v3210 = vunpack.c.l.b16 %v3125
        %v3211 = vunpack.c.l.b16 %v3126
        %v3212 = vunpack.c.h.b16 %v3126
        %v3213 = vunpack.c.l.b16 %v3127
        %v3214 = vunpack.c.l.b16 %v3128
        %v3215 = vunpack.c.h.b16 %v3128
        %v3216 = vunpack.c.l.b16 %v3129
        %v3217 = vunpack.c.l.b16 %v3130
        %v3218 = vunpack.c.h.b16 %v3130
        %v3219 = vunpack.c.l.b16 %v3131
        %v3220 = vunpack.c.l.b16 %v3132
        %v3221 = vunpack.c.h.b16 %v3132
        %v3222 = vunpack.c.l.b16 %v3133
        %v3223 = vunpack.c.l.b16 %v3134
        %v3224 = vunpack.c.h.b16 %v3134
        %v3225 = vunpack.c.l.b16 %v3135
        %v3226 = vunpack.c.l.b16 %v3136
        %v3227 = vunpack.c.h.b16 %v3136
        %v3228 = vunpack.c.l.b16 %v3137
        %v3229 = vunpack.c.l.b16 %v3138
        %v3230 = vunpack.c.h.b16 %v3138
        %v3231 = vunpack.c.l.b16 %v3139
        %v3232 = vunpack.c.l.b16 %v3140
        %v3233 = vunpack.c.h.b16 %v3140
        %v3234 = vunpack.c.l.b16 %v3141
        %v3235 = vunpack.c.l.b16 %v3142
        %v3236 = vunpack.c.h.b16 %v3142
        %v3237 = vunpack.c.l.b16 %v3143
        %v3238 = vunpack.c.l.b16 %v3144
        %v3239 = vunpack.c.h.b16 %v3144
        %v3240 = vunpack.c.l.b16 %v3145
        %v3241 = vunpack.c.l.b16 %v3146
        %v3242 = vunpack.c.h.b16 %v3146
        %v3243 = vunpack.c.l.b16 %v3147
        %v3244 = vunpack.c.l.b16 %v3148
        %v3245 = vunpack.c.h.b16 %v3148
        %v3246 = vunpack.c.l.b16 %v3149
        %v3247 = vunpack.c.l.b16 %v3150
        %v3248 = vunpack.c.h.b16 %v3150
        %v3249 = vunpack.c.l.b16 %v3151
        %v3250 = vunpack.c.l.b16 %v3152
        %v3251 = vunpack.c.h.b16 %v3152
        %v3252 = vunpack.c.l.b16 %v3153
        %v3253 = vpack.c.b16 %v3208, %v3205
        %v3254 = vpack.c.b16 %v3209, %v3206
        %v3255 = vpack.c.b16 %v3210, %v3207
        %v3256 = vpack.c.b16 %v3214, %v3211
        %v3257 = vpack.c.b16 %v3215, %v3212
        %v3258 = vpack.c.b16 %v3216, %v3213
        %v3259 = vpack.c.b16 %v3220, %v3217
        %v3260 = vpack.c.b16 %v3221, %v3218
        %v3261 = vpack.c.b16 %v3222, %v3219
        %v3262 = vpack.c.b16 %v3226, %v3223
        %v3263 = vpack.c.b16 %v3227, %v3224
        %v3264 = vpack.c.b16 %v3228, %v3225
        %v3265 = vpack.c.b16 %v3232, %v3229
        %v3266 = vpack.c.b16 %v3233, %v3230
        %v3267 = vpack.c.b16 %v3234, %v3231
        %v3268 = vpack.c.b16 %v3238, %v3235
        %v3269 = vpack.c.b16 %v3239, %v3236
        %v3270 = vpack.c.b16 %v3240, %v3237
        %v3271 = vpack.c.b16 %v3244, %v3241
        %v3272 = vpack.c.b16 %v3245, %v3242
        %v3273 = vpack.c.b16 %v3246, %v3243
        %v3274 = vpack.c.b16 %v3250, %v3247
        %v3275 = vpack.c.b16 %v3251, %v3248
        %v3276 = vpack.c.b16 %v3252, %v3249
        %3301 = vmatprep.subr.bf16.mxu0 %v3254
        %3302 = vmatpush1.bf16.msra.mxu0 %v3253
        %3303 = vmatprep.subr.bf16.mxu0 %v3257
        %3304 = vmatpush1.bf16.msra.mxu0 %v3256
        %3305 = vmatprep.subr.bf16.mxu0 %v3260
        %3306 = vmatpush1.bf16.msra.mxu0 %v3259
        %3307 = vmatprep.subr.bf16.mxu0 %v3263
        %3308 = vmatpush1.bf16.msra.mxu0 %v3262
        %3309 = vmatprep.subr.bf16.mxu0 %v3266
        %3310 = vmatpush1.bf16.msra.mxu0 %v3265
        %3311 = vmatprep.subr.bf16.mxu0 %v3269
        %3312 = vmatpush1.bf16.msra.mxu0 %v3268
        %3313 = vmatprep.subr.bf16.mxu0 %v3272
        %3314 = vmatpush1.bf16.msra.mxu0 %v3271
        %3315 = vmatprep.subr.bf16.mxu0 %v3275
        %3316 = vmatpush1.bf16.msra.mxu0 %v3274
        %3317 = vmatprep.subr.bf16.mxu0 0
        %3318 = vmatpush1.bf16.msra.mxu0 0
        %3319 = vmatprep.subr.bf16.mxu0 0
        %3320 = vmatpush1.bf16.msra.mxu0 0
        %3321 = vmatprep.subr.bf16.mxu0 0
        %3322 = vmatpush1.bf16.msra.mxu0 0
        %3323 = vmatprep.subr.bf16.mxu0 0
        %3324 = vmatpush1.bf16.msra.mxu0 0
        %3325 = vmatprep.subr.bf16.mxu0 0
        %3326 = vmatpush1.bf16.msra.mxu0 0
        %3327 = vmatprep.subr.bf16.mxu0 0
        %3328 = vmatpush1.bf16.msra.mxu0 0
        %3329 = vmatprep.subr.bf16.mxu0 0
        %3330 = vmatpush1.bf16.msra.mxu0 0
        %3331 = vmatprep.subr.bf16.mxu0 0
        %3332 = vmatpush1.bf16.msra.mxu0 0
        %3333 = vmatprep.mubr.bf16.mxu0 0
        %3334 = vmatmul.mubr.bf16.gmra.mrb[0].mxu0 %v3154
        %v3335 = vpop.f32.mrb[0].mxu0
        %v3336 = vadd.f32 %v3161, %v3335
        %v3337 = vpop.f32.mrb[0].mxu0
        %v3338 = vadd.f32 %v3165, %v3337
        %v3339 = vpop.f32.mrb[0].mxu0
        %v3340 = vpop.f32.mrb[0].mxu0
        %3341 = vdwg.mxu0
        %3342 = vmatprep.subr.bf16.mxu0 0
        %3343 = vmatpush1.bf16.msra.mxu0 %v3255
        %3344 = vmatprep.subr.bf16.mxu0 0
        %3345 = vmatpush1.bf16.msra.mxu0 %v3258
        %3346 = vmatprep.subr.bf16.mxu0 0
        %3347 = vmatpush1.bf16.msra.mxu0 %v3261
        %3348 = vmatprep.subr.bf16.mxu0 0
        %3349 = vmatpush1.bf16.msra.mxu0 %v3264
        %3350 = vmatprep.subr.bf16.mxu0 0
        %3351 = vmatpush1.bf16.msra.mxu0 %v3267
        %3352 = vmatprep.subr.bf16.mxu0 0
        %3353 = vmatpush1.bf16.msra.mxu0 %v3270
        %3354 = vmatprep.subr.bf16.mxu0 0
        %3355 = vmatpush1.bf16.msra.mxu0 %v3273
        %3356 = vmatprep.subr.bf16.mxu0 0
        %3357 = vmatpush1.bf16.msra.mxu0 %v3276
        %3358 = vmatprep.subr.bf16.mxu0 0
        %3359 = vmatpush1.bf16.msra.mxu0 0
        %3360 = vmatprep.subr.bf16.mxu0 0
        %3361 = vmatpush1.bf16.msra.mxu0 0
        %3362 = vmatprep.subr.bf16.mxu0 0
        %3363 = vmatpush1.bf16.msra.mxu0 0
        %3364 = vmatprep.subr.bf16.mxu0 0
        %3365 = vmatpush1.bf16.msra.mxu0 0
        %3366 = vmatprep.subr.bf16.mxu0 0
        %3367 = vmatpush1.bf16.msra.mxu0 0
        %3368 = vmatprep.subr.bf16.mxu0 0
        %3369 = vmatpush1.bf16.msra.mxu0 0
        %3370 = vmatprep.subr.bf16.mxu0 0
        %3371 = vmatpush1.bf16.msra.mxu0 0
        %3372 = vmatprep.subr.bf16.mxu0 0
        %3373 = vmatpush1.bf16.msra.mxu0 0
        %3374 = vmatprep.mubr.bf16.mxu0 0
        %3375 = vmatmul.mubr.bf16.gmra.mrb[0].mxu0 %v3154
        %v3376 = vpop.f32.mrb[0].mxu0
        %v3377 = vadd.f32 %v3169, %v3376
        %v3378 = vpop.f32.mrb[0].mxu0
        %v3379 = vpop.f32.mrb[0].mxu0
        %v3380 = vpop.f32.mrb[0].mxu0
        %3381 = vdwg.mxu0
        %s3382 = scalar_lea.vmem %s15, 64
        %v3383 = vld [vmem:[%s3382] sm:$0xf]
        %v3384 = vld [vmem:[%s3382 + $0x4] sm:$0xf]
        %v3385 = vld [vmem:[%s3382 + $0x8] sm:$0xf]
        %v3386 = vld [vmem:[%s3382 + $0xc] sm:$0xf]
        %v3387 = vld [vmem:[%s3382 + $0x10] sm:$0xf]
        %v3388 = vld [vmem:[%s3382 + $0x14] sm:$0xf]
        %v3389 = vld [vmem:[%s3382 + $0x18] sm:$0xf]
        %v3390 = vld [vmem:[%s3382 + $0x1c] sm:$0xf]
        %v3391 = vld [vmem:[%s3382 + $0x20] sm:$0xf]
        %v3392 = vld [vmem:[%s3382 + $0x24] sm:$0xf]
        %v3393 = vld [vmem:[%s3382 + $0x28] sm:$0xf]
        %v3394 = vld [vmem:[%s3382 + $0x2c] sm:$0xf]
        %v3395 = vld [vmem:[%s3382 + $0x30] sm:$0xf]
        %v3396 = vld [vmem:[%s3382 + $0x34] sm:$0xf]
        %v3397 = vld [vmem:[%s3382 + $0x38] sm:$0xf]
        %v3398 = vld [vmem:[%s3382 + $0x3c] sm:$0xf]
        %v3399 = vpack.c.bf16 %v3336, %v3336
        %v3400 = vpack.c.bf16 %v3338, %v3338
        %v3401 = vpack.c.bf16 %v3377, %v3377
        %v3403 = vsel %vm1700, %v3399, 0
        %v3406 = vsel %vm1700, %v3400, 0
        %3408 = vmatprep.subr.bf16.mxu0 0
        %3409 = vmatpush1.bf16.xpose.msra.mxu0 %v3406
        %3410 = vmatprep.subr.bf16.mxu0 0
        %3411 = vmatpush1.bf16.xpose.msra.mxu0 0
        %3412 = vmatprep.subr.bf16.mxu0 0
        %3413 = vmatpush1.bf16.xpose.msra.mxu0 0
        %3414 = vmatprep.subr.bf16.mxu0 0
        %3415 = vmatpush1.bf16.xpose.msra.mxu0 0
        %3416 = vmatprep.subr.bf16.mxu0 0
        %3417 = vmatpush1.bf16.xpose.msra.mxu0 0
        %3418 = vmatprep.subr.bf16.mxu0 0
        %3419 = vmatpush1.bf16.xpose.msra.mxu0 0
        %3420 = vmatprep.subr.bf16.mxu0 0
        %3421 = vmatpush1.bf16.xpose.msra.mxu0 0
        %3422 = vmatprep.subr.bf16.mxu0 0
        %3423 = vmatpush1.bf16.xpose.msra.mxu0 0
        %3424 = vmatprep.subr.bf16.mxu0 0
        %3425 = vmatpush1.bf16.xpose.msra.mxu0 0
        %3426 = vmatprep.subr.bf16.mxu0 0
        %3427 = vmatpush1.bf16.xpose.msra.mxu0 0
        %3428 = vmatprep.subr.bf16.mxu0 0
        %3429 = vmatpush1.bf16.xpose.msra.mxu0 0
        %3430 = vmatprep.subr.bf16.mxu0 0
        %3431 = vmatpush1.bf16.xpose.msra.mxu0 0
        %3432 = vmatprep.subr.bf16.mxu0 0
        %3433 = vmatpush1.bf16.xpose.msra.mxu0 0
        %3434 = vmatprep.subr.bf16.mxu0 0
        %3435 = vmatpush1.bf16.xpose.msra.mxu0 0
        %3436 = vmatprep.subr.bf16.mxu0 0
        %3437 = vmatpush1.bf16.xpose.msra.mxu0 0
        %3438 = vmatprep.subr.bf16.mxu0 0
        %3439 = vmatpush1.bf16.xpose.msra.mxu0 0
        %3440 = vmatprep.mubr.bf16.mxu0 0
        %3441 = vmatmul.mubr.bf16.gmra.mrb[0].mxu0 %v3403
        %v3442 = vpop.f32.mrb[0].mxu0
        %v3443 = vadd.f32 0.0, %v3442
        %v3444 = vpop.f32.mrb[0].mxu0
        %v3445 = vpop.f32.mrb[0].mxu0
        %v3446 = vpop.f32.mrb[0].mxu0
        %3447 = vdwg.mxu0
        %v3448 = vmul.f32 %v3443, 0.17677669
        %v3449 = vsel %vm1393, %v3448, -1e+30
        %v3450 = vsel %vm1749, %v3449, -inf
        %3451 = vmax.xlane.f32.xlu0 %v3450
        %v3452 = vpop.xlane.xlu0 %3451
        %v3453 = vsub.f32 %v3449, %v3452
        %v3454 = vmul.f32 %v3453, 1.442695
        %v3455 = vpow.pop %v3454
        %v3456 = vsel %vm1749, %v3455, 0.0
        %3457 = vadd.xlane.f32.xlu0 %v3456
        %v3458 = vpop.xlane.xlu0 %3457
        %v3459 = vrcp.pop %v3458
        %v3460 = vmul.f32 %v3455, %v3459
        %v3461 = vpack.c.bf16 %v3460, %v3460
        %v3463 = vsel %vm1749, %v3461, 0
        %v3466 = vsel %vm1765, %v3401, 0
        %3468 = vmatprep.subr.bf16.mxu0 0
        %3469 = vmatpush1.bf16.msra.mxu0 %v3466
        %3470 = vmatprep.subr.bf16.mxu0 0
        %3471 = vmatpush1.bf16.msra.mxu0 0
        %3472 = vmatprep.subr.bf16.mxu0 0
        %3473 = vmatpush1.bf16.msra.mxu0 0
        %3474 = vmatprep.subr.bf16.mxu0 0
        %3475 = vmatpush1.bf16.msra.mxu0 0
        %3476 = vmatprep.subr.bf16.mxu0 0
        %3477 = vmatpush1.bf16.msra.mxu0 0
        %3478 = vmatprep.subr.bf16.mxu0 0
        %3479 = vmatpush1.bf16.msra.mxu0 0
        %3480 = vmatprep.subr.bf16.mxu0 0
        %3481 = vmatpush1.bf16.msra.mxu0 0
        %3482 = vmatprep.subr.bf16.mxu0 0
        %3483 = vmatpush1.bf16.msra.mxu0 0
        %3484 = vmatprep.subr.bf16.mxu0 0
        %3485 = vmatpush1.bf16.msra.mxu0 0
        %3486 = vmatprep.subr.bf16.mxu0 0
        %3487 = vmatpush1.bf16.msra.mxu0 0
        %3488 = vmatprep.subr.bf16.mxu0 0
        %3489 = vmatpush1.bf16.msra.mxu0 0
        %3490 = vmatprep.subr.bf16.mxu0 0
        %3491 = vmatpush1.bf16.msra.mxu0 0
        %3492 = vmatprep.subr.bf16.mxu0 0
        %3493 = vmatpush1.bf16.msra.mxu0 0
        %3494 = vmatprep.subr.bf16.mxu0 0
        %3495 = vmatpush1.bf16.msra.mxu0 0
        %3496 = vmatprep.subr.bf16.mxu0 0
        %3497 = vmatpush1.bf16.msra.mxu0 0
        %3498 = vmatprep.subr.bf16.mxu0 0
        %3499 = vmatpush1.bf16.msra.mxu0 0
        %3500 = vmatprep.mubr.bf16.mxu0 0
        %3501 = vmatmul.mubr.bf16.gmra.mrb[0].mxu0 %v3463
        %v3502 = vpop.f32.mrb[0].mxu0
        %v3503 = vadd.f32 0.0, %v3502
        %v3504 = vpop.f32.mrb[0].mxu0
        %v3505 = vpop.f32.mrb[0].mxu0
        %v3506 = vpop.f32.mrb[0].mxu0
        %3507 = vdwg.mxu0
        %v3508 = vpack.c.bf16 %v3503, %v3503
        %3510 = vrot.lane.b32.xlu0 %v3399, 96
        %v3511 = vpop.permute.xlu0 %3510
        %3513 = vrot.lane.b32.xlu0 %v3400, 96
        %v3514 = vpop.permute.xlu0 %3513
        %v3516 = vsel %vm1700, %v3511, 0
        %v3519 = vsel %vm1700, %v3514, 0
        %3521 = vmatprep.subr.bf16.mxu0 0
        %3522 = vmatpush1.bf16.xpose.msra.mxu0 %v3519
        %3523 = vmatprep.subr.bf16.mxu0 0
        %3524 = vmatpush1.bf16.xpose.msra.mxu0 0
        %3525 = vmatprep.subr.bf16.mxu0 0
        %3526 = vmatpush1.bf16.xpose.msra.mxu0 0
        %3527 = vmatprep.subr.bf16.mxu0 0
        %3528 = vmatpush1.bf16.xpose.msra.mxu0 0
        %3529 = vmatprep.subr.bf16.mxu0 0
        %3530 = vmatpush1.bf16.xpose.msra.mxu0 0
        %3531 = vmatprep.subr.bf16.mxu0 0
        %3532 = vmatpush1.bf16.xpose.msra.mxu0 0
        %3533 = vmatprep.subr.bf16.mxu0 0
        %3534 = vmatpush1.bf16.xpose.msra.mxu0 0
        %3535 = vmatprep.subr.bf16.mxu0 0
        %3536 = vmatpush1.bf16.xpose.msra.mxu0 0
        %3537 = vmatprep.subr.bf16.mxu0 0
        %3538 = vmatpush1.bf16.xpose.msra.mxu0 0
        %3539 = vmatprep.subr.bf16.mxu0 0
        %3540 = vmatpush1.bf16.xpose.msra.mxu0 0
        %3541 = vmatprep.subr.bf16.mxu0 0
        %3542 = vmatpush1.bf16.xpose.msra.mxu0 0
        %3543 = vmatprep.subr.bf16.mxu0 0
        %3544 = vmatpush1.bf16.xpose.msra.mxu0 0
        %3545 = vmatprep.subr.bf16.mxu0 0
        %3546 = vmatpush1.bf16.xpose.msra.mxu0 0
        %3547 = vmatprep.subr.bf16.mxu0 0
        %3548 = vmatpush1.bf16.xpose.msra.mxu0 0
        %3549 = vmatprep.subr.bf16.mxu0 0
        %3550 = vmatpush1.bf16.xpose.msra.mxu0 0
        %3551 = vmatprep.subr.bf16.mxu0 0
        %3552 = vmatpush1.bf16.xpose.msra.mxu0 0
        %3553 = vmatprep.mubr.bf16.mxu0 0
        %3554 = vmatmul.mubr.bf16.gmra.mrb[0].mxu0 %v3516
        %v3555 = vpop.f32.mrb[0].mxu0
        %v3556 = vadd.f32 0.0, %v3555
        %v3557 = vpop.f32.mrb[0].mxu0
        %v3558 = vpop.f32.mrb[0].mxu0
        %v3559 = vpop.f32.mrb[0].mxu0
        %3560 = vdwg.mxu0
        %v3561 = vmul.f32 %v3556, 0.17677669
        %v3562 = vsel %vm1393, %v3561, -1e+30
        %v3563 = vsel %vm1749, %v3562, -inf
        %3564 = vmax.xlane.f32.xlu0 %v3563
        %v3565 = vpop.xlane.xlu0 %3564
        %v3566 = vsub.f32 %v3562, %v3565
        %v3567 = vmul.f32 %v3566, 1.442695
        %v3568 = vpow.pop %v3567
        %v3569 = vsel %vm1749, %v3568, 0.0
        %3570 = vadd.xlane.f32.xlu0 %v3569
        %v3571 = vpop.xlane.xlu0 %3570
        %v3572 = vrcp.pop %v3571
        %v3573 = vmul.f32 %v3568, %v3572
        %v3574 = vpack.c.bf16 %v3573, %v3573
        %3576 = vrot.lane.b32.xlu0 %v3401, 96
        %v3577 = vpop.permute.xlu0 %3576
        %v3579 = vsel %vm1749, %v3574, 0
        %v3582 = vsel %vm1765, %v3577, 0
        %3584 = vmatprep.subr.bf16.mxu0 0
        %3585 = vmatpush1.bf16.msra.mxu0 %v3582
        %3586 = vmatprep.subr.bf16.mxu0 0
        %3587 = vmatpush1.bf16.msra.mxu0 0
        %3588 = vmatprep.subr.bf16.mxu0 0
        %3589 = vmatpush1.bf16.msra.mxu0 0
        %3590 = vmatprep.subr.bf16.mxu0 0
        %3591 = vmatpush1.bf16.msra.mxu0 0
        %3592 = vmatprep.subr.bf16.mxu0 0
        %3593 = vmatpush1.bf16.msra.mxu0 0
        %3594 = vmatprep.subr.bf16.mxu0 0
        %3595 = vmatpush1.bf16.msra.mxu0 0
        %3596 = vmatprep.subr.bf16.mxu0 0
        %3597 = vmatpush1.bf16.msra.mxu0 0
        %3598 = vmatprep.subr.bf16.mxu0 0
        %3599 = vmatpush1.bf16.msra.mxu0 0
        %3600 = vmatprep.subr.bf16.mxu0 0
        %3601 = vmatpush1.bf16.msra.mxu0 0
        %3602 = vmatprep.subr.bf16.mxu0 0
        %3603 = vmatpush1.bf16.msra.mxu0 0
        %3604 = vmatprep.subr.bf16.mxu0 0
        %3605 = vmatpush1.bf16.msra.mxu0 0
        %3606 = vmatprep.subr.bf16.mxu0 0
        %3607 = vmatpush1.bf16.msra.mxu0 0
        %3608 = vmatprep.subr.bf16.mxu0 0
        %3609 = vmatpush1.bf16.msra.mxu0 0
        %3610 = vmatprep.subr.bf16.mxu0 0
        %3611 = vmatpush1.bf16.msra.mxu0 0
        %3612 = vmatprep.subr.bf16.mxu0 0
        %3613 = vmatpush1.bf16.msra.mxu0 0
        %3614 = vmatprep.subr.bf16.mxu0 0
        %3615 = vmatpush1.bf16.msra.mxu0 0
        %3616 = vmatprep.mubr.bf16.mxu0 0
        %3617 = vmatmul.mubr.bf16.gmra.mrb[0].mxu0 %v3579
        %v3618 = vpop.f32.mrb[0].mxu0
        %v3619 = vadd.f32 0.0, %v3618
        %v3620 = vpop.f32.mrb[0].mxu0
        %v3621 = vpop.f32.mrb[0].mxu0
        %v3622 = vpop.f32.mrb[0].mxu0
        %3623 = vdwg.mxu0
        %v3624 = vpack.c.bf16 %v3619, %v3619
        %v3629 = vunpack.c.l.b16 %v3387
        %v3630 = vunpack.c.l.b16 %v3388
        %v3631 = vunpack.c.l.b16 %v3389
        %v3632 = vunpack.c.l.b16 %v3390
        %v3633 = vpack.c.b16 %v3630, %v3629
        %v3634 = vpack.c.b16 %v3632, %v3631
        %v3638 = vsel %vm1700, %v3624, 0
        %3640 = vmatprep.subr.bf16.mxu0 0
        %3641 = vmatpush1.bf16.msra.mxu0 %v3633
        %3642 = vmatprep.subr.bf16.mxu0 0
        %3643 = vmatpush1.bf16.msra.mxu0 %v3634
        %3644 = vmatprep.subr.bf16.mxu0 0
        %3645 = vmatpush1.bf16.msra.mxu0 0
        %3646 = vmatprep.subr.bf16.mxu0 0
        %3647 = vmatpush1.bf16.msra.mxu0 0
        %3648 = vmatprep.subr.bf16.mxu0 0
        %3649 = vmatpush1.bf16.msra.mxu0 0
        %3650 = vmatprep.subr.bf16.mxu0 0
        %3651 = vmatpush1.bf16.msra.mxu0 0
        %3652 = vmatprep.subr.bf16.mxu0 0
        %3653 = vmatpush1.bf16.msra.mxu0 0
        %3654 = vmatprep.subr.bf16.mxu0 0
        %3655 = vmatpush1.bf16.msra.mxu0 0
        %3656 = vmatprep.subr.bf16.mxu0 0
        %3657 = vmatpush1.bf16.msra.mxu0 0
        %3658 = vmatprep.subr.bf16.mxu0 0
        %3659 = vmatpush1.bf16.msra.mxu0 0
        %3660 = vmatprep.subr.bf16.mxu0 0
        %3661 = vmatpush1.bf16.msra.mxu0 0
        %3662 = vmatprep.subr.bf16.mxu0 0
        %3663 = vmatpush1.bf16.msra.mxu0 0
        %3664 = vmatprep.subr.bf16.mxu0 0
        %3665 = vmatpush1.bf16.msra.mxu0 0
        %3666 = vmatprep.subr.bf16.mxu0 0
        %3667 = vmatpush1.bf16.msra.mxu0 0
        %3668 = vmatprep.subr.bf16.mxu0 0
        %3669 = vmatpush1.bf16.msra.mxu0 0
        %3670 = vmatprep.subr.bf16.mxu0 0
        %3671 = vmatpush1.bf16.msra.mxu0 0
        %3672 = vmatprep.mubr.bf16.mxu0 0
        %3673 = vmatmul.mubr.bf16.gmra.mrb[0].mxu0 %v3638
        %v3674 = vpop.f32.mrb[0].mxu0
        %v3675 = vadd.f32 0.0, %v3674
        %v3676 = vpop.f32.mrb[0].mxu0
        %v3677 = vpop.f32.mrb[0].mxu0
        %v3678 = vpop.f32.mrb[0].mxu0
        %3679 = vdwg.mxu0
        %v3684 = vunpack.c.l.b16 %v3383
        %v3685 = vunpack.c.l.b16 %v3384
        %v3686 = vunpack.c.l.b16 %v3385
        %v3687 = vunpack.c.l.b16 %v3386
        %v3688 = vpack.c.b16 %v3685, %v3684
        %v3689 = vpack.c.b16 %v3687, %v3686
        %v3693 = vsel %vm1700, %v3508, 0
        %3695 = vmatprep.subr.bf16.mxu0 0
        %3696 = vmatpush1.bf16.msra.mxu0 %v3688
        %3697 = vmatprep.subr.bf16.mxu0 0
        %3698 = vmatpush1.bf16.msra.mxu0 %v3689
        %3699 = vmatprep.subr.bf16.mxu0 0
        %3700 = vmatpush1.bf16.msra.mxu0 0
        %3701 = vmatprep.subr.bf16.mxu0 0
        %3702 = vmatpush1.bf16.msra.mxu0 0
        %3703 = vmatprep.subr.bf16.mxu0 0
        %3704 = vmatpush1.bf16.msra.mxu0 0
        %3705 = vmatprep.subr.bf16.mxu0 0
        %3706 = vmatpush1.bf16.msra.mxu0 0
        %3707 = vmatprep.subr.bf16.mxu0 0
        %3708 = vmatpush1.bf16.msra.mxu0 0
        %3709 = vmatprep.subr.bf16.mxu0 0
        %3710 = vmatpush1.bf16.msra.mxu0 0
        %3711 = vmatprep.subr.bf16.mxu0 0
        %3712 = vmatpush1.bf16.msra.mxu0 0
        %3713 = vmatprep.subr.bf16.mxu0 0
        %3714 = vmatpush1.bf16.msra.mxu0 0
        %3715 = vmatprep.subr.bf16.mxu0 0
        %3716 = vmatpush1.bf16.msra.mxu0 0
        %3717 = vmatprep.subr.bf16.mxu0 0
        %3718 = vmatpush1.bf16.msra.mxu0 0
        %3719 = vmatprep.subr.bf16.mxu0 0
        %3720 = vmatpush1.bf16.msra.mxu0 0
        %3721 = vmatprep.subr.bf16.mxu0 0
        %3722 = vmatpush1.bf16.msra.mxu0 0
        %3723 = vmatprep.subr.bf16.mxu0 0
        %3724 = vmatpush1.bf16.msra.mxu0 0
        %3725 = vmatprep.subr.bf16.mxu0 0
        %3726 = vmatpush1.bf16.msra.mxu0 0
        %3727 = vmatprep.mubr.bf16.mxu0 0
        %3728 = vmatmul.mubr.bf16.gmra.mrb[0].mxu0 %v3693
        %v3729 = vpop.f32.mrb[0].mxu0
        %v3730 = vadd.f32 %v3675, %v3729
        %v3731 = vpop.f32.mrb[0].mxu0
        %v3732 = vpop.f32.mrb[0].mxu0
        %v3733 = vpop.f32.mrb[0].mxu0
        %3734 = vdwg.mxu0
        %3735 = vrot.lane.b32.xlu0 %v3399, 64
        %v3736 = vpop.permute.xlu0 %3735
        %3737 = vrot.lane.b32.xlu0 %v3400, 64
        %v3738 = vpop.permute.xlu0 %3737
        %v3740 = vsel %vm1700, %v3736, 0
        %v3743 = vsel %vm1700, %v3738, 0
        %3745 = vmatprep.subr.bf16.mxu0 0
        %3746 = vmatpush1.bf16.xpose.msra.mxu0 %v3743
        %3747 = vmatprep.subr.bf16.mxu0 0
        %3748 = vmatpush1.bf16.xpose.msra.mxu0 0
        %3749 = vmatprep.subr.bf16.mxu0 0
        %3750 = vmatpush1.bf16.xpose.msra.mxu0 0
        %3751 = vmatprep.subr.bf16.mxu0 0
        %3752 = vmatpush1.bf16.xpose.msra.mxu0 0
        %3753 = vmatprep.subr.bf16.mxu0 0
        %3754 = vmatpush1.bf16.xpose.msra.mxu0 0
        %3755 = vmatprep.subr.bf16.mxu0 0
        %3756 = vmatpush1.bf16.xpose.msra.mxu0 0
        %3757 = vmatprep.subr.bf16.mxu0 0
        %3758 = vmatpush1.bf16.xpose.msra.mxu0 0
        %3759 = vmatprep.subr.bf16.mxu0 0
        %3760 = vmatpush1.bf16.xpose.msra.mxu0 0
        %3761 = vmatprep.subr.bf16.mxu0 0
        %3762 = vmatpush1.bf16.xpose.msra.mxu0 0
        %3763 = vmatprep.subr.bf16.mxu0 0
        %3764 = vmatpush1.bf16.xpose.msra.mxu0 0
        %3765 = vmatprep.subr.bf16.mxu0 0
        %3766 = vmatpush1.bf16.xpose.msra.mxu0 0
        %3767 = vmatprep.subr.bf16.mxu0 0
        %3768 = vmatpush1.bf16.xpose.msra.mxu0 0
        %3769 = vmatprep.subr.bf16.mxu0 0
        %3770 = vmatpush1.bf16.xpose.msra.mxu0 0
        %3771 = vmatprep.subr.bf16.mxu0 0
        %3772 = vmatpush1.bf16.xpose.msra.mxu0 0
        %3773 = vmatprep.subr.bf16.mxu0 0
        %3774 = vmatpush1.bf16.xpose.msra.mxu0 0
        %3775 = vmatprep.subr.bf16.mxu0 0
        %3776 = vmatpush1.bf16.xpose.msra.mxu0 0
        %3777 = vmatprep.mubr.bf16.mxu0 0
        %3778 = vmatmul.mubr.bf16.gmra.mrb[0].mxu0 %v3740
        %v3779 = vpop.f32.mrb[0].mxu0
        %v3780 = vadd.f32 0.0, %v3779
        %v3781 = vpop.f32.mrb[0].mxu0
        %v3782 = vpop.f32.mrb[0].mxu0
        %v3783 = vpop.f32.mrb[0].mxu0
        %3784 = vdwg.mxu0
        %v3785 = vmul.f32 %v3780, 0.17677669
        %v3786 = vsel %vm1393, %v3785, -1e+30
        %v3787 = vsel %vm1749, %v3786, -inf
        %3788 = vmax.xlane.f32.xlu0 %v3787
        %v3789 = vpop.xlane.xlu0 %3788
        %v3790 = vsub.f32 %v3786, %v3789
        %v3791 = vmul.f32 %v3790, 1.442695
        %v3792 = vpow.pop %v3791
        %v3793 = vsel %vm1749, %v3792, 0.0
        %3794 = vadd.xlane.f32.xlu0 %v3793
        %v3795 = vpop.xlane.xlu0 %3794
        %v3796 = vrcp.pop %v3795
        %v3797 = vmul.f32 %v3792, %v3796
        %v3798 = vpack.c.bf16 %v3797, %v3797
        %3799 = vrot.lane.b32.xlu0 %v3401, 64
        %v3800 = vpop.permute.xlu0 %3799
        %v3802 = vsel %vm1749, %v3798, 0
        %v3805 = vsel %vm1765, %v3800, 0
        %3807 = vmatprep.subr.bf16.mxu0 0
        %3808 = vmatpush1.bf16.msra.mxu0 %v3805
        %3809 = vmatprep.subr.bf16.mxu0 0
        %3810 = vmatpush1.bf16.msra.mxu0 0
        %3811 = vmatprep.subr.bf16.mxu0 0
        %3812 = vmatpush1.bf16.msra.mxu0 0
        %3813 = vmatprep.subr.bf16.mxu0 0
        %3814 = vmatpush1.bf16.msra.mxu0 0
        %3815 = vmatprep.subr.bf16.mxu0 0
        %3816 = vmatpush1.bf16.msra.mxu0 0
        %3817 = vmatprep.subr.bf16.mxu0 0
        %3818 = vmatpush1.bf16.msra.mxu0 0
        %3819 = vmatprep.subr.bf16.mxu0 0
        %3820 = vmatpush1.bf16.msra.mxu0 0
        %3821 = vmatprep.subr.bf16.mxu0 0
        %3822 = vmatpush1.bf16.msra.mxu0 0
        %3823 = vmatprep.subr.bf16.mxu0 0
        %3824 = vmatpush1.bf16.msra.mxu0 0
        %3825 = vmatprep.subr.bf16.mxu0 0
        %3826 = vmatpush1.bf16.msra.mxu0 0
        %3827 = vmatprep.subr.bf16.mxu0 0
        %3828 = vmatpush1.bf16.msra.mxu0 0
        %3829 = vmatprep.subr.bf16.mxu0 0
        %3830 = vmatpush1.bf16.msra.mxu0 0
        %3831 = vmatprep.subr.bf16.mxu0 0
        %3832 = vmatpush1.bf16.msra.mxu0 0
        %3833 = vmatprep.subr.bf16.mxu0 0
        %3834 = vmatpush1.bf16.msra.mxu0 0
        %3835 = vmatprep.subr.bf16.mxu0 0
        %3836 = vmatpush1.bf16.msra.mxu0 0
        %3837 = vmatprep.subr.bf16.mxu0 0
        %3838 = vmatpush1.bf16.msra.mxu0 0
        %3839 = vmatprep.mubr.bf16.mxu0 0
        %3840 = vmatmul.mubr.bf16.gmra.mrb[0].mxu0 %v3802
        %v3841 = vpop.f32.mrb[0].mxu0
        %v3842 = vadd.f32 0.0, %v3841
        %v3843 = vpop.f32.mrb[0].mxu0
        %v3844 = vpop.f32.mrb[0].mxu0
        %v3845 = vpop.f32.mrb[0].mxu0
        %3846 = vdwg.mxu0
        %v3847 = vpack.c.bf16 %v3842, %v3842
        %v3852 = vunpack.c.l.b16 %v3391
        %v3853 = vunpack.c.l.b16 %v3392
        %v3854 = vunpack.c.l.b16 %v3393
        %v3855 = vunpack.c.l.b16 %v3394
        %v3856 = vpack.c.b16 %v3853, %v3852
        %v3857 = vpack.c.b16 %v3855, %v3854
        %v3861 = vsel %vm1700, %v3847, 0
        %3863 = vmatprep.subr.bf16.mxu0 0
        %3864 = vmatpush1.bf16.msra.mxu0 %v3856
        %3865 = vmatprep.subr.bf16.mxu0 0
        %3866 = vmatpush1.bf16.msra.mxu0 %v3857
        %3867 = vmatprep.subr.bf16.mxu0 0
        %3868 = vmatpush1.bf16.msra.mxu0 0
        %3869 = vmatprep.subr.bf16.mxu0 0
        %3870 = vmatpush1.bf16.msra.mxu0 0
        %3871 = vmatprep.subr.bf16.mxu0 0
        %3872 = vmatpush1.bf16.msra.mxu0 0
        %3873 = vmatprep.subr.bf16.mxu0 0
        %3874 = vmatpush1.bf16.msra.mxu0 0
        %3875 = vmatprep.subr.bf16.mxu0 0
        %3876 = vmatpush1.bf16.msra.mxu0 0
        %3877 = vmatprep.subr.bf16.mxu0 0
        %3878 = vmatpush1.bf16.msra.mxu0 0
        %3879 = vmatprep.subr.bf16.mxu0 0
        %3880 = vmatpush1.bf16.msra.mxu0 0
        %3881 = vmatprep.subr.bf16.mxu0 0
        %3882 = vmatpush1.bf16.msra.mxu0 0
        %3883 = vmatprep.subr.bf16.mxu0 0
        %3884 = vmatpush1.bf16.msra.mxu0 0
        %3885 = vmatprep.subr.bf16.mxu0 0
        %3886 = vmatpush1.bf16.msra.mxu0 0
        %3887 = vmatprep.subr.bf16.mxu0 0
        %3888 = vmatpush1.bf16.msra.mxu0 0
        %3889 = vmatprep.subr.bf16.mxu0 0
        %3890 = vmatpush1.bf16.msra.mxu0 0
        %3891 = vmatprep.subr.bf16.mxu0 0
        %3892 = vmatpush1.bf16.msra.mxu0 0
        %3893 = vmatprep.subr.bf16.mxu0 0
        %3894 = vmatpush1.bf16.msra.mxu0 0
        %3895 = vmatprep.mubr.bf16.mxu0 0
        %3896 = vmatmul.mubr.bf16.gmra.mrb[0].mxu0 %v3861
        %v3897 = vpop.f32.mrb[0].mxu0
        %v3898 = vadd.f32 0.0, %v3897
        %v3899 = vpop.f32.mrb[0].mxu0
        %v3900 = vpop.f32.mrb[0].mxu0
        %v3901 = vpop.f32.mrb[0].mxu0
        %3902 = vdwg.mxu0
        %v3903 = vadd.f32 %v3730, %v3898
        %3904 = vrot.lane.b32.xlu0 %v3399, 32
        %v3905 = vpop.permute.xlu0 %3904
        %3906 = vrot.lane.b32.xlu0 %v3400, 32
        %v3907 = vpop.permute.xlu0 %3906
        %v3909 = vsel %vm1700, %v3905, 0
        %v3912 = vsel %vm1700, %v3907, 0
        %3914 = vmatprep.subr.bf16.mxu0 0
        %3915 = vmatpush1.bf16.xpose.msra.mxu0 %v3912
        %3916 = vmatprep.subr.bf16.mxu0 0
        %3917 = vmatpush1.bf16.xpose.msra.mxu0 0
        %3918 = vmatprep.subr.bf16.mxu0 0
        %3919 = vmatpush1.bf16.xpose.msra.mxu0 0
        %3920 = vmatprep.subr.bf16.mxu0 0
        %3921 = vmatpush1.bf16.xpose.msra.mxu0 0
        %3922 = vmatprep.subr.bf16.mxu0 0
        %3923 = vmatpush1.bf16.xpose.msra.mxu0 0
        %3924 = vmatprep.subr.bf16.mxu0 0
        %3925 = vmatpush1.bf16.xpose.msra.mxu0 0
        %3926 = vmatprep.subr.bf16.mxu0 0
        %3927 = vmatpush1.bf16.xpose.msra.mxu0 0
        %3928 = vmatprep.subr.bf16.mxu0 0
        %3929 = vmatpush1.bf16.xpose.msra.mxu0 0
        %3930 = vmatprep.subr.bf16.mxu0 0
        %3931 = vmatpush1.bf16.xpose.msra.mxu0 0
        %3932 = vmatprep.subr.bf16.mxu0 0
        %3933 = vmatpush1.bf16.xpose.msra.mxu0 0
        %3934 = vmatprep.subr.bf16.mxu0 0
        %3935 = vmatpush1.bf16.xpose.msra.mxu0 0
        %3936 = vmatprep.subr.bf16.mxu0 0
        %3937 = vmatpush1.bf16.xpose.msra.mxu0 0
        %3938 = vmatprep.subr.bf16.mxu0 0
        %3939 = vmatpush1.bf16.xpose.msra.mxu0 0
        %3940 = vmatprep.subr.bf16.mxu0 0
        %3941 = vmatpush1.bf16.xpose.msra.mxu0 0
        %3942 = vmatprep.subr.bf16.mxu0 0
        %3943 = vmatpush1.bf16.xpose.msra.mxu0 0
        %3944 = vmatprep.subr.bf16.mxu0 0
        %3945 = vmatpush1.bf16.xpose.msra.mxu0 0
        %3946 = vmatprep.mubr.bf16.mxu0 0
        %3947 = vmatmul.mubr.bf16.gmra.mrb[0].mxu0 %v3909
        %v3948 = vpop.f32.mrb[0].mxu0
        %v3949 = vadd.f32 0.0, %v3948
        %v3950 = vpop.f32.mrb[0].mxu0
        %v3951 = vpop.f32.mrb[0].mxu0
        %v3952 = vpop.f32.mrb[0].mxu0
        %3953 = vdwg.mxu0
        %v3954 = vmul.f32 %v3949, 0.17677669
        %v3955 = vsel %vm1393, %v3954, -1e+30
        %v3956 = vsel %vm1749, %v3955, -inf
        %3957 = vmax.xlane.f32.xlu0 %v3956
        %v3958 = vpop.xlane.xlu0 %3957
        %v3959 = vsub.f32 %v3955, %v3958
        %v3960 = vmul.f32 %v3959, 1.442695
        %v3961 = vpow.pop %v3960
        %v3962 = vsel %vm1749, %v3961, 0.0
        %3963 = vadd.xlane.f32.xlu0 %v3962
        %v3964 = vpop.xlane.xlu0 %3963
        %v3965 = vrcp.pop %v3964
        %v3966 = vmul.f32 %v3961, %v3965
        %v3967 = vpack.c.bf16 %v3966, %v3966
        %3968 = vrot.lane.b32.xlu0 %v3401, 32
        %v3969 = vpop.permute.xlu0 %3968
        %v3971 = vsel %vm1749, %v3967, 0
        %v3974 = vsel %vm1765, %v3969, 0
        %3976 = vmatprep.subr.bf16.mxu0 0
        %3977 = vmatpush1.bf16.msra.mxu0 %v3974
        %3978 = vmatprep.subr.bf16.mxu0 0
        %3979 = vmatpush1.bf16.msra.mxu0 0
        %3980 = vmatprep.subr.bf16.mxu0 0
        %3981 = vmatpush1.bf16.msra.mxu0 0
        %3982 = vmatprep.subr.bf16.mxu0 0
        %3983 = vmatpush1.bf16.msra.mxu0 0
        %3984 = vmatprep.subr.bf16.mxu0 0
        %3985 = vmatpush1.bf16.msra.mxu0 0
        %3986 = vmatprep.subr.bf16.mxu0 0
        %3987 = vmatpush1.bf16.msra.mxu0 0
        %3988 = vmatprep.subr.bf16.mxu0 0
        %3989 = vmatpush1.bf16.msra.mxu0 0
        %3990 = vmatprep.subr.bf16.mxu0 0
        %3991 = vmatpush1.bf16.msra.mxu0 0
        %3992 = vmatprep.subr.bf16.mxu0 0
        %3993 = vmatpush1.bf16.msra.mxu0 0
        %3994 = vmatprep.subr.bf16.mxu0 0
        %3995 = vmatpush1.bf16.msra.mxu0 0
        %3996 = vmatprep.subr.bf16.mxu0 0
        %3997 = vmatpush1.bf16.msra.mxu0 0
        %3998 = vmatprep.subr.bf16.mxu0 0
        %3999 = vmatpush1.bf16.msra.mxu0 0
        %4000 = vmatprep.subr.bf16.mxu0 0
        %4001 = vmatpush1.bf16.msra.mxu0 0
        %4002 = vmatprep.subr.bf16.mxu0 0
        %4003 = vmatpush1.bf16.msra.mxu0 0
        %4004 = vmatprep.subr.bf16.mxu0 0
        %4005 = vmatpush1.bf16.msra.mxu0 0
        %4006 = vmatprep.subr.bf16.mxu0 0
        %4007 = vmatpush1.bf16.msra.mxu0 0
        %4008 = vmatprep.mubr.bf16.mxu0 0
        %4009 = vmatmul.mubr.bf16.gmra.mrb[0].mxu0 %v3971
        %v4010 = vpop.f32.mrb[0].mxu0
        %v4011 = vadd.f32 0.0, %v4010
        %v4012 = vpop.f32.mrb[0].mxu0
        %v4013 = vpop.f32.mrb[0].mxu0
        %v4014 = vpop.f32.mrb[0].mxu0
        %4015 = vdwg.mxu0
        %v4016 = vpack.c.bf16 %v4011, %v4011
        %v4021 = vunpack.c.l.b16 %v3395
        %v4022 = vunpack.c.l.b16 %v3396
        %v4023 = vunpack.c.l.b16 %v3397
        %v4024 = vunpack.c.l.b16 %v3398
        %v4025 = vpack.c.b16 %v4022, %v4021
        %v4026 = vpack.c.b16 %v4024, %v4023
        %v4030 = vsel %vm1700, %v4016, 0
        %4032 = vmatprep.subr.bf16.mxu0 0
        %4033 = vmatpush1.bf16.msra.mxu0 %v4025
        %4034 = vmatprep.subr.bf16.mxu0 0
        %4035 = vmatpush1.bf16.msra.mxu0 %v4026
        %4036 = vmatprep.subr.bf16.mxu0 0
        %4037 = vmatpush1.bf16.msra.mxu0 0
        %4038 = vmatprep.subr.bf16.mxu0 0
        %4039 = vmatpush1.bf16.msra.mxu0 0
        %4040 = vmatprep.subr.bf16.mxu0 0
        %4041 = vmatpush1.bf16.msra.mxu0 0
        %4042 = vmatprep.subr.bf16.mxu0 0
        %4043 = vmatpush1.bf16.msra.mxu0 0
        %4044 = vmatprep.subr.bf16.mxu0 0
        %4045 = vmatpush1.bf16.msra.mxu0 0
        %4046 = vmatprep.subr.bf16.mxu0 0
        %4047 = vmatpush1.bf16.msra.mxu0 0
        %4048 = vmatprep.subr.bf16.mxu0 0
        %4049 = vmatpush1.bf16.msra.mxu0 0
        %4050 = vmatprep.subr.bf16.mxu0 0
        %4051 = vmatpush1.bf16.msra.mxu0 0
        %4052 = vmatprep.subr.bf16.mxu0 0
        %4053 = vmatpush1.bf16.msra.mxu0 0
        %4054 = vmatprep.subr.bf16.mxu0 0
        %4055 = vmatpush1.bf16.msra.mxu0 0
        %4056 = vmatprep.subr.bf16.mxu0 0
        %4057 = vmatpush1.bf16.msra.mxu0 0
        %4058 = vmatprep.subr.bf16.mxu0 0
        %4059 = vmatpush1.bf16.msra.mxu0 0
        %4060 = vmatprep.subr.bf16.mxu0 0
        %4061 = vmatpush1.bf16.msra.mxu0 0
        %4062 = vmatprep.subr.bf16.mxu0 0
        %4063 = vmatpush1.bf16.msra.mxu0 0
        %4064 = vmatprep.mubr.bf16.mxu0 0
        %4065 = vmatmul.mubr.bf16.gmra.mrb[0].mxu0 %v4030
        %v4066 = vpop.f32.mrb[0].mxu0
        %v4067 = vadd.f32 0.0, %v4066
        %v4068 = vpop.f32.mrb[0].mxu0
        %v4069 = vpop.f32.mrb[0].mxu0
        %v4070 = vpop.f32.mrb[0].mxu0
        %4071 = vdwg.mxu0
        %v4072 = vadd.f32 %v3903, %v4067
        %v4073 = vadd.f32 %v3091, %v4072
        %s4074 = scalar_lea.vmem [#allocation16], 1
        %v4075 = vld [vmem:[%s4074] sm:$0x1]
        %v4077 = vlaneseq
        %v4078 = vshrl.u32 %v4077, 7
        %v4079 = vsub.s32 0, %v4078
        %v4080 = vrot.slane %v4075, %v4079
        %v4082 = vadd.f32 %v4073, %v4080
        %s4083 = scalar_lea.vmem [#allocation17], 1
        %v4084 = vld [vmem:[%s4083] sm:$0x1]
        %s4085 = scalar_lea.vmem [#allocation19], 1
        %v4086 = vld [vmem:[%s4085] sm:$0x1]
        %4087 = vadd.xlane.f32.xlu0 %v4082
        %v4088 = vpop.xlane.xlu0 %4087
        %v4089 = vmul.f32 %v4088, %v1398
        %v4090 = vsub.f32 %v4082, %v4089
        %v4091 = vmul.f32 %v4090, %v4090
        %4092 = vadd.xlane.f32.xlu0 %v4091
        %v4093 = vpop.xlane.xlu0 %4092
        %v4094 = vmul.f32 %v4093, %v1398
        %v4095 = vadd.f32 %v4094, 1e-05
        %v4096 = vrsqrt.pop %v4095
        %v4097 = vmul.f32 %v4090, %v4096
        %v4099 = vlaneseq
        %v4100 = vshrl.u32 %v4099, 7
        %v4101 = vsub.s32 0, %v4100
        %v4102 = vrot.slane %v4084, %v4101
        %v4104 = vmul.f32 %v4097, %v4102
        %v4106 = vlaneseq
        %v4107 = vshrl.u32 %v4106, 7
        %v4108 = vsub.s32 0, %v4107
        %v4109 = vrot.slane %v4086, %v4108
        %v4111 = vadd.f32 %v4104, %v4109
        %s4112 = scalar_lea.vmem %s19, 256
        %v4113 = vld [vmem:[%s4112] sm:$0xff]
        %v4114 = vld [vmem:[%s4112 + $0x8] sm:$0xff]
        %v4115 = vld [vmem:[%s4112 + $0x10] sm:$0xff]
        %v4116 = vld [vmem:[%s4112 + $0x18] sm:$0xff]
        %v4117 = vld [vmem:[%s4112 + $0x20] sm:$0xff]
        %v4118 = vld [vmem:[%s4112 + $0x28] sm:$0xff]
        %v4119 = vld [vmem:[%s4112 + $0x30] sm:$0xff]
        %v4120 = vld [vmem:[%s4112 + $0x38] sm:$0xff]
        %v4121 = vld [vmem:[%s4112 + $0x40] sm:$0xff]
        %v4122 = vld [vmem:[%s4112 + $0x48] sm:$0xff]
        %v4123 = vld [vmem:[%s4112 + $0x50] sm:$0xff]
        %v4124 = vld [vmem:[%s4112 + $0x58] sm:$0xff]
        %v4125 = vld [vmem:[%s4112 + $0x60] sm:$0xff]
        %v4126 = vld [vmem:[%s4112 + $0x68] sm:$0xff]
        %v4127 = vld [vmem:[%s4112 + $0x70] sm:$0xff]
        %v4128 = vld [vmem:[%s4112 + $0x78] sm:$0xff]
        %v4129 = vld [vmem:[%s4112 + $0x80] sm:$0xff]
        %v4130 = vld [vmem:[%s4112 + $0x88] sm:$0xff]
        %v4131 = vld [vmem:[%s4112 + $0x90] sm:$0xff]
        %v4132 = vld [vmem:[%s4112 + $0x98] sm:$0xff]
        %v4133 = vld [vmem:[%s4112 + $0xa0] sm:$0xff]
        %v4134 = vld [vmem:[%s4112 + $0xa8] sm:$0xff]
        %v4135 = vld [vmem:[%s4112 + $0xb0] sm:$0xff]
        %v4136 = vld [vmem:[%s4112 + $0xb8] sm:$0xff]
        %v4137 = vld [vmem:[%s4112 + $0xc0] sm:$0xff]
        %v4138 = vld [vmem:[%s4112 + $0xc8] sm:$0xff]
        %v4139 = vld [vmem:[%s4112 + $0xd0] sm:$0xff]
        %v4140 = vld [vmem:[%s4112 + $0xd8] sm:$0xff]
        %v4141 = vld [vmem:[%s4112 + $0xe0] sm:$0xff]
        %v4142 = vld [vmem:[%s4112 + $0xe8] sm:$0xff]
        %v4143 = vld [vmem:[%s4112 + $0xf0] sm:$0xff]
        %v4144 = vld [vmem:[%s4112 + $0xf8] sm:$0xff]
        %v4145 = vpack.c.bf16 %v4111, %v4111
        %s4146 = scalar_lea.vmem [#allocation20], 4
        %v4147 = vld [vmem:[%s4146] sm:$0xf]
        %v4149 = vlaneseq
        %v4150 = vshrl.u32 %v4149, 7
        %v4151 = vsub.s32 0, %v4150
        %v4152 = vrot.slane %v4147, %v4151
        %v4153 = vlaneseq
        %v4154 = vshrl.u32 %v4153, 7
        %v4155 = vsub.s32 1, %v4154
        %v4156 = vrot.slane %v4147, %v4155
        %v4157 = vlaneseq
        %v4158 = vshrl.u32 %v4157, 7
        %v4159 = vsub.s32 2, %v4158
        %v4160 = vrot.slane %v4147, %v4159
        %v4161 = vlaneseq
        %v4162 = vshrl.u32 %v4161, 7
        %v4163 = vsub.s32 3, %v4162
        %v4164 = vrot.slane %v4147, %v4163
        %v4201 = vunpack.c.l.b16 %v4113
        %v4202 = vunpack.c.h.b16 %v4113
        %v4203 = vunpack.c.l.b16 %v4114
        %v4204 = vunpack.c.h.b16 %v4114
        %v4205 = vunpack.c.l.b16 %v4115
        %v4206 = vunpack.c.h.b16 %v4115
        %v4207 = vunpack.c.l.b16 %v4116
        %v4208 = vunpack.c.h.b16 %v4116
        %v4209 = vunpack.c.l.b16 %v4117
        %v4210 = vunpack.c.h.b16 %v4117
        %v4211 = vunpack.c.l.b16 %v4118
        %v4212 = vunpack.c.h.b16 %v4118
        %v4213 = vunpack.c.l.b16 %v4119
        %v4214 = vunpack.c.h.b16 %v4119
        %v4215 = vunpack.c.l.b16 %v4120
        %v4216 = vunpack.c.h.b16 %v4120
        %v4217 = vunpack.c.l.b16 %v4121
        %v4218 = vunpack.c.h.b16 %v4121
        %v4219 = vunpack.c.l.b16 %v4122
        %v4220 = vunpack.c.h.b16 %v4122
        %v4221 = vunpack.c.l.b16 %v4123
        %v4222 = vunpack.c.h.b16 %v4123
        %v4223 = vunpack.c.l.b16 %v4124
        %v4224 = vunpack.c.h.b16 %v4124
        %v4225 = vunpack.c.l.b16 %v4125
        %v4226 = vunpack.c.h.b16 %v4125
        %v4227 = vunpack.c.l.b16 %v4126
        %v4228 = vunpack.c.h.b16 %v4126
        %v4229 = vunpack.c.l.b16 %v4127
        %v4230 = vunpack.c.h.b16 %v4127
        %v4231 = vunpack.c.l.b16 %v4128
        %v4232 = vunpack.c.h.b16 %v4128
        %v4233 = vunpack.c.l.b16 %v4129
        %v4234 = vunpack.c.h.b16 %v4129
        %v4235 = vunpack.c.l.b16 %v4130
        %v4236 = vunpack.c.h.b16 %v4130
        %v4237 = vunpack.c.l.b16 %v4131
        %v4238 = vunpack.c.h.b16 %v4131
        %v4239 = vunpack.c.l.b16 %v4132
        %v4240 = vunpack.c.h.b16 %v4132
        %v4241 = vunpack.c.l.b16 %v4133
        %v4242 = vunpack.c.h.b16 %v4133
        %v4243 = vunpack.c.l.b16 %v4134
        %v4244 = vunpack.c.h.b16 %v4134
        %v4245 = vunpack.c.l.b16 %v4135
        %v4246 = vunpack.c.h.b16 %v4135
        %v4247 = vunpack.c.l.b16 %v4136
        %v4248 = vunpack.c.h.b16 %v4136
        %v4249 = vunpack.c.l.b16 %v4137
        %v4250 = vunpack.c.h.b16 %v4137
        %v4251 = vunpack.c.l.b16 %v4138
        %v4252 = vunpack.c.h.b16 %v4138
        %v4253 = vunpack.c.l.b16 %v4139
        %v4254 = vunpack.c.h.b16 %v4139
        %v4255 = vunpack.c.l.b16 %v4140
        %v4256 = vunpack.c.h.b16 %v4140
        %v4257 = vunpack.c.l.b16 %v4141
        %v4258 = vunpack.c.h.b16 %v4141
        %v4259 = vunpack.c.l.b16 %v4142
        %v4260 = vunpack.c.h.b16 %v4142
        %v4261 = vunpack.c.l.b16 %v4143
        %v4262 = vunpack.c.h.b16 %v4143
        %v4263 = vunpack.c.l.b16 %v4144
        %v4264 = vunpack.c.h.b16 %v4144
        %v4265 = vpack.c.b16 %v4205, %v4201
        %v4266 = vpack.c.b16 %v4206, %v4202
        %v4267 = vpack.c.b16 %v4207, %v4203
        %v4268 = vpack.c.b16 %v4208, %v4204
        %v4269 = vpack.c.b16 %v4213, %v4209
        %v4270 = vpack.c.b16 %v4214, %v4210
        %v4271 = vpack.c.b16 %v4215, %v4211
        %v4272 = vpack.c.b16 %v4216, %v4212
        %v4273 = vpack.c.b16 %v4221, %v4217
        %v4274 = vpack.c.b16 %v4222, %v4218
        %v4275 = vpack.c.b16 %v4223, %v4219
        %v4276 = vpack.c.b16 %v4224, %v4220
        %v4277 = vpack.c.b16 %v4229, %v4225
        %v4278 = vpack.c.b16 %v4230, %v4226
        %v4279 = vpack.c.b16 %v4231, %v4227
        %v4280 = vpack.c.b16 %v4232, %v4228
        %v4281 = vpack.c.b16 %v4237, %v4233
        %v4282 = vpack.c.b16 %v4238, %v4234
        %v4283 = vpack.c.b16 %v4239, %v4235
        %v4284 = vpack.c.b16 %v4240, %v4236
        %v4285 = vpack.c.b16 %v4245, %v4241
        %v4286 = vpack.c.b16 %v4246, %v4242
        %v4287 = vpack.c.b16 %v4247, %v4243
        %v4288 = vpack.c.b16 %v4248, %v4244
        %v4289 = vpack.c.b16 %v4253, %v4249
        %v4290 = vpack.c.b16 %v4254, %v4250
        %v4291 = vpack.c.b16 %v4255, %v4251
        %v4292 = vpack.c.b16 %v4256, %v4252
        %v4293 = vpack.c.b16 %v4261, %v4257
        %v4294 = vpack.c.b16 %v4262, %v4258
        %v4295 = vpack.c.b16 %v4263, %v4259
        %v4296 = vpack.c.b16 %v4264, %v4260
        %4329 = vmatprep.subr.bf16.mxu0 %v4266
        %4330 = vmatpush1.bf16.msra.mxu0 %v4265
        %4331 = vmatprep.subr.bf16.mxu0 %v4270
        %4332 = vmatpush1.bf16.msra.mxu0 %v4269
        %4333 = vmatprep.subr.bf16.mxu0 %v4274
        %4334 = vmatpush1.bf16.msra.mxu0 %v4273
        %4335 = vmatprep.subr.bf16.mxu0 %v4278
        %4336 = vmatpush1.bf16.msra.mxu0 %v4277
        %4337 = vmatprep.subr.bf16.mxu0 %v4282
        %4338 = vmatpush1.bf16.msra.mxu0 %v4281
        %4339 = vmatprep.subr.bf16.mxu0 %v4286
        %4340 = vmatpush1.bf16.msra.mxu0 %v4285
        %4341 = vmatprep.subr.bf16.mxu0 %v4290
        %4342 = vmatpush1.bf16.msra.mxu0 %v4289
        %4343 = vmatprep.subr.bf16.mxu0 %v4294
        %4344 = vmatpush1.bf16.msra.mxu0 %v4293
        %4345 = vmatprep.subr.bf16.mxu0 0
        %4346 = vmatpush1.bf16.msra.mxu0 0
        %4347 = vmatprep.subr.bf16.mxu0 0
        %4348 = vmatpush1.bf16.msra.mxu0 0
        %4349 = vmatprep.subr.bf16.mxu0 0
        %4350 = vmatpush1.bf16.msra.mxu0 0
        %4351 = vmatprep.subr.bf16.mxu0 0
        %4352 = vmatpush1.bf16.msra.mxu0 0
        %4353 = vmatprep.subr.bf16.mxu0 0
        %4354 = vmatpush1.bf16.msra.mxu0 0
        %4355 = vmatprep.subr.bf16.mxu0 0
        %4356 = vmatpush1.bf16.msra.mxu0 0
        %4357 = vmatprep.subr.bf16.mxu0 0
        %4358 = vmatpush1.bf16.msra.mxu0 0
        %4359 = vmatprep.subr.bf16.mxu0 0
        %4360 = vmatpush1.bf16.msra.mxu0 0
        %4361 = vmatprep.mubr.bf16.mxu0 0
        %4362 = vmatmul.mubr.bf16.gmra.mrb[0].mxu0 %v4145
        %v4363 = vpop.f32.mrb[0].mxu0
        %v4364 = vadd.f32 %v4152, %v4363
        %v4365 = vpop.f32.mrb[0].mxu0
        %v4366 = vadd.f32 %v4156, %v4365
        %v4367 = vpop.f32.mrb[0].mxu0
        %v4368 = vpop.f32.mrb[0].mxu0
        %4369 = vdwg.mxu0
        %4370 = vmatprep.subr.bf16.mxu0 %v4268
        %4371 = vmatpush1.bf16.msra.mxu0 %v4267
        %4372 = vmatprep.subr.bf16.mxu0 %v4272
        %4373 = vmatpush1.bf16.msra.mxu0 %v4271
        %4374 = vmatprep.subr.bf16.mxu0 %v4276
        %4375 = vmatpush1.bf16.msra.mxu0 %v4275
        %4376 = vmatprep.subr.bf16.mxu0 %v4280
        %4377 = vmatpush1.bf16.msra.mxu0 %v4279
        %4378 = vmatprep.subr.bf16.mxu0 %v4284
        %4379 = vmatpush1.bf16.msra.mxu0 %v4283
        %4380 = vmatprep.subr.bf16.mxu0 %v4288
        %4381 = vmatpush1.bf16.msra.mxu0 %v4287
        %4382 = vmatprep.subr.bf16.mxu0 %v4292
        %4383 = vmatpush1.bf16.msra.mxu0 %v4291
        %4384 = vmatprep.subr.bf16.mxu0 %v4296
        %4385 = vmatpush1.bf16.msra.mxu0 %v4295
        %4386 = vmatprep.subr.bf16.mxu0 0
        %4387 = vmatpush1.bf16.msra.mxu0 0
        %4388 = vmatprep.subr.bf16.mxu0 0
        %4389 = vmatpush1.bf16.msra.mxu0 0
        %4390 = vmatprep.subr.bf16.mxu0 0
        %4391 = vmatpush1.bf16.msra.mxu0 0
        %4392 = vmatprep.subr.bf16.mxu0 0
        %4393 = vmatpush1.bf16.msra.mxu0 0
        %4394 = vmatprep.subr.bf16.mxu0 0
        %4395 = vmatpush1.bf16.msra.mxu0 0
        %4396 = vmatprep.subr.bf16.mxu0 0
        %4397 = vmatpush1.bf16.msra.mxu0 0
        %4398 = vmatprep.subr.bf16.mxu0 0
        %4399 = vmatpush1.bf16.msra.mxu0 0
        %4400 = vmatprep.subr.bf16.mxu0 0
        %4401 = vmatpush1.bf16.msra.mxu0 0
        %4402 = vmatprep.mubr.bf16.mxu0 0
        %4403 = vmatmul.mubr.bf16.gmra.mrb[0].mxu0 %v4145
        %v4404 = vpop.f32.mrb[0].mxu0
        %v4405 = vadd.f32 %v4160, %v4404
        %v4406 = vpop.f32.mrb[0].mxu0
        %v4407 = vadd.f32 %v4164, %v4406
        %v4408 = vpop.f32.mrb[0].mxu0
        %v4409 = vpop.f32.mrb[0].mxu0
        %4410 = vdwg.mxu0
        %v4411 = vmul.f32 %v4364, %v4364
        %v4412 = vmul.f32 %v4366, %v4366
        %v4413 = vmul.f32 %v4405, %v4405
        %v4414 = vmul.f32 %v4407, %v4407
        %v4415 = vmul.f32 %v4364, %v4411
        %v4416 = vmul.f32 %v4366, %v4412
        %v4417 = vmul.f32 %v4405, %v4413
        %v4418 = vmul.f32 %v4407, %v4414
        %v4419 = vmul.f32 %v4415, 0.044715
        %v4420 = vmul.f32 %v4416, 0.044715
        %v4421 = vmul.f32 %v4417, 0.044715
        %v4422 = vmul.f32 %v4418, 0.044715
        %v4423 = vadd.f32 %v4364, %v4419
        %v4424 = vadd.f32 %v4366, %v4420
        %v4425 = vadd.f32 %v4405, %v4421
        %v4426 = vadd.f32 %v4407, %v4422
        %v4427 = vmul.f32 %v4423, 0.7978846
        %v4428 = vmul.f32 %v4424, 0.7978846
        %v4429 = vmul.f32 %v4425, 0.7978846
        %v4430 = vmul.f32 %v4426, 0.7978846
        %v4431 = vtanh.pop %v4427
        %v4432 = vtanh.pop %v4428
        %v4433 = vtanh.pop %v4429
        %v4434 = vtanh.pop %v4430
        %v4435 = vadd.f32 %v4431, 1.0
        %v4436 = vadd.f32 %v4432, 1.0
        %v4437 = vadd.f32 %v4433, 1.0
        %v4438 = vadd.f32 %v4434, 1.0
        %v4439 = vmul.f32 %v4435, 0.5
        %v4440 = vmul.f32 %v4436, 0.5
        %v4441 = vmul.f32 %v4437, 0.5
        %v4442 = vmul.f32 %v4438, 0.5
        %v4443 = vmul.f32 %v4364, %v4439
        %v4444 = vmul.f32 %v4366, %v4440
        %v4445 = vmul.f32 %v4405, %v4441
        %v4446 = vmul.f32 %v4407, %v4442
        %s4447 = scalar_lea.vmem [#allocation22], 256
        %v4448 = vld [vmem:[%s4447] sm:$0xf]
        %v4449 = vld [vmem:[%s4447 + $0x4] sm:$0xf]
        %v4450 = vld [vmem:[%s4447 + $0x8] sm:$0xf]
        %v4451 = vld [vmem:[%s4447 + $0xc] sm:$0xf]
        %v4452 = vld [vmem:[%s4447 + $0x10] sm:$0xf]
        %v4453 = vld [vmem:[%s4447 + $0x14] sm:$0xf]
        %v4454 = vld [vmem:[%s4447 + $0x18] sm:$0xf]
        %v4455 = vld [vmem:[%s4447 + $0x1c] sm:$0xf]
        %v4456 = vld [vmem:[%s4447 + $0x20] sm:$0xf]
        %v4457 = vld [vmem:[%s4447 + $0x24] sm:$0xf]
        %v4458 = vld [vmem:[%s4447 + $0x28] sm:$0xf]
        %v4459 = vld [vmem:[%s4447 + $0x2c] sm:$0xf]
        %v4460 = vld [vmem:[%s4447 + $0x30] sm:$0xf]
        %v4461 = vld [vmem:[%s4447 + $0x34] sm:$0xf]
        %v4462 = vld [vmem:[%s4447 + $0x38] sm:$0xf]
        %v4463 = vld [vmem:[%s4447 + $0x3c] sm:$0xf]
        %v4464 = vld [vmem:[%s4447 + $0x40] sm:$0xf]
        %v4465 = vld [vmem:[%s4447 + $0x44] sm:$0xf]
        %v4466 = vld [vmem:[%s4447 + $0x48] sm:$0xf]
        %v4467 = vld [vmem:[%s4447 + $0x4c] sm:$0xf]
        %v4468 = vld [vmem:[%s4447 + $0x50] sm:$0xf]
        %v4469 = vld [vmem:[%s4447 + $0x54] sm:$0xf]
        %v4470 = vld [vmem:[%s4447 + $0x58] sm:$0xf]
        %v4471 = vld [vmem:[%s4447 + $0x5c] sm:$0xf]
        %v4472 = vld [vmem:[%s4447 + $0x60] sm:$0xf]
        %v4473 = vld [vmem:[%s4447 + $0x64] sm:$0xf]
        %v4474 = vld [vmem:[%s4447 + $0x68] sm:$0xf]
        %v4475 = vld [vmem:[%s4447 + $0x6c] sm:$0xf]
        %v4476 = vld [vmem:[%s4447 + $0x70] sm:$0xf]
        %v4477 = vld [vmem:[%s4447 + $0x74] sm:$0xf]
        %v4478 = vld [vmem:[%s4447 + $0x78] sm:$0xf]
        %v4479 = vld [vmem:[%s4447 + $0x7c] sm:$0xf]
        %v4480 = vld [vmem:[%s4447 + $0x80] sm:$0xf]
        %v4481 = vld [vmem:[%s4447 + $0x84] sm:$0xf]
        %v4482 = vld [vmem:[%s4447 + $0x88] sm:$0xf]
        %v4483 = vld [vmem:[%s4447 + $0x8c] sm:$0xf]
        %v4484 = vld [vmem:[%s4447 + $0x90] sm:$0xf]
        %v4485 = vld [vmem:[%s4447 + $0x94] sm:$0xf]
        %v4486 = vld [vmem:[%s4447 + $0x98] sm:$0xf]
        %v4487 = vld [vmem:[%s4447 + $0x9c] sm:$0xf]
        %v4488 = vld [vmem:[%s4447 + $0xa0] sm:$0xf]
        %v4489 = vld [vmem:[%s4447 + $0xa4] sm:$0xf]
        %v4490 = vld [vmem:[%s4447 + $0xa8] sm:$0xf]
        %v4491 = vld [vmem:[%s4447 + $0xac] sm:$0xf]
        %v4492 = vld [vmem:[%s4447 + $0xb0] sm:$0xf]
        %v4493 = vld [vmem:[%s4447 + $0xb4] sm:$0xf]
        %v4494 = vld [vmem:[%s4447 + $0xb8] sm:$0xf]
        %v4495 = vld [vmem:[%s4447 + $0xbc] sm:$0xf]
        %v4496 = vld [vmem:[%s4447 + $0xc0] sm:$0xf]
        %v4497 = vld [vmem:[%s4447 + $0xc4] sm:$0xf]
        %v4498 = vld [vmem:[%s4447 + $0xc8] sm:$0xf]
        %v4499 = vld [vmem:[%s4447 + $0xcc] sm:$0xf]
        %v4500 = vld [vmem:[%s4447 + $0xd0] sm:$0xf]
        %v4501 = vld [vmem:[%s4447 + $0xd4] sm:$0xf]
        %v4502 = vld [vmem:[%s4447 + $0xd8] sm:$0xf]
        %v4503 = vld [vmem:[%s4447 + $0xdc] sm:$0xf]
        %v4504 = vld [vmem:[%s4447 + $0xe0] sm:$0xf]
        %v4505 = vld [vmem:[%s4447 + $0xe4] sm:$0xf]
        %v4506 = vld [vmem:[%s4447 + $0xe8] sm:$0xf]
        %v4507 = vld [vmem:[%s4447 + $0xec] sm:$0xf]
        %v4508 = vld [vmem:[%s4447 + $0xf0] sm:$0xf]
        %v4509 = vld [vmem:[%s4447 + $0xf4] sm:$0xf]
        %v4510 = vld [vmem:[%s4447 + $0xf8] sm:$0xf]
        %v4511 = vld [vmem:[%s4447 + $0xfc] sm:$0xf]
        %v4512 = vpack.c.bf16 %v4443, %v4443
        %v4513 = vpack.c.bf16 %v4444, %v4444
        %v4514 = vpack.c.bf16 %v4445, %v4445
        %v4515 = vpack.c.bf16 %v4446, %v4446
        %v4580 = vunpack.c.l.b16 %v4448
        %v4581 = vunpack.c.l.b16 %v4449
        %v4582 = vunpack.c.l.b16 %v4450
        %v4583 = vunpack.c.l.b16 %v4451
        %v4584 = vunpack.c.l.b16 %v4452
        %v4585 = vunpack.c.l.b16 %v4453
        %v4586 = vunpack.c.l.b16 %v4454
        %v4587 = vunpack.c.l.b16 %v4455
        %v4588 = vunpack.c.l.b16 %v4456
        %v4589 = vunpack.c.l.b16 %v4457
        %v4590 = vunpack.c.l.b16 %v4458
        %v4591 = vunpack.c.l.b16 %v4459
        %v4592 = vunpack.c.l.b16 %v4460
        %v4593 = vunpack.c.l.b16 %v4461
        %v4594 = vunpack.c.l.b16 %v4462
        %v4595 = vunpack.c.l.b16 %v4463
        %v4596 = vunpack.c.l.b16 %v4464
        %v4597 = vunpack.c.l.b16 %v4465
        %v4598 = vunpack.c.l.b16 %v4466
        %v4599 = vunpack.c.l.b16 %v4467
        %v4600 = vunpack.c.l.b16 %v4468
        %v4601 = vunpack.c.l.b16 %v4469
        %v4602 = vunpack.c.l.b16 %v4470
        %v4603 = vunpack.c.l.b16 %v4471
        %v4604 = vunpack.c.l.b16 %v4472
        %v4605 = vunpack.c.l.b16 %v4473
        %v4606 = vunpack.c.l.b16 %v4474
        %v4607 = vunpack.c.l.b16 %v4475
        %v4608 = vunpack.c.l.b16 %v4476
        %v4609 = vunpack.c.l.b16 %v4477
        %v4610 = vunpack.c.l.b16 %v4478
        %v4611 = vunpack.c.l.b16 %v4479
        %v4612 = vunpack.c.l.b16 %v4480
        %v4613 = vunpack.c.l.b16 %v4481
        %v4614 = vunpack.c.l.b16 %v4482
        %v4615 = vunpack.c.l.b16 %v4483
        %v4616 = vunpack.c.l.b16 %v4484
        %v4617 = vunpack.c.l.b16 %v4485
        %v4618 = vunpack.c.l.b16 %v4486
        %v4619 = vunpack.c.l.b16 %v4487
        %v4620 = vunpack.c.l.b16 %v4488
        %v4621 = vunpack.c.l.b16 %v4489
        %v4622 = vunpack.c.l.b16 %v4490
        %v4623 = vunpack.c.l.b16 %v4491
        %v4624 = vunpack.c.l.b16 %v4492
        %v4625 = vunpack.c.l.b16 %v4493
        %v4626 = vunpack.c.l.b16 %v4494
        %v4627 = vunpack.c.l.b16 %v4495
        %v4628 = vunpack.c.l.b16 %v4496
        %v4629 = vunpack.c.l.b16 %v4497
        %v4630 = vunpack.c.l.b16 %v4498
        %v4631 = vunpack.c.l.b16 %v4499
        %v4632 = vunpack.c.l.b16 %v4500
        %v4633 = vunpack.c.l.b16 %v4501
        %v4634 = vunpack.c.l.b16 %v4502
        %v4635 = vunpack.c.l.b16 %v4503
        %v4636 = vunpack.c.l.b16 %v4504
        %v4637 = vunpack.c.l.b16 %v4505
        %v4638 = vunpack.c.l.b16 %v4506
        %v4639 = vunpack.c.l.b16 %v4507
        %v4640 = vunpack.c.l.b16 %v4508
        %v4641 = vunpack.c.l.b16 %v4509
        %v4642 = vunpack.c.l.b16 %v4510
        %v4643 = vunpack.c.l.b16 %v4511
        %v4644 = vpack.c.b16 %v4581, %v4580
        %v4645 = vpack.c.b16 %v4583, %v4582
        %v4646 = vpack.c.b16 %v4585, %v4584
        %v4647 = vpack.c.b16 %v4587, %v4586
        %v4648 = vpack.c.b16 %v4589, %v4588
        %v4649 = vpack.c.b16 %v4591, %v4590
        %v4650 = vpack.c.b16 %v4593, %v4592
        %v4651 = vpack.c.b16 %v4595, %v4594
        %v4652 = vpack.c.b16 %v4597, %v4596
        %v4653 = vpack.c.b16 %v4599, %v4598
        %v4654 = vpack.c.b16 %v4601, %v4600
        %v4655 = vpack.c.b16 %v4603, %v4602
        %v4656 = vpack.c.b16 %v4605, %v4604
        %v4657 = vpack.c.b16 %v4607, %v4606
        %v4658 = vpack.c.b16 %v4609, %v4608
        %v4659 = vpack.c.b16 %v4611, %v4610
        %v4660 = vpack.c.b16 %v4613, %v4612
        %v4661 = vpack.c.b16 %v4615, %v4614
        %v4662 = vpack.c.b16 %v4617, %v4616
        %v4663 = vpack.c.b16 %v4619, %v4618
        %v4664 = vpack.c.b16 %v4621, %v4620
        %v4665 = vpack.c.b16 %v4623, %v4622
        %v4666 = vpack.c.b16 %v4625, %v4624
        %v4667 = vpack.c.b16 %v4627, %v4626
        %v4668 = vpack.c.b16 %v4629, %v4628
        %v4669 = vpack.c.b16 %v4631, %v4630
        %v4670 = vpack.c.b16 %v4633, %v4632
        %v4671 = vpack.c.b16 %v4635, %v4634
        %v4672 = vpack.c.b16 %v4637, %v4636
        %v4673 = vpack.c.b16 %v4639, %v4638
        %v4674 = vpack.c.b16 %v4641, %v4640
        %v4675 = vpack.c.b16 %v4643, %v4642
        %4708 = vmatprep.subr.bf16.mxu0 0
        %4709 = vmatpush1.bf16.msra.mxu0 %v4644
        %4710 = vmatprep.subr.bf16.mxu0 0
        %4711 = vmatpush1.bf16.msra.mxu0 %v4645
        %4712 = vmatprep.subr.bf16.mxu0 0
        %4713 = vmatpush1.bf16.msra.mxu0 %v4646
        %4714 = vmatprep.subr.bf16.mxu0 0
        %4715 = vmatpush1.bf16.msra.mxu0 %v4647
        %4716 = vmatprep.subr.bf16.mxu0 0
        %4717 = vmatpush1.bf16.msra.mxu0 %v4648
        %4718 = vmatprep.subr.bf16.mxu0 0
        %4719 = vmatpush1.bf16.msra.mxu0 %v4649
        %4720 = vmatprep.subr.bf16.mxu0 0
        %4721 = vmatpush1.bf16.msra.mxu0 %v4650
        %4722 = vmatprep.subr.bf16.mxu0 0
        %4723 = vmatpush1.bf16.msra.mxu0 %v4651
        %4724 = vmatprep.subr.bf16.mxu0 0
        %4725 = vmatpush1.bf16.msra.mxu0 %v4652
        %4726 = vmatprep.subr.bf16.mxu0 0
        %4727 = vmatpush1.bf16.msra.mxu0 %v4653
        %4728 = vmatprep.subr.bf16.mxu0 0
        %4729 = vmatpush1.bf16.msra.mxu0 %v4654
        %4730 = vmatprep.subr.bf16.mxu0 0
        %4731 = vmatpush1.bf16.msra.mxu0 %v4655
        %4732 = vmatprep.subr.bf16.mxu0 0
        %4733 = vmatpush1.bf16.msra.mxu0 %v4656
        %4734 = vmatprep.subr.bf16.mxu0 0
        %4735 = vmatpush1.bf16.msra.mxu0 %v4657
        %4736 = vmatprep.subr.bf16.mxu0 0
        %4737 = vmatpush1.bf16.msra.mxu0 %v4658
        %4738 = vmatprep.subr.bf16.mxu0 0
        %4739 = vmatpush1.bf16.msra.mxu0 %v4659
        %4740 = vmatprep.mubr.bf16.mxu0 %v4513
        %4741 = vmatmul.mubr.bf16.gmra.mrb[0].mxu0 %v4512
        %v4742 = vpop.f32.mrb[0].mxu0
        %v4743 = vadd.f32 0.0, %v4742
        %v4744 = vpop.f32.mrb[0].mxu0
        %v4745 = vpop.f32.mrb[0].mxu0
        %v4746 = vpop.f32.mrb[0].mxu0
        %4747 = vdwg.mxu0
        %4748 = vmatprep.subr.bf16.mxu0 0
        %4749 = vmatpush1.bf16.msra.mxu0 %v4660
        %4750 = vmatprep.subr.bf16.mxu0 0
        %4751 = vmatpush1.bf16.msra.mxu0 %v4661
        %4752 = vmatprep.subr.bf16.mxu0 0
        %4753 = vmatpush1.bf16.msra.mxu0 %v4662
        %4754 = vmatprep.subr.bf16.mxu0 0
        %4755 = vmatpush1.bf16.msra.mxu0 %v4663
        %4756 = vmatprep.subr.bf16.mxu0 0
        %4757 = vmatpush1.bf16.msra.mxu0 %v4664
        %4758 = vmatprep.subr.bf16.mxu0 0
        %4759 = vmatpush1.bf16.msra.mxu0 %v4665
        %4760 = vmatprep.subr.bf16.mxu0 0
        %4761 = vmatpush1.bf16.msra.mxu0 %v4666
        %4762 = vmatprep.subr.bf16.mxu0 0
        %4763 = vmatpush1.bf16.msra.mxu0 %v4667
        %4764 = vmatprep.subr.bf16.mxu0 0
        %4765 = vmatpush1.bf16.msra.mxu0 %v4668
        %4766 = vmatprep.subr.bf16.mxu0 0
        %4767 = vmatpush1.bf16.msra.mxu0 %v4669
        %4768 = vmatprep.subr.bf16.mxu0 0
        %4769 = vmatpush1.bf16.msra.mxu0 %v4670
        %4770 = vmatprep.subr.bf16.mxu0 0
        %4771 = vmatpush1.bf16.msra.mxu0 %v4671
        %4772 = vmatprep.subr.bf16.mxu0 0
        %4773 = vmatpush1.bf16.msra.mxu0 %v4672
        %4774 = vmatprep.subr.bf16.mxu0 0
        %4775 = vmatpush1.bf16.msra.mxu0 %v4673
        %4776 = vmatprep.subr.bf16.mxu0 0
        %4777 = vmatpush1.bf16.msra.mxu0 %v4674
        %4778 = vmatprep.subr.bf16.mxu0 0
        %4779 = vmatpush1.bf16.msra.mxu0 %v4675
        %4780 = vmatprep.mubr.bf16.mxu0 %v4515
        %4781 = vmatmul.mubr.bf16.gmra.mrb[0].mxu0 %v4514
        %v4782 = vpop.f32.mrb[0].mxu0
        %v4783 = vadd.f32 %v4743, %v4782
        %v4784 = vpop.f32.mrb[0].mxu0
        %v4785 = vpop.f32.mrb[0].mxu0
        %v4786 = vpop.f32.mrb[0].mxu0
        %4787 = vdwg.mxu0
        %v4788 = vadd.f32 %v4082, %v4783
        %s4789 = scalar_lea.vmem [#allocation23], 1
        %v4790 = vld [vmem:[%s4789] sm:$0x1]
        %v4792 = vlaneseq
        %v4793 = vshrl.u32 %v4792, 7
        %v4794 = vsub.s32 0, %v4793
        %v4795 = vrot.slane %v4790, %v4794
        %v4797 = vadd.f32 %v4788, %v4795
        %v4798 = vld [vmem:[#allocation25] sm:$0x1]
        %v4799 = vld [vmem:[#allocation26] sm:$0x1]
        %4800 = vadd.xlane.f32.xlu0 %v4797
        %v4801 = vpop.xlane.xlu0 %4800
        %v4802 = vmul.f32 %v4801, %v1398
        %v4803 = vsub.f32 %v4797, %v4802
        %v4804 = vmul.f32 %v4803, %v4803
        %4805 = vadd.xlane.f32.xlu0 %v4804
        %v4806 = vpop.xlane.xlu0 %4805
        %v4807 = vmul.f32 %v4806, %v1398
        %v4808 = vadd.f32 %v4807, 1e-05
        %v4809 = vrsqrt.pop %v4808
        %v4810 = vmul.f32 %v4803, %v4809
        %v4812 = vlaneseq
        %v4813 = vshrl.u32 %v4812, 7
        %v4814 = vsub.s32 0, %v4813
        %v4815 = vrot.slane %v4798, %v4814
        %v4817 = vmul.f32 %v4810, %v4815
        %v4819 = vlaneseq
        %v4820 = vshrl.u32 %v4819, 7
        %v4821 = vsub.s32 0, %v4820
        %v4822 = vrot.slane %v4799, %v4821
        %v4824 = vadd.f32 %v4817, %v4822
        %v4825 = vld [vmem:[#allocation28] sm:$0xf]
        %v4826 = vld [vmem:[#allocation28 + $0x4] sm:$0xf]
        %v4827 = vld [vmem:[#allocation28 + $0x8] sm:$0xf]
        %v4828 = vld [vmem:[#allocation28 + $0xc] sm:$0xf]
        %v4829 = vld [vmem:[#allocation28 + $0x10] sm:$0xf]
        %v4830 = vld [vmem:[#allocation28 + $0x14] sm:$0xf]
        %v4831 = vld [vmem:[#allocation28 + $0x18] sm:$0xf]
        %v4832 = vld [vmem:[#allocation28 + $0x1c] sm:$0xf]
        %v4833 = vld [vmem:[#allocation28 + $0x20] sm:$0xf]
        %v4834 = vld [vmem:[#allocation28 + $0x24] sm:$0xf]
        %v4835 = vld [vmem:[#allocation28 + $0x28] sm:$0xf]
        %v4836 = vld [vmem:[#allocation28 + $0x2c] sm:$0xf]
        %v4837 = vld [vmem:[#allocation28 + $0x30] sm:$0xf]
        %v4838 = vld [vmem:[#allocation28 + $0x34] sm:$0xf]
        %v4839 = vld [vmem:[#allocation28 + $0x38] sm:$0xf]
        %v4840 = vld [vmem:[#allocation28 + $0x3c] sm:$0xf]
        %v4841 = vpack.c.bf16 %v4824, %v4824
        %v4842 = vld [vmem:[#allocation29] sm:$0x1]
        %v4844 = vlaneseq
        %v4845 = vshrl.u32 %v4844, 7
        %v4846 = vsub.s32 0, %v4845
        %v4847 = vrot.slane %v4842, %v4846
        %v4865 = vunpack.c.l.b16 %v4825
        %v4866 = vunpack.c.l.b16 %v4826
        %v4867 = vunpack.c.l.b16 %v4827
        %v4868 = vunpack.c.l.b16 %v4828
        %v4869 = vunpack.c.l.b16 %v4829
        %v4870 = vunpack.c.l.b16 %v4830
        %v4871 = vunpack.c.l.b16 %v4831
        %v4872 = vunpack.c.l.b16 %v4832
        %v4873 = vunpack.c.l.b16 %v4833
        %v4874 = vunpack.c.l.b16 %v4834
        %v4875 = vunpack.c.l.b16 %v4835
        %v4876 = vunpack.c.l.b16 %v4836
        %v4877 = vunpack.c.l.b16 %v4837
        %v4878 = vunpack.c.l.b16 %v4838
        %v4879 = vunpack.c.l.b16 %v4839
        %v4880 = vunpack.c.l.b16 %v4840
        %v4881 = vpack.c.b16 %v4866, %v4865
        %v4882 = vpack.c.b16 %v4868, %v4867
        %v4883 = vpack.c.b16 %v4870, %v4869
        %v4884 = vpack.c.b16 %v4872, %v4871
        %v4885 = vpack.c.b16 %v4874, %v4873
        %v4886 = vpack.c.b16 %v4876, %v4875
        %v4887 = vpack.c.b16 %v4878, %v4877
        %v4888 = vpack.c.b16 %v4880, %v4879
        %4897 = vmatprep.subr.bf16.mxu0 0
        %4898 = vmatpush1.bf16.msra.mxu0 %v4881
        %4899 = vmatprep.subr.bf16.mxu0 0
        %4900 = vmatpush1.bf16.msra.mxu0 %v4882
        %4901 = vmatprep.subr.bf16.mxu0 0
        %4902 = vmatpush1.bf16.msra.mxu0 %v4883
        %4903 = vmatprep.subr.bf16.mxu0 0
        %4904 = vmatpush1.bf16.msra.mxu0 %v4884
        %4905 = vmatprep.subr.bf16.mxu0 0
        %4906 = vmatpush1.bf16.msra.mxu0 %v4885
        %4907 = vmatprep.subr.bf16.mxu0 0
        %4908 = vmatpush1.bf16.msra.mxu0 %v4886
        %4909 = vmatprep.subr.bf16.mxu0 0
        %4910 = vmatpush1.bf16.msra.mxu0 %v4887
        %4911 = vmatprep.subr.bf16.mxu0 0
        %4912 = vmatpush1.bf16.msra.mxu0 %v4888
        %4913 = vmatprep.subr.bf16.mxu0 0
        %4914 = vmatpush1.bf16.msra.mxu0 0
        %4915 = vmatprep.subr.bf16.mxu0 0
        %4916 = vmatpush1.bf16.msra.mxu0 0
        %4917 = vmatprep.subr.bf16.mxu0 0
        %4918 = vmatpush1.bf16.msra.mxu0 0
        %4919 = vmatprep.subr.bf16.mxu0 0
        %4920 = vmatpush1.bf16.msra.mxu0 0
        %4921 = vmatprep.subr.bf16.mxu0 0
        %4922 = vmatpush1.bf16.msra.mxu0 0
        %4923 = vmatprep.subr.bf16.mxu0 0
        %4924 = vmatpush1.bf16.msra.mxu0 0
        %4925 = vmatprep.subr.bf16.mxu0 0
        %4926 = vmatpush1.bf16.msra.mxu0 0
        %4927 = vmatprep.subr.bf16.mxu0 0
        %4928 = vmatpush1.bf16.msra.mxu0 0
        %4929 = vmatprep.mubr.bf16.mxu0 0
        %4930 = vmatmul.mubr.bf16.gmra.mrb[0].mxu0 %v4841
        %v4931 = vpop.f32.mrb[0].mxu0
        %v4932 = vadd.f32 %v4847, %v4931
        %v4933 = vpop.f32.mrb[0].mxu0
        %v4934 = vpop.f32.mrb[0].mxu0
        %v4935 = vpop.f32.mrb[0].mxu0
        %4936 = vdwg.mxu0
        %4937 = vst [vmem:[%s1094] sm:$0xff] %v4932
        %s4938 = sand.u32 %s646, 1
        %s4939 = scalar_lea.sflag [#allocation4], %s4938
        %s4940 = sand.u32 %s646, 1
        %s4941 = smul.addr %s4940, 8
        %s4942 = scalar_lea.vmem [#allocation31], %s4941
        // Predicated region
        $region201: #{target_vqgan_transformer_forward.3} parent=127 // pred_check
          %p4943 = pneg %p656
        $region202: #{target_vqgan_transformer_forward.3} parent=127 // pred_check_branch
          %4945 = sbr.rel (%p4943) target = $region204
        $region203: #{target_vqgan_transformer_forward.3} parent=127 // pred_region
          %s4947 = ssub.s32 128, 128
          %4948 = vsyncadd %s4939, %s4947
          %s4949 = smul.addr %s51, 128
          %s4950 = scalar_lea.hbm %s27, %s4949
          %s4952 = sshll.u32 %s4942, 4
          %s4953 = int_to_ptr.vmem [resolvable:$true] %s4952
          %4955 = dma.vmem_to_hbm [thread:$0]  %s4953, 128, %s4950, %s4939
        $region204: #{target_vqgan_transformer_forward.3} parent=127 // pred_fallthru
          _
      $region128: #{target_vqgan_transformer_forward.3} parent=5 // pred_fallthru
        _
      %p4956 = scmp.le.s32.totalorder 2, %s46
      // Predicated region
      $region205: #{target_vqgan_transformer_forward.3} parent=5 // pred_check
        %p4957 = pneg %p4956
      $region206: #{target_vqgan_transformer_forward.3} parent=5 // pred_check_branch
        %4959 = sbr.rel (%p4957) target = $region208
      $region207: #{target_vqgan_transformer_forward.3} parent=5 // pred_region
        %s4960 = ssub.s32 %s46, 2
        // Predicated region
        $region209: #{target_vqgan_transformer_forward.3} parent=207 // pred_check
          %p4961 = pneg %p662
        $region210: #{target_vqgan_transformer_forward.3} parent=207 // pred_check_branch
          %4963 = sbr.rel (%p4961) target = $region212
        $region211: #{target_vqgan_transformer_forward.3} parent=207 // pred_region
          %s4964 = sand.u32 %s647, 1
          %s4965 = scalar_lea.sflag [#allocation4], %s4964
          %s4966 = sand.u32 %s647, 1
          %s4967 = smul.addr %s4966, 8
          %s4968 = scalar_lea.vmem [#allocation31], %s4967
          %4969 = dma.done %s4965, 128
        $region212: #{target_vqgan_transformer_forward.3} parent=207 // pred_fallthru
          _
      $region208: #{target_vqgan_transformer_forward.3} parent=5 // pred_fallthru
        _
    $region6: #{target_vqgan_transformer_forward.3} parent=1 // loop_footer
      %s50 = sadd.s32 1, %s46
    $region7: #{target_vqgan_transformer_forward.3} parent=1 // loop_footer_branch
      %45 = sbr.rel target = $region3
    $region8: #{target_vqgan_transformer_forward.3} parent=1 // loop_exit
      _
    %4970 = vsyncpa [#allocation3], 1
    %s4971 = scalar_lea.sflag [#allocation3], 1
    %4972 = vsyncpa %s4971, 1
    %4973 = vsyncpa [#allocation6], 1
    %4974 = vsyncpa [#allocation9], 1
    %4975 = vsyncpa [#allocation12], 1
    %4976 = vsyncpa [#allocation15], 1
    %4977 = vsyncpa [#allocation18], 1
    %4978 = vsyncpa [#allocation21], 1
    %4979 = vsyncpa [#allocation24], 1
    %4980 = vsyncpa [#allocation27], 1
    %4981 = vsyncpa [#allocation30], 1
    %4982 = vsyncpa [#allocation4], 1
    %s4983 = scalar_lea.sflag [#allocation4], 1
    %4984 = vsyncpa %s4983, 1

</llo_original>
